<compile_context>
chip_gen: v7x
topology: tpu7x:2x2x1
jax: 0.10.0
libtpu: 0.0.40
codegen_flags: <defaults>
</compile_context>

<pallas_src>
import jax
import jax.numpy as jnp
from jax.experimental import pallas as pl
from jax.experimental.pallas import tpu as pltpu

EPS = 1e-5
# MXU operand dtype (full rate on v6e/v7x, f32 accumulation) -- also the dtype
# of the padded-activation scratch and the im2col patch.
MXU_DTYPE = jnp.bfloat16
# Inter-pass activation storage dtype in HBM (y1, y2).
ACT_DTYPE = jnp.bfloat16


# ------------------------------ kernel helpers ------------------------------ #

def _row_tile(H, W, C):
    """Largest divisor of H whose per-row-tile working set stays ~<= 4 MiB."""
    per_row = W * (9 * C * 2 if C < 128 else C * 4)   # bf16 patch vs f32 acc
    budget = 4 * 1024 * 1024
    for tr in range(H, 0, -1):
        if H % tr == 0 and tr * per_row <= budget:
            return tr
    return 1


def _pad_into_scratch(pad_ref, h):
    """Write h = (H, W, C) into the interior of pad_ref = (H+2, W+2, C) bf16.

    Only the 1-wide halo is zeroed, then the interior is stored once (single
    f32->bf16 cast of the activation).  The halo is re-zeroed every grid step:
    persistent-scratch "init on program_id==0" is unsafe under megacore
    (each TensorCore owns a private scratch and only one core runs step 0).
    """
    H, W, C = h.shape
    zrow = jnp.zeros((1, W + 2, C), pad_ref.dtype)
    zcol = jnp.zeros((H + 2, 1, C), pad_ref.dtype)
    pad_ref[0:1, :, :] = zrow
    pad_ref[H + 1:H + 2, :, :] = zrow
    pad_ref[:, 0:1, :] = zcol
    pad_ref[:, W + 1:W + 2, :] = zcol
    pad_ref[1:1 + H, 1:1 + W, :] = h.astype(pad_ref.dtype)


def _conv3x3_write_and_stats(pad_ref, w_ref, y_ref, stats_ref, H, W, C):
    """3x3 SAME conv from the bf16 padded scratch.

    Row-tiled so only a (TR*W, 9C) bf16 patch (or a (TR*W, C) f32 accumulator
    for the 9-tap path) is live at a time.  Writes y_ref[0] = (H, W, C) in
    ACT_DTYPE and stats_ref[0] = (2, C) f32 per-image [sum, sumsq] computed
    from the f32 matmul output *before* the activation downcast.
    """
    TR = _row_tile(H, W, C)
    s = jnp.zeros((1, C), jnp.float32)
    ss = jnp.zeros((1, C), jnp.float32)
    for r0 in range(0, H, TR):                       # static, unrolled at trace
        if C >= 128:
            # 9 accumulated matmuls: no patch materialization, K=C fills MXU.
            yb = jnp.zeros((TR * W, C), jnp.float32)
            for k in range(9):
                dy, dx = divmod(k, 3)
                tap = pad_ref[r0 + dy:r0 + dy + TR, dx:dx + W, :].reshape(TR * W, C)
                yb = yb + jnp.dot(tap, w_ref[k * C:(k + 1) * C, :],
                                  preferred_element_type=jnp.float32)
        else:
            # Small C: fused K=9C matmul on a bf16 im2col patch.
            taps = [pad_ref[r0 + dy:r0 + dy + TR, dx:dx + W, :]
                    for dy in range(3) for dx in range(3)]
            patch = jnp.concatenate(taps, axis=-1).reshape(TR * W, 9 * C)
            yb = jnp.dot(patch, w_ref[...], preferred_element_type=jnp.float32)
        y_ref[0, r0:r0 + TR, :, :] = yb.reshape(TR, W, C).astype(y_ref.dtype)
        s = s + jnp.sum(yb, axis=0, keepdims=True)
        ss = ss + jnp.sum(yb * yb, axis=0, keepdims=True)
    stats_ref[0] = jnp.concatenate([s, ss], axis=0)   # (2, C) f32


# ------------------------------ kernel bodies ------------------------------ #

def _conv1_stats_kernel(x_ref, w_ref, y_ref, stats_ref, pad_ref):
    # x_ref: (1, H, W, C) f32 input image.  w_ref: (9C, C) bf16 im2col weight.
    _, H, W, C = x_ref.shape
    _pad_into_scratch(pad_ref, x_ref[0])
    _conv3x3_write_and_stats(pad_ref, w_ref, y_ref, stats_ref, H, W, C)


def _bn_relu_conv2_stats_kernel(y1_ref, w_ref, scale_ref, shift_ref,
                                y_ref, stats_ref, pad_ref):
    # BN1 as a per-channel affine (global scale/shift precomputed in the
    # wrapper) on the bf16 y1, then ReLU (f32 VPU math), then conv2.
    _, H, W, C = y1_ref.shape
    h = jnp.maximum(
        y1_ref[0].astype(jnp.float32) * scale_ref[0] + shift_ref[0], 0.0)
    _pad_into_scratch(pad_ref, h)
    _conv3x3_write_and_stats(pad_ref, w_ref, y_ref, stats_ref, H, W, C)


def _bn_residual_kernel(x_ref, y2_ref, scale_ref, shift_ref, o_ref):
    # out = x + BN2(conv2_out): lane-dense (TH, W*C) elementwise, f32 math.
    o_ref[0] = (x_ref[0]
                + y2_ref[0].astype(jnp.float32) * scale_ref[0]
                + shift_ref[0]).astype(o_ref.dtype)


# --------------------------------- wrapper --------------------------------- #

def _vmem_limit_bytes():
    """Generation-aware scoped-VMEM limit: ~3/4 of physical, capped at 96 MiB
    (=> ~96 MiB on v5e/v6e's 128 MiB, ~48 MiB on v7x's 64 MiB)."""
    try:
        cap = int(getattr(pltpu.get_tpu_info(), "vmem_capacity_bytes",
                          64 * 1024 * 1024))
    except Exception:
        cap = 64 * 1024 * 1024
    return int(min(96 * 1024 * 1024, cap * 3 // 4))


def _bn_scale_shift(stats, gamma, beta, count):
    """Fold per-image [sum, sumsq] partials into training-mode BN scale/shift."""
    total = jnp.sum(stats, axis=0)                      # (2, C)
    mean = total[0] / count
    var = jnp.maximum(total[1] / count - mean * mean, 0.0)
    scale = gamma * jax.lax.rsqrt(var + EPS)
    shift = beta - mean * scale
    C = gamma.shape[0]
    return (scale.reshape(1, C).astype(jnp.float32),
            shift.reshape(1, C).astype(jnp.float32))


def residual_block(x_nchw, params):
    """x_nchw: (N, C, H, W) float32 -> (N, C, H, W) float32."""
    w1, b1, g1, be1, w2, b2, g2, be2 = params
    # Conv biases are exactly cancelled by the training-mode BN mean
    # subtraction that immediately follows each conv -> drop them.
    # (Only valid in training mode; eval-mode running stats would not cancel.)
    del b1, b2
    N, C, H, W = x_nchw.shape
    M = N * H * W

    # NCHW -> NHWC once at the boundary (channels on the lane axis).
    x = jnp.transpose(x_nchw, (0, 2, 3, 1)).astype(jnp.float32)

    # PyTorch (Cout, Cin, 3, 3) -> im2col (9*Cin, Cout) bf16 MXU operand.
    def im2col_weight(w):
        return jnp.transpose(w, (2, 3, 1, 0)).reshape(9 * C, C).astype(MXU_DTYPE)

    w1k, w2k = im2col_weight(w1), im2col_weight(w2)

    img_spec = pl.BlockSpec((1, H, W, C), lambda n: (n, 0, 0, 0))
    wgt_spec = pl.BlockSpec((9 * C, C), lambda n: (0, 0))
    vec_spec = pl.BlockSpec((1, C), lambda n: (0, 0))
    stats_spec = pl.BlockSpec((1, 2, C), lambda n: (n, 0, 0))

    vmem_limit = _vmem_limit_bytes()
    cparams = pltpu.CompilerParams(
        dimension_semantics=("parallel",),      # batch grid split across TCs
        vmem_limit_bytes=vmem_limit,
    )
    conv_cost = pl.CostEstimate(
        flops=2 * M * (9 * C) * C, transcendentals=0,
        bytes_accessed=M * C * (4 + 2) + 9 * C * C * 2 + N * 2 * C * 4)
    pad_scratch = pltpu.VMEM((H + 2, W + 2, C), MXU_DTYPE)
    conv_out_shape = (jax.ShapeDtypeStruct((N, H, W, C), ACT_DTYPE),
                      jax.ShapeDtypeStruct((N, 2, C), jnp.float32))

    # Pass 1: conv1 + per-image BN1 partial statistics.
    y1, s1 = pl.pallas_call(
        _conv1_stats_kernel,
        grid=(N,),
        in_specs=[img_spec, wgt_spec],
        out_specs=(img_spec, stats_spec),
        out_shape=conv_out_shape,
        scratch_shapes=[pad_scratch],
        compiler_params=cparams,
        cost_estimate=conv_cost,
    )(x, w1k)
    scale1, shift1 = _bn_scale_shift(s1, g1, be1, M)

    # Pass 2: BN1 affine + ReLU + conv2 + per-image BN2 partial statistics.
    y2, s2 = pl.pallas_call(
        _bn_relu_conv2_stats_kernel,
        grid=(N,),
        in_specs=[img_spec, wgt_spec, vec_spec, vec_spec],
        out_specs=(img_spec, stats_spec),
        out_shape=conv_out_shape,
        scratch_shapes=[pad_scratch],
        compiler_params=cparams,
        cost_estimate=conv_cost,
    )(y1, w2k, scale1, shift1)
    scale2, shift2 = _bn_scale_shift(s2, g2, be2, M)

    # Pass 3: BN2 affine + residual add on a lane-dense (N, H, W*C) layout.
    WC = W * C
    TH = 8 if H % 8 == 0 else H
    x3 = x.reshape(N, H, WC)
    y23 = y2.reshape(N, H, WC)
    scale2w = jnp.tile(scale2, (1, W))      # (1, W*C): channel pattern per row
    shift2w = jnp.tile(shift2, (1, W))
    row_spec = pl.BlockSpec((1, TH, WC), lambda n, r: (n, r, 0))
    vecw_spec = pl.BlockSpec((1, WC), lambda n, r: (0, 0))

    out3 = pl.pallas_call(
        _bn_residual_kernel,
        grid=(N, H // TH),
        in_specs=[row_spec, row_spec, vecw_spec, vecw_spec],
        out_specs=row_spec,
        out_shape=jax.ShapeDtypeStruct((N, H, WC), jnp.float32),
        input_output_aliases={0: 0},        # reuse the residual-input buffer
        compiler_params=pltpu.CompilerParams(
            dimension_semantics=("parallel", "parallel"),
            vmem_limit_bytes=vmem_limit),
        cost_estimate=pl.CostEstimate(flops=3 * M * C, transcendentals=0,
                                      bytes_accessed=M * C * (4 + 2 + 4)),
    )(x3, y23, scale2w, shift2w)

    return jnp.transpose(out3.reshape(N, H, W, C), (0, 3, 1, 2))


# ------------------------------ reference path ----------------------------- #

def init_params(key, channels):
    """Deterministic synthetic parameters matching ResidualBlock(channels)."""
    k0, k1, k2, k3 = jax.random.split(key, 4)
    C = channels
    w1 = 0.1 * jax.random.normal(k0, (C, C, 3, 3), jnp.float32)   # Conv2d #1
    b1 = 0.01 * jax.random.normal(k1, (C,), jnp.float32)
    w2 = 0.1 * jax.random.normal(k2, (C, C, 3, 3), jnp.float32)   # Conv2d #2
    b2 = 0.01 * jax.random.normal(k3, (C,), jnp.float32)
    g1 = jnp.ones((C,), jnp.float32)     # BatchNorm2d #1 weight
    be1 = jnp.zeros((C,), jnp.float32)   # BatchNorm2d #1 bias
    g2 = jnp.ones((C,), jnp.float32)     # BatchNorm2d #2 weight
    be2 = jnp.zeros((C,), jnp.float32)   # BatchNorm2d #2 bias
    return (w1, b1, g1, be1, w2, b2, g2, be2)


def ref_forward(x_nchw, params):
    """Pure-JAX reference mirroring the kernel's deliberate precision policy:
    bf16 MXU operands with f32 accumulation, bf16 inter-pass activation
    storage (y1/y2), f32 BN statistics computed *before* the downcast, and
    conv biases omitted (exactly cancelled by training-mode BN mean
    subtraction).  All BN affine / ReLU / residual math is f32."""
    w1, b1, g1, be1, w2, b2, g2, be2 = params
    del b1, b2
    x = jnp.transpose(x_nchw, (0, 2, 3, 1)).astype(jnp.float32)

    def conv(h, w):
        w_hwio = jnp.transpose(w, (2, 3, 1, 0))
        return jax.lax.conv_general_dilated(
            h.astype(MXU_DTYPE), w_hwio.astype(MXU_DTYPE),
            window_strides=(1, 1), padding="SAME",
            dimension_numbers=("NHWC", "HWIO", "NHWC"),
            preferred_element_type=jnp.float32)

    def bn_stats(y):
        mean = jnp.mean(y, axis=(0, 1, 2))
        var = jnp.maximum(jnp.mean(y * y, axis=(0, 1, 2)) - mean * mean, 0.0)
        return mean, var

    y1 = conv(x, w1)
    m1, v1 = bn_stats(y1)
    y1q = y1.astype(ACT_DTYPE).astype(jnp.float32)     # mirrors bf16 HBM storage
    h = jnp.maximum((y1q - m1) * jax.lax.rsqrt(v1 + EPS) * g1 + be1, 0.0)

    y2 = conv(h, w2)
    m2, v2 = bn_stats(y2)
    y2q = y2.astype(ACT_DTYPE).astype(jnp.float32)
    h2 = (y2q - m2) * jax.lax.rsqrt(v2 + EPS) * g2 + be2
    return jnp.transpose(x + h2, (0, 3, 1, 2))


if __name__ == "__main__":
    key = jax.random.PRNGKey(0)
    kx, kp = jax.random.split(key)

    N, C, H, W = 2, 4, 16, 16
    x = jax.random.normal(kx, (N, C, H, W), jnp.float32)
    params = init_params(kp, C)

    fwd = jax.jit(residual_block)
    out = jax.block_until_ready(fwd(x, params))

    ref = ref_forward(x, params)
    assert out.shape == (N, C, H, W)
    # Tolerance covers MXU-vs-XLA accumulation-order differences and rare
    # bf16 rounding-boundary flips on the stored y1/y2 intermediates.
    if not bool(jnp.allclose(out, ref, rtol=1e-2, atol=2e-2)):
        err = float(jnp.max(jnp.abs(out - ref)))
        raise AssertionError(
            f"Pallas output does not match JAX reference (max abs err {err})")

    print("KERNEL_OK")
</pallas_src>

<mosaic_0001>
module attributes {stable_mosaic.version = 11 : i64} {
  func.func @_bn_relu_conv2_stats_kernel(%arg0: i32, %arg1: memref<1x16x16x4xbf16, #tpu.memory_space<vmem>>, %arg2: memref<36x4xbf16, #tpu.memory_space<vmem>>, %arg3: memref<1x4xf32, #tpu.memory_space<vmem>>, %arg4: memref<1x4xf32, #tpu.memory_space<vmem>>, %arg5: memref<1x16x16x4xbf16, #tpu.memory_space<vmem>>, %arg6: memref<1x2x4xf32, #tpu.memory_space<vmem>>, %arg7: memref<18x18x4xbf16, #tpu.memory_space<vmem>>) attributes {dimension_semantics = [#tpu.dimension_semantics<parallel>], iteration_bounds = array<i64: 2>, scalar_prefetch = 0 : i64, scratch_operands = 1 : i64, tpu.core_type = #tpu.core_type<tc>, window_params = [{transform_indices = @transform_0, window_bounds = array<i64: 1, 16, 16, 4>}, {pipeline_mode = #tpu.pipeline_mode<synchronous>, transform_indices = @transform_1, window_bounds = array<i64: 36, 4>}, {pipeline_mode = #tpu.pipeline_mode<synchronous>, transform_indices = @transform_2, window_bounds = array<i64: 1, 4>}, {pipeline_mode = #tpu.pipeline_mode<synchronous>, transform_indices = @transform_3, window_bounds = array<i64: 1, 4>}, {transform_indices = @transform_4, window_bounds = array<i64: 1, 16, 16, 4>}, {transform_indices = @transform_5, window_bounds = array<i64: 1, 2, 4>}]} {
    %c0 = arith.constant 0 : index
    %c0_0 = arith.constant 0 : index
    %c0_1 = arith.constant 0 : index
    %c0_2 = arith.constant 0 : index
    %0 = vector.load %arg1[%c0, %c0_0, %c0_1, %c0_2] : memref<1x16x16x4xbf16, #tpu.memory_space<vmem>>, vector<1x16x16x4xbf16>
    %1 = vector.shape_cast %0 : vector<1x16x16x4xbf16> to vector<16x16x4xbf16>
    %2 = arith.extf %1 : vector<16x16x4xbf16> to vector<16x16x4xf32>
    %c0_3 = arith.constant 0 : index
    %c0_4 = arith.constant 0 : index
    %3 = vector.load %arg3[%c0_3, %c0_4] : memref<1x4xf32, #tpu.memory_space<vmem>>, vector<1x4xf32>
    %4 = vector.shape_cast %3 : vector<1x4xf32> to vector<4xf32>
    %5 = vector.shape_cast %4 : vector<4xf32> to vector<1x1x4xf32>
    %6 = vector.broadcast %5 : vector<1x1x4xf32> to vector<16x16x4xf32>
    %7 = arith.mulf %2, %6 : vector<16x16x4xf32>
    %c0_5 = arith.constant 0 : index
    %c0_6 = arith.constant 0 : index
    %8 = vector.load %arg4[%c0_5, %c0_6] : memref<1x4xf32, #tpu.memory_space<vmem>>, vector<1x4xf32>
    %9 = vector.shape_cast %8 : vector<1x4xf32> to vector<4xf32>
    %10 = vector.shape_cast %9 : vector<4xf32> to vector<1x1x4xf32>
    %11 = vector.broadcast %10 : vector<1x1x4xf32> to vector<16x16x4xf32>
    %12 = arith.addf %7, %11 : vector<16x16x4xf32>
    %cst = arith.constant 0.000000e+00 : f32
    %13 = vector.broadcast %cst : f32 to vector<16x16x4xf32>
    %14 = arith.maximumf %12, %13 : vector<16x16x4xf32>
    %cst_7 = arith.constant 0.000000e+00 : bf16
    %15 = vector.broadcast %cst_7 : bf16 to vector<1x18x4xbf16>
    %cst_8 = arith.constant 0.000000e+00 : bf16
    %16 = vector.broadcast %cst_8 : bf16 to vector<18x1x4xbf16>
    %c0_9 = arith.constant 0 : index
    %c0_10 = arith.constant 0 : index
    %c0_11 = arith.constant 0 : index
    %17 = vector.load %arg7[%c0_9, %c0_10, %c0_11] : memref<18x18x4xbf16, #tpu.memory_space<vmem>>, vector<1x18x4xbf16>
    tpu.vector_store %arg7[%c0_9, %c0_10, %c0_11], %15 {strides = array<i32>} : memref<18x18x4xbf16, #tpu.memory_space<vmem>>, vector<1x18x4xbf16>,
    %c17 = arith.constant 17 : index
    %c0_12 = arith.constant 0 : index
    %c0_13 = arith.constant 0 : index
    %18 = vector.load %arg7[%c17, %c0_12, %c0_13] : memref<18x18x4xbf16, #tpu.memory_space<vmem>>, vector<1x18x4xbf16>
    tpu.vector_store %arg7[%c17, %c0_12, %c0_13], %15 {strides = array<i32>} : memref<18x18x4xbf16, #tpu.memory_space<vmem>>, vector<1x18x4xbf16>,
    %c0_14 = arith.constant 0 : index
    %c0_15 = arith.constant 0 : index
    %c0_16 = arith.constant 0 : index
    %19 = vector.load %arg7[%c0_14, %c0_15, %c0_16] : memref<18x18x4xbf16, #tpu.memory_space<vmem>>, vector<18x1x4xbf16>
    tpu.vector_store %arg7[%c0_14, %c0_15, %c0_16], %16 {strides = array<i32>} : memref<18x18x4xbf16, #tpu.memory_space<vmem>>, vector<18x1x4xbf16>,
    %c0_17 = arith.constant 0 : index
    %c17_18 = arith.constant 17 : index
    %c0_19 = arith.constant 0 : index
    %20 = vector.load %arg7[%c0_17, %c17_18, %c0_19] : memref<18x18x4xbf16, #tpu.memory_space<vmem>>, vector<18x1x4xbf16>
    tpu.vector_store %arg7[%c0_17, %c17_18, %c0_19], %16 {strides = array<i32>} : memref<18x18x4xbf16, #tpu.memory_space<vmem>>, vector<18x1x4xbf16>,
    %21 = arith.truncf %14 : vector<16x16x4xf32> to vector<16x16x4xbf16>
    %c1 = arith.constant 1 : index
    %c1_20 = arith.constant 1 : index
    %c0_21 = arith.constant 0 : index
    %22 = vector.load %arg7[%c1, %c1_20, %c0_21] : memref<18x18x4xbf16, #tpu.memory_space<vmem>>, vector<16x16x4xbf16>
    tpu.vector_store %arg7[%c1, %c1_20, %c0_21], %21 {strides = array<i32>} : memref<18x18x4xbf16, #tpu.memory_space<vmem>>, vector<16x16x4xbf16>,
    %cst_22 = arith.constant 0.000000e+00 : f32
    %23 = vector.broadcast %cst_22 : f32 to vector<1x4xf32>
    %cst_23 = arith.constant 0.000000e+00 : f32
    %24 = vector.broadcast %cst_23 : f32 to vector<1x4xf32>
    %c0_24 = arith.constant 0 : index
    %c0_25 = arith.constant 0 : index
    %c0_26 = arith.constant 0 : index
    %25 = vector.load %arg7[%c0_24, %c0_25, %c0_26] : memref<18x18x4xbf16, #tpu.memory_space<vmem>>, vector<16x16x4xbf16>
    %c0_27 = arith.constant 0 : index
    %c1_28 = arith.constant 1 : index
    %c0_29 = arith.constant 0 : index
    %26 = vector.load %arg7[%c0_27, %c1_28, %c0_29] : memref<18x18x4xbf16, #tpu.memory_space<vmem>>, vector<16x16x4xbf16>
    %c0_30 = arith.constant 0 : index
    %c2 = arith.constant 2 : index
    %c0_31 = arith.constant 0 : index
    %27 = vector.load %arg7[%c0_30, %c2, %c0_31] : memref<18x18x4xbf16, #tpu.memory_space<vmem>>, vector<16x16x4xbf16>
    %c1_32 = arith.constant 1 : index
    %c0_33 = arith.constant 0 : index
    %c0_34 = arith.constant 0 : index
    %28 = vector.load %arg7[%c1_32, %c0_33, %c0_34] : memref<18x18x4xbf16, #tpu.memory_space<vmem>>, vector<16x16x4xbf16>
    %c1_35 = arith.constant 1 : index
    %c1_36 = arith.constant 1 : index
    %c0_37 = arith.constant 0 : index
    %29 = vector.load %arg7[%c1_35, %c1_36, %c0_37] : memref<18x18x4xbf16, #tpu.memory_space<vmem>>, vector<16x16x4xbf16>
    %c1_38 = arith.constant 1 : index
    %c2_39 = arith.constant 2 : index
    %c0_40 = arith.constant 0 : index
    %30 = vector.load %arg7[%c1_38, %c2_39, %c0_40] : memref<18x18x4xbf16, #tpu.memory_space<vmem>>, vector<16x16x4xbf16>
    %c2_41 = arith.constant 2 : index
    %c0_42 = arith.constant 0 : index
    %c0_43 = arith.constant 0 : index
    %31 = vector.load %arg7[%c2_41, %c0_42, %c0_43] : memref<18x18x4xbf16, #tpu.memory_space<vmem>>, vector<16x16x4xbf16>
    %c2_44 = arith.constant 2 : index
    %c1_45 = arith.constant 1 : index
    %c0_46 = arith.constant 0 : index
    %32 = vector.load %arg7[%c2_44, %c1_45, %c0_46] : memref<18x18x4xbf16, #tpu.memory_space<vmem>>, vector<16x16x4xbf16>
    %c2_47 = arith.constant 2 : index
    %c2_48 = arith.constant 2 : index
    %c0_49 = arith.constant 0 : index
    %33 = vector.load %arg7[%c2_47, %c2_48, %c0_49] : memref<18x18x4xbf16, #tpu.memory_space<vmem>>, vector<16x16x4xbf16>
    %34 = tpu.concatenate %25, %26, %27, %28, %29, %30, %31, %32, %33 in 2 : vector<16x16x4xbf16>, vector<16x16x4xbf16>, vector<16x16x4xbf16>, vector<16x16x4xbf16>, vector<16x16x4xbf16>, vector<16x16x4xbf16>, vector<16x16x4xbf16>, vector<16x16x4xbf16>, vector<16x16x4xbf16> -> vector<16x16x36xbf16>
    %35 = vector.shape_cast %34 : vector<16x16x36xbf16> to vector<256x36xbf16>
    %c0_50 = arith.constant 0 : index
    %c0_51 = arith.constant 0 : index
    %36 = vector.load %arg2[%c0_50, %c0_51] : memref<36x4xbf16, #tpu.memory_space<vmem>>, vector<36x4xbf16>
    %cst_52 = arith.constant dense<0.000000e+00> : vector<256x4xf32>
    %37 = tpu.matmul %35, %36, %cst_52 {dimension_numbers = #tpu.dot_dimension_numbers<[1], [0], [0], [1], [0, 0, 1, 1], [], []>} : vector<256x36xbf16>, vector<36x4xbf16>, vector<256x4xf32> -> vector<256x4xf32>
    %38 = vector.shape_cast %37 : vector<256x4xf32> to vector<16x16x4xf32>
    %39 = arith.truncf %38 : vector<16x16x4xf32> to vector<16x16x4xbf16>
    %c0_53 = arith.constant 0 : index
    %c0_54 = arith.constant 0 : index
    %c0_55 = arith.constant 0 : index
    %c0_56 = arith.constant 0 : index
    %40 = vector.load %arg5[%c0_53, %c0_54, %c0_55, %c0_56] : memref<1x16x16x4xbf16, #tpu.memory_space<vmem>>, vector<1x16x16x4xbf16>
    %41 = vector.shape_cast %40 : vector<1x16x16x4xbf16> to vector<16x16x4xbf16>
    %42 = vector.shape_cast %39 : vector<16x16x4xbf16> to vector<1x16x16x4xbf16>
    tpu.vector_store %arg5[%c0_53, %c0_54, %c0_55, %c0_56], %42 {strides = array<i32>} : memref<1x16x16x4xbf16, #tpu.memory_space<vmem>>, vector<1x16x16x4xbf16>,
    %cst_57 = arith.constant dense<0.000000e+00> : vector<4xf32>
    %43 = vector.multi_reduction <add>, %37, %cst_57 [0] : vector<256x4xf32> to vector<4xf32>
    %44 = vector.shape_cast %43 : vector<4xf32> to vector<1x4xf32>
    %45 = arith.addf %23, %44 : vector<1x4xf32>
    %46 = arith.mulf %37, %37 : vector<256x4xf32>
    %cst_58 = arith.constant dense<0.000000e+00> : vector<4xf32>
    %47 = vector.multi_reduction <add>, %46, %cst_58 [0] : vector<256x4xf32> to vector<4xf32>
    %48 = vector.shape_cast %47 : vector<4xf32> to vector<1x4xf32>
    %49 = arith.addf %24, %48 : vector<1x4xf32>
    %50 = tpu.concatenate %45, %49 in 0 : vector<1x4xf32>, vector<1x4xf32> -> vector<2x4xf32>
    %c0_59 = arith.constant 0 : index
    %c0_60 = arith.constant 0 : index
    %c0_61 = arith.constant 0 : index
    %51 = vector.load %arg6[%c0_59, %c0_60, %c0_61] : memref<1x2x4xf32, #tpu.memory_space<vmem>>, vector<1x2x4xf32>
    %52 = vector.shape_cast %51 : vector<1x2x4xf32> to vector<2x4xf32>
    %53 = vector.shape_cast %50 : vector<2x4xf32> to vector<1x2x4xf32>
    tpu.vector_store %arg6[%c0_59, %c0_60, %c0_61], %53 {strides = array<i32>} : memref<1x2x4xf32, #tpu.memory_space<vmem>>, vector<1x2x4xf32>,
    return
  }
  func.func @transform_0(%arg0: i32) -> (i32, i32, i32, i32) {
    %c0_i32 = arith.constant 0 : i32
    %c0_i32_0 = arith.constant 0 : i32
    %c0_i32_1 = arith.constant 0 : i32
    %c0_i32_2 = arith.constant 0 : i32
    return %arg0, %c0_i32, %c0_i32_0, %c0_i32_1 : i32, i32, i32, i32
  }
  func.func @transform_1(%arg0: i32) -> (i32, i32) {
    %c0_i32 = arith.constant 0 : i32
    %c0_i32_0 = arith.constant 0 : i32
    %c0_i32_1 = arith.constant 0 : i32
    return %c0_i32, %c0_i32_0 : i32, i32
  }
  func.func @transform_2(%arg0: i32) -> (i32, i32) {
    %c0_i32 = arith.constant 0 : i32
    %c0_i32_0 = arith.constant 0 : i32
    %c0_i32_1 = arith.constant 0 : i32
    return %c0_i32, %c0_i32_0 : i32, i32
  }
  func.func @transform_3(%arg0: i32) -> (i32, i32) {
    %c0_i32 = arith.constant 0 : i32
    %c0_i32_0 = arith.constant 0 : i32
    %c0_i32_1 = arith.constant 0 : i32
    return %c0_i32, %c0_i32_0 : i32, i32
  }
  func.func @transform_4(%arg0: i32) -> (i32, i32, i32, i32) {
    %c0_i32 = arith.constant 0 : i32
    %c0_i32_0 = arith.constant 0 : i32
    %c0_i32_1 = arith.constant 0 : i32
    %c0_i32_2 = arith.constant 0 : i32
    return %arg0, %c0_i32, %c0_i32_0, %c0_i32_1 : i32, i32, i32, i32
  }
  func.func @transform_5(%arg0: i32) -> (i32, i32, i32) {
    %c0_i32 = arith.constant 0 : i32
    %c0_i32_0 = arith.constant 0 : i32
    %c0_i32_1 = arith.constant 0 : i32
    return %arg0, %c0_i32, %c0_i32_0 : i32, i32, i32
  }
}

module attributes {stable_mosaic.version = 11 : i64} {
  func.func @_conv1_stats_kernel(%arg0: i32, %arg1: memref<1x16x16x4xf32, #tpu.memory_space<vmem>>, %arg2: memref<36x4xbf16, #tpu.memory_space<vmem>>, %arg3: memref<1x16x16x4xbf16, #tpu.memory_space<vmem>>, %arg4: memref<1x2x4xf32, #tpu.memory_space<vmem>>, %arg5: memref<18x18x4xbf16, #tpu.memory_space<vmem>>) attributes {dimension_semantics = [#tpu.dimension_semantics<parallel>], iteration_bounds = array<i64: 2>, scalar_prefetch = 0 : i64, scratch_operands = 1 : i64, tpu.core_type = #tpu.core_type<tc>, window_params = [{transform_indices = @transform_0, window_bounds = array<i64: 1, 16, 16, 4>}, {pipeline_mode = #tpu.pipeline_mode<synchronous>, transform_indices = @transform_1, window_bounds = array<i64: 36, 4>}, {transform_indices = @transform_2, window_bounds = array<i64: 1, 16, 16, 4>}, {transform_indices = @transform_3, window_bounds = array<i64: 1, 2, 4>}]} {
    %c0 = arith.constant 0 : index
    %c0_0 = arith.constant 0 : index
    %c0_1 = arith.constant 0 : index
    %c0_2 = arith.constant 0 : index
    %0 = vector.load %arg1[%c0, %c0_0, %c0_1, %c0_2] : memref<1x16x16x4xf32, #tpu.memory_space<vmem>>, vector<1x16x16x4xf32>
    %1 = vector.shape_cast %0 : vector<1x16x16x4xf32> to vector<16x16x4xf32>
    %cst = arith.constant 0.000000e+00 : bf16
    %2 = vector.broadcast %cst : bf16 to vector<1x18x4xbf16>
    %cst_3 = arith.constant 0.000000e+00 : bf16
    %3 = vector.broadcast %cst_3 : bf16 to vector<18x1x4xbf16>
    %c0_4 = arith.constant 0 : index
    %c0_5 = arith.constant 0 : index
    %c0_6 = arith.constant 0 : index
    %4 = vector.load %arg5[%c0_4, %c0_5, %c0_6] : memref<18x18x4xbf16, #tpu.memory_space<vmem>>, vector<1x18x4xbf16>
    tpu.vector_store %arg5[%c0_4, %c0_5, %c0_6], %2 {strides = array<i32>} : memref<18x18x4xbf16, #tpu.memory_space<vmem>>, vector<1x18x4xbf16>,
    %c17 = arith.constant 17 : index
    %c0_7 = arith.constant 0 : index
    %c0_8 = arith.constant 0 : index
    %5 = vector.load %arg5[%c17, %c0_7, %c0_8] : memref<18x18x4xbf16, #tpu.memory_space<vmem>>, vector<1x18x4xbf16>
    tpu.vector_store %arg5[%c17, %c0_7, %c0_8], %2 {strides = array<i32>} : memref<18x18x4xbf16, #tpu.memory_space<vmem>>, vector<1x18x4xbf16>,
    %c0_9 = arith.constant 0 : index
    %c0_10 = arith.constant 0 : index
    %c0_11 = arith.constant 0 : index
    %6 = vector.load %arg5[%c0_9, %c0_10, %c0_11] : memref<18x18x4xbf16, #tpu.memory_space<vmem>>, vector<18x1x4xbf16>
    tpu.vector_store %arg5[%c0_9, %c0_10, %c0_11], %3 {strides = array<i32>} : memref<18x18x4xbf16, #tpu.memory_space<vmem>>, vector<18x1x4xbf16>,
    %c0_12 = arith.constant 0 : index
    %c17_13 = arith.constant 17 : index
    %c0_14 = arith.constant 0 : index
    %7 = vector.load %arg5[%c0_12, %c17_13, %c0_14] : memref<18x18x4xbf16, #tpu.memory_space<vmem>>, vector<18x1x4xbf16>
    tpu.vector_store %arg5[%c0_12, %c17_13, %c0_14], %3 {strides = array<i32>} : memref<18x18x4xbf16, #tpu.memory_space<vmem>>, vector<18x1x4xbf16>,
    %8 = arith.truncf %1 : vector<16x16x4xf32> to vector<16x16x4xbf16>
    %c1 = arith.constant 1 : index
    %c1_15 = arith.constant 1 : index
    %c0_16 = arith.constant 0 : index
    %9 = vector.load %arg5[%c1, %c1_15, %c0_16] : memref<18x18x4xbf16, #tpu.memory_space<vmem>>, vector<16x16x4xbf16>
    tpu.vector_store %arg5[%c1, %c1_15, %c0_16], %8 {strides = array<i32>} : memref<18x18x4xbf16, #tpu.memory_space<vmem>>, vector<16x16x4xbf16>,
    %cst_17 = arith.constant 0.000000e+00 : f32
    %10 = vector.broadcast %cst_17 : f32 to vector<1x4xf32>
    %cst_18 = arith.constant 0.000000e+00 : f32
    %11 = vector.broadcast %cst_18 : f32 to vector<1x4xf32>
    %c0_19 = arith.constant 0 : index
    %c0_20 = arith.constant 0 : index
    %c0_21 = arith.constant 0 : index
    %12 = vector.load %arg5[%c0_19, %c0_20, %c0_21] : memref<18x18x4xbf16, #tpu.memory_space<vmem>>, vector<16x16x4xbf16>
    %c0_22 = arith.constant 0 : index
    %c1_23 = arith.constant 1 : index
    %c0_24 = arith.constant 0 : index
    %13 = vector.load %arg5[%c0_22, %c1_23, %c0_24] : memref<18x18x4xbf16, #tpu.memory_space<vmem>>, vector<16x16x4xbf16>
    %c0_25 = arith.constant 0 : index
    %c2 = arith.constant 2 : index
    %c0_26 = arith.constant 0 : index
    %14 = vector.load %arg5[%c0_25, %c2, %c0_26] : memref<18x18x4xbf16, #tpu.memory_space<vmem>>, vector<16x16x4xbf16>
    %c1_27 = arith.constant 1 : index
    %c0_28 = arith.constant 0 : index
    %c0_29 = arith.constant 0 : index
    %15 = vector.load %arg5[%c1_27, %c0_28, %c0_29] : memref<18x18x4xbf16, #tpu.memory_space<vmem>>, vector<16x16x4xbf16>
    %c1_30 = arith.constant 1 : index
    %c1_31 = arith.constant 1 : index
    %c0_32 = arith.constant 0 : index
    %16 = vector.load %arg5[%c1_30, %c1_31, %c0_32] : memref<18x18x4xbf16, #tpu.memory_space<vmem>>, vector<16x16x4xbf16>
    %c1_33 = arith.constant 1 : index
    %c2_34 = arith.constant 2 : index
    %c0_35 = arith.constant 0 : index
    %17 = vector.load %arg5[%c1_33, %c2_34, %c0_35] : memref<18x18x4xbf16, #tpu.memory_space<vmem>>, vector<16x16x4xbf16>
    %c2_36 = arith.constant 2 : index
    %c0_37 = arith.constant 0 : index
    %c0_38 = arith.constant 0 : index
    %18 = vector.load %arg5[%c2_36, %c0_37, %c0_38] : memref<18x18x4xbf16, #tpu.memory_space<vmem>>, vector<16x16x4xbf16>
    %c2_39 = arith.constant 2 : index
    %c1_40 = arith.constant 1 : index
    %c0_41 = arith.constant 0 : index
    %19 = vector.load %arg5[%c2_39, %c1_40, %c0_41] : memref<18x18x4xbf16, #tpu.memory_space<vmem>>, vector<16x16x4xbf16>
    %c2_42 = arith.constant 2 : index
    %c2_43 = arith.constant 2 : index
    %c0_44 = arith.constant 0 : index
    %20 = vector.load %arg5[%c2_42, %c2_43, %c0_44] : memref<18x18x4xbf16, #tpu.memory_space<vmem>>, vector<16x16x4xbf16>
    %21 = tpu.concatenate %12, %13, %14, %15, %16, %17, %18, %19, %20 in 2 : vector<16x16x4xbf16>, vector<16x16x4xbf16>, vector<16x16x4xbf16>, vector<16x16x4xbf16>, vector<16x16x4xbf16>, vector<16x16x4xbf16>, vector<16x16x4xbf16>, vector<16x16x4xbf16>, vector<16x16x4xbf16> -> vector<16x16x36xbf16>
    %22 = vector.shape_cast %21 : vector<16x16x36xbf16> to vector<256x36xbf16>
    %c0_45 = arith.constant 0 : index
    %c0_46 = arith.constant 0 : index
    %23 = vector.load %arg2[%c0_45, %c0_46] : memref<36x4xbf16, #tpu.memory_space<vmem>>, vector<36x4xbf16>
    %cst_47 = arith.constant dense<0.000000e+00> : vector<256x4xf32>
    %24 = tpu.matmul %22, %23, %cst_47 {dimension_numbers = #tpu.dot_dimension_numbers<[1], [0], [0], [1], [0, 0, 1, 1], [], []>} : vector<256x36xbf16>, vector<36x4xbf16>, vector<256x4xf32> -> vector<256x4xf32>
    %25 = vector.shape_cast %24 : vector<256x4xf32> to vector<16x16x4xf32>
    %26 = arith.truncf %25 : vector<16x16x4xf32> to vector<16x16x4xbf16>
    %c0_48 = arith.constant 0 : index
    %c0_49 = arith.constant 0 : index
    %c0_50 = arith.constant 0 : index
    %c0_51 = arith.constant 0 : index
    %27 = vector.load %arg3[%c0_48, %c0_49, %c0_50, %c0_51] : memref<1x16x16x4xbf16, #tpu.memory_space<vmem>>, vector<1x16x16x4xbf16>
    %28 = vector.shape_cast %27 : vector<1x16x16x4xbf16> to vector<16x16x4xbf16>
    %29 = vector.shape_cast %26 : vector<16x16x4xbf16> to vector<1x16x16x4xbf16>
    tpu.vector_store %arg3[%c0_48, %c0_49, %c0_50, %c0_51], %29 {strides = array<i32>} : memref<1x16x16x4xbf16, #tpu.memory_space<vmem>>, vector<1x16x16x4xbf16>,
    %cst_52 = arith.constant dense<0.000000e+00> : vector<4xf32>
    %30 = vector.multi_reduction <add>, %24, %cst_52 [0] : vector<256x4xf32> to vector<4xf32>
    %31 = vector.shape_cast %30 : vector<4xf32> to vector<1x4xf32>
    %32 = arith.addf %10, %31 : vector<1x4xf32>
    %33 = arith.mulf %24, %24 : vector<256x4xf32>
    %cst_53 = arith.constant dense<0.000000e+00> : vector<4xf32>
    %34 = vector.multi_reduction <add>, %33, %cst_53 [0] : vector<256x4xf32> to vector<4xf32>
    %35 = vector.shape_cast %34 : vector<4xf32> to vector<1x4xf32>
    %36 = arith.addf %11, %35 : vector<1x4xf32>
    %37 = tpu.concatenate %32, %36 in 0 : vector<1x4xf32>, vector<1x4xf32> -> vector<2x4xf32>
    %c0_54 = arith.constant 0 : index
    %c0_55 = arith.constant 0 : index
    %c0_56 = arith.constant 0 : index
    %38 = vector.load %arg4[%c0_54, %c0_55, %c0_56] : memref<1x2x4xf32, #tpu.memory_space<vmem>>, vector<1x2x4xf32>
    %39 = vector.shape_cast %38 : vector<1x2x4xf32> to vector<2x4xf32>
    %40 = vector.shape_cast %37 : vector<2x4xf32> to vector<1x2x4xf32>
    tpu.vector_store %arg4[%c0_54, %c0_55, %c0_56], %40 {strides = array<i32>} : memref<1x2x4xf32, #tpu.memory_space<vmem>>, vector<1x2x4xf32>,
    return
  }
  func.func @transform_0(%arg0: i32) -> (i32, i32, i32, i32) {
    %c0_i32 = arith.constant 0 : i32
    %c0_i32_0 = arith.constant 0 : i32
    %c0_i32_1 = arith.constant 0 : i32
    %c0_i32_2 = arith.constant 0 : i32
    return %arg0, %c0_i32, %c0_i32_0, %c0_i32_1 : i32, i32, i32, i32
  }
  func.func @transform_1(%arg0: i32) -> (i32, i32) {
    %c0_i32 = arith.constant 0 : i32
    %c0_i32_0 = arith.constant 0 : i32
    %c0_i32_1 = arith.constant 0 : i32
    return %c0_i32, %c0_i32_0 : i32, i32
  }
  func.func @transform_2(%arg0: i32) -> (i32, i32, i32, i32) {
    %c0_i32 = arith.constant 0 : i32
    %c0_i32_0 = arith.constant 0 : i32
    %c0_i32_1 = arith.constant 0 : i32
    %c0_i32_2 = arith.constant 0 : i32
    return %arg0, %c0_i32, %c0_i32_0, %c0_i32_1 : i32, i32, i32, i32
  }
  func.func @transform_3(%arg0: i32) -> (i32, i32, i32) {
    %c0_i32 = arith.constant 0 : i32
    %c0_i32_0 = arith.constant 0 : i32
    %c0_i32_1 = arith.constant 0 : i32
    return %arg0, %c0_i32, %c0_i32_0 : i32, i32, i32
  }
}

module attributes {stable_mosaic.version = 11 : i64} {
  func.func @_bn_residual_kernel(%arg0: i32, %arg1: i32, %arg2: memref<1x8x64xf32, #tpu.memory_space<vmem>>, %arg3: memref<1x8x64xbf16, #tpu.memory_space<vmem>>, %arg4: memref<1x64xf32, #tpu.memory_space<vmem>>, %arg5: memref<1x64xf32, #tpu.memory_space<vmem>>, %arg6: memref<1x8x64xf32, #tpu.memory_space<vmem>>) attributes {dimension_semantics = [#tpu.dimension_semantics<parallel>, #tpu.dimension_semantics<parallel>], iteration_bounds = array<i64: 2, 2>, scalar_prefetch = 0 : i64, scratch_operands = 0 : i64, tpu.core_type = #tpu.core_type<tc>, window_params = [{transform_indices = @transform_0, window_bounds = array<i64: 1, 8, 64>}, {transform_indices = @transform_1, window_bounds = array<i64: 1, 8, 64>}, {pipeline_mode = #tpu.pipeline_mode<synchronous>, transform_indices = @transform_2, window_bounds = array<i64: 1, 64>}, {pipeline_mode = #tpu.pipeline_mode<synchronous>, transform_indices = @transform_3, window_bounds = array<i64: 1, 64>}, {transform_indices = @transform_4, window_bounds = array<i64: 1, 8, 64>}]} {
    %c0 = arith.constant 0 : index
    %c0_0 = arith.constant 0 : index
    %c0_1 = arith.constant 0 : index
    %0 = vector.load %arg2[%c0, %c0_0, %c0_1] : memref<1x8x64xf32, #tpu.memory_space<vmem>>, vector<1x8x64xf32>
    %1 = vector.shape_cast %0 : vector<1x8x64xf32> to vector<8x64xf32>
    %c0_2 = arith.constant 0 : index
    %c0_3 = arith.constant 0 : index
    %c0_4 = arith.constant 0 : index
    %2 = vector.load %arg3[%c0_2, %c0_3, %c0_4] : memref<1x8x64xbf16, #tpu.memory_space<vmem>>, vector<1x8x64xbf16>
    %3 = vector.shape_cast %2 : vector<1x8x64xbf16> to vector<8x64xbf16>
    %4 = arith.extf %3 : vector<8x64xbf16> to vector<8x64xf32>
    %c0_5 = arith.constant 0 : index
    %c0_6 = arith.constant 0 : index
    %5 = vector.load %arg4[%c0_5, %c0_6] : memref<1x64xf32, #tpu.memory_space<vmem>>, vector<1x64xf32>
    %6 = vector.shape_cast %5 : vector<1x64xf32> to vector<64xf32>
    %7 = vector.shape_cast %6 : vector<64xf32> to vector<1x64xf32>
    %8 = vector.broadcast %7 : vector<1x64xf32> to vector<8x64xf32>
    %9 = arith.mulf %4, %8 : vector<8x64xf32>
    %10 = arith.addf %1, %9 : vector<8x64xf32>
    %c0_7 = arith.constant 0 : index
    %c0_8 = arith.constant 0 : index
    %11 = vector.load %arg5[%c0_7, %c0_8] : memref<1x64xf32, #tpu.memory_space<vmem>>, vector<1x64xf32>
    %12 = vector.shape_cast %11 : vector<1x64xf32> to vector<64xf32>
    %13 = vector.shape_cast %12 : vector<64xf32> to vector<1x64xf32>
    %14 = vector.broadcast %13 : vector<1x64xf32> to vector<8x64xf32>
    %15 = arith.addf %10, %14 : vector<8x64xf32>
    %c0_9 = arith.constant 0 : index
    %c0_10 = arith.constant 0 : index
    %c0_11 = arith.constant 0 : index
    %16 = vector.load %arg6[%c0_9, %c0_10, %c0_11] : memref<1x8x64xf32, #tpu.memory_space<vmem>>, vector<1x8x64xf32>
    %17 = vector.shape_cast %16 : vector<1x8x64xf32> to vector<8x64xf32>
    %18 = vector.shape_cast %15 : vector<8x64xf32> to vector<1x8x64xf32>
    tpu.vector_store %arg6[%c0_9, %c0_10, %c0_11], %18 {strides = array<i32>} : memref<1x8x64xf32, #tpu.memory_space<vmem>>, vector<1x8x64xf32>,
    return
  }
  func.func @transform_0(%arg0: i32, %arg1: i32) -> (i32, i32, i32) {
    %c0_i32 = arith.constant 0 : i32
    %c0_i32_0 = arith.constant 0 : i32
    return %arg0, %arg1, %c0_i32 : i32, i32, i32
  }
  func.func @transform_1(%arg0: i32, %arg1: i32) -> (i32, i32, i32) {
    %c0_i32 = arith.constant 0 : i32
    %c0_i32_0 = arith.constant 0 : i32
    return %arg0, %arg1, %c0_i32 : i32, i32, i32
  }
  func.func @transform_2(%arg0: i32, %arg1: i32) -> (i32, i32) {
    %c0_i32 = arith.constant 0 : i32
    %c0_i32_0 = arith.constant 0 : i32
    %c0_i32_1 = arith.constant 0 : i32
    return %c0_i32, %c0_i32_0 : i32, i32
  }
  func.func @transform_3(%arg0: i32, %arg1: i32) -> (i32, i32) {
    %c0_i32 = arith.constant 0 : i32
    %c0_i32_0 = arith.constant 0 : i32
    %c0_i32_1 = arith.constant 0 : i32
    return %c0_i32, %c0_i32_0 : i32, i32
  }
  func.func @transform_4(%arg0: i32, %arg1: i32) -> (i32, i32, i32) {
    %c0_i32 = arith.constant 0 : i32
    %c0_i32_0 = arith.constant 0 : i32
    return %arg0, %arg1, %c0_i32 : i32, i32, i32
  }
}

</mosaic_0001>

<llo_original>
// kernel: residual_block.5
$region0: #{residual_block.5}
  #allocation0 [shape = 'u32[]', space=smem, size = 0x4, offset = 0x4, fixed_abs, tag = 'smem constant byte address 0x4 - core index']
  #allocation1 [shape = 'u32[144,128]{1,0:T(1,128)}', space=vmem, size = 0x12000, scoped, tag = 'internal scratch']
  %s0 = inlined_call_operand.vmem [shape: f32[2,16,64], index: 0, kind: input, shape index: {}, may-alias: {0,4}]
  %s1 = inlined_call_operand.vmem [shape: bf16[2,16,64], index: 1, kind: input, shape index: {}]
  %s2 = inlined_call_operand.vmem [shape: f32[1,64], index: 2, kind: input, shape index: {}]
  %s3 = inlined_call_operand.vmem [shape: f32[1,64], index: 3, kind: input, shape index: {}]
  %s4 = inlined_call_operand.vmem [shape: f32[2,16,64], index: 4, kind: output, shape index: {}, may-alias: {0,4}]
  %s5 = sld [smem:[#allocation0]]
  $region49: #{residual_block.5} parent=0
    _
  %s7 = ssub.s32 1, %s5
  %s8 = scalar_select 0, %s7, %s5
  loop: start=0, step=1, limit=6
  $region2: #{residual_block.5} parent=0 // loop_pre_header
    _
  $region3: #{residual_block.5} parent=0 // loop_header
    %s10 = sphi 0, %s14
    %p11 = scmp.ge.s32.totalorder %s10, 6
    %s17 = sphi 0, %s29
    %s18 = sphi 0, %s25
    %s19 = sphi 0, %s17
    %s20 = sphi 0, %s18
    %s21 = sphi 0, %s19
    %s22 = sphi 0, %s20
    %s34 = sphi 0, %s36
    %s37 = sphi 0, %s34
    %s38 = sphi 0, %s37
    %s54 = sphi 0, %s38
    %s62 = sphi 0, %s64
    %s65 = sphi 0, %s62
    %s66 = sphi 0, %s65
    %s82 = sphi 0, %s66
    %s86 = sphi 0, %s86
    %s88 = sphi 0, %s86
    %s89 = sphi 0, %s88
    %s103 = sphi 0, %s89
    %s107 = sphi 0, %s107
    %s109 = sphi 0, %s107
    %s110 = sphi 0, %s109
    %s124 = sphi 0, %s110
    %s132 = sphi 0, %s134
    %s135 = sphi 0, %s132
    %s136 = sphi 0, %s135
    %s152 = sphi 0, %s136
  $region4: #{residual_block.5} parent=0 // loop_header_branch
    %13 = sbr.rel (%p11) target = $region8
  $region5: #{residual_block.5} parent=0 // loop_body
    %s15 = ssub.s32 %s10, 1
    %s16 = ssub.s32 %s10, 2
    %s23 = sadd.s32 1, %s18
    %p24 = scmp.ge.s32.totalorder %s23, 2
    %s25 = scalar_select %p24, 0, %s23
    %s26 = sadd.s32 1, %s17
    %s27 = scalar_select %p24, %s26, %s17
    %p28 = scmp.ge.s32.totalorder %s27, 2
    %s29 = scalar_select %p28, 0, %s27
    %s30 = ssub.s32 %s17, %s29
    %s31 = ssub.s32 %s18, %s25
    %s32 = sor.u32 %s30, %s31
    %p33 = scmp.eq.s32.totalorder %s32, 0
    %s35 = sadd.s32 %s34, 1
    %s36 = scalar_select %p33, %s34, %s35
    %p39 = pneg %p33
    %p40 = scmp.eq.s32.totalorder %s10, 3
    %p41 = por %p39, %p40
    %p42 = scmp.ne.s32.totalorder %s34, %s37
    %p43 = scmp.eq.s32.totalorder %s10, 0
    %p44 = por %p42, %p43
    %p45 = scmp.ne.s32.totalorder %s34, %s37
    %p46 = scmp.eq.s32.totalorder %s15, 3
    %p47 = por %p45, %p46
    %p48 = scmp.ne.s32.totalorder %s37, %s38
    %p49 = scmp.eq.s32.totalorder %s15, 0
    %p50 = por %p48, %p49
    %p51 = scmp.ne.s32.totalorder %s37, %s38
    %p52 = scmp.eq.s32.totalorder %s16, 3
    %p53 = por %p51, %p52
    %p55 = scmp.ne.s32.totalorder %s38, %s54
    %p56 = scmp.eq.s32.totalorder %s16, 0
    %p57 = por %p55, %p56
    %s58 = ssub.s32 %s17, %s29
    %s59 = ssub.s32 %s18, %s25
    %s60 = sor.u32 %s58, %s59
    %p61 = scmp.eq.s32.totalorder %s60, 0
    %s63 = sadd.s32 %s62, 1
    %s64 = scalar_select %p61, %s62, %s63
    %p67 = pneg %p61
    %p68 = scmp.eq.s32.totalorder %s10, 3
    %p69 = por %p67, %p68
    %p70 = scmp.ne.s32.totalorder %s62, %s65
    %p71 = scmp.eq.s32.totalorder %s10, 0
    %p72 = por %p70, %p71
    %p73 = scmp.ne.s32.totalorder %s62, %s65
    %p74 = scmp.eq.s32.totalorder %s15, 3
    %p75 = por %p73, %p74
    %p76 = scmp.ne.s32.totalorder %s65, %s66
    %p77 = scmp.eq.s32.totalorder %s15, 0
    %p78 = por %p76, %p77
    %p79 = scmp.ne.s32.totalorder %s65, %s66
    %p80 = scmp.eq.s32.totalorder %s16, 3
    %p81 = por %p79, %p80
    %p83 = scmp.ne.s32.totalorder %s66, %s82
    %p84 = scmp.eq.s32.totalorder %s16, 0
    %p85 = por %p83, %p84
    %s87 = sadd.s32 %s86, 1
    %p90 = scmp.eq.s32.totalorder %s10, 3
    %p91 = scmp.ne.s32.totalorder %s86, %s88
    %p92 = scmp.eq.s32.totalorder %s10, 0
    %p93 = por %p91, %p92
    %p94 = scmp.ne.s32.totalorder %s86, %s88
    %p95 = scmp.eq.s32.totalorder %s15, 3
    %p96 = por %p94, %p95
    %p97 = scmp.ne.s32.totalorder %s88, %s89
    %p98 = scmp.eq.s32.totalorder %s15, 0
    %p99 = por %p97, %p98
    %p100 = scmp.ne.s32.totalorder %s88, %s89
    %p101 = scmp.eq.s32.totalorder %s16, 3
    %p102 = por %p100, %p101
    %p104 = scmp.ne.s32.totalorder %s89, %s103
    %p105 = scmp.eq.s32.totalorder %s16, 0
    %p106 = por %p104, %p105
    %s108 = sadd.s32 %s107, 1
    %p111 = scmp.eq.s32.totalorder %s10, 3
    %p112 = scmp.ne.s32.totalorder %s107, %s109
    %p113 = scmp.eq.s32.totalorder %s10, 0
    %p114 = por %p112, %p113
    %p115 = scmp.ne.s32.totalorder %s107, %s109
    %p116 = scmp.eq.s32.totalorder %s15, 3
    %p117 = por %p115, %p116
    %p118 = scmp.ne.s32.totalorder %s109, %s110
    %p119 = scmp.eq.s32.totalorder %s15, 0
    %p120 = por %p118, %p119
    %p121 = scmp.ne.s32.totalorder %s109, %s110
    %p122 = scmp.eq.s32.totalorder %s16, 3
    %p123 = por %p121, %p122
    %p125 = scmp.ne.s32.totalorder %s110, %s124
    %p126 = scmp.eq.s32.totalorder %s16, 0
    %p127 = por %p125, %p126
    %s128 = ssub.s32 %s17, %s29
    %s129 = ssub.s32 %s18, %s25
    %s130 = sor.u32 %s128, %s129
    %p131 = scmp.eq.s32.totalorder %s130, 0
    %s133 = sadd.s32 %s132, 1
    %s134 = scalar_select %p131, %s132, %s133
    %p137 = pneg %p131
    %p138 = scmp.eq.s32.totalorder %s10, 3
    %p139 = por %p137, %p138
    %p140 = scmp.ne.s32.totalorder %s132, %s135
    %p141 = scmp.eq.s32.totalorder %s10, 0
    %p142 = por %p140, %p141
    %p143 = scmp.ne.s32.totalorder %s132, %s135
    %p144 = scmp.eq.s32.totalorder %s15, 3
    %p145 = por %p143, %p144
    %p146 = scmp.ne.s32.totalorder %s135, %s136
    %p147 = scmp.eq.s32.totalorder %s15, 0
    %p148 = por %p146, %p147
    %p149 = scmp.ne.s32.totalorder %s135, %s136
    %p150 = scmp.eq.s32.totalorder %s16, 3
    %p151 = por %p149, %p150
    %p153 = scmp.ne.s32.totalorder %s136, %s152
    %p154 = scmp.eq.s32.totalorder %s16, 0
    %p155 = por %p153, %p154
    %p156 = scmp.le.s32.totalorder 1, %s10
    %p157 = scmp.lt.s32.totalorder %s10, 5
    %p158 = pnand %p156, %p157
    %p159 = pneg %p158
    // Predicated region
    $region9: #{residual_block.5} parent=5 // pred_check
      _
    $region10: #{residual_block.5} parent=5 // pred_check_branch
      %161 = sbr.rel (%p158) target = $region12
    $region11: #{residual_block.5} parent=5 // pred_region
      %s162 = ssub.s32 %s10, 1
      // Predicated region
      $region13: #{residual_block.5} parent=11 // pred_check
        %p163 = pneg %p99
      $region14: #{residual_block.5} parent=11 // pred_check_branch
        %165 = sbr.rel (%p163) target = $region16
      $region15: #{residual_block.5} parent=11 // pred_region
        _
      $region16: #{residual_block.5} parent=11 // pred_fallthru
        _
      // Predicated region
      $region17: #{residual_block.5} parent=11 // pred_check
        %p166 = pneg %p120
      $region18: #{residual_block.5} parent=11 // pred_check_branch
        %168 = sbr.rel (%p166) target = $region20
      $region19: #{residual_block.5} parent=11 // pred_region
        _
      $region20: #{residual_block.5} parent=11 // pred_fallthru
        _
    $region12: #{residual_block.5} parent=5 // pred_fallthru
      _
    %p169 = scmp.lt.s32.totalorder %s10, 4
    // Predicated region
    $region21: #{residual_block.5} parent=5 // pred_check
      %p170 = pneg %p169
    $region22: #{residual_block.5} parent=5 // pred_check_branch
      %172 = sbr.rel (%p170) target = $region24
    $region23: #{residual_block.5} parent=5 // pred_region
      // Predicated region
      $region25: #{residual_block.5} parent=23 // pred_check
        %p173 = pneg %p44
      $region26: #{residual_block.5} parent=23 // pred_check_branch
        %175 = sbr.rel (%p173) target = $region28
      $region27: #{residual_block.5} parent=23 // pred_region
        %p176 = scmp.lt.s32.totalorder %s17, 1
        %s177 = scalar_select %p176, %s17, 1
        %p178 = scmp.lt.s32.totalorder %s18, 1
        %s179 = scalar_select %p178, %s18, 1
        %s180 = smul.addr %s177, 2
        %s181 = sadd.s32 %s179, %s180
        %s182 = smul.addr %s181, 8
        %s183 = scalar_lea.vmem %s0, %s182
      $region28: #{residual_block.5} parent=23 // pred_fallthru
        _
      // Predicated region
      $region29: #{residual_block.5} parent=23 // pred_check
        %p184 = pneg %p72
      $region30: #{residual_block.5} parent=23 // pred_check_branch
        %186 = sbr.rel (%p184) target = $region32
      $region31: #{residual_block.5} parent=23 // pred_region
        %p187 = scmp.lt.s32.totalorder %s17, 1
        %s188 = scalar_select %p187, %s17, 1
        %p189 = scmp.lt.s32.totalorder %s18, 1
        %s190 = scalar_select %p189, %s18, 1
        %s191 = smul.addr %s188, 2
        %s192 = sadd.s32 %s190, %s191
        %s193 = smul.addr %s192, 4
        %s194 = scalar_lea.vmem %s1, %s193
      $region32: #{residual_block.5} parent=23 // pred_fallthru
        _
    $region24: #{residual_block.5} parent=5 // pred_fallthru
      _
    %p195 = scmp.le.s32.totalorder 1, %s10
    %p196 = scmp.lt.s32.totalorder %s10, 5
    %p197 = pnand %p195, %p196
    %p198 = pneg %p197
    // Predicated region
    $region33: #{residual_block.5} parent=5 // pred_check
      _
    $region34: #{residual_block.5} parent=5 // pred_check_branch
      %200 = sbr.rel (%p197) target = $region36
    $region35: #{residual_block.5} parent=5 // pred_region
      %s201 = ssub.s32 %s10, 1
      %p202 = scmp.lt.s32.totalorder %s19, 1
      %s203 = scalar_select %p202, %s19, 1
      %p204 = scmp.lt.s32.totalorder %s20, 1
      %s205 = scalar_select %p204, %s20, 1
      %s206 = smul.addr %s203, 2
      %s207 = sadd.s32 %s205, %s206
      %s208 = smul.addr %s207, 8
      %s209 = scalar_lea.vmem %s0, %s208
      %p210 = pneg %p50
      %p211 = pneg %p47
      %p212 = scmp.lt.s32.totalorder %s19, 1
      %s213 = scalar_select %p212, %s19, 1
      %p214 = scmp.lt.s32.totalorder %s20, 1
      %s215 = scalar_select %p214, %s20, 1
      %s216 = smul.addr %s213, 2
      %s217 = sadd.s32 %s215, %s216
      %s218 = smul.addr %s217, 4
      %s219 = scalar_lea.vmem %s1, %s218
      %p220 = pneg %p78
      %p221 = pneg %p75
      %p222 = pneg %p99
      %p223 = pneg %p96
      %p224 = pneg %p120
      %p225 = pneg %p117
      %p226 = pneg %p148
      %p227 = pneg %p145
      %p228 = scmp.lt.s32.totalorder %s19, 1
      %s229 = scalar_select %p228, %s19, 1
      %p230 = scmp.lt.s32.totalorder %s20, 1
      %s231 = scalar_select %p230, %s20, 1
      %s232 = smul.addr %s229, 2
      %s233 = sadd.s32 %s231, %s232
      %s234 = smul.addr %s233, 8
      %s235 = scalar_lea.vmem %s4, %s234
      %p236 = scmp.lt.s32.totalorder %s19, 1
      %s237 = scalar_select %p236, %s19, 1
      %p238 = scmp.lt.s32.totalorder %s20, 1
      %s239 = scalar_select %p238, %s20, 1
      %s240 = smul.addr %s237, 2
      %s241 = sadd.s32 %s239, %s240
      %s242 = smul.addr %s241, 8
      %s243 = scalar_lea.vmem %s0, %s242
      %p244 = scmp.lt.s32.totalorder %s19, 1
      %s245 = scalar_select %p244, %s19, 1
      %p246 = scmp.lt.s32.totalorder %s20, 1
      %s247 = scalar_select %p246, %s20, 1
      %s248 = smul.addr %s245, 2
      %s249 = sadd.s32 %s247, %s248
      %s250 = smul.addr %s249, 4
      %s251 = scalar_lea.vmem %s1, %s250
      %p252 = scmp.lt.s32.totalorder %s19, 1
      %s253 = scalar_select %p252, %s19, 1
      %p254 = scmp.lt.s32.totalorder %s20, 1
      %s255 = scalar_select %p254, %s20, 1
      %s256 = smul.addr %s253, 2
      %s257 = sadd.s32 %s255, %s256
      %s258 = smul.addr %s257, 8
      %s259 = scalar_lea.vmem %s4, %s258
      %v260 = vld [vmem:[%s243] sm:$0xff]
      %v261 = vld [vmem:[%s251] sm:$0xf]
      %v262 = vunpack.c.l.bf16 %v261
      %v263 = vld [vmem:[%s2] sm:$0x1]
      %v265 = vlaneseq
      %v266 = vshrl.u32 %v265, 7
      %v267 = vsub.s32 0, %v266
      %v268 = vrot.slane %v263, %v267
      %v270 = vmul.f32 %v262, %v268
      %v271 = vadd.f32 %v260, %v270
      %v272 = vld [vmem:[%s3] sm:$0x1]
      %v274 = vlaneseq
      %v275 = vshrl.u32 %v274, 7
      %v276 = vsub.s32 0, %v275
      %v277 = vrot.slane %v272, %v276
      %v279 = vadd.f32 %v271, %v277
      %vm280 = vcmask 523264
      %281 = vst.msk [vmem:[%s259] sm:$0xff] %vm280, %v279
      %p282 = scmp.lt.s32.totalorder %s19, 1
      %s283 = scalar_select %p282, %s19, 1
      %p284 = scmp.lt.s32.totalorder %s20, 1
      %s285 = scalar_select %p284, %s20, 1
      %s286 = smul.addr %s283, 2
      %s287 = sadd.s32 %s285, %s286
      %s288 = smul.addr %s287, 8
      %s289 = scalar_lea.vmem %s4, %s288
      // Predicated region
      $region37: #{residual_block.5} parent=35 // pred_check
        %p290 = pneg %p145
      $region38: #{residual_block.5} parent=35 // pred_check_branch
        %292 = sbr.rel (%p290) target = $region40
      $region39: #{residual_block.5} parent=35 // pred_region
        _
      $region40: #{residual_block.5} parent=35 // pred_fallthru
        _
    $region36: #{residual_block.5} parent=5 // pred_fallthru
      _
    %p293 = scmp.le.s32.totalorder 2, %s10
    // Predicated region
    $region41: #{residual_block.5} parent=5 // pred_check
      %p294 = pneg %p293
    $region42: #{residual_block.5} parent=5 // pred_check_branch
      %296 = sbr.rel (%p294) target = $region44
    $region43: #{residual_block.5} parent=5 // pred_region
      %s297 = ssub.s32 %s10, 2
      // Predicated region
      $region45: #{residual_block.5} parent=43 // pred_check
        %p298 = pneg %p151
      $region46: #{residual_block.5} parent=43 // pred_check_branch
        %300 = sbr.rel (%p298) target = $region48
      $region47: #{residual_block.5} parent=43 // pred_region
        %p301 = scmp.lt.s32.totalorder %s21, 1
        %s302 = scalar_select %p301, %s21, 1
        %p303 = scmp.lt.s32.totalorder %s22, 1
        %s304 = scalar_select %p303, %s22, 1
        %s305 = smul.addr %s302, 2
        %s306 = sadd.s32 %s304, %s305
        %s307 = smul.addr %s306, 8
        %s308 = scalar_lea.vmem %s4, %s307
      $region48: #{residual_block.5} parent=43 // pred_fallthru
        _
    $region44: #{residual_block.5} parent=5 // pred_fallthru
      _
  $region6: #{residual_block.5} parent=0 // loop_footer
    %s14 = sadd.s32 1, %s10
  $region7: #{residual_block.5} parent=0 // loop_footer_branch
    %9 = sbr.rel target = $region3
  $region8: #{residual_block.5} parent=0 // loop_exit
    _

// kernel: residual_block.3
$region0: #{residual_block.3}
  #allocation0 [shape = 'u32[]', space=smem, size = 0x4, offset = 0x4, fixed_abs, tag = 'smem constant byte address 0x4 - core index']
  #allocation1 [shape = 'u32[144,128]{1,0:T(1,128)}', space=vmem, size = 0x12000, scoped, tag = 'internal scratch']
  #allocation2 [shape = 'bf16[18,18,4]{2,1,0:T(8,128)(2,1)}', space=vmem, size = 0x1b000, scoped, tag = 'scratch operand']
  %s0 = inlined_call_operand.vmem [shape: f32[2,16,16,4], index: 0, kind: input, shape index: {}]
  %s1 = inlined_call_operand.vmem [shape: bf16[36,4], index: 1, kind: input, shape index: {}]
  %s2 = inlined_call_operand.vmem [shape: bf16[2,16,16,4], index: 2, kind: output, shape index: {0}]
  %s3 = inlined_call_operand.vmem [shape: f32[2,2,4], index: 3, kind: output, shape index: {1}]
  %4 = xla_tuple %s2, %s3
  %s5 = sld [smem:[#allocation0]]
  $region49: #{residual_block.3} parent=0
    _
  %s7 = ssub.s32 1, %s5
  %s8 = scalar_select 0, %s7, %s5
  loop: start=0, step=1, limit=4
  $region2: #{residual_block.3} parent=0 // loop_pre_header
    _
  $region3: #{residual_block.3} parent=0 // loop_header
    %s10 = sphi 0, %s14
    %p11 = scmp.ge.s32.totalorder %s10, 4
    %s20 = sphi 0, %s22
    %s23 = sphi 0, %s20
    %s24 = sphi 0, %s23
    %s40 = sphi 0, %s24
    %s44 = sphi 0, %s44
    %s46 = sphi 0, %s44
    %s47 = sphi 0, %s46
    %s61 = sphi 0, %s47
    %s67 = sphi 0, %s69
    %s70 = sphi 0, %s67
    %s71 = sphi 0, %s70
    %s87 = sphi 0, %s71
    %s93 = sphi 0, %s95
    %s96 = sphi 0, %s93
    %s97 = sphi 0, %s96
    %s113 = sphi 0, %s97
  $region4: #{residual_block.3} parent=0 // loop_header_branch
    %13 = sbr.rel (%p11) target = $region8
  $region5: #{residual_block.3} parent=0 // loop_body
    %s15 = ssub.s32 %s10, 1
    %s16 = ssub.s32 %s10, 2
    %s17 = sadd.s32 %s10, 1
    %s18 = ssub.s32 %s10, %s17
    %p19 = scmp.eq.s32.totalorder %s18, 0
    %s21 = sadd.s32 %s20, 1
    %s22 = scalar_select %p19, %s20, %s21
    %p25 = pneg %p19
    %p26 = scmp.eq.s32.totalorder %s10, 1
    %p27 = por %p25, %p26
    %p28 = scmp.ne.s32.totalorder %s20, %s23
    %p29 = scmp.eq.s32.totalorder %s10, 0
    %p30 = por %p28, %p29
    %p31 = scmp.ne.s32.totalorder %s20, %s23
    %p32 = scmp.eq.s32.totalorder %s15, 1
    %p33 = por %p31, %p32
    %p34 = scmp.ne.s32.totalorder %s23, %s24
    %p35 = scmp.eq.s32.totalorder %s15, 0
    %p36 = por %p34, %p35
    %p37 = scmp.ne.s32.totalorder %s23, %s24
    %p38 = scmp.eq.s32.totalorder %s16, 1
    %p39 = por %p37, %p38
    %p41 = scmp.ne.s32.totalorder %s24, %s40
    %p42 = scmp.eq.s32.totalorder %s16, 0
    %p43 = por %p41, %p42
    %s45 = sadd.s32 %s44, 1
    %p48 = scmp.eq.s32.totalorder %s10, 1
    %p49 = scmp.ne.s32.totalorder %s44, %s46
    %p50 = scmp.eq.s32.totalorder %s10, 0
    %p51 = por %p49, %p50
    %p52 = scmp.ne.s32.totalorder %s44, %s46
    %p53 = scmp.eq.s32.totalorder %s15, 1
    %p54 = por %p52, %p53
    %p55 = scmp.ne.s32.totalorder %s46, %s47
    %p56 = scmp.eq.s32.totalorder %s15, 0
    %p57 = por %p55, %p56
    %p58 = scmp.ne.s32.totalorder %s46, %s47
    %p59 = scmp.eq.s32.totalorder %s16, 1
    %p60 = por %p58, %p59
    %p62 = scmp.ne.s32.totalorder %s47, %s61
    %p63 = scmp.eq.s32.totalorder %s16, 0
    %p64 = por %p62, %p63
    %s65 = ssub.s32 %s10, %s17
    %p66 = scmp.eq.s32.totalorder %s65, 0
    %s68 = sadd.s32 %s67, 1
    %s69 = scalar_select %p66, %s67, %s68
    %p72 = pneg %p66
    %p73 = scmp.eq.s32.totalorder %s10, 1
    %p74 = por %p72, %p73
    %p75 = scmp.ne.s32.totalorder %s67, %s70
    %p76 = scmp.eq.s32.totalorder %s10, 0
    %p77 = por %p75, %p76
    %p78 = scmp.ne.s32.totalorder %s67, %s70
    %p79 = scmp.eq.s32.totalorder %s15, 1
    %p80 = por %p78, %p79
    %p81 = scmp.ne.s32.totalorder %s70, %s71
    %p82 = scmp.eq.s32.totalorder %s15, 0
    %p83 = por %p81, %p82
    %p84 = scmp.ne.s32.totalorder %s70, %s71
    %p85 = scmp.eq.s32.totalorder %s16, 1
    %p86 = por %p84, %p85
    %p88 = scmp.ne.s32.totalorder %s71, %s87
    %p89 = scmp.eq.s32.totalorder %s16, 0
    %p90 = por %p88, %p89
    %s91 = ssub.s32 %s10, %s17
    %p92 = scmp.eq.s32.totalorder %s91, 0
    %s94 = sadd.s32 %s93, 1
    %s95 = scalar_select %p92, %s93, %s94
    %p98 = pneg %p92
    %p99 = scmp.eq.s32.totalorder %s10, 1
    %p100 = por %p98, %p99
    %p101 = scmp.ne.s32.totalorder %s93, %s96
    %p102 = scmp.eq.s32.totalorder %s10, 0
    %p103 = por %p101, %p102
    %p104 = scmp.ne.s32.totalorder %s93, %s96
    %p105 = scmp.eq.s32.totalorder %s15, 1
    %p106 = por %p104, %p105
    %p107 = scmp.ne.s32.totalorder %s96, %s97
    %p108 = scmp.eq.s32.totalorder %s15, 0
    %p109 = por %p107, %p108
    %p110 = scmp.ne.s32.totalorder %s96, %s97
    %p111 = scmp.eq.s32.totalorder %s16, 1
    %p112 = por %p110, %p111
    %p114 = scmp.ne.s32.totalorder %s97, %s113
    %p115 = scmp.eq.s32.totalorder %s16, 0
    %p116 = por %p114, %p115
    %p117 = scmp.le.s32.totalorder 1, %s10
    %p118 = scmp.lt.s32.totalorder %s10, 3
    %p119 = pnand %p117, %p118
    %p120 = pneg %p119
    // Predicated region
    $region9: #{residual_block.3} parent=5 // pred_check
      _
    $region10: #{residual_block.3} parent=5 // pred_check_branch
      %122 = sbr.rel (%p119) target = $region12
    $region11: #{residual_block.3} parent=5 // pred_region
      %s123 = ssub.s32 %s10, 1
      // Predicated region
      $region13: #{residual_block.3} parent=11 // pred_check
        %p124 = pneg %p57
      $region14: #{residual_block.3} parent=11 // pred_check_branch
        %126 = sbr.rel (%p124) target = $region16
      $region15: #{residual_block.3} parent=11 // pred_region
        _
      $region16: #{residual_block.3} parent=11 // pred_fallthru
        _
    $region12: #{residual_block.3} parent=5 // pred_fallthru
      _
    %p127 = scmp.lt.s32.totalorder %s10, 2
    // Predicated region
    $region17: #{residual_block.3} parent=5 // pred_check
      %p128 = pneg %p127
    $region18: #{residual_block.3} parent=5 // pred_check_branch
      %130 = sbr.rel (%p128) target = $region20
    $region19: #{residual_block.3} parent=5 // pred_region
      // Predicated region
      $region21: #{residual_block.3} parent=19 // pred_check
        %p131 = pneg %p30
      $region22: #{residual_block.3} parent=19 // pred_check_branch
        %133 = sbr.rel (%p131) target = $region24
      $region23: #{residual_block.3} parent=19 // pred_region
        %p134 = scmp.lt.s32.totalorder %s10, 1
        %s135 = scalar_select %p134, %s10, 1
        %s136 = smul.addr %s135, 32
        %s137 = smul.addr %s136, 8
        %s138 = scalar_lea.vmem %s0, %s137
      $region24: #{residual_block.3} parent=19 // pred_fallthru
        _
    $region20: #{residual_block.3} parent=5 // pred_fallthru
      _
    %p139 = scmp.le.s32.totalorder 1, %s10
    %p140 = scmp.lt.s32.totalorder %s10, 3
    %p141 = pnand %p139, %p140
    %p142 = pneg %p141
    // Predicated region
    $region25: #{residual_block.3} parent=5 // pred_check
      _
    $region26: #{residual_block.3} parent=5 // pred_check_branch
      %144 = sbr.rel (%p141) target = $region28
    $region27: #{residual_block.3} parent=5 // pred_region
      %s145 = ssub.s32 %s10, 1
      %p146 = scmp.lt.s32.totalorder %s15, 1
      %s147 = scalar_select %p146, %s15, 1
      %s148 = smul.addr %s147, 32
      %s149 = smul.addr %s148, 8
      %s150 = scalar_lea.vmem %s0, %s149
      %p151 = pneg %p36
      %p152 = pneg %p33
      %p153 = pneg %p57
      %p154 = pneg %p54
      %p155 = pneg %p83
      %p156 = pneg %p80
      %p157 = scmp.lt.s32.totalorder %s15, 1
      %s158 = scalar_select %p157, %s15, 1
      %s159 = smul.addr %s158, 32
      %s160 = smul.addr %s159, 4
      %s161 = scalar_lea.vmem %s2, %s160
      %p162 = pneg %p109
      %p163 = pneg %p106
      %p164 = scmp.lt.s32.totalorder %s15, 1
      %s165 = scalar_select %p164, %s15, 1
      %s166 = smul.addr %s165, 2
      %s167 = scalar_lea.vmem %s3, %s166
      %p168 = scmp.lt.s32.totalorder %s15, 1
      %s169 = scalar_select %p168, %s15, 1
      %s170 = smul.addr %s169, 32
      %s171 = smul.addr %s170, 8
      %s172 = scalar_lea.vmem %s0, %s171
      %p173 = scmp.lt.s32.totalorder %s15, 1
      %s174 = scalar_select %p173, %s15, 1
      %s175 = smul.addr %s174, 32
      %s176 = smul.addr %s175, 4
      %s177 = scalar_lea.vmem %s2, %s176
      %p178 = scmp.lt.s32.totalorder %s15, 1
      %s179 = scalar_select %p178, %s15, 1
      %s180 = smul.addr %s179, 2
      %s181 = scalar_lea.vmem %s3, %s180
      %v183 = vld [vmem:[%s172] sm:$0xff]
      %v184 = vld [vmem:[%s172 + $0x8] sm:$0xff]
      %v185 = vld [vmem:[%s172 + $0x10] sm:$0xff]
      %v186 = vld [vmem:[%s172 + $0x18] sm:$0xff]
      %v187 = vld [vmem:[%s172 + $0x20] sm:$0xff]
      %v188 = vld [vmem:[%s172 + $0x28] sm:$0xff]
      %v189 = vld [vmem:[%s172 + $0x30] sm:$0xff]
      %v190 = vld [vmem:[%s172 + $0x38] sm:$0xff]
      %v191 = vld [vmem:[%s172 + $0x40] sm:$0xff]
      %v192 = vld [vmem:[%s172 + $0x48] sm:$0xff]
      %v193 = vld [vmem:[%s172 + $0x50] sm:$0xff]
      %v194 = vld [vmem:[%s172 + $0x58] sm:$0xff]
      %v195 = vld [vmem:[%s172 + $0x60] sm:$0xff]
      %v196 = vld [vmem:[%s172 + $0x68] sm:$0xff]
      %v197 = vld [vmem:[%s172 + $0x70] sm:$0xff]
      %v198 = vld [vmem:[%s172 + $0x78] sm:$0xff]
      %v199 = vld [vmem:[%s172 + $0x80] sm:$0xff]
      %v200 = vld [vmem:[%s172 + $0x88] sm:$0xff]
      %v201 = vld [vmem:[%s172 + $0x90] sm:$0xff]
      %v202 = vld [vmem:[%s172 + $0x98] sm:$0xff]
      %v203 = vld [vmem:[%s172 + $0xa0] sm:$0xff]
      %v204 = vld [vmem:[%s172 + $0xa8] sm:$0xff]
      %v205 = vld [vmem:[%s172 + $0xb0] sm:$0xff]
      %v206 = vld [vmem:[%s172 + $0xb8] sm:$0xff]
      %v207 = vld [vmem:[%s172 + $0xc0] sm:$0xff]
      %v208 = vld [vmem:[%s172 + $0xc8] sm:$0xff]
      %v209 = vld [vmem:[%s172 + $0xd0] sm:$0xff]
      %v210 = vld [vmem:[%s172 + $0xd8] sm:$0xff]
      %v211 = vld [vmem:[%s172 + $0xe0] sm:$0xff]
      %v212 = vld [vmem:[%s172 + $0xe8] sm:$0xff]
      %v213 = vld [vmem:[%s172 + $0xf0] sm:$0xff]
      %v214 = vld [vmem:[%s172 + $0xf8] sm:$0xff]
      %vm215 = vcmask 27648
      %216 = vst.msk [vmem:[#allocation2] sm:$0xf] %vm215, 0
      %217 = vst.msk [vmem:[#allocation2 + $0x4] sm:$0xf] %vm215, 0
      %vm218 = vcmask 24576
      %219 = vst.msk [vmem:[#allocation2 + $0x8] sm:$0x1] %vm218, 0
      %s220 = scalar_lea.vmem [#allocation2], 204
      %221 = vst.msk [vmem:[%s220] sm:$0xf] %vm215, 0
      %222 = vst.msk [vmem:[%s220 + $0x4] sm:$0xf] %vm215, 0
      %223 = vst.msk [vmem:[%s220 + $0x8] sm:$0x1] %vm218, 0
      %vm224 = vcmask 24576
      %vm225 = vsmask.f32 256
      %vm226 = vmand %vm224, %vm225
      %v227 = vld [vmem:[#allocation2] sm:$0x1]
      %v228 = vsel %vm226, 0, %v227
      %229 = vst [vmem:[#allocation2] sm:$0x1] %v228
      %v230 = vld [vmem:[#allocation2 + $0xc] sm:$0x1]
      %v231 = vsel %vm226, 0, %v230
      %232 = vst [vmem:[#allocation2 + $0xc] sm:$0x1] %v231
      %v233 = vld [vmem:[#allocation2 + $0x18] sm:$0x1]
      %v234 = vsel %vm226, 0, %v233
      %235 = vst [vmem:[#allocation2 + $0x18] sm:$0x1] %v234
      %v236 = vld [vmem:[#allocation2 + $0x24] sm:$0x1]
      %v237 = vsel %vm226, 0, %v236
      %238 = vst [vmem:[#allocation2 + $0x24] sm:$0x1] %v237
      %v239 = vld [vmem:[#allocation2 + $0x30] sm:$0x1]
      %v240 = vsel %vm226, 0, %v239
      %241 = vst [vmem:[#allocation2 + $0x30] sm:$0x1] %v240
      %v242 = vld [vmem:[#allocation2 + $0x3c] sm:$0x1]
      %v243 = vsel %vm226, 0, %v242
      %244 = vst [vmem:[#allocation2 + $0x3c] sm:$0x1] %v243
      %v245 = vld [vmem:[#allocation2 + $0x48] sm:$0x1]
      %v246 = vsel %vm226, 0, %v245
      %247 = vst [vmem:[#allocation2 + $0x48] sm:$0x1] %v246
      %v248 = vld [vmem:[#allocation2 + $0x54] sm:$0x1]
      %v249 = vsel %vm226, 0, %v248
      %250 = vst [vmem:[#allocation2 + $0x54] sm:$0x1] %v249
      %v251 = vld [vmem:[#allocation2 + $0x60] sm:$0x1]
      %v252 = vsel %vm226, 0, %v251
      %253 = vst [vmem:[#allocation2 + $0x60] sm:$0x1] %v252
      %v254 = vld [vmem:[#allocation2 + $0x6c] sm:$0x1]
      %v255 = vsel %vm226, 0, %v254
      %256 = vst [vmem:[#allocation2 + $0x6c] sm:$0x1] %v255
      %v257 = vld [vmem:[#allocation2 + $0x78] sm:$0x1]
      %v258 = vsel %vm226, 0, %v257
      %259 = vst [vmem:[#allocation2 + $0x78] sm:$0x1] %v258
      %v260 = vld [vmem:[#allocation2 + $0x84] sm:$0x1]
      %v261 = vsel %vm226, 0, %v260
      %262 = vst [vmem:[#allocation2 + $0x84] sm:$0x1] %v261
      %v263 = vld [vmem:[#allocation2 + $0x90] sm:$0x1]
      %v264 = vsel %vm226, 0, %v263
      %265 = vst [vmem:[#allocation2 + $0x90] sm:$0x1] %v264
      %v266 = vld [vmem:[#allocation2 + $0x9c] sm:$0x1]
      %v267 = vsel %vm226, 0, %v266
      %268 = vst [vmem:[#allocation2 + $0x9c] sm:$0x1] %v267
      %v269 = vld [vmem:[#allocation2 + $0xa8] sm:$0x1]
      %v270 = vsel %vm226, 0, %v269
      %271 = vst [vmem:[#allocation2 + $0xa8] sm:$0x1] %v270
      %v272 = vld [vmem:[#allocation2 + $0xb4] sm:$0x1]
      %v273 = vsel %vm226, 0, %v272
      %274 = vst [vmem:[#allocation2 + $0xb4] sm:$0x1] %v273
      %v275 = vld [vmem:[#allocation2 + $0xc0] sm:$0x1]
      %v276 = vsel %vm226, 0, %v275
      %277 = vst [vmem:[#allocation2 + $0xc0] sm:$0x1] %v276
      %v278 = vld [vmem:[#allocation2 + $0xcc] sm:$0x1]
      %v279 = vsel %vm226, 0, %v278
      %280 = vst [vmem:[#allocation2 + $0xcc] sm:$0x1] %v279
      %vm281 = vsmask.f32 7938
      %vm282 = vmand %vm224, %vm281
      %v283 = vld [vmem:[#allocation2 + $0x8] sm:$0x1]
      %v284 = vsel %vm282, 0, %v283
      %285 = vst [vmem:[#allocation2 + $0x8] sm:$0x1] %v284
      %v286 = vld [vmem:[#allocation2 + $0x14] sm:$0x1]
      %v287 = vsel %vm282, 0, %v286
      %288 = vst [vmem:[#allocation2 + $0x14] sm:$0x1] %v287
      %v289 = vld [vmem:[#allocation2 + $0x20] sm:$0x1]
      %v290 = vsel %vm282, 0, %v289
      %291 = vst [vmem:[#allocation2 + $0x20] sm:$0x1] %v290
      %v292 = vld [vmem:[#allocation2 + $0x2c] sm:$0x1]
      %v293 = vsel %vm282, 0, %v292
      %294 = vst [vmem:[#allocation2 + $0x2c] sm:$0x1] %v293
      %v295 = vld [vmem:[#allocation2 + $0x38] sm:$0x1]
      %v296 = vsel %vm282, 0, %v295
      %297 = vst [vmem:[#allocation2 + $0x38] sm:$0x1] %v296
      %v298 = vld [vmem:[#allocation2 + $0x44] sm:$0x1]
      %v299 = vsel %vm282, 0, %v298
      %300 = vst [vmem:[#allocation2 + $0x44] sm:$0x1] %v299
      %v301 = vld [vmem:[#allocation2 + $0x50] sm:$0x1]
      %v302 = vsel %vm282, 0, %v301
      %303 = vst [vmem:[#allocation2 + $0x50] sm:$0x1] %v302
      %v304 = vld [vmem:[#allocation2 + $0x5c] sm:$0x1]
      %v305 = vsel %vm282, 0, %v304
      %306 = vst [vmem:[#allocation2 + $0x5c] sm:$0x1] %v305
      %v307 = vld [vmem:[#allocation2 + $0x68] sm:$0x1]
      %v308 = vsel %vm282, 0, %v307
      %309 = vst [vmem:[#allocation2 + $0x68] sm:$0x1] %v308
      %v310 = vld [vmem:[#allocation2 + $0x74] sm:$0x1]
      %v311 = vsel %vm282, 0, %v310
      %312 = vst [vmem:[#allocation2 + $0x74] sm:$0x1] %v311
      %v313 = vld [vmem:[#allocation2 + $0x80] sm:$0x1]
      %v314 = vsel %vm282, 0, %v313
      %315 = vst [vmem:[#allocation2 + $0x80] sm:$0x1] %v314
      %v316 = vld [vmem:[#allocation2 + $0x8c] sm:$0x1]
      %v317 = vsel %vm282, 0, %v316
      %318 = vst [vmem:[#allocation2 + $0x8c] sm:$0x1] %v317
      %v319 = vld [vmem:[#allocation2 + $0x98] sm:$0x1]
      %v320 = vsel %vm282, 0, %v319
      %321 = vst [vmem:[#allocation2 + $0x98] sm:$0x1] %v320
      %v322 = vld [vmem:[#allocation2 + $0xa4] sm:$0x1]
      %v323 = vsel %vm282, 0, %v322
      %324 = vst [vmem:[#allocation2 + $0xa4] sm:$0x1] %v323
      %v325 = vld [vmem:[#allocation2 + $0xb0] sm:$0x1]
      %v326 = vsel %vm282, 0, %v325
      %327 = vst [vmem:[#allocation2 + $0xb0] sm:$0x1] %v326
      %v328 = vld [vmem:[#allocation2 + $0xbc] sm:$0x1]
      %v329 = vsel %vm282, 0, %v328
      %330 = vst [vmem:[#allocation2 + $0xbc] sm:$0x1] %v329
      %v331 = vld [vmem:[#allocation2 + $0xc8] sm:$0x1]
      %v332 = vsel %vm282, 0, %v331
      %333 = vst [vmem:[#allocation2 + $0xc8] sm:$0x1] %v332
      %v334 = vld [vmem:[#allocation2 + $0xd4] sm:$0x1]
      %v335 = vsel %vm282, 0, %v334
      %336 = vst [vmem:[#allocation2 + $0xd4] sm:$0x1] %v335
      %v337 = vpack.c.bf16 %v184, %v183
      %v338 = vpack.c.bf16 %v186, %v185
      %v339 = vpack.c.bf16 %v188, %v187
      %v340 = vpack.c.bf16 %v190, %v189
      %v341 = vpack.c.bf16 %v192, %v191
      %v342 = vpack.c.bf16 %v194, %v193
      %v343 = vpack.c.bf16 %v196, %v195
      %v344 = vpack.c.bf16 %v198, %v197
      %v345 = vpack.c.bf16 %v200, %v199
      %v346 = vpack.c.bf16 %v202, %v201
      %v347 = vpack.c.bf16 %v204, %v203
      %v348 = vpack.c.bf16 %v206, %v205
      %v349 = vpack.c.bf16 %v208, %v207
      %v350 = vpack.c.bf16 %v210, %v209
      %v351 = vpack.c.bf16 %v212, %v211
      %v352 = vpack.c.bf16 %v214, %v213
      %v369 = vunpack.c.l.b16 %v337
      %v370 = vunpack.c.h.b16 %v337
      %v371 = vunpack.c.l.b16 %v338
      %v372 = vunpack.c.h.b16 %v338
      %v373 = vunpack.c.l.b16 %v339
      %v374 = vunpack.c.h.b16 %v339
      %v375 = vunpack.c.l.b16 %v340
      %v376 = vunpack.c.h.b16 %v340
      %v377 = vunpack.c.l.b16 %v341
      %v378 = vunpack.c.h.b16 %v341
      %v379 = vunpack.c.l.b16 %v342
      %v380 = vunpack.c.h.b16 %v342
      %v381 = vunpack.c.l.b16 %v343
      %v382 = vunpack.c.h.b16 %v343
      %v383 = vunpack.c.l.b16 %v344
      %v384 = vunpack.c.h.b16 %v344
      %v385 = vunpack.c.l.b16 %v345
      %v386 = vunpack.c.h.b16 %v345
      %v387 = vunpack.c.l.b16 %v346
      %v388 = vunpack.c.h.b16 %v346
      %v389 = vunpack.c.l.b16 %v347
      %v390 = vunpack.c.h.b16 %v347
      %v391 = vunpack.c.l.b16 %v348
      %v392 = vunpack.c.h.b16 %v348
      %v393 = vunpack.c.l.b16 %v349
      %v394 = vunpack.c.h.b16 %v349
      %v395 = vunpack.c.l.b16 %v350
      %v396 = vunpack.c.h.b16 %v350
      %v397 = vunpack.c.l.b16 %v351
      %v398 = vunpack.c.h.b16 %v351
      %v399 = vunpack.c.l.b16 %v352
      %v400 = vunpack.c.h.b16 %v352
      %v401 = vpack.c.b16 %v369, %v369
      %v402 = vpack.c.b16 %v370, %v370
      %v403 = vpack.c.b16 %v371, %v371
      %v404 = vpack.c.b16 %v372, %v372
      %v405 = vpack.c.b16 %v373, %v373
      %v406 = vpack.c.b16 %v374, %v374
      %v407 = vpack.c.b16 %v375, %v375
      %v408 = vpack.c.b16 %v376, %v376
      %v409 = vpack.c.b16 %v377, %v377
      %v410 = vpack.c.b16 %v378, %v378
      %v411 = vpack.c.b16 %v379, %v379
      %v412 = vpack.c.b16 %v380, %v380
      %v413 = vpack.c.b16 %v381, %v381
      %v414 = vpack.c.b16 %v382, %v382
      %v415 = vpack.c.b16 %v383, %v383
      %v416 = vpack.c.b16 %v384, %v384
      %v417 = vpack.c.b16 %v385, %v385
      %v418 = vpack.c.b16 %v386, %v386
      %v419 = vpack.c.b16 %v387, %v387
      %v420 = vpack.c.b16 %v388, %v388
      %v421 = vpack.c.b16 %v389, %v389
      %v422 = vpack.c.b16 %v390, %v390
      %v423 = vpack.c.b16 %v391, %v391
      %v424 = vpack.c.b16 %v392, %v392
      %v425 = vpack.c.b16 %v393, %v393
      %v426 = vpack.c.b16 %v394, %v394
      %v427 = vpack.c.b16 %v395, %v395
      %v428 = vpack.c.b16 %v396, %v396
      %v429 = vpack.c.b16 %v397, %v397
      %v430 = vpack.c.b16 %v398, %v398
      %v431 = vpack.c.b16 %v399, %v399
      %v432 = vpack.c.b16 %v400, %v400
      %vm433 = vsmask.f32 4368
      %vm434 = vmor %vm225, %vm433
      %v436 = vshrl.u32 %v401, 16
      %v438 = vrot.slane %v436, 7
      %v439 = vshll.u32 %v401, 16
      %v441 = vor.u32 %v438, %v439
      %v442 = vrot.slane %v438, 4
      %v444 = vshrl.u32 %v402, 16
      %v446 = vrot.slane %v444, 7
      %v447 = vshll.u32 %v402, 16
      %v449 = vor.u32 %v446, %v447
      %v450 = vsel %vm434, %v442, %v449
      %v451 = vrot.slane %v446, 4
      %v453 = vshrl.u32 %v403, 16
      %v455 = vrot.slane %v453, 7
      %v456 = vshll.u32 %v403, 16
      %v458 = vor.u32 %v455, %v456
      %v459 = vrot.slane %v455, 4
      %v461 = vshrl.u32 %v404, 16
      %v463 = vrot.slane %v461, 7
      %v464 = vshll.u32 %v404, 16
      %v466 = vor.u32 %v463, %v464
      %v467 = vsel %vm434, %v459, %v466
      %v468 = vrot.slane %v463, 4
      %v470 = vshrl.u32 %v405, 16
      %v472 = vrot.slane %v470, 7
      %v473 = vshll.u32 %v405, 16
      %v475 = vor.u32 %v472, %v473
      %v476 = vrot.slane %v472, 4
      %v478 = vshrl.u32 %v406, 16
      %v480 = vrot.slane %v478, 7
      %v481 = vshll.u32 %v406, 16
      %v483 = vor.u32 %v480, %v481
      %v484 = vsel %vm434, %v476, %v483
      %v485 = vrot.slane %v480, 4
      %v487 = vshrl.u32 %v407, 16
      %v489 = vrot.slane %v487, 7
      %v490 = vshll.u32 %v407, 16
      %v492 = vor.u32 %v489, %v490
      %v493 = vrot.slane %v489, 4
      %v495 = vshrl.u32 %v408, 16
      %v497 = vrot.slane %v495, 7
      %v498 = vshll.u32 %v408, 16
      %v500 = vor.u32 %v497, %v498
      %v501 = vsel %vm434, %v493, %v500
      %v502 = vrot.slane %v497, 4
      %v504 = vshrl.u32 %v409, 16
      %v506 = vrot.slane %v504, 7
      %v507 = vshll.u32 %v409, 16
      %v509 = vor.u32 %v506, %v507
      %v510 = vrot.slane %v506, 4
      %v512 = vshrl.u32 %v410, 16
      %v514 = vrot.slane %v512, 7
      %v515 = vshll.u32 %v410, 16
      %v517 = vor.u32 %v514, %v515
      %v518 = vsel %vm434, %v510, %v517
      %v519 = vrot.slane %v514, 4
      %v521 = vshrl.u32 %v411, 16
      %v523 = vrot.slane %v521, 7
      %v524 = vshll.u32 %v411, 16
      %v526 = vor.u32 %v523, %v524
      %v527 = vrot.slane %v523, 4
      %v529 = vshrl.u32 %v412, 16
      %v531 = vrot.slane %v529, 7
      %v532 = vshll.u32 %v412, 16
      %v534 = vor.u32 %v531, %v532
      %v535 = vsel %vm434, %v527, %v534
      %v536 = vrot.slane %v531, 4
      %v538 = vshrl.u32 %v413, 16
      %v540 = vrot.slane %v538, 7
      %v541 = vshll.u32 %v413, 16
      %v543 = vor.u32 %v540, %v541
      %v544 = vrot.slane %v540, 4
      %v546 = vshrl.u32 %v414, 16
      %v548 = vrot.slane %v546, 7
      %v549 = vshll.u32 %v414, 16
      %v551 = vor.u32 %v548, %v549
      %v552 = vsel %vm434, %v544, %v551
      %v553 = vrot.slane %v548, 4
      %v555 = vshrl.u32 %v415, 16
      %v557 = vrot.slane %v555, 7
      %v558 = vshll.u32 %v415, 16
      %v560 = vor.u32 %v557, %v558
      %v561 = vrot.slane %v557, 4
      %v563 = vshrl.u32 %v416, 16
      %v565 = vrot.slane %v563, 7
      %v566 = vshll.u32 %v416, 16
      %v568 = vor.u32 %v565, %v566
      %v569 = vsel %vm434, %v561, %v568
      %v570 = vrot.slane %v565, 4
      %v572 = vshrl.u32 %v417, 16
      %v574 = vrot.slane %v572, 7
      %v575 = vshll.u32 %v417, 16
      %v577 = vor.u32 %v574, %v575
      %v578 = vrot.slane %v574, 4
      %v580 = vshrl.u32 %v418, 16
      %v582 = vrot.slane %v580, 7
      %v583 = vshll.u32 %v418, 16
      %v585 = vor.u32 %v582, %v583
      %v586 = vsel %vm434, %v578, %v585
      %v587 = vrot.slane %v582, 4
      %v589 = vshrl.u32 %v419, 16
      %v591 = vrot.slane %v589, 7
      %v592 = vshll.u32 %v419, 16
      %v594 = vor.u32 %v591, %v592
      %v595 = vrot.slane %v591, 4
      %v597 = vshrl.u32 %v420, 16
      %v599 = vrot.slane %v597, 7
      %v600 = vshll.u32 %v420, 16
      %v602 = vor.u32 %v599, %v600
      %v603 = vsel %vm434, %v595, %v602
      %v604 = vrot.slane %v599, 4
      %v606 = vshrl.u32 %v421, 16
      %v608 = vrot.slane %v606, 7
      %v609 = vshll.u32 %v421, 16
      %v611 = vor.u32 %v608, %v609
      %v612 = vrot.slane %v608, 4
      %v614 = vshrl.u32 %v422, 16
      %v616 = vrot.slane %v614, 7
      %v617 = vshll.u32 %v422, 16
      %v619 = vor.u32 %v616, %v617
      %v620 = vsel %vm434, %v612, %v619
      %v621 = vrot.slane %v616, 4
      %v623 = vshrl.u32 %v423, 16
      %v625 = vrot.slane %v623, 7
      %v626 = vshll.u32 %v423, 16
      %v628 = vor.u32 %v625, %v626
      %v629 = vrot.slane %v625, 4
      %v631 = vshrl.u32 %v424, 16
      %v633 = vrot.slane %v631, 7
      %v634 = vshll.u32 %v424, 16
      %v636 = vor.u32 %v633, %v634
      %v637 = vsel %vm434, %v629, %v636
      %v638 = vrot.slane %v633, 4
      %v640 = vshrl.u32 %v425, 16
      %v642 = vrot.slane %v640, 7
      %v643 = vshll.u32 %v425, 16
      %v645 = vor.u32 %v642, %v643
      %v646 = vrot.slane %v642, 4
      %v648 = vshrl.u32 %v426, 16
      %v650 = vrot.slane %v648, 7
      %v651 = vshll.u32 %v426, 16
      %v653 = vor.u32 %v650, %v651
      %v654 = vsel %vm434, %v646, %v653
      %v655 = vrot.slane %v650, 4
      %v657 = vshrl.u32 %v427, 16
      %v659 = vrot.slane %v657, 7
      %v660 = vshll.u32 %v427, 16
      %v662 = vor.u32 %v659, %v660
      %v663 = vrot.slane %v659, 4
      %v665 = vshrl.u32 %v428, 16
      %v667 = vrot.slane %v665, 7
      %v668 = vshll.u32 %v428, 16
      %v670 = vor.u32 %v667, %v668
      %v671 = vsel %vm434, %v663, %v670
      %v672 = vrot.slane %v667, 4
      %v674 = vshrl.u32 %v429, 16
      %v676 = vrot.slane %v674, 7
      %v677 = vshll.u32 %v429, 16
      %v679 = vor.u32 %v676, %v677
      %v680 = vrot.slane %v676, 4
      %v682 = vshrl.u32 %v430, 16
      %v684 = vrot.slane %v682, 7
      %v685 = vshll.u32 %v430, 16
      %v687 = vor.u32 %v684, %v685
      %v688 = vsel %vm434, %v680, %v687
      %v689 = vrot.slane %v684, 4
      %v691 = vshrl.u32 %v431, 16
      %v693 = vrot.slane %v691, 7
      %v694 = vshll.u32 %v431, 16
      %v696 = vor.u32 %v693, %v694
      %v697 = vrot.slane %v693, 4
      %v699 = vshrl.u32 %v432, 16
      %v701 = vrot.slane %v699, 7
      %v702 = vshll.u32 %v432, 16
      %v704 = vor.u32 %v701, %v702
      %v705 = vsel %vm434, %v697, %v704
      %v706 = vrot.slane %v701, 4
      %s755 = scalar_lea.vmem [#allocation2], 12
      %vm756 = vcmask 27648
      %vm757 = vmand %vm756, %vm281
      %v758 = vld [vmem:[%s755] sm:$0xf]
      %v759 = vsel %vm757, %v441, %v758
      %760 = vst [vmem:[%s755] sm:$0xf] %v759
      %761 = vst.msk [vmem:[%s755 + $0x4] sm:$0xf] %vm215, %v450
      %v762 = vld [vmem:[%s755 + $0x8] sm:$0x1]
      %v763 = vsel %vm226, %v451, %v762
      %764 = vst [vmem:[%s755 + $0x8] sm:$0x1] %v763
      %v765 = vld [vmem:[%s755 + $0xc] sm:$0xf]
      %v766 = vsel %vm757, %v458, %v765
      %767 = vst [vmem:[%s755 + $0xc] sm:$0xf] %v766
      %768 = vst.msk [vmem:[%s755 + $0x10] sm:$0xf] %vm215, %v467
      %v769 = vld [vmem:[%s755 + $0x14] sm:$0x1]
      %v770 = vsel %vm226, %v468, %v769
      %771 = vst [vmem:[%s755 + $0x14] sm:$0x1] %v770
      %v772 = vld [vmem:[%s755 + $0x18] sm:$0xf]
      %v773 = vsel %vm757, %v475, %v772
      %774 = vst [vmem:[%s755 + $0x18] sm:$0xf] %v773
      %775 = vst.msk [vmem:[%s755 + $0x1c] sm:$0xf] %vm215, %v484
      %v776 = vld [vmem:[%s755 + $0x20] sm:$0x1]
      %v777 = vsel %vm226, %v485, %v776
      %778 = vst [vmem:[%s755 + $0x20] sm:$0x1] %v777
      %v779 = vld [vmem:[%s755 + $0x24] sm:$0xf]
      %v780 = vsel %vm757, %v492, %v779
      %781 = vst [vmem:[%s755 + $0x24] sm:$0xf] %v780
      %782 = vst.msk [vmem:[%s755 + $0x28] sm:$0xf] %vm215, %v501
      %v783 = vld [vmem:[%s755 + $0x2c] sm:$0x1]
      %v784 = vsel %vm226, %v502, %v783
      %785 = vst [vmem:[%s755 + $0x2c] sm:$0x1] %v784
      %v786 = vld [vmem:[%s755 + $0x30] sm:$0xf]
      %v787 = vsel %vm757, %v509, %v786
      %788 = vst [vmem:[%s755 + $0x30] sm:$0xf] %v787
      %789 = vst.msk [vmem:[%s755 + $0x34] sm:$0xf] %vm215, %v518
      %v790 = vld [vmem:[%s755 + $0x38] sm:$0x1]
      %v791 = vsel %vm226, %v519, %v790
      %792 = vst [vmem:[%s755 + $0x38] sm:$0x1] %v791
      %v793 = vld [vmem:[%s755 + $0x3c] sm:$0xf]
      %v794 = vsel %vm757, %v526, %v793
      %795 = vst [vmem:[%s755 + $0x3c] sm:$0xf] %v794
      %796 = vst.msk [vmem:[%s755 + $0x40] sm:$0xf] %vm215, %v535
      %v797 = vld [vmem:[%s755 + $0x44] sm:$0x1]
      %v798 = vsel %vm226, %v536, %v797
      %799 = vst [vmem:[%s755 + $0x44] sm:$0x1] %v798
      %v800 = vld [vmem:[%s755 + $0x48] sm:$0xf]
      %v801 = vsel %vm757, %v543, %v800
      %802 = vst [vmem:[%s755 + $0x48] sm:$0xf] %v801
      %803 = vst.msk [vmem:[%s755 + $0x4c] sm:$0xf] %vm215, %v552
      %v804 = vld [vmem:[%s755 + $0x50] sm:$0x1]
      %v805 = vsel %vm226, %v553, %v804
      %806 = vst [vmem:[%s755 + $0x50] sm:$0x1] %v805
      %v807 = vld [vmem:[%s755 + $0x54] sm:$0xf]
      %v808 = vsel %vm757, %v560, %v807
      %809 = vst [vmem:[%s755 + $0x54] sm:$0xf] %v808
      %810 = vst.msk [vmem:[%s755 + $0x58] sm:$0xf] %vm215, %v569
      %v811 = vld [vmem:[%s755 + $0x5c] sm:$0x1]
      %v812 = vsel %vm226, %v570, %v811
      %813 = vst [vmem:[%s755 + $0x5c] sm:$0x1] %v812
      %v814 = vld [vmem:[%s755 + $0x60] sm:$0xf]
      %v815 = vsel %vm757, %v577, %v814
      %816 = vst [vmem:[%s755 + $0x60] sm:$0xf] %v815
      %817 = vst.msk [vmem:[%s755 + $0x64] sm:$0xf] %vm215, %v586
      %v818 = vld [vmem:[%s755 + $0x68] sm:$0x1]
      %v819 = vsel %vm226, %v587, %v818
      %820 = vst [vmem:[%s755 + $0x68] sm:$0x1] %v819
      %v821 = vld [vmem:[%s755 + $0x6c] sm:$0xf]
      %v822 = vsel %vm757, %v594, %v821
      %823 = vst [vmem:[%s755 + $0x6c] sm:$0xf] %v822
      %824 = vst.msk [vmem:[%s755 + $0x70] sm:$0xf] %vm215, %v603
      %v825 = vld [vmem:[%s755 + $0x74] sm:$0x1]
      %v826 = vsel %vm226, %v604, %v825
      %827 = vst [vmem:[%s755 + $0x74] sm:$0x1] %v826
      %v828 = vld [vmem:[%s755 + $0x78] sm:$0xf]
      %v829 = vsel %vm757, %v611, %v828
      %830 = vst [vmem:[%s755 + $0x78] sm:$0xf] %v829
      %831 = vst.msk [vmem:[%s755 + $0x7c] sm:$0xf] %vm215, %v620
      %v832 = vld [vmem:[%s755 + $0x80] sm:$0x1]
      %v833 = vsel %vm226, %v621, %v832
      %834 = vst [vmem:[%s755 + $0x80] sm:$0x1] %v833
      %v835 = vld [vmem:[%s755 + $0x84] sm:$0xf]
      %v836 = vsel %vm757, %v628, %v835
      %837 = vst [vmem:[%s755 + $0x84] sm:$0xf] %v836
      %838 = vst.msk [vmem:[%s755 + $0x88] sm:$0xf] %vm215, %v637
      %v839 = vld [vmem:[%s755 + $0x8c] sm:$0x1]
      %v840 = vsel %vm226, %v638, %v839
      %841 = vst [vmem:[%s755 + $0x8c] sm:$0x1] %v840
      %v842 = vld [vmem:[%s755 + $0x90] sm:$0xf]
      %v843 = vsel %vm757, %v645, %v842
      %844 = vst [vmem:[%s755 + $0x90] sm:$0xf] %v843
      %845 = vst.msk [vmem:[%s755 + $0x94] sm:$0xf] %vm215, %v654
      %v846 = vld [vmem:[%s755 + $0x98] sm:$0x1]
      %v847 = vsel %vm226, %v655, %v846
      %848 = vst [vmem:[%s755 + $0x98] sm:$0x1] %v847
      %v849 = vld [vmem:[%s755 + $0x9c] sm:$0xf]
      %v850 = vsel %vm757, %v662, %v849
      %851 = vst [vmem:[%s755 + $0x9c] sm:$0xf] %v850
      %852 = vst.msk [vmem:[%s755 + $0xa0] sm:$0xf] %vm215, %v671
      %v853 = vld [vmem:[%s755 + $0xa4] sm:$0x1]
      %v854 = vsel %vm226, %v672, %v853
      %855 = vst [vmem:[%s755 + $0xa4] sm:$0x1] %v854
      %v856 = vld [vmem:[%s755 + $0xa8] sm:$0xf]
      %v857 = vsel %vm757, %v679, %v856
      %858 = vst [vmem:[%s755 + $0xa8] sm:$0xf] %v857
      %859 = vst.msk [vmem:[%s755 + $0xac] sm:$0xf] %vm215, %v688
      %v860 = vld [vmem:[%s755 + $0xb0] sm:$0x1]
      %v861 = vsel %vm226, %v689, %v860
      %862 = vst [vmem:[%s755 + $0xb0] sm:$0x1] %v861
      %v863 = vld [vmem:[%s755 + $0xb4] sm:$0xf]
      %v864 = vsel %vm757, %v696, %v863
      %865 = vst [vmem:[%s755 + $0xb4] sm:$0xf] %v864
      %866 = vst.msk [vmem:[%s755 + $0xb8] sm:$0xf] %vm215, %v705
      %v867 = vld [vmem:[%s755 + $0xbc] sm:$0x1]
      %v868 = vsel %vm226, %v706, %v867
      %869 = vst [vmem:[%s755 + $0xbc] sm:$0x1] %v868
      %v870 = vld [vmem:[#allocation2] sm:$0xf]
      %v871 = vld [vmem:[#allocation2 + $0x4] sm:$0xf]
      %v872 = vld [vmem:[#allocation2 + $0xc] sm:$0xf]
      %v873 = vld [vmem:[#allocation2 + $0x10] sm:$0xf]
      %v874 = vld [vmem:[#allocation2 + $0x18] sm:$0xf]
      %v875 = vld [vmem:[#allocation2 + $0x1c] sm:$0xf]
      %v876 = vld [vmem:[#allocation2 + $0x24] sm:$0xf]
      %v877 = vld [vmem:[#allocation2 + $0x28] sm:$0xf]
      %v878 = vld [vmem:[#allocation2 + $0x30] sm:$0xf]
      %v879 = vld [vmem:[#allocation2 + $0x34] sm:$0xf]
      %v880 = vld [vmem:[#allocation2 + $0x3c] sm:$0xf]
      %v881 = vld [vmem:[#allocation2 + $0x40] sm:$0xf]
      %v882 = vld [vmem:[#allocation2 + $0x48] sm:$0xf]
      %v883 = vld [vmem:[#allocation2 + $0x4c] sm:$0xf]
      %v884 = vld [vmem:[#allocation2 + $0x54] sm:$0xf]
      %v885 = vld [vmem:[#allocation2 + $0x58] sm:$0xf]
      %v886 = vld [vmem:[#allocation2 + $0x60] sm:$0xf]
      %v887 = vld [vmem:[#allocation2 + $0x64] sm:$0xf]
      %v888 = vld [vmem:[#allocation2 + $0x6c] sm:$0xf]
      %v889 = vld [vmem:[#allocation2 + $0x70] sm:$0xf]
      %v890 = vld [vmem:[#allocation2 + $0x78] sm:$0xf]
      %v891 = vld [vmem:[#allocation2 + $0x7c] sm:$0xf]
      %v892 = vld [vmem:[#allocation2 + $0x84] sm:$0xf]
      %v893 = vld [vmem:[#allocation2 + $0x88] sm:$0xf]
      %v894 = vld [vmem:[#allocation2 + $0x90] sm:$0xf]
      %v895 = vld [vmem:[#allocation2 + $0x94] sm:$0xf]
      %v896 = vld [vmem:[#allocation2 + $0x9c] sm:$0xf]
      %v897 = vld [vmem:[#allocation2 + $0xa0] sm:$0xf]
      %v898 = vld [vmem:[#allocation2 + $0xa8] sm:$0xf]
      %v899 = vld [vmem:[#allocation2 + $0xac] sm:$0xf]
      %v900 = vld [vmem:[#allocation2 + $0xb4] sm:$0xf]
      %v901 = vld [vmem:[#allocation2 + $0xb8] sm:$0xf]
      %v902 = vld [vmem:[#allocation2 + $0x8] sm:$0x1]
      %v903 = vld [vmem:[#allocation2 + $0x14] sm:$0x1]
      %v904 = vld [vmem:[#allocation2 + $0x20] sm:$0x1]
      %v905 = vld [vmem:[#allocation2 + $0x2c] sm:$0x1]
      %v906 = vld [vmem:[#allocation2 + $0x38] sm:$0x1]
      %v907 = vld [vmem:[#allocation2 + $0x44] sm:$0x1]
      %v908 = vld [vmem:[#allocation2 + $0x50] sm:$0x1]
      %v909 = vld [vmem:[#allocation2 + $0x5c] sm:$0x1]
      %v910 = vld [vmem:[#allocation2 + $0x68] sm:$0x1]
      %v911 = vld [vmem:[#allocation2 + $0x74] sm:$0x1]
      %v912 = vld [vmem:[#allocation2 + $0x80] sm:$0x1]
      %v913 = vld [vmem:[#allocation2 + $0x8c] sm:$0x1]
      %v914 = vld [vmem:[#allocation2 + $0x98] sm:$0x1]
      %v915 = vld [vmem:[#allocation2 + $0xa4] sm:$0x1]
      %v916 = vld [vmem:[#allocation2 + $0xb0] sm:$0x1]
      %v917 = vld [vmem:[#allocation2 + $0xbc] sm:$0x1]
      %v918 = vld [vmem:[#allocation2] sm:$0xe]
      %v919 = vld [vmem:[#allocation2 + $0xc] sm:$0xe]
      %v920 = vld [vmem:[#allocation2 + $0x18] sm:$0xe]
      %v921 = vld [vmem:[#allocation2 + $0x24] sm:$0xe]
      %v922 = vld [vmem:[#allocation2 + $0x30] sm:$0xe]
      %v923 = vld [vmem:[#allocation2 + $0x3c] sm:$0xe]
      %v924 = vld [vmem:[#allocation2 + $0x48] sm:$0xe]
      %v925 = vld [vmem:[#allocation2 + $0x54] sm:$0xe]
      %v926 = vld [vmem:[#allocation2 + $0x60] sm:$0xe]
      %v927 = vld [vmem:[#allocation2 + $0x6c] sm:$0xe]
      %v928 = vld [vmem:[#allocation2 + $0x78] sm:$0xe]
      %v929 = vld [vmem:[#allocation2 + $0x84] sm:$0xe]
      %v930 = vld [vmem:[#allocation2 + $0x90] sm:$0xe]
      %v931 = vld [vmem:[#allocation2 + $0x9c] sm:$0xe]
      %v932 = vld [vmem:[#allocation2 + $0xa8] sm:$0xe]
      %v933 = vld [vmem:[#allocation2 + $0xb4] sm:$0xe]
      %v934 = vld [vmem:[%s755] sm:$0xf]
      %v935 = vld [vmem:[%s755 + $0x4] sm:$0xf]
      %v936 = vld [vmem:[%s755 + $0xc] sm:$0xf]
      %v937 = vld [vmem:[%s755 + $0x10] sm:$0xf]
      %v938 = vld [vmem:[%s755 + $0x18] sm:$0xf]
      %v939 = vld [vmem:[%s755 + $0x1c] sm:$0xf]
      %v940 = vld [vmem:[%s755 + $0x24] sm:$0xf]
      %v941 = vld [vmem:[%s755 + $0x28] sm:$0xf]
      %v942 = vld [vmem:[%s755 + $0x30] sm:$0xf]
      %v943 = vld [vmem:[%s755 + $0x34] sm:$0xf]
      %v944 = vld [vmem:[%s755 + $0x3c] sm:$0xf]
      %v945 = vld [vmem:[%s755 + $0x40] sm:$0xf]
      %v946 = vld [vmem:[%s755 + $0x48] sm:$0xf]
      %v947 = vld [vmem:[%s755 + $0x4c] sm:$0xf]
      %v948 = vld [vmem:[%s755 + $0x54] sm:$0xf]
      %v949 = vld [vmem:[%s755 + $0x58] sm:$0xf]
      %v950 = vld [vmem:[%s755 + $0x60] sm:$0xf]
      %v951 = vld [vmem:[%s755 + $0x64] sm:$0xf]
      %v952 = vld [vmem:[%s755 + $0x6c] sm:$0xf]
      %v953 = vld [vmem:[%s755 + $0x70] sm:$0xf]
      %v954 = vld [vmem:[%s755 + $0x78] sm:$0xf]
      %v955 = vld [vmem:[%s755 + $0x7c] sm:$0xf]
      %v956 = vld [vmem:[%s755 + $0x84] sm:$0xf]
      %v957 = vld [vmem:[%s755 + $0x88] sm:$0xf]
      %v958 = vld [vmem:[%s755 + $0x90] sm:$0xf]
      %v959 = vld [vmem:[%s755 + $0x94] sm:$0xf]
      %v960 = vld [vmem:[%s755 + $0x9c] sm:$0xf]
      %v961 = vld [vmem:[%s755 + $0xa0] sm:$0xf]
      %v962 = vld [vmem:[%s755 + $0xa8] sm:$0xf]
      %v963 = vld [vmem:[%s755 + $0xac] sm:$0xf]
      %v964 = vld [vmem:[%s755 + $0xb4] sm:$0xf]
      %v965 = vld [vmem:[%s755 + $0xb8] sm:$0xf]
      %v966 = vld [vmem:[%s755 + $0x8] sm:$0x1]
      %v967 = vld [vmem:[%s755 + $0x14] sm:$0x1]
      %v968 = vld [vmem:[%s755 + $0x20] sm:$0x1]
      %v969 = vld [vmem:[%s755 + $0x2c] sm:$0x1]
      %v970 = vld [vmem:[%s755 + $0x38] sm:$0x1]
      %v971 = vld [vmem:[%s755 + $0x44] sm:$0x1]
      %v972 = vld [vmem:[%s755 + $0x50] sm:$0x1]
      %v973 = vld [vmem:[%s755 + $0x5c] sm:$0x1]
      %v974 = vld [vmem:[%s755 + $0x68] sm:$0x1]
      %v975 = vld [vmem:[%s755 + $0x74] sm:$0x1]
      %v976 = vld [vmem:[%s755 + $0x80] sm:$0x1]
      %v977 = vld [vmem:[%s755 + $0x8c] sm:$0x1]
      %v978 = vld [vmem:[%s755 + $0x98] sm:$0x1]
      %v979 = vld [vmem:[%s755 + $0xa4] sm:$0x1]
      %v980 = vld [vmem:[%s755 + $0xb0] sm:$0x1]
      %v981 = vld [vmem:[%s755 + $0xbc] sm:$0x1]
      %v982 = vld [vmem:[%s755] sm:$0xe]
      %v983 = vld [vmem:[%s755 + $0xc] sm:$0xe]
      %v984 = vld [vmem:[%s755 + $0x18] sm:$0xe]
      %v985 = vld [vmem:[%s755 + $0x24] sm:$0xe]
      %v986 = vld [vmem:[%s755 + $0x30] sm:$0xe]
      %v987 = vld [vmem:[%s755 + $0x3c] sm:$0xe]
      %v988 = vld [vmem:[%s755 + $0x48] sm:$0xe]
      %v989 = vld [vmem:[%s755 + $0x54] sm:$0xe]
      %v990 = vld [vmem:[%s755 + $0x60] sm:$0xe]
      %v991 = vld [vmem:[%s755 + $0x6c] sm:$0xe]
      %v992 = vld [vmem:[%s755 + $0x78] sm:$0xe]
      %v993 = vld [vmem:[%s755 + $0x84] sm:$0xe]
      %v994 = vld [vmem:[%s755 + $0x90] sm:$0xe]
      %v995 = vld [vmem:[%s755 + $0x9c] sm:$0xe]
      %v996 = vld [vmem:[%s755 + $0xa8] sm:$0xe]
      %v997 = vld [vmem:[%s755 + $0xb4] sm:$0xe]
      %s998 = scalar_lea.vmem [#allocation2], 24
      %v999 = vld [vmem:[%s998] sm:$0xf]
      %v1000 = vld [vmem:[%s998 + $0x4] sm:$0xf]
      %v1001 = vld [vmem:[%s998 + $0xc] sm:$0xf]
      %v1002 = vld [vmem:[%s998 + $0x10] sm:$0xf]
      %v1003 = vld [vmem:[%s998 + $0x18] sm:$0xf]
      %v1004 = vld [vmem:[%s998 + $0x1c] sm:$0xf]
      %v1005 = vld [vmem:[%s998 + $0x24] sm:$0xf]
      %v1006 = vld [vmem:[%s998 + $0x28] sm:$0xf]
      %v1007 = vld [vmem:[%s998 + $0x30] sm:$0xf]
      %v1008 = vld [vmem:[%s998 + $0x34] sm:$0xf]
      %v1009 = vld [vmem:[%s998 + $0x3c] sm:$0xf]
      %v1010 = vld [vmem:[%s998 + $0x40] sm:$0xf]
      %v1011 = vld [vmem:[%s998 + $0x48] sm:$0xf]
      %v1012 = vld [vmem:[%s998 + $0x4c] sm:$0xf]
      %v1013 = vld [vmem:[%s998 + $0x54] sm:$0xf]
      %v1014 = vld [vmem:[%s998 + $0x58] sm:$0xf]
      %v1015 = vld [vmem:[%s998 + $0x60] sm:$0xf]
      %v1016 = vld [vmem:[%s998 + $0x64] sm:$0xf]
      %v1017 = vld [vmem:[%s998 + $0x6c] sm:$0xf]
      %v1018 = vld [vmem:[%s998 + $0x70] sm:$0xf]
      %v1019 = vld [vmem:[%s998 + $0x78] sm:$0xf]
      %v1020 = vld [vmem:[%s998 + $0x7c] sm:$0xf]
      %v1021 = vld [vmem:[%s998 + $0x84] sm:$0xf]
      %v1022 = vld [vmem:[%s998 + $0x88] sm:$0xf]
      %v1023 = vld [vmem:[%s998 + $0x90] sm:$0xf]
      %v1024 = vld [vmem:[%s998 + $0x94] sm:$0xf]
      %v1025 = vld [vmem:[%s998 + $0x9c] sm:$0xf]
      %v1026 = vld [vmem:[%s998 + $0xa0] sm:$0xf]
      %v1027 = vld [vmem:[%s998 + $0xa8] sm:$0xf]
      %v1028 = vld [vmem:[%s998 + $0xac] sm:$0xf]
      %v1029 = vld [vmem:[%s998 + $0xb4] sm:$0xf]
      %v1030 = vld [vmem:[%s998 + $0xb8] sm:$0xf]
      %v1031 = vld [vmem:[%s998 + $0x8] sm:$0x1]
      %v1032 = vld [vmem:[%s998 + $0x14] sm:$0x1]
      %v1033 = vld [vmem:[%s998 + $0x20] sm:$0x1]
      %v1034 = vld [vmem:[%s998 + $0x2c] sm:$0x1]
      %v1035 = vld [vmem:[%s998 + $0x38] sm:$0x1]
      %v1036 = vld [vmem:[%s998 + $0x44] sm:$0x1]
      %v1037 = vld [vmem:[%s998 + $0x50] sm:$0x1]
      %v1038 = vld [vmem:[%s998 + $0x5c] sm:$0x1]
      %v1039 = vld [vmem:[%s998 + $0x68] sm:$0x1]
      %v1040 = vld [vmem:[%s998 + $0x74] sm:$0x1]
      %v1041 = vld [vmem:[%s998 + $0x80] sm:$0x1]
      %v1042 = vld [vmem:[%s998 + $0x8c] sm:$0x1]
      %v1043 = vld [vmem:[%s998 + $0x98] sm:$0x1]
      %v1044 = vld [vmem:[%s998 + $0xa4] sm:$0x1]
      %v1045 = vld [vmem:[%s998 + $0xb0] sm:$0x1]
      %v1046 = vld [vmem:[%s998 + $0xbc] sm:$0x1]
      %v1047 = vld [vmem:[%s998] sm:$0xe]
      %v1048 = vld [vmem:[%s998 + $0xc] sm:$0xe]
      %v1049 = vld [vmem:[%s998 + $0x18] sm:$0xe]
      %v1050 = vld [vmem:[%s998 + $0x24] sm:$0xe]
      %v1051 = vld [vmem:[%s998 + $0x30] sm:$0xe]
      %v1052 = vld [vmem:[%s998 + $0x3c] sm:$0xe]
      %v1053 = vld [vmem:[%s998 + $0x48] sm:$0xe]
      %v1054 = vld [vmem:[%s998 + $0x54] sm:$0xe]
      %v1055 = vld [vmem:[%s998 + $0x60] sm:$0xe]
      %v1056 = vld [vmem:[%s998 + $0x6c] sm:$0xe]
      %v1057 = vld [vmem:[%s998 + $0x78] sm:$0xe]
      %v1058 = vld [vmem:[%s998 + $0x84] sm:$0xe]
      %v1059 = vld [vmem:[%s998 + $0x90] sm:$0xe]
      %v1060 = vld [vmem:[%s998 + $0x9c] sm:$0xe]
      %v1061 = vld [vmem:[%s998 + $0xa8] sm:$0xe]
      %v1062 = vld [vmem:[%s998 + $0xb4] sm:$0xe]
      %v1095 = vunpack.c.l.b16 %v870
      %v1096 = vunpack.c.l.b16 %v871
      %v1097 = vunpack.c.l.b16 %v872
      %v1098 = vunpack.c.l.b16 %v873
      %v1099 = vunpack.c.l.b16 %v874
      %v1100 = vunpack.c.l.b16 %v875
      %v1101 = vunpack.c.l.b16 %v876
      %v1102 = vunpack.c.l.b16 %v877
      %v1103 = vunpack.c.l.b16 %v878
      %v1104 = vunpack.c.l.b16 %v879
      %v1105 = vunpack.c.l.b16 %v880
      %v1106 = vunpack.c.l.b16 %v881
      %v1107 = vunpack.c.l.b16 %v882
      %v1108 = vunpack.c.l.b16 %v883
      %v1109 = vunpack.c.l.b16 %v884
      %v1110 = vunpack.c.l.b16 %v885
      %v1111 = vunpack.c.l.b16 %v886
      %v1112 = vunpack.c.l.b16 %v887
      %v1113 = vunpack.c.l.b16 %v888
      %v1114 = vunpack.c.l.b16 %v889
      %v1115 = vunpack.c.l.b16 %v890
      %v1116 = vunpack.c.l.b16 %v891
      %v1117 = vunpack.c.l.b16 %v892
      %v1118 = vunpack.c.l.b16 %v893
      %v1119 = vunpack.c.l.b16 %v894
      %v1120 = vunpack.c.l.b16 %v895
      %v1121 = vunpack.c.l.b16 %v896
      %v1122 = vunpack.c.l.b16 %v897
      %v1123 = vunpack.c.l.b16 %v898
      %v1124 = vunpack.c.l.b16 %v899
      %v1125 = vunpack.c.l.b16 %v900
      %v1126 = vunpack.c.l.b16 %v901
      %v1127 = vpack.c.b16 %v1096, %v1095
      %v1128 = vpack.c.b16 %v1098, %v1097
      %v1129 = vpack.c.b16 %v1100, %v1099
      %v1130 = vpack.c.b16 %v1102, %v1101
      %v1131 = vpack.c.b16 %v1104, %v1103
      %v1132 = vpack.c.b16 %v1106, %v1105
      %v1133 = vpack.c.b16 %v1108, %v1107
      %v1134 = vpack.c.b16 %v1110, %v1109
      %v1135 = vpack.c.b16 %v1112, %v1111
      %v1136 = vpack.c.b16 %v1114, %v1113
      %v1137 = vpack.c.b16 %v1116, %v1115
      %v1138 = vpack.c.b16 %v1118, %v1117
      %v1139 = vpack.c.b16 %v1120, %v1119
      %v1140 = vpack.c.b16 %v1122, %v1121
      %v1141 = vpack.c.b16 %v1124, %v1123
      %v1142 = vpack.c.b16 %v1126, %v1125
      %v1159 = vunpack.c.l.b16 %v902
      %v1160 = vunpack.c.l.b16 %v903
      %v1161 = vunpack.c.l.b16 %v904
      %v1162 = vunpack.c.l.b16 %v905
      %v1163 = vunpack.c.l.b16 %v906
      %v1164 = vunpack.c.l.b16 %v907
      %v1165 = vunpack.c.l.b16 %v908
      %v1166 = vunpack.c.l.b16 %v909
      %v1167 = vunpack.c.l.b16 %v910
      %v1168 = vunpack.c.l.b16 %v911
      %v1169 = vunpack.c.l.b16 %v912
      %v1170 = vunpack.c.l.b16 %v913
      %v1171 = vunpack.c.l.b16 %v914
      %v1172 = vunpack.c.l.b16 %v915
      %v1173 = vunpack.c.l.b16 %v916
      %v1174 = vunpack.c.l.b16 %v917
      %v1175 = vpack.c.b16 %v1159, %v1159
      %v1176 = vpack.c.b16 %v1160, %v1160
      %v1177 = vpack.c.b16 %v1161, %v1161
      %v1178 = vpack.c.b16 %v1162, %v1162
      %v1179 = vpack.c.b16 %v1163, %v1163
      %v1180 = vpack.c.b16 %v1164, %v1164
      %v1181 = vpack.c.b16 %v1165, %v1165
      %v1182 = vpack.c.b16 %v1166, %v1166
      %v1183 = vpack.c.b16 %v1167, %v1167
      %v1184 = vpack.c.b16 %v1168, %v1168
      %v1185 = vpack.c.b16 %v1169, %v1169
      %v1186 = vpack.c.b16 %v1170, %v1170
      %v1187 = vpack.c.b16 %v1171, %v1171
      %v1188 = vpack.c.b16 %v1172, %v1172
      %v1189 = vpack.c.b16 %v1173, %v1173
      %v1190 = vpack.c.b16 %v1174, %v1174
      %vm1191 = vsmask.f32 7424
      %v1193 = vshrl.u32 %v1127, 16
      %v1195 = vshll.u32 %v1127, 16
      %v1197 = vrot.slane %v1195, 1
      %v1198 = vor.u32 %v1193, %v1197
      %v1200 = vshll.u32 %v1175, 16
      %v1202 = vrot.slane %v1200, 1
      %v1203 = vsel %vm1191, %v1198, %v1202
      %v1205 = vshrl.u32 %v1128, 16
      %v1207 = vshll.u32 %v1128, 16
      %v1209 = vrot.slane %v1207, 1
      %v1210 = vor.u32 %v1205, %v1209
      %v1212 = vshll.u32 %v1176, 16
      %v1214 = vrot.slane %v1212, 1
      %v1215 = vsel %vm1191, %v1210, %v1214
      %v1217 = vshrl.u32 %v1129, 16
      %v1219 = vshll.u32 %v1129, 16
      %v1221 = vrot.slane %v1219, 1
      %v1222 = vor.u32 %v1217, %v1221
      %v1224 = vshll.u32 %v1177, 16
      %v1226 = vrot.slane %v1224, 1
      %v1227 = vsel %vm1191, %v1222, %v1226
      %v1229 = vshrl.u32 %v1130, 16
      %v1231 = vshll.u32 %v1130, 16
      %v1233 = vrot.slane %v1231, 1
      %v1234 = vor.u32 %v1229, %v1233
      %v1236 = vshll.u32 %v1178, 16
      %v1238 = vrot.slane %v1236, 1
      %v1239 = vsel %vm1191, %v1234, %v1238
      %v1241 = vshrl.u32 %v1131, 16
      %v1243 = vshll.u32 %v1131, 16
      %v1245 = vrot.slane %v1243, 1
      %v1246 = vor.u32 %v1241, %v1245
      %v1248 = vshll.u32 %v1179, 16
      %v1250 = vrot.slane %v1248, 1
      %v1251 = vsel %vm1191, %v1246, %v1250
      %v1253 = vshrl.u32 %v1132, 16
      %v1255 = vshll.u32 %v1132, 16
      %v1257 = vrot.slane %v1255, 1
      %v1258 = vor.u32 %v1253, %v1257
      %v1260 = vshll.u32 %v1180, 16
      %v1262 = vrot.slane %v1260, 1
      %v1263 = vsel %vm1191, %v1258, %v1262
      %v1265 = vshrl.u32 %v1133, 16
      %v1267 = vshll.u32 %v1133, 16
      %v1269 = vrot.slane %v1267, 1
      %v1270 = vor.u32 %v1265, %v1269
      %v1272 = vshll.u32 %v1181, 16
      %v1274 = vrot.slane %v1272, 1
      %v1275 = vsel %vm1191, %v1270, %v1274
      %v1277 = vshrl.u32 %v1134, 16
      %v1279 = vshll.u32 %v1134, 16
      %v1281 = vrot.slane %v1279, 1
      %v1282 = vor.u32 %v1277, %v1281
      %v1284 = vshll.u32 %v1182, 16
      %v1286 = vrot.slane %v1284, 1
      %v1287 = vsel %vm1191, %v1282, %v1286
      %v1289 = vshrl.u32 %v1135, 16
      %v1291 = vshll.u32 %v1135, 16
      %v1293 = vrot.slane %v1291, 1
      %v1294 = vor.u32 %v1289, %v1293
      %v1296 = vshll.u32 %v1183, 16
      %v1298 = vrot.slane %v1296, 1
      %v1299 = vsel %vm1191, %v1294, %v1298
      %v1301 = vshrl.u32 %v1136, 16
      %v1303 = vshll.u32 %v1136, 16
      %v1305 = vrot.slane %v1303, 1
      %v1306 = vor.u32 %v1301, %v1305
      %v1308 = vshll.u32 %v1184, 16
      %v1310 = vrot.slane %v1308, 1
      %v1311 = vsel %vm1191, %v1306, %v1310
      %v1313 = vshrl.u32 %v1137, 16
      %v1315 = vshll.u32 %v1137, 16
      %v1317 = vrot.slane %v1315, 1
      %v1318 = vor.u32 %v1313, %v1317
      %v1320 = vshll.u32 %v1185, 16
      %v1322 = vrot.slane %v1320, 1
      %v1323 = vsel %vm1191, %v1318, %v1322
      %v1325 = vshrl.u32 %v1138, 16
      %v1327 = vshll.u32 %v1138, 16
      %v1329 = vrot.slane %v1327, 1
      %v1330 = vor.u32 %v1325, %v1329
      %v1332 = vshll.u32 %v1186, 16
      %v1334 = vrot.slane %v1332, 1
      %v1335 = vsel %vm1191, %v1330, %v1334
      %v1337 = vshrl.u32 %v1139, 16
      %v1339 = vshll.u32 %v1139, 16
      %v1341 = vrot.slane %v1339, 1
      %v1342 = vor.u32 %v1337, %v1341
      %v1344 = vshll.u32 %v1187, 16
      %v1346 = vrot.slane %v1344, 1
      %v1347 = vsel %vm1191, %v1342, %v1346
      %v1349 = vshrl.u32 %v1140, 16
      %v1351 = vshll.u32 %v1140, 16
      %v1353 = vrot.slane %v1351, 1
      %v1354 = vor.u32 %v1349, %v1353
      %v1356 = vshll.u32 %v1188, 16
      %v1358 = vrot.slane %v1356, 1
      %v1359 = vsel %vm1191, %v1354, %v1358
      %v1361 = vshrl.u32 %v1141, 16
      %v1363 = vshll.u32 %v1141, 16
      %v1365 = vrot.slane %v1363, 1
      %v1366 = vor.u32 %v1361, %v1365
      %v1368 = vshll.u32 %v1189, 16
      %v1370 = vrot.slane %v1368, 1
      %v1371 = vsel %vm1191, %v1366, %v1370
      %v1373 = vshrl.u32 %v1142, 16
      %v1375 = vshll.u32 %v1142, 16
      %v1377 = vrot.slane %v1375, 1
      %v1378 = vor.u32 %v1373, %v1377
      %v1380 = vshll.u32 %v1190, 16
      %v1382 = vrot.slane %v1380, 1
      %v1383 = vsel %vm1191, %v1378, %v1382
      %1384 = vrot.lane.b32.xlu0 %v1203, 4
      %v1385 = vpop.permute.xlu0 %1384
      %1386 = vrot.lane.b32.xlu0 %v1215, 4
      %v1387 = vpop.permute.xlu0 %1386
      %1388 = vrot.lane.b32.xlu0 %v1227, 4
      %v1389 = vpop.permute.xlu0 %1388
      %1390 = vrot.lane.b32.xlu0 %v1239, 4
      %v1391 = vpop.permute.xlu0 %1390
      %1392 = vrot.lane.b32.xlu0 %v1251, 4
      %v1393 = vpop.permute.xlu0 %1392
      %1394 = vrot.lane.b32.xlu0 %v1263, 4
      %v1395 = vpop.permute.xlu0 %1394
      %1396 = vrot.lane.b32.xlu0 %v1275, 4
      %v1397 = vpop.permute.xlu0 %1396
      %1398 = vrot.lane.b32.xlu0 %v1287, 4
      %v1399 = vpop.permute.xlu0 %1398
      %1400 = vrot.lane.b32.xlu0 %v1299, 4
      %v1401 = vpop.permute.xlu0 %1400
      %1402 = vrot.lane.b32.xlu0 %v1311, 4
      %v1403 = vpop.permute.xlu0 %1402
      %1404 = vrot.lane.b32.xlu0 %v1323, 4
      %v1405 = vpop.permute.xlu0 %1404
      %1406 = vrot.lane.b32.xlu0 %v1335, 4
      %v1407 = vpop.permute.xlu0 %1406
      %1408 = vrot.lane.b32.xlu0 %v1347, 4
      %v1409 = vpop.permute.xlu0 %1408
      %1410 = vrot.lane.b32.xlu0 %v1359, 4
      %v1411 = vpop.permute.xlu0 %1410
      %1412 = vrot.lane.b32.xlu0 %v1371, 4
      %v1413 = vpop.permute.xlu0 %1412
      %1414 = vrot.lane.b32.xlu0 %v1383, 4
      %v1415 = vpop.permute.xlu0 %1414
      %v1432 = vunpack.c.l.b16 %v918
      %v1433 = vunpack.c.l.b16 %v919
      %v1434 = vunpack.c.l.b16 %v920
      %v1435 = vunpack.c.l.b16 %v921
      %v1436 = vunpack.c.l.b16 %v922
      %v1437 = vunpack.c.l.b16 %v923
      %v1438 = vunpack.c.l.b16 %v924
      %v1439 = vunpack.c.l.b16 %v925
      %v1440 = vunpack.c.l.b16 %v926
      %v1441 = vunpack.c.l.b16 %v927
      %v1442 = vunpack.c.l.b16 %v928
      %v1443 = vunpack.c.l.b16 %v929
      %v1444 = vunpack.c.l.b16 %v930
      %v1445 = vunpack.c.l.b16 %v931
      %v1446 = vunpack.c.l.b16 %v932
      %v1447 = vunpack.c.l.b16 %v933
      %v1448 = vpack.c.b16 %v1096, %v1432
      %v1449 = vpack.c.b16 %v1098, %v1433
      %v1450 = vpack.c.b16 %v1100, %v1434
      %v1451 = vpack.c.b16 %v1102, %v1435
      %v1452 = vpack.c.b16 %v1104, %v1436
      %v1453 = vpack.c.b16 %v1106, %v1437
      %v1454 = vpack.c.b16 %v1108, %v1438
      %v1455 = vpack.c.b16 %v1110, %v1439
      %v1456 = vpack.c.b16 %v1112, %v1440
      %v1457 = vpack.c.b16 %v1114, %v1441
      %v1458 = vpack.c.b16 %v1116, %v1442
      %v1459 = vpack.c.b16 %v1118, %v1443
      %v1460 = vpack.c.b16 %v1120, %v1444
      %v1461 = vpack.c.b16 %v1122, %v1445
      %v1462 = vpack.c.b16 %v1124, %v1446
      %v1463 = vpack.c.b16 %v1126, %v1447
      %vm1464 = vcmask 1046528
      %v1465 = vrot.slane %v1448, 1
      %v1466 = vrot.slane %v1175, 1
      %v1467 = vsel %vm1464, %v1465, %v1466
      %v1468 = vrot.slane %v1449, 1
      %v1469 = vrot.slane %v1176, 1
      %v1470 = vsel %vm1464, %v1468, %v1469
      %v1471 = vrot.slane %v1450, 1
      %v1472 = vrot.slane %v1177, 1
      %v1473 = vsel %vm1464, %v1471, %v1472
      %v1474 = vrot.slane %v1451, 1
      %v1475 = vrot.slane %v1178, 1
      %v1476 = vsel %vm1464, %v1474, %v1475
      %v1477 = vrot.slane %v1452, 1
      %v1478 = vrot.slane %v1179, 1
      %v1479 = vsel %vm1464, %v1477, %v1478
      %v1480 = vrot.slane %v1453, 1
      %v1481 = vrot.slane %v1180, 1
      %v1482 = vsel %vm1464, %v1480, %v1481
      %v1483 = vrot.slane %v1454, 1
      %v1484 = vrot.slane %v1181, 1
      %v1485 = vsel %vm1464, %v1483, %v1484
      %v1486 = vrot.slane %v1455, 1
      %v1487 = vrot.slane %v1182, 1
      %v1488 = vsel %vm1464, %v1486, %v1487
      %v1489 = vrot.slane %v1456, 1
      %v1490 = vrot.slane %v1183, 1
      %v1491 = vsel %vm1464, %v1489, %v1490
      %v1492 = vrot.slane %v1457, 1
      %v1493 = vrot.slane %v1184, 1
      %v1494 = vsel %vm1464, %v1492, %v1493
      %v1495 = vrot.slane %v1458, 1
      %v1496 = vrot.slane %v1185, 1
      %v1497 = vsel %vm1464, %v1495, %v1496
      %v1498 = vrot.slane %v1459, 1
      %v1499 = vrot.slane %v1186, 1
      %v1500 = vsel %vm1464, %v1498, %v1499
      %v1501 = vrot.slane %v1460, 1
      %v1502 = vrot.slane %v1187, 1
      %v1503 = vsel %vm1464, %v1501, %v1502
      %v1504 = vrot.slane %v1461, 1
      %v1505 = vrot.slane %v1188, 1
      %v1506 = vsel %vm1464, %v1504, %v1505
      %v1507 = vrot.slane %v1462, 1
      %v1508 = vrot.slane %v1189, 1
      %v1509 = vsel %vm1464, %v1507, %v1508
      %v1510 = vrot.slane %v1463, 1
      %v1511 = vrot.slane %v1190, 1
      %v1512 = vsel %vm1464, %v1510, %v1511
      %1513 = vrot.lane.b32.xlu0 %v1467, 8
      %v1514 = vpop.permute.xlu0 %1513
      %1515 = vrot.lane.b32.xlu0 %v1470, 8
      %v1516 = vpop.permute.xlu0 %1515
      %1517 = vrot.lane.b32.xlu0 %v1473, 8
      %v1518 = vpop.permute.xlu0 %1517
      %1519 = vrot.lane.b32.xlu0 %v1476, 8
      %v1520 = vpop.permute.xlu0 %1519
      %1521 = vrot.lane.b32.xlu0 %v1479, 8
      %v1522 = vpop.permute.xlu0 %1521
      %1523 = vrot.lane.b32.xlu0 %v1482, 8
      %v1524 = vpop.permute.xlu0 %1523
      %1525 = vrot.lane.b32.xlu0 %v1485, 8
      %v1526 = vpop.permute.xlu0 %1525
      %1527 = vrot.lane.b32.xlu0 %v1488, 8
      %v1528 = vpop.permute.xlu0 %1527
      %1529 = vrot.lane.b32.xlu0 %v1491, 8
      %v1530 = vpop.permute.xlu0 %1529
      %1531 = vrot.lane.b32.xlu0 %v1494, 8
      %v1532 = vpop.permute.xlu0 %1531
      %1533 = vrot.lane.b32.xlu0 %v1497, 8
      %v1534 = vpop.permute.xlu0 %1533
      %1535 = vrot.lane.b32.xlu0 %v1500, 8
      %v1536 = vpop.permute.xlu0 %1535
      %1537 = vrot.lane.b32.xlu0 %v1503, 8
      %v1538 = vpop.permute.xlu0 %1537
      %1539 = vrot.lane.b32.xlu0 %v1506, 8
      %v1540 = vpop.permute.xlu0 %1539
      %1541 = vrot.lane.b32.xlu0 %v1509, 8
      %v1542 = vpop.permute.xlu0 %1541
      %1543 = vrot.lane.b32.xlu0 %v1512, 8
      %v1544 = vpop.permute.xlu0 %1543
      %v1577 = vunpack.c.l.b16 %v934
      %v1578 = vunpack.c.l.b16 %v935
      %v1579 = vunpack.c.l.b16 %v936
      %v1580 = vunpack.c.l.b16 %v937
      %v1581 = vunpack.c.l.b16 %v938
      %v1582 = vunpack.c.l.b16 %v939
      %v1583 = vunpack.c.l.b16 %v940
      %v1584 = vunpack.c.l.b16 %v941
      %v1585 = vunpack.c.l.b16 %v942
      %v1586 = vunpack.c.l.b16 %v943
      %v1587 = vunpack.c.l.b16 %v944
      %v1588 = vunpack.c.l.b16 %v945
      %v1589 = vunpack.c.l.b16 %v946
      %v1590 = vunpack.c.l.b16 %v947
      %v1591 = vunpack.c.l.b16 %v948
      %v1592 = vunpack.c.l.b16 %v949
      %v1593 = vunpack.c.l.b16 %v950
      %v1594 = vunpack.c.l.b16 %v951
      %v1595 = vunpack.c.l.b16 %v952
      %v1596 = vunpack.c.l.b16 %v953
      %v1597 = vunpack.c.l.b16 %v954
      %v1598 = vunpack.c.l.b16 %v955
      %v1599 = vunpack.c.l.b16 %v956
      %v1600 = vunpack.c.l.b16 %v957
      %v1601 = vunpack.c.l.b16 %v958
      %v1602 = vunpack.c.l.b16 %v959
      %v1603 = vunpack.c.l.b16 %v960
      %v1604 = vunpack.c.l.b16 %v961
      %v1605 = vunpack.c.l.b16 %v962
      %v1606 = vunpack.c.l.b16 %v963
      %v1607 = vunpack.c.l.b16 %v964
      %v1608 = vunpack.c.l.b16 %v965
      %v1609 = vpack.c.b16 %v1578, %v1577
      %v1610 = vpack.c.b16 %v1580, %v1579
      %v1611 = vpack.c.b16 %v1582, %v1581
      %v1612 = vpack.c.b16 %v1584, %v1583
      %v1613 = vpack.c.b16 %v1586, %v1585
      %v1614 = vpack.c.b16 %v1588, %v1587
      %v1615 = vpack.c.b16 %v1590, %v1589
      %v1616 = vpack.c.b16 %v1592, %v1591
      %v1617 = vpack.c.b16 %v1594, %v1593
      %v1618 = vpack.c.b16 %v1596, %v1595
      %v1619 = vpack.c.b16 %v1598, %v1597
      %v1620 = vpack.c.b16 %v1600, %v1599
      %v1621 = vpack.c.b16 %v1602, %v1601
      %v1622 = vpack.c.b16 %v1604, %v1603
      %v1623 = vpack.c.b16 %v1606, %v1605
      %v1624 = vpack.c.b16 %v1608, %v1607
      %1625 = vrot.lane.b32.xlu0 %v1609, 12
      %v1626 = vpop.permute.xlu0 %1625
      %1627 = vrot.lane.b32.xlu0 %v1610, 12
      %v1628 = vpop.permute.xlu0 %1627
      %1629 = vrot.lane.b32.xlu0 %v1611, 12
      %v1630 = vpop.permute.xlu0 %1629
      %1631 = vrot.lane.b32.xlu0 %v1612, 12
      %v1632 = vpop.permute.xlu0 %1631
      %1633 = vrot.lane.b32.xlu0 %v1613, 12
      %v1634 = vpop.permute.xlu0 %1633
      %1635 = vrot.lane.b32.xlu0 %v1614, 12
      %v1636 = vpop.permute.xlu0 %1635
      %1637 = vrot.lane.b32.xlu0 %v1615, 12
      %v1638 = vpop.permute.xlu0 %1637
      %1639 = vrot.lane.b32.xlu0 %v1616, 12
      %v1640 = vpop.permute.xlu0 %1639
      %1641 = vrot.lane.b32.xlu0 %v1617, 12
      %v1642 = vpop.permute.xlu0 %1641
      %1643 = vrot.lane.b32.xlu0 %v1618, 12
      %v1644 = vpop.permute.xlu0 %1643
      %1645 = vrot.lane.b32.xlu0 %v1619, 12
      %v1646 = vpop.permute.xlu0 %1645
      %1647 = vrot.lane.b32.xlu0 %v1620, 12
      %v1648 = vpop.permute.xlu0 %1647
      %1649 = vrot.lane.b32.xlu0 %v1621, 12
      %v1650 = vpop.permute.xlu0 %1649
      %1651 = vrot.lane.b32.xlu0 %v1622, 12
      %v1652 = vpop.permute.xlu0 %1651
      %1653 = vrot.lane.b32.xlu0 %v1623, 12
      %v1654 = vpop.permute.xlu0 %1653
      %1655 = vrot.lane.b32.xlu0 %v1624, 12
      %v1656 = vpop.permute.xlu0 %1655
      %v1673 = vunpack.c.l.b16 %v966
      %v1674 = vunpack.c.l.b16 %v967
      %v1675 = vunpack.c.l.b16 %v968
      %v1676 = vunpack.c.l.b16 %v969
      %v1677 = vunpack.c.l.b16 %v970
      %v1678 = vunpack.c.l.b16 %v971
      %v1679 = vunpack.c.l.b16 %v972
      %v1680 = vunpack.c.l.b16 %v973
      %v1681 = vunpack.c.l.b16 %v974
      %v1682 = vunpack.c.l.b16 %v975
      %v1683 = vunpack.c.l.b16 %v976
      %v1684 = vunpack.c.l.b16 %v977
      %v1685 = vunpack.c.l.b16 %v978
      %v1686 = vunpack.c.l.b16 %v979
      %v1687 = vunpack.c.l.b16 %v980
      %v1688 = vunpack.c.l.b16 %v981
      %v1689 = vpack.c.b16 %v1673, %v1673
      %v1690 = vpack.c.b16 %v1674, %v1674
      %v1691 = vpack.c.b16 %v1675, %v1675
      %v1692 = vpack.c.b16 %v1676, %v1676
      %v1693 = vpack.c.b16 %v1677, %v1677
      %v1694 = vpack.c.b16 %v1678, %v1678
      %v1695 = vpack.c.b16 %v1679, %v1679
      %v1696 = vpack.c.b16 %v1680, %v1680
      %v1697 = vpack.c.b16 %v1681, %v1681
      %v1698 = vpack.c.b16 %v1682, %v1682
      %v1699 = vpack.c.b16 %v1683, %v1683
      %v1700 = vpack.c.b16 %v1684, %v1684
      %v1701 = vpack.c.b16 %v1685, %v1685
      %v1702 = vpack.c.b16 %v1686, %v1686
      %v1703 = vpack.c.b16 %v1687, %v1687
      %v1704 = vpack.c.b16 %v1688, %v1688
      %v1706 = vshrl.u32 %v1609, 16
      %v1708 = vshll.u32 %v1609, 16
      %v1710 = vrot.slane %v1708, 1
      %v1711 = vor.u32 %v1706, %v1710
      %v1713 = vshll.u32 %v1689, 16
      %v1715 = vrot.slane %v1713, 1
      %v1716 = vsel %vm1191, %v1711, %v1715
      %v1718 = vshrl.u32 %v1610, 16
      %v1720 = vshll.u32 %v1610, 16
      %v1722 = vrot.slane %v1720, 1
      %v1723 = vor.u32 %v1718, %v1722
      %v1725 = vshll.u32 %v1690, 16
      %v1727 = vrot.slane %v1725, 1
      %v1728 = vsel %vm1191, %v1723, %v1727
      %v1730 = vshrl.u32 %v1611, 16
      %v1732 = vshll.u32 %v1611, 16
      %v1734 = vrot.slane %v1732, 1
      %v1735 = vor.u32 %v1730, %v1734
      %v1737 = vshll.u32 %v1691, 16
      %v1739 = vrot.slane %v1737, 1
      %v1740 = vsel %vm1191, %v1735, %v1739
      %v1742 = vshrl.u32 %v1612, 16
      %v1744 = vshll.u32 %v1612, 16
      %v1746 = vrot.slane %v1744, 1
      %v1747 = vor.u32 %v1742, %v1746
      %v1749 = vshll.u32 %v1692, 16
      %v1751 = vrot.slane %v1749, 1
      %v1752 = vsel %vm1191, %v1747, %v1751
      %v1754 = vshrl.u32 %v1613, 16
      %v1756 = vshll.u32 %v1613, 16
      %v1758 = vrot.slane %v1756, 1
      %v1759 = vor.u32 %v1754, %v1758
      %v1761 = vshll.u32 %v1693, 16
      %v1763 = vrot.slane %v1761, 1
      %v1764 = vsel %vm1191, %v1759, %v1763
      %v1766 = vshrl.u32 %v1614, 16
      %v1768 = vshll.u32 %v1614, 16
      %v1770 = vrot.slane %v1768, 1
      %v1771 = vor.u32 %v1766, %v1770
      %v1773 = vshll.u32 %v1694, 16
      %v1775 = vrot.slane %v1773, 1
      %v1776 = vsel %vm1191, %v1771, %v1775
      %v1778 = vshrl.u32 %v1615, 16
      %v1780 = vshll.u32 %v1615, 16
      %v1782 = vrot.slane %v1780, 1
      %v1783 = vor.u32 %v1778, %v1782
      %v1785 = vshll.u32 %v1695, 16
      %v1787 = vrot.slane %v1785, 1
      %v1788 = vsel %vm1191, %v1783, %v1787
      %v1790 = vshrl.u32 %v1616, 16
      %v1792 = vshll.u32 %v1616, 16
      %v1794 = vrot.slane %v1792, 1
      %v1795 = vor.u32 %v1790, %v1794
      %v1797 = vshll.u32 %v1696, 16
      %v1799 = vrot.slane %v1797, 1
      %v1800 = vsel %vm1191, %v1795, %v1799
      %v1802 = vshrl.u32 %v1617, 16
      %v1804 = vshll.u32 %v1617, 16
      %v1806 = vrot.slane %v1804, 1
      %v1807 = vor.u32 %v1802, %v1806
      %v1809 = vshll.u32 %v1697, 16
      %v1811 = vrot.slane %v1809, 1
      %v1812 = vsel %vm1191, %v1807, %v1811
      %v1814 = vshrl.u32 %v1618, 16
      %v1816 = vshll.u32 %v1618, 16
      %v1818 = vrot.slane %v1816, 1
      %v1819 = vor.u32 %v1814, %v1818
      %v1821 = vshll.u32 %v1698, 16
      %v1823 = vrot.slane %v1821, 1
      %v1824 = vsel %vm1191, %v1819, %v1823
      %v1826 = vshrl.u32 %v1619, 16
      %v1828 = vshll.u32 %v1619, 16
      %v1830 = vrot.slane %v1828, 1
      %v1831 = vor.u32 %v1826, %v1830
      %v1833 = vshll.u32 %v1699, 16
      %v1835 = vrot.slane %v1833, 1
      %v1836 = vsel %vm1191, %v1831, %v1835
      %v1838 = vshrl.u32 %v1620, 16
      %v1840 = vshll.u32 %v1620, 16
      %v1842 = vrot.slane %v1840, 1
      %v1843 = vor.u32 %v1838, %v1842
      %v1845 = vshll.u32 %v1700, 16
      %v1847 = vrot.slane %v1845, 1
      %v1848 = vsel %vm1191, %v1843, %v1847
      %v1850 = vshrl.u32 %v1621, 16
      %v1852 = vshll.u32 %v1621, 16
      %v1854 = vrot.slane %v1852, 1
      %v1855 = vor.u32 %v1850, %v1854
      %v1857 = vshll.u32 %v1701, 16
      %v1859 = vrot.slane %v1857, 1
      %v1860 = vsel %vm1191, %v1855, %v1859
      %v1862 = vshrl.u32 %v1622, 16
      %v1864 = vshll.u32 %v1622, 16
      %v1866 = vrot.slane %v1864, 1
      %v1867 = vor.u32 %v1862, %v1866
      %v1869 = vshll.u32 %v1702, 16
      %v1871 = vrot.slane %v1869, 1
      %v1872 = vsel %vm1191, %v1867, %v1871
      %v1874 = vshrl.u32 %v1623, 16
      %v1876 = vshll.u32 %v1623, 16
      %v1878 = vrot.slane %v1876, 1
      %v1879 = vor.u32 %v1874, %v1878
      %v1881 = vshll.u32 %v1703, 16
      %v1883 = vrot.slane %v1881, 1
      %v1884 = vsel %vm1191, %v1879, %v1883
      %v1886 = vshrl.u32 %v1624, 16
      %v1888 = vshll.u32 %v1624, 16
      %v1890 = vrot.slane %v1888, 1
      %v1891 = vor.u32 %v1886, %v1890
      %v1893 = vshll.u32 %v1704, 16
      %v1895 = vrot.slane %v1893, 1
      %v1896 = vsel %vm1191, %v1891, %v1895
      %1897 = vrot.lane.b32.xlu0 %v1716, 16
      %v1898 = vpop.permute.xlu0 %1897
      %1899 = vrot.lane.b32.xlu0 %v1728, 16
      %v1900 = vpop.permute.xlu0 %1899
      %1901 = vrot.lane.b32.xlu0 %v1740, 16
      %v1902 = vpop.permute.xlu0 %1901
      %1903 = vrot.lane.b32.xlu0 %v1752, 16
      %v1904 = vpop.permute.xlu0 %1903
      %1905 = vrot.lane.b32.xlu0 %v1764, 16
      %v1906 = vpop.permute.xlu0 %1905
      %1907 = vrot.lane.b32.xlu0 %v1776, 16
      %v1908 = vpop.permute.xlu0 %1907
      %1909 = vrot.lane.b32.xlu0 %v1788, 16
      %v1910 = vpop.permute.xlu0 %1909
      %1911 = vrot.lane.b32.xlu0 %v1800, 16
      %v1912 = vpop.permute.xlu0 %1911
      %1913 = vrot.lane.b32.xlu0 %v1812, 16
      %v1914 = vpop.permute.xlu0 %1913
      %1915 = vrot.lane.b32.xlu0 %v1824, 16
      %v1916 = vpop.permute.xlu0 %1915
      %1917 = vrot.lane.b32.xlu0 %v1836, 16
      %v1918 = vpop.permute.xlu0 %1917
      %1919 = vrot.lane.b32.xlu0 %v1848, 16
      %v1920 = vpop.permute.xlu0 %1919
      %1921 = vrot.lane.b32.xlu0 %v1860, 16
      %v1922 = vpop.permute.xlu0 %1921
      %1923 = vrot.lane.b32.xlu0 %v1872, 16
      %v1924 = vpop.permute.xlu0 %1923
      %1925 = vrot.lane.b32.xlu0 %v1884, 16
      %v1926 = vpop.permute.xlu0 %1925
      %1927 = vrot.lane.b32.xlu0 %v1896, 16
      %v1928 = vpop.permute.xlu0 %1927
      %v1945 = vunpack.c.l.b16 %v982
      %v1946 = vunpack.c.l.b16 %v983
      %v1947 = vunpack.c.l.b16 %v984
      %v1948 = vunpack.c.l.b16 %v985
      %v1949 = vunpack.c.l.b16 %v986
      %v1950 = vunpack.c.l.b16 %v987
      %v1951 = vunpack.c.l.b16 %v988
      %v1952 = vunpack.c.l.b16 %v989
      %v1953 = vunpack.c.l.b16 %v990
      %v1954 = vunpack.c.l.b16 %v991
      %v1955 = vunpack.c.l.b16 %v992
      %v1956 = vunpack.c.l.b16 %v993
      %v1957 = vunpack.c.l.b16 %v994
      %v1958 = vunpack.c.l.b16 %v995
      %v1959 = vunpack.c.l.b16 %v996
      %v1960 = vunpack.c.l.b16 %v997
      %v1961 = vpack.c.b16 %v1578, %v1945
      %v1962 = vpack.c.b16 %v1580, %v1946
      %v1963 = vpack.c.b16 %v1582, %v1947
      %v1964 = vpack.c.b16 %v1584, %v1948
      %v1965 = vpack.c.b16 %v1586, %v1949
      %v1966 = vpack.c.b16 %v1588, %v1950
      %v1967 = vpack.c.b16 %v1590, %v1951
      %v1968 = vpack.c.b16 %v1592, %v1952
      %v1969 = vpack.c.b16 %v1594, %v1953
      %v1970 = vpack.c.b16 %v1596, %v1954
      %v1971 = vpack.c.b16 %v1598, %v1955
      %v1972 = vpack.c.b16 %v1600, %v1956
      %v1973 = vpack.c.b16 %v1602, %v1957
      %v1974 = vpack.c.b16 %v1604, %v1958
      %v1975 = vpack.c.b16 %v1606, %v1959
      %v1976 = vpack.c.b16 %v1608, %v1960
      %v1977 = vrot.slane %v1961, 1
      %v1978 = vrot.slane %v1689, 1
      %v1979 = vsel %vm1464, %v1977, %v1978
      %v1980 = vrot.slane %v1962, 1
      %v1981 = vrot.slane %v1690, 1
      %v1982 = vsel %vm1464, %v1980, %v1981
      %v1983 = vrot.slane %v1963, 1
      %v1984 = vrot.slane %v1691, 1
      %v1985 = vsel %vm1464, %v1983, %v1984
      %v1986 = vrot.slane %v1964, 1
      %v1987 = vrot.slane %v1692, 1
      %v1988 = vsel %vm1464, %v1986, %v1987
      %v1989 = vrot.slane %v1965, 1
      %v1990 = vrot.slane %v1693, 1
      %v1991 = vsel %vm1464, %v1989, %v1990
      %v1992 = vrot.slane %v1966, 1
      %v1993 = vrot.slane %v1694, 1
      %v1994 = vsel %vm1464, %v1992, %v1993
      %v1995 = vrot.slane %v1967, 1
      %v1996 = vrot.slane %v1695, 1
      %v1997 = vsel %vm1464, %v1995, %v1996
      %v1998 = vrot.slane %v1968, 1
      %v1999 = vrot.slane %v1696, 1
      %v2000 = vsel %vm1464, %v1998, %v1999
      %v2001 = vrot.slane %v1969, 1
      %v2002 = vrot.slane %v1697, 1
      %v2003 = vsel %vm1464, %v2001, %v2002
      %v2004 = vrot.slane %v1970, 1
      %v2005 = vrot.slane %v1698, 1
      %v2006 = vsel %vm1464, %v2004, %v2005
      %v2007 = vrot.slane %v1971, 1
      %v2008 = vrot.slane %v1699, 1
      %v2009 = vsel %vm1464, %v2007, %v2008
      %v2010 = vrot.slane %v1972, 1
      %v2011 = vrot.slane %v1700, 1
      %v2012 = vsel %vm1464, %v2010, %v2011
      %v2013 = vrot.slane %v1973, 1
      %v2014 = vrot.slane %v1701, 1
      %v2015 = vsel %vm1464, %v2013, %v2014
      %v2016 = vrot.slane %v1974, 1
      %v2017 = vrot.slane %v1702, 1
      %v2018 = vsel %vm1464, %v2016, %v2017
      %v2019 = vrot.slane %v1975, 1
      %v2020 = vrot.slane %v1703, 1
      %v2021 = vsel %vm1464, %v2019, %v2020
      %v2022 = vrot.slane %v1976, 1
      %v2023 = vrot.slane %v1704, 1
      %v2024 = vsel %vm1464, %v2022, %v2023
      %2025 = vrot.lane.b32.xlu0 %v1979, 20
      %v2026 = vpop.permute.xlu0 %2025
      %2027 = vrot.lane.b32.xlu0 %v1982, 20
      %v2028 = vpop.permute.xlu0 %2027
      %2029 = vrot.lane.b32.xlu0 %v1985, 20
      %v2030 = vpop.permute.xlu0 %2029
      %2031 = vrot.lane.b32.xlu0 %v1988, 20
      %v2032 = vpop.permute.xlu0 %2031
      %2033 = vrot.lane.b32.xlu0 %v1991, 20
      %v2034 = vpop.permute.xlu0 %2033
      %2035 = vrot.lane.b32.xlu0 %v1994, 20
      %v2036 = vpop.permute.xlu0 %2035
      %2037 = vrot.lane.b32.xlu0 %v1997, 20
      %v2038 = vpop.permute.xlu0 %2037
      %2039 = vrot.lane.b32.xlu0 %v2000, 20
      %v2040 = vpop.permute.xlu0 %2039
      %2041 = vrot.lane.b32.xlu0 %v2003, 20
      %v2042 = vpop.permute.xlu0 %2041
      %2043 = vrot.lane.b32.xlu0 %v2006, 20
      %v2044 = vpop.permute.xlu0 %2043
      %2045 = vrot.lane.b32.xlu0 %v2009, 20
      %v2046 = vpop.permute.xlu0 %2045
      %2047 = vrot.lane.b32.xlu0 %v2012, 20
      %v2048 = vpop.permute.xlu0 %2047
      %2049 = vrot.lane.b32.xlu0 %v2015, 20
      %v2050 = vpop.permute.xlu0 %2049
      %2051 = vrot.lane.b32.xlu0 %v2018, 20
      %v2052 = vpop.permute.xlu0 %2051
      %2053 = vrot.lane.b32.xlu0 %v2021, 20
      %v2054 = vpop.permute.xlu0 %2053
      %2055 = vrot.lane.b32.xlu0 %v2024, 20
      %v2056 = vpop.permute.xlu0 %2055
      %v2089 = vunpack.c.l.b16 %v999
      %v2090 = vunpack.c.l.b16 %v1000
      %v2091 = vunpack.c.l.b16 %v1001
      %v2092 = vunpack.c.l.b16 %v1002
      %v2093 = vunpack.c.l.b16 %v1003
      %v2094 = vunpack.c.l.b16 %v1004
      %v2095 = vunpack.c.l.b16 %v1005
      %v2096 = vunpack.c.l.b16 %v1006
      %v2097 = vunpack.c.l.b16 %v1007
      %v2098 = vunpack.c.l.b16 %v1008
      %v2099 = vunpack.c.l.b16 %v1009
      %v2100 = vunpack.c.l.b16 %v1010
      %v2101 = vunpack.c.l.b16 %v1011
      %v2102 = vunpack.c.l.b16 %v1012
      %v2103 = vunpack.c.l.b16 %v1013
      %v2104 = vunpack.c.l.b16 %v1014
      %v2105 = vunpack.c.l.b16 %v1015
      %v2106 = vunpack.c.l.b16 %v1016
      %v2107 = vunpack.c.l.b16 %v1017
      %v2108 = vunpack.c.l.b16 %v1018
      %v2109 = vunpack.c.l.b16 %v1019
      %v2110 = vunpack.c.l.b16 %v1020
      %v2111 = vunpack.c.l.b16 %v1021
      %v2112 = vunpack.c.l.b16 %v1022
      %v2113 = vunpack.c.l.b16 %v1023
      %v2114 = vunpack.c.l.b16 %v1024
      %v2115 = vunpack.c.l.b16 %v1025
      %v2116 = vunpack.c.l.b16 %v1026
      %v2117 = vunpack.c.l.b16 %v1027
      %v2118 = vunpack.c.l.b16 %v1028
      %v2119 = vunpack.c.l.b16 %v1029
      %v2120 = vunpack.c.l.b16 %v1030
      %v2121 = vpack.c.b16 %v2090, %v2089
      %v2122 = vpack.c.b16 %v2092, %v2091
      %v2123 = vpack.c.b16 %v2094, %v2093
      %v2124 = vpack.c.b16 %v2096, %v2095
      %v2125 = vpack.c.b16 %v2098, %v2097
      %v2126 = vpack.c.b16 %v2100, %v2099
      %v2127 = vpack.c.b16 %v2102, %v2101
      %v2128 = vpack.c.b16 %v2104, %v2103
      %v2129 = vpack.c.b16 %v2106, %v2105
      %v2130 = vpack.c.b16 %v2108, %v2107
      %v2131 = vpack.c.b16 %v2110, %v2109
      %v2132 = vpack.c.b16 %v2112, %v2111
      %v2133 = vpack.c.b16 %v2114, %v2113
      %v2134 = vpack.c.b16 %v2116, %v2115
      %v2135 = vpack.c.b16 %v2118, %v2117
      %v2136 = vpack.c.b16 %v2120, %v2119
      %2137 = vrot.lane.b32.xlu0 %v2121, 24
      %v2138 = vpop.permute.xlu0 %2137
      %2139 = vrot.lane.b32.xlu0 %v2122, 24
      %v2140 = vpop.permute.xlu0 %2139
      %2141 = vrot.lane.b32.xlu0 %v2123, 24
      %v2142 = vpop.permute.xlu0 %2141
      %2143 = vrot.lane.b32.xlu0 %v2124, 24
      %v2144 = vpop.permute.xlu0 %2143
      %2145 = vrot.lane.b32.xlu0 %v2125, 24
      %v2146 = vpop.permute.xlu0 %2145
      %2147 = vrot.lane.b32.xlu0 %v2126, 24
      %v2148 = vpop.permute.xlu0 %2147
      %2149 = vrot.lane.b32.xlu0 %v2127, 24
      %v2150 = vpop.permute.xlu0 %2149
      %2151 = vrot.lane.b32.xlu0 %v2128, 24
      %v2152 = vpop.permute.xlu0 %2151
      %2153 = vrot.lane.b32.xlu0 %v2129, 24
      %v2154 = vpop.permute.xlu0 %2153
      %2155 = vrot.lane.b32.xlu0 %v2130, 24
      %v2156 = vpop.permute.xlu0 %2155
      %2157 = vrot.lane.b32.xlu0 %v2131, 24
      %v2158 = vpop.permute.xlu0 %2157
      %2159 = vrot.lane.b32.xlu0 %v2132, 24
      %v2160 = vpop.permute.xlu0 %2159
      %2161 = vrot.lane.b32.xlu0 %v2133, 24
      %v2162 = vpop.permute.xlu0 %2161
      %2163 = vrot.lane.b32.xlu0 %v2134, 24
      %v2164 = vpop.permute.xlu0 %2163
      %2165 = vrot.lane.b32.xlu0 %v2135, 24
      %v2166 = vpop.permute.xlu0 %2165
      %2167 = vrot.lane.b32.xlu0 %v2136, 24
      %v2168 = vpop.permute.xlu0 %2167
      %v2185 = vunpack.c.l.b16 %v1031
      %v2186 = vunpack.c.l.b16 %v1032
      %v2187 = vunpack.c.l.b16 %v1033
      %v2188 = vunpack.c.l.b16 %v1034
      %v2189 = vunpack.c.l.b16 %v1035
      %v2190 = vunpack.c.l.b16 %v1036
      %v2191 = vunpack.c.l.b16 %v1037
      %v2192 = vunpack.c.l.b16 %v1038
      %v2193 = vunpack.c.l.b16 %v1039
      %v2194 = vunpack.c.l.b16 %v1040
      %v2195 = vunpack.c.l.b16 %v1041
      %v2196 = vunpack.c.l.b16 %v1042
      %v2197 = vunpack.c.l.b16 %v1043
      %v2198 = vunpack.c.l.b16 %v1044
      %v2199 = vunpack.c.l.b16 %v1045
      %v2200 = vunpack.c.l.b16 %v1046
      %v2201 = vpack.c.b16 %v2185, %v2185
      %v2202 = vpack.c.b16 %v2186, %v2186
      %v2203 = vpack.c.b16 %v2187, %v2187
      %v2204 = vpack.c.b16 %v2188, %v2188
      %v2205 = vpack.c.b16 %v2189, %v2189
      %v2206 = vpack.c.b16 %v2190, %v2190
      %v2207 = vpack.c.b16 %v2191, %v2191
      %v2208 = vpack.c.b16 %v2192, %v2192
      %v2209 = vpack.c.b16 %v2193, %v2193
      %v2210 = vpack.c.b16 %v2194, %v2194
      %v2211 = vpack.c.b16 %v2195, %v2195
      %v2212 = vpack.c.b16 %v2196, %v2196
      %v2213 = vpack.c.b16 %v2197, %v2197
      %v2214 = vpack.c.b16 %v2198, %v2198
      %v2215 = vpack.c.b16 %v2199, %v2199
      %v2216 = vpack.c.b16 %v2200, %v2200
      %v2218 = vshrl.u32 %v2121, 16
      %v2220 = vshll.u32 %v2121, 16
      %v2222 = vrot.slane %v2220, 1
      %v2223 = vor.u32 %v2218, %v2222
      %v2225 = vshll.u32 %v2201, 16
      %v2227 = vrot.slane %v2225, 1
      %v2228 = vsel %vm1191, %v2223, %v2227
      %v2230 = vshrl.u32 %v2122, 16
      %v2232 = vshll.u32 %v2122, 16
      %v2234 = vrot.slane %v2232, 1
      %v2235 = vor.u32 %v2230, %v2234
      %v2237 = vshll.u32 %v2202, 16
      %v2239 = vrot.slane %v2237, 1
      %v2240 = vsel %vm1191, %v2235, %v2239
      %v2242 = vshrl.u32 %v2123, 16
      %v2244 = vshll.u32 %v2123, 16
      %v2246 = vrot.slane %v2244, 1
      %v2247 = vor.u32 %v2242, %v2246
      %v2249 = vshll.u32 %v2203, 16
      %v2251 = vrot.slane %v2249, 1
      %v2252 = vsel %vm1191, %v2247, %v2251
      %v2254 = vshrl.u32 %v2124, 16
      %v2256 = vshll.u32 %v2124, 16
      %v2258 = vrot.slane %v2256, 1
      %v2259 = vor.u32 %v2254, %v2258
      %v2261 = vshll.u32 %v2204, 16
      %v2263 = vrot.slane %v2261, 1
      %v2264 = vsel %vm1191, %v2259, %v2263
      %v2266 = vshrl.u32 %v2125, 16
      %v2268 = vshll.u32 %v2125, 16
      %v2270 = vrot.slane %v2268, 1
      %v2271 = vor.u32 %v2266, %v2270
      %v2273 = vshll.u32 %v2205, 16
      %v2275 = vrot.slane %v2273, 1
      %v2276 = vsel %vm1191, %v2271, %v2275
      %v2278 = vshrl.u32 %v2126, 16
      %v2280 = vshll.u32 %v2126, 16
      %v2282 = vrot.slane %v2280, 1
      %v2283 = vor.u32 %v2278, %v2282
      %v2285 = vshll.u32 %v2206, 16
      %v2287 = vrot.slane %v2285, 1
      %v2288 = vsel %vm1191, %v2283, %v2287
      %v2290 = vshrl.u32 %v2127, 16
      %v2292 = vshll.u32 %v2127, 16
      %v2294 = vrot.slane %v2292, 1
      %v2295 = vor.u32 %v2290, %v2294
      %v2297 = vshll.u32 %v2207, 16
      %v2299 = vrot.slane %v2297, 1
      %v2300 = vsel %vm1191, %v2295, %v2299
      %v2302 = vshrl.u32 %v2128, 16
      %v2304 = vshll.u32 %v2128, 16
      %v2306 = vrot.slane %v2304, 1
      %v2307 = vor.u32 %v2302, %v2306
      %v2309 = vshll.u32 %v2208, 16
      %v2311 = vrot.slane %v2309, 1
      %v2312 = vsel %vm1191, %v2307, %v2311
      %v2314 = vshrl.u32 %v2129, 16
      %v2316 = vshll.u32 %v2129, 16
      %v2318 = vrot.slane %v2316, 1
      %v2319 = vor.u32 %v2314, %v2318
      %v2321 = vshll.u32 %v2209, 16
      %v2323 = vrot.slane %v2321, 1
      %v2324 = vsel %vm1191, %v2319, %v2323
      %v2326 = vshrl.u32 %v2130, 16
      %v2328 = vshll.u32 %v2130, 16
      %v2330 = vrot.slane %v2328, 1
      %v2331 = vor.u32 %v2326, %v2330
      %v2333 = vshll.u32 %v2210, 16
      %v2335 = vrot.slane %v2333, 1
      %v2336 = vsel %vm1191, %v2331, %v2335
      %v2338 = vshrl.u32 %v2131, 16
      %v2340 = vshll.u32 %v2131, 16
      %v2342 = vrot.slane %v2340, 1
      %v2343 = vor.u32 %v2338, %v2342
      %v2345 = vshll.u32 %v2211, 16
      %v2347 = vrot.slane %v2345, 1
      %v2348 = vsel %vm1191, %v2343, %v2347
      %v2350 = vshrl.u32 %v2132, 16
      %v2352 = vshll.u32 %v2132, 16
      %v2354 = vrot.slane %v2352, 1
      %v2355 = vor.u32 %v2350, %v2354
      %v2357 = vshll.u32 %v2212, 16
      %v2359 = vrot.slane %v2357, 1
      %v2360 = vsel %vm1191, %v2355, %v2359
      %v2362 = vshrl.u32 %v2133, 16
      %v2364 = vshll.u32 %v2133, 16
      %v2366 = vrot.slane %v2364, 1
      %v2367 = vor.u32 %v2362, %v2366
      %v2369 = vshll.u32 %v2213, 16
      %v2371 = vrot.slane %v2369, 1
      %v2372 = vsel %vm1191, %v2367, %v2371
      %v2374 = vshrl.u32 %v2134, 16
      %v2376 = vshll.u32 %v2134, 16
      %v2378 = vrot.slane %v2376, 1
      %v2379 = vor.u32 %v2374, %v2378
      %v2381 = vshll.u32 %v2214, 16
      %v2383 = vrot.slane %v2381, 1
      %v2384 = vsel %vm1191, %v2379, %v2383
      %v2386 = vshrl.u32 %v2135, 16
      %v2388 = vshll.u32 %v2135, 16
      %v2390 = vrot.slane %v2388, 1
      %v2391 = vor.u32 %v2386, %v2390
      %v2393 = vshll.u32 %v2215, 16
      %v2395 = vrot.slane %v2393, 1
      %v2396 = vsel %vm1191, %v2391, %v2395
      %v2398 = vshrl.u32 %v2136, 16
      %v2400 = vshll.u32 %v2136, 16
      %v2402 = vrot.slane %v2400, 1
      %v2403 = vor.u32 %v2398, %v2402
      %v2405 = vshll.u32 %v2216, 16
      %v2407 = vrot.slane %v2405, 1
      %v2408 = vsel %vm1191, %v2403, %v2407
      %2409 = vrot.lane.b32.xlu0 %v2228, 28
      %v2410 = vpop.permute.xlu0 %2409
      %2411 = vrot.lane.b32.xlu0 %v2240, 28
      %v2412 = vpop.permute.xlu0 %2411
      %2413 = vrot.lane.b32.xlu0 %v2252, 28
      %v2414 = vpop.permute.xlu0 %2413
      %2415 = vrot.lane.b32.xlu0 %v2264, 28
      %v2416 = vpop.permute.xlu0 %2415
      %2417 = vrot.lane.b32.xlu0 %v2276, 28
      %v2418 = vpop.permute.xlu0 %2417
      %2419 = vrot.lane.b32.xlu0 %v2288, 28
      %v2420 = vpop.permute.xlu0 %2419
      %2421 = vrot.lane.b32.xlu0 %v2300, 28
      %v2422 = vpop.permute.xlu0 %2421
      %2423 = vrot.lane.b32.xlu0 %v2312, 28
      %v2424 = vpop.permute.xlu0 %2423
      %2425 = vrot.lane.b32.xlu0 %v2324, 28
      %v2426 = vpop.permute.xlu0 %2425
      %2427 = vrot.lane.b32.xlu0 %v2336, 28
      %v2428 = vpop.permute.xlu0 %2427
      %2429 = vrot.lane.b32.xlu0 %v2348, 28
      %v2430 = vpop.permute.xlu0 %2429
      %2431 = vrot.lane.b32.xlu0 %v2360, 28
      %v2432 = vpop.permute.xlu0 %2431
      %2433 = vrot.lane.b32.xlu0 %v2372, 28
      %v2434 = vpop.permute.xlu0 %2433
      %2435 = vrot.lane.b32.xlu0 %v2384, 28
      %v2436 = vpop.permute.xlu0 %2435
      %2437 = vrot.lane.b32.xlu0 %v2396, 28
      %v2438 = vpop.permute.xlu0 %2437
      %2439 = vrot.lane.b32.xlu0 %v2408, 28
      %v2440 = vpop.permute.xlu0 %2439
      %v2457 = vunpack.c.l.b16 %v1047
      %v2458 = vunpack.c.l.b16 %v1048
      %v2459 = vunpack.c.l.b16 %v1049
      %v2460 = vunpack.c.l.b16 %v1050
      %v2461 = vunpack.c.l.b16 %v1051
      %v2462 = vunpack.c.l.b16 %v1052
      %v2463 = vunpack.c.l.b16 %v1053
      %v2464 = vunpack.c.l.b16 %v1054
      %v2465 = vunpack.c.l.b16 %v1055
      %v2466 = vunpack.c.l.b16 %v1056
      %v2467 = vunpack.c.l.b16 %v1057
      %v2468 = vunpack.c.l.b16 %v1058
      %v2469 = vunpack.c.l.b16 %v1059
      %v2470 = vunpack.c.l.b16 %v1060
      %v2471 = vunpack.c.l.b16 %v1061
      %v2472 = vunpack.c.l.b16 %v1062
      %v2473 = vpack.c.b16 %v2090, %v2457
      %v2474 = vpack.c.b16 %v2092, %v2458
      %v2475 = vpack.c.b16 %v2094, %v2459
      %v2476 = vpack.c.b16 %v2096, %v2460
      %v2477 = vpack.c.b16 %v2098, %v2461
      %v2478 = vpack.c.b16 %v2100, %v2462
      %v2479 = vpack.c.b16 %v2102, %v2463
      %v2480 = vpack.c.b16 %v2104, %v2464
      %v2481 = vpack.c.b16 %v2106, %v2465
      %v2482 = vpack.c.b16 %v2108, %v2466
      %v2483 = vpack.c.b16 %v2110, %v2467
      %v2484 = vpack.c.b16 %v2112, %v2468
      %v2485 = vpack.c.b16 %v2114, %v2469
      %v2486 = vpack.c.b16 %v2116, %v2470
      %v2487 = vpack.c.b16 %v2118, %v2471
      %v2488 = vpack.c.b16 %v2120, %v2472
      %v2489 = vrot.slane %v2473, 1
      %v2490 = vrot.slane %v2201, 1
      %v2491 = vsel %vm1464, %v2489, %v2490
      %v2492 = vrot.slane %v2474, 1
      %v2493 = vrot.slane %v2202, 1
      %v2494 = vsel %vm1464, %v2492, %v2493
      %v2495 = vrot.slane %v2475, 1
      %v2496 = vrot.slane %v2203, 1
      %v2497 = vsel %vm1464, %v2495, %v2496
      %v2498 = vrot.slane %v2476, 1
      %v2499 = vrot.slane %v2204, 1
      %v2500 = vsel %vm1464, %v2498, %v2499
      %v2501 = vrot.slane %v2477, 1
      %v2502 = vrot.slane %v2205, 1
      %v2503 = vsel %vm1464, %v2501, %v2502
      %v2504 = vrot.slane %v2478, 1
      %v2505 = vrot.slane %v2206, 1
      %v2506 = vsel %vm1464, %v2504, %v2505
      %v2507 = vrot.slane %v2479, 1
      %v2508 = vrot.slane %v2207, 1
      %v2509 = vsel %vm1464, %v2507, %v2508
      %v2510 = vrot.slane %v2480, 1
      %v2511 = vrot.slane %v2208, 1
      %v2512 = vsel %vm1464, %v2510, %v2511
      %v2513 = vrot.slane %v2481, 1
      %v2514 = vrot.slane %v2209, 1
      %v2515 = vsel %vm1464, %v2513, %v2514
      %v2516 = vrot.slane %v2482, 1
      %v2517 = vrot.slane %v2210, 1
      %v2518 = vsel %vm1464, %v2516, %v2517
      %v2519 = vrot.slane %v2483, 1
      %v2520 = vrot.slane %v2211, 1
      %v2521 = vsel %vm1464, %v2519, %v2520
      %v2522 = vrot.slane %v2484, 1
      %v2523 = vrot.slane %v2212, 1
      %v2524 = vsel %vm1464, %v2522, %v2523
      %v2525 = vrot.slane %v2485, 1
      %v2526 = vrot.slane %v2213, 1
      %v2527 = vsel %vm1464, %v2525, %v2526
      %v2528 = vrot.slane %v2486, 1
      %v2529 = vrot.slane %v2214, 1
      %v2530 = vsel %vm1464, %v2528, %v2529
      %v2531 = vrot.slane %v2487, 1
      %v2532 = vrot.slane %v2215, 1
      %v2533 = vsel %vm1464, %v2531, %v2532
      %v2534 = vrot.slane %v2488, 1
      %v2535 = vrot.slane %v2216, 1
      %v2536 = vsel %vm1464, %v2534, %v2535
      %2537 = vrot.lane.b32.xlu0 %v2491, 32
      %v2538 = vpop.permute.xlu0 %2537
      %2539 = vrot.lane.b32.xlu0 %v2494, 32
      %v2540 = vpop.permute.xlu0 %2539
      %2541 = vrot.lane.b32.xlu0 %v2497, 32
      %v2542 = vpop.permute.xlu0 %2541
      %2543 = vrot.lane.b32.xlu0 %v2500, 32
      %v2544 = vpop.permute.xlu0 %2543
      %2545 = vrot.lane.b32.xlu0 %v2503, 32
      %v2546 = vpop.permute.xlu0 %2545
      %2547 = vrot.lane.b32.xlu0 %v2506, 32
      %v2548 = vpop.permute.xlu0 %2547
      %2549 = vrot.lane.b32.xlu0 %v2509, 32
      %v2550 = vpop.permute.xlu0 %2549
      %2551 = vrot.lane.b32.xlu0 %v2512, 32
      %v2552 = vpop.permute.xlu0 %2551
      %2553 = vrot.lane.b32.xlu0 %v2515, 32
      %v2554 = vpop.permute.xlu0 %2553
      %2555 = vrot.lane.b32.xlu0 %v2518, 32
      %v2556 = vpop.permute.xlu0 %2555
      %2557 = vrot.lane.b32.xlu0 %v2521, 32
      %v2558 = vpop.permute.xlu0 %2557
      %2559 = vrot.lane.b32.xlu0 %v2524, 32
      %v2560 = vpop.permute.xlu0 %2559
      %2561 = vrot.lane.b32.xlu0 %v2527, 32
      %v2562 = vpop.permute.xlu0 %2561
      %2563 = vrot.lane.b32.xlu0 %v2530, 32
      %v2564 = vpop.permute.xlu0 %2563
      %2565 = vrot.lane.b32.xlu0 %v2533, 32
      %v2566 = vpop.permute.xlu0 %2565
      %2567 = vrot.lane.b32.xlu0 %v2536, 32
      %v2568 = vpop.permute.xlu0 %2567
      %vm2569 = vcmask 31744
      %v2571 = vsel %vm2569, %v1127, %v1385
      %v2573 = vsel %vm2569, %v1128, %v1387
      %v2575 = vsel %vm2569, %v1129, %v1389
      %v2577 = vsel %vm2569, %v1130, %v1391
      %v2579 = vsel %vm2569, %v1131, %v1393
      %v2581 = vsel %vm2569, %v1132, %v1395
      %v2583 = vsel %vm2569, %v1133, %v1397
      %v2585 = vsel %vm2569, %v1134, %v1399
      %v2587 = vsel %vm2569, %v1135, %v1401
      %v2589 = vsel %vm2569, %v1136, %v1403
      %v2591 = vsel %vm2569, %v1137, %v1405
      %v2593 = vsel %vm2569, %v1138, %v1407
      %v2595 = vsel %vm2569, %v1139, %v1409
      %v2597 = vsel %vm2569, %v1140, %v1411
      %v2599 = vsel %vm2569, %v1141, %v1413
      %v2601 = vsel %vm2569, %v1142, %v1415
      %vm2602 = vcmask 64512
      %v2604 = vsel %vm2602, %v2571, %v1514
      %v2606 = vsel %vm2602, %v2573, %v1516
      %v2608 = vsel %vm2602, %v2575, %v1518
      %v2610 = vsel %vm2602, %v2577, %v1520
      %v2612 = vsel %vm2602, %v2579, %v1522
      %v2614 = vsel %vm2602, %v2581, %v1524
      %v2616 = vsel %vm2602, %v2583, %v1526
      %v2618 = vsel %vm2602, %v2585, %v1528
      %v2620 = vsel %vm2602, %v2587, %v1530
      %v2622 = vsel %vm2602, %v2589, %v1532
      %v2624 = vsel %vm2602, %v2591, %v1534
      %v2626 = vsel %vm2602, %v2593, %v1536
      %v2628 = vsel %vm2602, %v2595, %v1538
      %v2630 = vsel %vm2602, %v2597, %v1540
      %v2632 = vsel %vm2602, %v2599, %v1542
      %v2634 = vsel %vm2602, %v2601, %v1544
      %vm2635 = vcmask 97280
      %v2637 = vsel %vm2635, %v2604, %v1626
      %v2639 = vsel %vm2635, %v2606, %v1628
      %v2641 = vsel %vm2635, %v2608, %v1630
      %v2643 = vsel %vm2635, %v2610, %v1632
      %v2645 = vsel %vm2635, %v2612, %v1634
      %v2647 = vsel %vm2635, %v2614, %v1636
      %v2649 = vsel %vm2635, %v2616, %v1638
      %v2651 = vsel %vm2635, %v2618, %v1640
      %v2653 = vsel %vm2635, %v2620, %v1642
      %v2655 = vsel %vm2635, %v2622, %v1644
      %v2657 = vsel %vm2635, %v2624, %v1646
      %v2659 = vsel %vm2635, %v2626, %v1648
      %v2661 = vsel %vm2635, %v2628, %v1650
      %v2663 = vsel %vm2635, %v2630, %v1652
      %v2665 = vsel %vm2635, %v2632, %v1654
      %v2667 = vsel %vm2635, %v2634, %v1656
      %vm2668 = vcmask 130048
      %v2670 = vsel %vm2668, %v2637, %v1898
      %v2672 = vsel %vm2668, %v2639, %v1900
      %v2674 = vsel %vm2668, %v2641, %v1902
      %v2676 = vsel %vm2668, %v2643, %v1904
      %v2678 = vsel %vm2668, %v2645, %v1906
      %v2680 = vsel %vm2668, %v2647, %v1908
      %v2682 = vsel %vm2668, %v2649, %v1910
      %v2684 = vsel %vm2668, %v2651, %v1912
      %v2686 = vsel %vm2668, %v2653, %v1914
      %v2688 = vsel %vm2668, %v2655, %v1916
      %v2690 = vsel %vm2668, %v2657, %v1918
      %v2692 = vsel %vm2668, %v2659, %v1920
      %v2694 = vsel %vm2668, %v2661, %v1922
      %v2696 = vsel %vm2668, %v2663, %v1924
      %v2698 = vsel %vm2668, %v2665, %v1926
      %v2700 = vsel %vm2668, %v2667, %v1928
      %vm2701 = vcmask 162816
      %v2703 = vsel %vm2701, %v2670, %v2026
      %v2705 = vsel %vm2701, %v2672, %v2028
      %v2707 = vsel %vm2701, %v2674, %v2030
      %v2709 = vsel %vm2701, %v2676, %v2032
      %v2711 = vsel %vm2701, %v2678, %v2034
      %v2713 = vsel %vm2701, %v2680, %v2036
      %v2715 = vsel %vm2701, %v2682, %v2038
      %v2717 = vsel %vm2701, %v2684, %v2040
      %v2719 = vsel %vm2701, %v2686, %v2042
      %v2721 = vsel %vm2701, %v2688, %v2044
      %v2723 = vsel %vm2701, %v2690, %v2046
      %v2725 = vsel %vm2701, %v2692, %v2048
      %v2727 = vsel %vm2701, %v2694, %v2050
      %v2729 = vsel %vm2701, %v2696, %v2052
      %v2731 = vsel %vm2701, %v2698, %v2054
      %v2733 = vsel %vm2701, %v2700, %v2056
      %vm2734 = vcmask 195584
      %v2736 = vsel %vm2734, %v2703, %v2138
      %v2738 = vsel %vm2734, %v2705, %v2140
      %v2740 = vsel %vm2734, %v2707, %v2142
      %v2742 = vsel %vm2734, %v2709, %v2144
      %v2744 = vsel %vm2734, %v2711, %v2146
      %v2746 = vsel %vm2734, %v2713, %v2148
      %v2748 = vsel %vm2734, %v2715, %v2150
      %v2750 = vsel %vm2734, %v2717, %v2152
      %v2752 = vsel %vm2734, %v2719, %v2154
      %v2754 = vsel %vm2734, %v2721, %v2156
      %v2756 = vsel %vm2734, %v2723, %v2158
      %v2758 = vsel %vm2734, %v2725, %v2160
      %v2760 = vsel %vm2734, %v2727, %v2162
      %v2762 = vsel %vm2734, %v2729, %v2164
      %v2764 = vsel %vm2734, %v2731, %v2166
      %v2766 = vsel %vm2734, %v2733, %v2168
      %vm2767 = vcmask 228352
      %v2769 = vsel %vm2767, %v2736, %v2410
      %v2771 = vsel %vm2767, %v2738, %v2412
      %v2773 = vsel %vm2767, %v2740, %v2414
      %v2775 = vsel %vm2767, %v2742, %v2416
      %v2777 = vsel %vm2767, %v2744, %v2418
      %v2779 = vsel %vm2767, %v2746, %v2420
      %v2781 = vsel %vm2767, %v2748, %v2422
      %v2783 = vsel %vm2767, %v2750, %v2424
      %v2785 = vsel %vm2767, %v2752, %v2426
      %v2787 = vsel %vm2767, %v2754, %v2428
      %v2789 = vsel %vm2767, %v2756, %v2430
      %v2791 = vsel %vm2767, %v2758, %v2432
      %v2793 = vsel %vm2767, %v2760, %v2434
      %v2795 = vsel %vm2767, %v2762, %v2436
      %v2797 = vsel %vm2767, %v2764, %v2438
      %v2799 = vsel %vm2767, %v2766, %v2440
      %vm2800 = vcmask 261120
      %v2802 = vsel %vm2800, %v2769, %v2538
      %v2804 = vsel %vm2800, %v2771, %v2540
      %v2806 = vsel %vm2800, %v2773, %v2542
      %v2808 = vsel %vm2800, %v2775, %v2544
      %v2810 = vsel %vm2800, %v2777, %v2546
      %v2812 = vsel %vm2800, %v2779, %v2548
      %v2814 = vsel %vm2800, %v2781, %v2550
      %v2816 = vsel %vm2800, %v2783, %v2552
      %v2818 = vsel %vm2800, %v2785, %v2554
      %v2820 = vsel %vm2800, %v2787, %v2556
      %v2822 = vsel %vm2800, %v2789, %v2558
      %v2824 = vsel %vm2800, %v2791, %v2560
      %v2826 = vsel %vm2800, %v2793, %v2562
      %v2828 = vsel %vm2800, %v2795, %v2564
      %v2830 = vsel %vm2800, %v2797, %v2566
      %v2832 = vsel %vm2800, %v2799, %v2568
      %v2833 = vld [vmem:[%s1] sm:$0xf]
      %v2834 = vld [vmem:[%s1 + $0x4] sm:$0xf]
      %v2835 = vld [vmem:[%s1 + $0x8] sm:$0xf]
      %v2836 = vld [vmem:[%s1 + $0xc] sm:$0xf]
      %v2837 = vld [vmem:[%s1 + $0x10] sm:$0x3]
      %v2843 = vunpack.c.l.b16 %v2833
      %v2844 = vunpack.c.l.b16 %v2834
      %v2845 = vunpack.c.l.b16 %v2835
      %v2846 = vunpack.c.l.b16 %v2836
      %v2847 = vunpack.c.l.b16 %v2837
      %v2848 = vpack.c.b16 %v2844, %v2843
      %v2849 = vpack.c.b16 %v2846, %v2845
      %v2850 = vpack.c.b16 %v2847, %v2847
      %vm2853 = vcmask 293888
      %v2854 = vsel %vm2853, %v2802, 0
      %v2856 = vsel %vm2853, %v2804, 0
      %v2858 = vsel %vm2853, %v2806, 0
      %v2860 = vsel %vm2853, %v2808, 0
      %v2862 = vsel %vm2853, %v2810, 0
      %v2864 = vsel %vm2853, %v2812, 0
      %v2866 = vsel %vm2853, %v2814, 0
      %v2868 = vsel %vm2853, %v2816, 0
      %v2870 = vsel %vm2853, %v2818, 0
      %v2872 = vsel %vm2853, %v2820, 0
      %v2874 = vsel %vm2853, %v2822, 0
      %v2876 = vsel %vm2853, %v2824, 0
      %v2878 = vsel %vm2853, %v2826, 0
      %v2880 = vsel %vm2853, %v2828, 0
      %v2882 = vsel %vm2853, %v2830, 0
      %v2884 = vsel %vm2853, %v2832, 0
      %vm2886 = vcmask 1041408
      %v2888 = vsel %vm2886, %v2850, 0
      %2890 = vmatprep.subr.bf16.mxu0 0
      %2891 = vmatpush1.bf16.msra.mxu0 %v2848
      %2892 = vmatprep.subr.bf16.mxu0 0
      %2893 = vmatpush1.bf16.msra.mxu0 %v2849
      %2894 = vmatprep.subr.bf16.mxu0 0
      %2895 = vmatpush1.bf16.msra.mxu0 %v2888
      %2896 = vmatprep.subr.bf16.mxu0 0
      %2897 = vmatpush1.bf16.msra.mxu0 0
      %2898 = vmatprep.subr.bf16.mxu0 0
      %2899 = vmatpush1.bf16.msra.mxu0 0
      %2900 = vmatprep.subr.bf16.mxu0 0
      %2901 = vmatpush1.bf16.msra.mxu0 0
      %2902 = vmatprep.subr.bf16.mxu0 0
      %2903 = vmatpush1.bf16.msra.mxu0 0
      %2904 = vmatprep.subr.bf16.mxu0 0
      %2905 = vmatpush1.bf16.msra.mxu0 0
      %2906 = vmatprep.subr.bf16.mxu0 0
      %2907 = vmatpush1.bf16.msra.mxu0 0
      %2908 = vmatprep.subr.bf16.mxu0 0
      %2909 = vmatpush1.bf16.msra.mxu0 0
      %2910 = vmatprep.subr.bf16.mxu0 0
      %2911 = vmatpush1.bf16.msra.mxu0 0
      %2912 = vmatprep.subr.bf16.mxu0 0
      %2913 = vmatpush1.bf16.msra.mxu0 0
      %2914 = vmatprep.subr.bf16.mxu0 0
      %2915 = vmatpush1.bf16.msra.mxu0 0
      %2916 = vmatprep.subr.bf16.mxu0 0
      %2917 = vmatpush1.bf16.msra.mxu0 0
      %2918 = vmatprep.subr.bf16.mxu0 0
      %2919 = vmatpush1.bf16.msra.mxu0 0
      %2920 = vmatprep.subr.bf16.mxu0 0
      %2921 = vmatpush1.bf16.msra.mxu0 0
      %2922 = vmatprep.mubr.bf16.mxu0 0
      %2923 = vmatmul.mubr.bf16.gmra.mrb[0].mxu0 %v2854
      %v2924 = vpop.f32.mrb[0].mxu0
      %v2925 = vadd.f32 0.0, %v2924
      %v2926 = vpop.f32.mrb[0].mxu0
      %v2927 = vpop.f32.mrb[0].mxu0
      %v2928 = vadd.f32 0.0, %v2927
      %v2929 = vpop.f32.mrb[0].mxu0
      %2930 = vmatprep.mubr.bf16.mxu0 0
      %2931 = vmatmul.mubr.bf16.gmra.mrb[0].mxu0 %v2856
      %v2932 = vpop.f32.mrb[0].mxu0
      %v2933 = vadd.f32 0.0, %v2932
      %v2934 = vpop.f32.mrb[0].mxu0
      %v2935 = vpop.f32.mrb[0].mxu0
      %v2936 = vadd.f32 0.0, %v2935
      %v2937 = vpop.f32.mrb[0].mxu0
      %2938 = vmatprep.mubr.bf16.mxu0 0
      %2939 = vmatmul.mubr.bf16.gmra.mrb[0].mxu0 %v2858
      %v2940 = vpop.f32.mrb[0].mxu0
      %v2941 = vadd.f32 0.0, %v2940
      %v2942 = vpop.f32.mrb[0].mxu0
      %v2943 = vpop.f32.mrb[0].mxu0
      %v2944 = vadd.f32 0.0, %v2943
      %v2945 = vpop.f32.mrb[0].mxu0
      %2946 = vmatprep.mubr.bf16.mxu0 0
      %2947 = vmatmul.mubr.bf16.gmra.mrb[0].mxu0 %v2860
      %v2948 = vpop.f32.mrb[0].mxu0
      %v2949 = vadd.f32 0.0, %v2948
      %v2950 = vpop.f32.mrb[0].mxu0
      %v2951 = vpop.f32.mrb[0].mxu0
      %v2952 = vadd.f32 0.0, %v2951
      %v2953 = vpop.f32.mrb[0].mxu0
      %2954 = vmatprep.mubr.bf16.mxu0 0
      %2955 = vmatmul.mubr.bf16.gmra.mrb[0].mxu0 %v2862
      %v2956 = vpop.f32.mrb[0].mxu0
      %v2957 = vadd.f32 0.0, %v2956
      %v2958 = vpop.f32.mrb[0].mxu0
      %v2959 = vpop.f32.mrb[0].mxu0
      %v2960 = vadd.f32 0.0, %v2959
      %v2961 = vpop.f32.mrb[0].mxu0
      %2962 = vmatprep.mubr.bf16.mxu0 0
      %2963 = vmatmul.mubr.bf16.gmra.mrb[0].mxu0 %v2864
      %v2964 = vpop.f32.mrb[0].mxu0
      %v2965 = vadd.f32 0.0, %v2964
      %v2966 = vpop.f32.mrb[0].mxu0
      %v2967 = vpop.f32.mrb[0].mxu0
      %v2968 = vadd.f32 0.0, %v2967
      %v2969 = vpop.f32.mrb[0].mxu0
      %2970 = vmatprep.mubr.bf16.mxu0 0
      %2971 = vmatmul.mubr.bf16.gmra.mrb[0].mxu0 %v2866
      %v2972 = vpop.f32.mrb[0].mxu0
      %v2973 = vadd.f32 0.0, %v2972
      %v2974 = vpop.f32.mrb[0].mxu0
      %v2975 = vpop.f32.mrb[0].mxu0
      %v2976 = vadd.f32 0.0, %v2975
      %v2977 = vpop.f32.mrb[0].mxu0
      %2978 = vmatprep.mubr.bf16.mxu0 0
      %2979 = vmatmul.mubr.bf16.gmra.mrb[0].mxu0 %v2868
      %v2980 = vpop.f32.mrb[0].mxu0
      %v2981 = vadd.f32 0.0, %v2980
      %v2982 = vpop.f32.mrb[0].mxu0
      %v2983 = vpop.f32.mrb[0].mxu0
      %v2984 = vadd.f32 0.0, %v2983
      %v2985 = vpop.f32.mrb[0].mxu0
      %2986 = vmatprep.mubr.bf16.mxu0 0
      %2987 = vmatmul.mubr.bf16.gmra.mrb[0].mxu0 %v2870
      %v2988 = vpop.f32.mrb[0].mxu0
      %v2989 = vadd.f32 0.0, %v2988
      %v2990 = vpop.f32.mrb[0].mxu0
      %v2991 = vpop.f32.mrb[0].mxu0
      %v2992 = vadd.f32 0.0, %v2991
      %v2993 = vpop.f32.mrb[0].mxu0
      %2994 = vmatprep.mubr.bf16.mxu0 0
      %2995 = vmatmul.mubr.bf16.gmra.mrb[0].mxu0 %v2872
      %v2996 = vpop.f32.mrb[0].mxu0
      %v2997 = vadd.f32 0.0, %v2996
      %v2998 = vpop.f32.mrb[0].mxu0
      %v2999 = vpop.f32.mrb[0].mxu0
      %v3000 = vadd.f32 0.0, %v2999
      %v3001 = vpop.f32.mrb[0].mxu0
      %3002 = vmatprep.mubr.bf16.mxu0 0
      %3003 = vmatmul.mubr.bf16.gmra.mrb[0].mxu0 %v2874
      %v3004 = vpop.f32.mrb[0].mxu0
      %v3005 = vadd.f32 0.0, %v3004
      %v3006 = vpop.f32.mrb[0].mxu0
      %v3007 = vpop.f32.mrb[0].mxu0
      %v3008 = vadd.f32 0.0, %v3007
      %v3009 = vpop.f32.mrb[0].mxu0
      %3010 = vmatprep.mubr.bf16.mxu0 0
      %3011 = vmatmul.mubr.bf16.gmra.mrb[0].mxu0 %v2876
      %v3012 = vpop.f32.mrb[0].mxu0
      %v3013 = vadd.f32 0.0, %v3012
      %v3014 = vpop.f32.mrb[0].mxu0
      %v3015 = vpop.f32.mrb[0].mxu0
      %v3016 = vadd.f32 0.0, %v3015
      %v3017 = vpop.f32.mrb[0].mxu0
      %3018 = vmatprep.mubr.bf16.mxu0 0
      %3019 = vmatmul.mubr.bf16.gmra.mrb[0].mxu0 %v2878
      %v3020 = vpop.f32.mrb[0].mxu0
      %v3021 = vadd.f32 0.0, %v3020
      %v3022 = vpop.f32.mrb[0].mxu0
      %v3023 = vpop.f32.mrb[0].mxu0
      %v3024 = vadd.f32 0.0, %v3023
      %v3025 = vpop.f32.mrb[0].mxu0
      %3026 = vmatprep.mubr.bf16.mxu0 0
      %3027 = vmatmul.mubr.bf16.gmra.mrb[0].mxu0 %v2880
      %v3028 = vpop.f32.mrb[0].mxu0
      %v3029 = vadd.f32 0.0, %v3028
      %v3030 = vpop.f32.mrb[0].mxu0
      %v3031 = vpop.f32.mrb[0].mxu0
      %v3032 = vadd.f32 0.0, %v3031
      %v3033 = vpop.f32.mrb[0].mxu0
      %3034 = vmatprep.mubr.bf16.mxu0 0
      %3035 = vmatmul.mubr.bf16.gmra.mrb[0].mxu0 %v2882
      %v3036 = vpop.f32.mrb[0].mxu0
      %v3037 = vadd.f32 0.0, %v3036
      %v3038 = vpop.f32.mrb[0].mxu0
      %v3039 = vpop.f32.mrb[0].mxu0
      %v3040 = vadd.f32 0.0, %v3039
      %v3041 = vpop.f32.mrb[0].mxu0
      %3042 = vmatprep.mubr.bf16.mxu0 0
      %3043 = vmatmul.mubr.bf16.gmra.mrb[0].mxu0 %v2884
      %v3044 = vpop.f32.mrb[0].mxu0
      %v3045 = vadd.f32 0.0, %v3044
      %v3046 = vpop.f32.mrb[0].mxu0
      %v3047 = vpop.f32.mrb[0].mxu0
      %v3048 = vadd.f32 0.0, %v3047
      %v3049 = vpop.f32.mrb[0].mxu0
      %3050 = vdwg.mxu0
      %v3051 = vpack.c.bf16 %v2928, %v2925
      %v3052 = vpack.c.bf16 %v2936, %v2933
      %v3053 = vpack.c.bf16 %v2944, %v2941
      %v3054 = vpack.c.bf16 %v2952, %v2949
      %v3055 = vpack.c.bf16 %v2960, %v2957
      %v3056 = vpack.c.bf16 %v2968, %v2965
      %v3057 = vpack.c.bf16 %v2976, %v2973
      %v3058 = vpack.c.bf16 %v2984, %v2981
      %v3059 = vpack.c.bf16 %v2992, %v2989
      %v3060 = vpack.c.bf16 %v3000, %v2997
      %v3061 = vpack.c.bf16 %v3008, %v3005
      %v3062 = vpack.c.bf16 %v3016, %v3013
      %v3063 = vpack.c.bf16 %v3024, %v3021
      %v3064 = vpack.c.bf16 %v3032, %v3029
      %v3065 = vpack.c.bf16 %v3040, %v3037
      %v3066 = vpack.c.bf16 %v3048, %v3045
      %v3083 = vunpack.c.l.b16 %v3051
      %v3084 = vunpack.c.h.b16 %v3051
      %v3085 = vunpack.c.l.b16 %v3052
      %v3086 = vunpack.c.h.b16 %v3052
      %v3087 = vunpack.c.l.b16 %v3053
      %v3088 = vunpack.c.h.b16 %v3053
      %v3089 = vunpack.c.l.b16 %v3054
      %v3090 = vunpack.c.h.b16 %v3054
      %v3091 = vunpack.c.l.b16 %v3055
      %v3092 = vunpack.c.h.b16 %v3055
      %v3093 = vunpack.c.l.b16 %v3056
      %v3094 = vunpack.c.h.b16 %v3056
      %v3095 = vunpack.c.l.b16 %v3057
      %v3096 = vunpack.c.h.b16 %v3057
      %v3097 = vunpack.c.l.b16 %v3058
      %v3098 = vunpack.c.h.b16 %v3058
      %v3099 = vunpack.c.l.b16 %v3059
      %v3100 = vunpack.c.h.b16 %v3059
      %v3101 = vunpack.c.l.b16 %v3060
      %v3102 = vunpack.c.h.b16 %v3060
      %v3103 = vunpack.c.l.b16 %v3061
      %v3104 = vunpack.c.h.b16 %v3061
      %v3105 = vunpack.c.l.b16 %v3062
      %v3106 = vunpack.c.h.b16 %v3062
      %v3107 = vunpack.c.l.b16 %v3063
      %v3108 = vunpack.c.h.b16 %v3063
      %v3109 = vunpack.c.l.b16 %v3064
      %v3110 = vunpack.c.h.b16 %v3064
      %v3111 = vunpack.c.l.b16 %v3065
      %v3112 = vunpack.c.h.b16 %v3065
      %v3113 = vunpack.c.l.b16 %v3066
      %v3114 = vunpack.c.h.b16 %v3066
      %v3115 = vpack.c.b16 %v3083, %v3083
      %v3116 = vpack.c.b16 %v3084, %v3084
      %v3117 = vpack.c.b16 %v3085, %v3085
      %v3118 = vpack.c.b16 %v3086, %v3086
      %v3119 = vpack.c.b16 %v3087, %v3087
      %v3120 = vpack.c.b16 %v3088, %v3088
      %v3121 = vpack.c.b16 %v3089, %v3089
      %v3122 = vpack.c.b16 %v3090, %v3090
      %v3123 = vpack.c.b16 %v3091, %v3091
      %v3124 = vpack.c.b16 %v3092, %v3092
      %v3125 = vpack.c.b16 %v3093, %v3093
      %v3126 = vpack.c.b16 %v3094, %v3094
      %v3127 = vpack.c.b16 %v3095, %v3095
      %v3128 = vpack.c.b16 %v3096, %v3096
      %v3129 = vpack.c.b16 %v3097, %v3097
      %v3130 = vpack.c.b16 %v3098, %v3098
      %v3131 = vpack.c.b16 %v3099, %v3099
      %v3132 = vpack.c.b16 %v3100, %v3100
      %v3133 = vpack.c.b16 %v3101, %v3101
      %v3134 = vpack.c.b16 %v3102, %v3102
      %v3135 = vpack.c.b16 %v3103, %v3103
      %v3136 = vpack.c.b16 %v3104, %v3104
      %v3137 = vpack.c.b16 %v3105, %v3105
      %v3138 = vpack.c.b16 %v3106, %v3106
      %v3139 = vpack.c.b16 %v3107, %v3107
      %v3140 = vpack.c.b16 %v3108, %v3108
      %v3141 = vpack.c.b16 %v3109, %v3109
      %v3142 = vpack.c.b16 %v3110, %v3110
      %v3143 = vpack.c.b16 %v3111, %v3111
      %v3144 = vpack.c.b16 %v3112, %v3112
      %v3145 = vpack.c.b16 %v3113, %v3113
      %v3146 = vpack.c.b16 %v3114, %v3114
      %3179 = vst.msk [vmem:[%s177] sm:$0xf] %vm215, %v3115
      %3180 = vst.msk [vmem:[%s177 + $0x4] sm:$0xf] %vm215, %v3116
      %3181 = vst.msk [vmem:[%s177 + $0x8] sm:$0xf] %vm215, %v3117
      %3182 = vst.msk [vmem:[%s177 + $0xc] sm:$0xf] %vm215, %v3118
      %3183 = vst.msk [vmem:[%s177 + $0x10] sm:$0xf] %vm215, %v3119
      %3184 = vst.msk [vmem:[%s177 + $0x14] sm:$0xf] %vm215, %v3120
      %3185 = vst.msk [vmem:[%s177 + $0x18] sm:$0xf] %vm215, %v3121
      %3186 = vst.msk [vmem:[%s177 + $0x1c] sm:$0xf] %vm215, %v3122
      %3187 = vst.msk [vmem:[%s177 + $0x20] sm:$0xf] %vm215, %v3123
      %3188 = vst.msk [vmem:[%s177 + $0x24] sm:$0xf] %vm215, %v3124
      %3189 = vst.msk [vmem:[%s177 + $0x28] sm:$0xf] %vm215, %v3125
      %3190 = vst.msk [vmem:[%s177 + $0x2c] sm:$0xf] %vm215, %v3126
      %3191 = vst.msk [vmem:[%s177 + $0x30] sm:$0xf] %vm215, %v3127
      %3192 = vst.msk [vmem:[%s177 + $0x34] sm:$0xf] %vm215, %v3128
      %3193 = vst.msk [vmem:[%s177 + $0x38] sm:$0xf] %vm215, %v3129
      %3194 = vst.msk [vmem:[%s177 + $0x3c] sm:$0xf] %vm215, %v3130
      %3195 = vst.msk [vmem:[%s177 + $0x40] sm:$0xf] %vm215, %v3131
      %3196 = vst.msk [vmem:[%s177 + $0x44] sm:$0xf] %vm215, %v3132
      %3197 = vst.msk [vmem:[%s177 + $0x48] sm:$0xf] %vm215, %v3133
      %3198 = vst.msk [vmem:[%s177 + $0x4c] sm:$0xf] %vm215, %v3134
      %3199 = vst.msk [vmem:[%s177 + $0x50] sm:$0xf] %vm215, %v3135
      %3200 = vst.msk [vmem:[%s177 + $0x54] sm:$0xf] %vm215, %v3136
      %3201 = vst.msk [vmem:[%s177 + $0x58] sm:$0xf] %vm215, %v3137
      %3202 = vst.msk [vmem:[%s177 + $0x5c] sm:$0xf] %vm215, %v3138
      %3203 = vst.msk [vmem:[%s177 + $0x60] sm:$0xf] %vm215, %v3139
      %3204 = vst.msk [vmem:[%s177 + $0x64] sm:$0xf] %vm215, %v3140
      %3205 = vst.msk [vmem:[%s177 + $0x68] sm:$0xf] %vm215, %v3141
      %3206 = vst.msk [vmem:[%s177 + $0x6c] sm:$0xf] %vm215, %v3142
      %3207 = vst.msk [vmem:[%s177 + $0x70] sm:$0xf] %vm215, %v3143
      %3208 = vst.msk [vmem:[%s177 + $0x74] sm:$0xf] %vm215, %v3144
      %3209 = vst.msk [vmem:[%s177 + $0x78] sm:$0xf] %vm215, %v3145
      %3210 = vst.msk [vmem:[%s177 + $0x7c] sm:$0xf] %vm215, %v3146
      %v3211 = vsel %vm2569, %v2925, 0.0
      %v3212 = vsel %vm2569, %v2928, 0.0
      %v3213 = vadd.f32 %v3211, %v3212
      %v3214 = vsel %vm2569, %v2933, 0.0
      %v3215 = vadd.f32 %v3213, %v3214
      %v3216 = vsel %vm2569, %v2936, 0.0
      %v3217 = vadd.f32 %v3215, %v3216
      %v3218 = vsel %vm2569, %v2941, 0.0
      %v3219 = vadd.f32 %v3217, %v3218
      %v3220 = vsel %vm2569, %v2944, 0.0
      %v3221 = vadd.f32 %v3219, %v3220
      %v3222 = vsel %vm2569, %v2949, 0.0
      %v3223 = vadd.f32 %v3221, %v3222
      %v3224 = vsel %vm2569, %v2952, 0.0
      %v3225 = vadd.f32 %v3223, %v3224
      %v3226 = vsel %vm2569, %v2957, 0.0
      %v3227 = vadd.f32 %v3225, %v3226
      %v3228 = vsel %vm2569, %v2960, 0.0
      %v3229 = vadd.f32 %v3227, %v3228
      %v3230 = vsel %vm2569, %v2965, 0.0
      %v3231 = vadd.f32 %v3229, %v3230
      %v3232 = vsel %vm2569, %v2968, 0.0
      %v3233 = vadd.f32 %v3231, %v3232
      %v3234 = vsel %vm2569, %v2973, 0.0
      %v3235 = vadd.f32 %v3233, %v3234
      %v3236 = vsel %vm2569, %v2976, 0.0
      %v3237 = vadd.f32 %v3235, %v3236
      %v3238 = vsel %vm2569, %v2981, 0.0
      %v3239 = vadd.f32 %v3237, %v3238
      %v3240 = vsel %vm2569, %v2984, 0.0
      %v3241 = vadd.f32 %v3239, %v3240
      %v3242 = vsel %vm2569, %v2989, 0.0
      %v3243 = vadd.f32 %v3241, %v3242
      %v3244 = vsel %vm2569, %v2992, 0.0
      %v3245 = vadd.f32 %v3243, %v3244
      %v3246 = vsel %vm2569, %v2997, 0.0
      %v3247 = vadd.f32 %v3245, %v3246
      %v3248 = vsel %vm2569, %v3000, 0.0
      %v3249 = vadd.f32 %v3247, %v3248
      %v3250 = vsel %vm2569, %v3005, 0.0
      %v3251 = vadd.f32 %v3249, %v3250
      %v3252 = vsel %vm2569, %v3008, 0.0
      %v3253 = vadd.f32 %v3251, %v3252
      %v3254 = vsel %vm2569, %v3013, 0.0
      %v3255 = vadd.f32 %v3253, %v3254
      %v3256 = vsel %vm2569, %v3016, 0.0
      %v3257 = vadd.f32 %v3255, %v3256
      %v3258 = vsel %vm2569, %v3021, 0.0
      %v3259 = vadd.f32 %v3257, %v3258
      %v3260 = vsel %vm2569, %v3024, 0.0
      %v3261 = vadd.f32 %v3259, %v3260
      %v3262 = vsel %vm2569, %v3029, 0.0
      %v3263 = vadd.f32 %v3261, %v3262
      %v3264 = vsel %vm2569, %v3032, 0.0
      %v3265 = vadd.f32 %v3263, %v3264
      %v3266 = vsel %vm2569, %v3037, 0.0
      %v3267 = vadd.f32 %v3265, %v3266
      %v3268 = vsel %vm2569, %v3040, 0.0
      %v3269 = vadd.f32 %v3267, %v3268
      %v3270 = vsel %vm2569, %v3045, 0.0
      %v3271 = vadd.f32 %v3269, %v3270
      %v3272 = vsel %vm2569, %v3048, 0.0
      %v3273 = vadd.f32 %v3271, %v3272
      %v3274 = vrot.slane %v3273, 4
      %v3275 = vadd.f32 %v3273, %v3274
      %v3276 = vrot.slane %v3275, 2
      %v3277 = vadd.f32 %v3275, %v3276
      %v3278 = vrot.slane %v3277, 1
      %v3279 = vadd.f32 %v3277, %v3278
      %v3280 = vadd.f32 %v3279, 0.0
      %v3281 = vmul.f32 %v2925, %v2925
      %v3282 = vmul.f32 %v2928, %v2928
      %v3283 = vmul.f32 %v2933, %v2933
      %v3284 = vmul.f32 %v2936, %v2936
      %v3285 = vmul.f32 %v2941, %v2941
      %v3286 = vmul.f32 %v2944, %v2944
      %v3287 = vmul.f32 %v2949, %v2949
      %v3288 = vmul.f32 %v2952, %v2952
      %v3289 = vmul.f32 %v2957, %v2957
      %v3290 = vmul.f32 %v2960, %v2960
      %v3291 = vmul.f32 %v2965, %v2965
      %v3292 = vmul.f32 %v2968, %v2968
      %v3293 = vmul.f32 %v2973, %v2973
      %v3294 = vmul.f32 %v2976, %v2976
      %v3295 = vmul.f32 %v2981, %v2981
      %v3296 = vmul.f32 %v2984, %v2984
      %v3297 = vmul.f32 %v2989, %v2989
      %v3298 = vmul.f32 %v2992, %v2992
      %v3299 = vmul.f32 %v2997, %v2997
      %v3300 = vmul.f32 %v3000, %v3000
      %v3301 = vmul.f32 %v3005, %v3005
      %v3302 = vmul.f32 %v3008, %v3008
      %v3303 = vmul.f32 %v3013, %v3013
      %v3304 = vmul.f32 %v3016, %v3016
      %v3305 = vmul.f32 %v3021, %v3021
      %v3306 = vmul.f32 %v3024, %v3024
      %v3307 = vmul.f32 %v3029, %v3029
      %v3308 = vmul.f32 %v3032, %v3032
      %v3309 = vmul.f32 %v3037, %v3037
      %v3310 = vmul.f32 %v3040, %v3040
      %v3311 = vmul.f32 %v3045, %v3045
      %v3312 = vmul.f32 %v3048, %v3048
      %v3313 = vsel %vm2569, %v3281, 0.0
      %v3314 = vsel %vm2569, %v3282, 0.0
      %v3315 = vadd.f32 %v3313, %v3314
      %v3316 = vsel %vm2569, %v3283, 0.0
      %v3317 = vadd.f32 %v3315, %v3316
      %v3318 = vsel %vm2569, %v3284, 0.0
      %v3319 = vadd.f32 %v3317, %v3318
      %v3320 = vsel %vm2569, %v3285, 0.0
      %v3321 = vadd.f32 %v3319, %v3320
      %v3322 = vsel %vm2569, %v3286, 0.0
      %v3323 = vadd.f32 %v3321, %v3322
      %v3324 = vsel %vm2569, %v3287, 0.0
      %v3325 = vadd.f32 %v3323, %v3324
      %v3326 = vsel %vm2569, %v3288, 0.0
      %v3327 = vadd.f32 %v3325, %v3326
      %v3328 = vsel %vm2569, %v3289, 0.0
      %v3329 = vadd.f32 %v3327, %v3328
      %v3330 = vsel %vm2569, %v3290, 0.0
      %v3331 = vadd.f32 %v3329, %v3330
      %v3332 = vsel %vm2569, %v3291, 0.0
      %v3333 = vadd.f32 %v3331, %v3332
      %v3334 = vsel %vm2569, %v3292, 0.0
      %v3335 = vadd.f32 %v3333, %v3334
      %v3336 = vsel %vm2569, %v3293, 0.0
      %v3337 = vadd.f32 %v3335, %v3336
      %v3338 = vsel %vm2569, %v3294, 0.0
      %v3339 = vadd.f32 %v3337, %v3338
      %v3340 = vsel %vm2569, %v3295, 0.0
      %v3341 = vadd.f32 %v3339, %v3340
      %v3342 = vsel %vm2569, %v3296, 0.0
      %v3343 = vadd.f32 %v3341, %v3342
      %v3344 = vsel %vm2569, %v3297, 0.0
      %v3345 = vadd.f32 %v3343, %v3344
      %v3346 = vsel %vm2569, %v3298, 0.0
      %v3347 = vadd.f32 %v3345, %v3346
      %v3348 = vsel %vm2569, %v3299, 0.0
      %v3349 = vadd.f32 %v3347, %v3348
      %v3350 = vsel %vm2569, %v3300, 0.0
      %v3351 = vadd.f32 %v3349, %v3350
      %v3352 = vsel %vm2569, %v3301, 0.0
      %v3353 = vadd.f32 %v3351, %v3352
      %v3354 = vsel %vm2569, %v3302, 0.0
      %v3355 = vadd.f32 %v3353, %v3354
      %v3356 = vsel %vm2569, %v3303, 0.0
      %v3357 = vadd.f32 %v3355, %v3356
      %v3358 = vsel %vm2569, %v3304, 0.0
      %v3359 = vadd.f32 %v3357, %v3358
      %v3360 = vsel %vm2569, %v3305, 0.0
      %v3361 = vadd.f32 %v3359, %v3360
      %v3362 = vsel %vm2569, %v3306, 0.0
      %v3363 = vadd.f32 %v3361, %v3362
      %v3364 = vsel %vm2569, %v3307, 0.0
      %v3365 = vadd.f32 %v3363, %v3364
      %v3366 = vsel %vm2569, %v3308, 0.0
      %v3367 = vadd.f32 %v3365, %v3366
      %v3368 = vsel %vm2569, %v3309, 0.0
      %v3369 = vadd.f32 %v3367, %v3368
      %v3370 = vsel %vm2569, %v3310, 0.0
      %v3371 = vadd.f32 %v3369, %v3370
      %v3372 = vsel %vm2569, %v3311, 0.0
      %v3373 = vadd.f32 %v3371, %v3372
      %v3374 = vsel %vm2569, %v3312, 0.0
      %v3375 = vadd.f32 %v3373, %v3374
      %v3376 = vrot.slane %v3375, 4
      %v3377 = vadd.f32 %v3375, %v3376
      %v3378 = vrot.slane %v3377, 2
      %v3379 = vadd.f32 %v3377, %v3378
      %v3380 = vrot.slane %v3379, 1
      %v3381 = vadd.f32 %v3379, %v3380
      %v3382 = vadd.f32 %v3381, 0.0
      %vm3383 = vcmask 1040384
      %v3384 = vsel %vm3383, %v3280, %v3382
      %vm3385 = vcmask 25600
      %3386 = vst.msk [vmem:[%s181] sm:$0x3] %vm3385, %v3384
      %p3387 = scmp.lt.s32.totalorder %s15, 1
      %s3388 = scalar_select %p3387, %s15, 1
      %s3389 = smul.addr %s3388, 32
      %s3390 = smul.addr %s3389, 4
      %s3391 = scalar_lea.vmem %s2, %s3390
      %p3392 = scmp.lt.s32.totalorder %s15, 1
      %s3393 = scalar_select %p3392, %s15, 1
      %s3394 = smul.addr %s3393, 2
      %s3395 = scalar_lea.vmem %s3, %s3394
      // Predicated region
      $region29: #{residual_block.3} parent=27 // pred_check
        %p3396 = pneg %p80
      $region30: #{residual_block.3} parent=27 // pred_check_branch
        %3398 = sbr.rel (%p3396) target = $region32
      $region31: #{residual_block.3} parent=27 // pred_region
        _
      $region32: #{residual_block.3} parent=27 // pred_fallthru
        _
      // Predicated region
      $region33: #{residual_block.3} parent=27 // pred_check
        %p3399 = pneg %p106
      $region34: #{residual_block.3} parent=27 // pred_check_branch
        %3401 = sbr.rel (%p3399) target = $region36
      $region35: #{residual_block.3} parent=27 // pred_region
        _
      $region36: #{residual_block.3} parent=27 // pred_fallthru
        _
    $region28: #{residual_block.3} parent=5 // pred_fallthru
      _
    %p3402 = scmp.le.s32.totalorder 2, %s10
    // Predicated region
    $region37: #{residual_block.3} parent=5 // pred_check
      %p3403 = pneg %p3402
    $region38: #{residual_block.3} parent=5 // pred_check_branch
      %3405 = sbr.rel (%p3403) target = $region40
    $region39: #{residual_block.3} parent=5 // pred_region
      %s3406 = ssub.s32 %s10, 2
      // Predicated region
      $region41: #{residual_block.3} parent=39 // pred_check
        %p3407 = pneg %p86
      $region42: #{residual_block.3} parent=39 // pred_check_branch
        %3409 = sbr.rel (%p3407) target = $region44
      $region43: #{residual_block.3} parent=39 // pred_region
        %p3410 = scmp.lt.s32.totalorder %s16, 1
        %s3411 = scalar_select %p3410, %s16, 1
        %s3412 = smul.addr %s3411, 32
        %s3413 = smul.addr %s3412, 4
        %s3414 = scalar_lea.vmem %s2, %s3413
      $region44: #{residual_block.3} parent=39 // pred_fallthru
        _
      // Predicated region
      $region45: #{residual_block.3} parent=39 // pred_check
        %p3415 = pneg %p112
      $region46: #{residual_block.3} parent=39 // pred_check_branch
        %3417 = sbr.rel (%p3415) target = $region48
      $region47: #{residual_block.3} parent=39 // pred_region
        %p3418 = scmp.lt.s32.totalorder %s16, 1
        %s3419 = scalar_select %p3418, %s16, 1
        %s3420 = smul.addr %s3419, 2
        %s3421 = scalar_lea.vmem %s3, %s3420
      $region48: #{residual_block.3} parent=39 // pred_fallthru
        _
    $region40: #{residual_block.3} parent=5 // pred_fallthru
      _
  $region6: #{residual_block.3} parent=0 // loop_footer
    %s14 = sadd.s32 1, %s10
  $region7: #{residual_block.3} parent=0 // loop_footer_branch
    %9 = sbr.rel target = $region3
  $region8: #{residual_block.3} parent=0 // loop_exit
    _

// kernel: residual_block.4
$region0: #{residual_block.4}
  #allocation0 [shape = 'u32[]', space=smem, size = 0x4, offset = 0x4, fixed_abs, tag = 'smem constant byte address 0x4 - core index']
  #allocation1 [shape = 'u32[144,128]{1,0:T(1,128)}', space=vmem, size = 0x12000, scoped, tag = 'internal scratch']
  #allocation2 [shape = 'bf16[18,18,4]{2,1,0:T(8,128)(2,1)}', space=vmem, size = 0x1b000, scoped, tag = 'scratch operand']
  %s0 = inlined_call_operand.vmem [shape: bf16[2,16,16,4], index: 0, kind: input, shape index: {}]
  %s1 = inlined_call_operand.vmem [shape: bf16[36,4], index: 1, kind: input, shape index: {}]
  %s2 = inlined_call_operand.vmem [shape: f32[1,4], index: 2, kind: input, shape index: {}]
  %s3 = inlined_call_operand.vmem [shape: f32[1,4], index: 3, kind: input, shape index: {}]
  %s4 = inlined_call_operand.vmem [shape: bf16[2,16,16,4], index: 4, kind: output, shape index: {0}]
  %s5 = inlined_call_operand.vmem [shape: f32[2,2,4], index: 5, kind: output, shape index: {1}]
  %6 = xla_tuple %s4, %s5
  %s7 = sld [smem:[#allocation0]]
  $region57: #{residual_block.4} parent=0
    _
  %s9 = ssub.s32 1, %s7
  %s10 = scalar_select 0, %s9, %s7
  loop: start=0, step=1, limit=4
  $region2: #{residual_block.4} parent=0 // loop_pre_header
    _
  $region3: #{residual_block.4} parent=0 // loop_header
    %s12 = sphi 0, %s16
    %p13 = scmp.ge.s32.totalorder %s12, 4
    %s22 = sphi 0, %s24
    %s25 = sphi 0, %s22
    %s26 = sphi 0, %s25
    %s42 = sphi 0, %s26
    %s46 = sphi 0, %s46
    %s48 = sphi 0, %s46
    %s49 = sphi 0, %s48
    %s63 = sphi 0, %s49
    %s67 = sphi 0, %s67
    %s69 = sphi 0, %s67
    %s70 = sphi 0, %s69
    %s84 = sphi 0, %s70
    %s88 = sphi 0, %s88
    %s90 = sphi 0, %s88
    %s91 = sphi 0, %s90
    %s105 = sphi 0, %s91
    %s111 = sphi 0, %s113
    %s114 = sphi 0, %s111
    %s115 = sphi 0, %s114
    %s131 = sphi 0, %s115
    %s137 = sphi 0, %s139
    %s140 = sphi 0, %s137
    %s141 = sphi 0, %s140
    %s157 = sphi 0, %s141
  $region4: #{residual_block.4} parent=0 // loop_header_branch
    %15 = sbr.rel (%p13) target = $region8
  $region5: #{residual_block.4} parent=0 // loop_body
    %s17 = ssub.s32 %s12, 1
    %s18 = ssub.s32 %s12, 2
    %s19 = sadd.s32 %s12, 1
    %s20 = ssub.s32 %s12, %s19
    %p21 = scmp.eq.s32.totalorder %s20, 0
    %s23 = sadd.s32 %s22, 1
    %s24 = scalar_select %p21, %s22, %s23
    %p27 = pneg %p21
    %p28 = scmp.eq.s32.totalorder %s12, 1
    %p29 = por %p27, %p28
    %p30 = scmp.ne.s32.totalorder %s22, %s25
    %p31 = scmp.eq.s32.totalorder %s12, 0
    %p32 = por %p30, %p31
    %p33 = scmp.ne.s32.totalorder %s22, %s25
    %p34 = scmp.eq.s32.totalorder %s17, 1
    %p35 = por %p33, %p34
    %p36 = scmp.ne.s32.totalorder %s25, %s26
    %p37 = scmp.eq.s32.totalorder %s17, 0
    %p38 = por %p36, %p37
    %p39 = scmp.ne.s32.totalorder %s25, %s26
    %p40 = scmp.eq.s32.totalorder %s18, 1
    %p41 = por %p39, %p40
    %p43 = scmp.ne.s32.totalorder %s26, %s42
    %p44 = scmp.eq.s32.totalorder %s18, 0
    %p45 = por %p43, %p44
    %s47 = sadd.s32 %s46, 1
    %p50 = scmp.eq.s32.totalorder %s12, 1
    %p51 = scmp.ne.s32.totalorder %s46, %s48
    %p52 = scmp.eq.s32.totalorder %s12, 0
    %p53 = por %p51, %p52
    %p54 = scmp.ne.s32.totalorder %s46, %s48
    %p55 = scmp.eq.s32.totalorder %s17, 1
    %p56 = por %p54, %p55
    %p57 = scmp.ne.s32.totalorder %s48, %s49
    %p58 = scmp.eq.s32.totalorder %s17, 0
    %p59 = por %p57, %p58
    %p60 = scmp.ne.s32.totalorder %s48, %s49
    %p61 = scmp.eq.s32.totalorder %s18, 1
    %p62 = por %p60, %p61
    %p64 = scmp.ne.s32.totalorder %s49, %s63
    %p65 = scmp.eq.s32.totalorder %s18, 0
    %p66 = por %p64, %p65
    %s68 = sadd.s32 %s67, 1
    %p71 = scmp.eq.s32.totalorder %s12, 1
    %p72 = scmp.ne.s32.totalorder %s67, %s69
    %p73 = scmp.eq.s32.totalorder %s12, 0
    %p74 = por %p72, %p73
    %p75 = scmp.ne.s32.totalorder %s67, %s69
    %p76 = scmp.eq.s32.totalorder %s17, 1
    %p77 = por %p75, %p76
    %p78 = scmp.ne.s32.totalorder %s69, %s70
    %p79 = scmp.eq.s32.totalorder %s17, 0
    %p80 = por %p78, %p79
    %p81 = scmp.ne.s32.totalorder %s69, %s70
    %p82 = scmp.eq.s32.totalorder %s18, 1
    %p83 = por %p81, %p82
    %p85 = scmp.ne.s32.totalorder %s70, %s84
    %p86 = scmp.eq.s32.totalorder %s18, 0
    %p87 = por %p85, %p86
    %s89 = sadd.s32 %s88, 1
    %p92 = scmp.eq.s32.totalorder %s12, 1
    %p93 = scmp.ne.s32.totalorder %s88, %s90
    %p94 = scmp.eq.s32.totalorder %s12, 0
    %p95 = por %p93, %p94
    %p96 = scmp.ne.s32.totalorder %s88, %s90
    %p97 = scmp.eq.s32.totalorder %s17, 1
    %p98 = por %p96, %p97
    %p99 = scmp.ne.s32.totalorder %s90, %s91
    %p100 = scmp.eq.s32.totalorder %s17, 0
    %p101 = por %p99, %p100
    %p102 = scmp.ne.s32.totalorder %s90, %s91
    %p103 = scmp.eq.s32.totalorder %s18, 1
    %p104 = por %p102, %p103
    %p106 = scmp.ne.s32.totalorder %s91, %s105
    %p107 = scmp.eq.s32.totalorder %s18, 0
    %p108 = por %p106, %p107
    %s109 = ssub.s32 %s12, %s19
    %p110 = scmp.eq.s32.totalorder %s109, 0
    %s112 = sadd.s32 %s111, 1
    %s113 = scalar_select %p110, %s111, %s112
    %p116 = pneg %p110
    %p117 = scmp.eq.s32.totalorder %s12, 1
    %p118 = por %p116, %p117
    %p119 = scmp.ne.s32.totalorder %s111, %s114
    %p120 = scmp.eq.s32.totalorder %s12, 0
    %p121 = por %p119, %p120
    %p122 = scmp.ne.s32.totalorder %s111, %s114
    %p123 = scmp.eq.s32.totalorder %s17, 1
    %p124 = por %p122, %p123
    %p125 = scmp.ne.s32.totalorder %s114, %s115
    %p126 = scmp.eq.s32.totalorder %s17, 0
    %p127 = por %p125, %p126
    %p128 = scmp.ne.s32.totalorder %s114, %s115
    %p129 = scmp.eq.s32.totalorder %s18, 1
    %p130 = por %p128, %p129
    %p132 = scmp.ne.s32.totalorder %s115, %s131
    %p133 = scmp.eq.s32.totalorder %s18, 0
    %p134 = por %p132, %p133
    %s135 = ssub.s32 %s12, %s19
    %p136 = scmp.eq.s32.totalorder %s135, 0
    %s138 = sadd.s32 %s137, 1
    %s139 = scalar_select %p136, %s137, %s138
    %p142 = pneg %p136
    %p143 = scmp.eq.s32.totalorder %s12, 1
    %p144 = por %p142, %p143
    %p145 = scmp.ne.s32.totalorder %s137, %s140
    %p146 = scmp.eq.s32.totalorder %s12, 0
    %p147 = por %p145, %p146
    %p148 = scmp.ne.s32.totalorder %s137, %s140
    %p149 = scmp.eq.s32.totalorder %s17, 1
    %p150 = por %p148, %p149
    %p151 = scmp.ne.s32.totalorder %s140, %s141
    %p152 = scmp.eq.s32.totalorder %s17, 0
    %p153 = por %p151, %p152
    %p154 = scmp.ne.s32.totalorder %s140, %s141
    %p155 = scmp.eq.s32.totalorder %s18, 1
    %p156 = por %p154, %p155
    %p158 = scmp.ne.s32.totalorder %s141, %s157
    %p159 = scmp.eq.s32.totalorder %s18, 0
    %p160 = por %p158, %p159
    %p161 = scmp.le.s32.totalorder 1, %s12
    %p162 = scmp.lt.s32.totalorder %s12, 3
    %p163 = pnand %p161, %p162
    %p164 = pneg %p163
    // Predicated region
    $region9: #{residual_block.4} parent=5 // pred_check
      _
    $region10: #{residual_block.4} parent=5 // pred_check_branch
      %166 = sbr.rel (%p163) target = $region12
    $region11: #{residual_block.4} parent=5 // pred_region
      %s167 = ssub.s32 %s12, 1
      // Predicated region
      $region13: #{residual_block.4} parent=11 // pred_check
        %p168 = pneg %p59
      $region14: #{residual_block.4} parent=11 // pred_check_branch
        %170 = sbr.rel (%p168) target = $region16
      $region15: #{residual_block.4} parent=11 // pred_region
        _
      $region16: #{residual_block.4} parent=11 // pred_fallthru
        _
      // Predicated region
      $region17: #{residual_block.4} parent=11 // pred_check
        %p171 = pneg %p80
      $region18: #{residual_block.4} parent=11 // pred_check_branch
        %173 = sbr.rel (%p171) target = $region20
      $region19: #{residual_block.4} parent=11 // pred_region
        _
      $region20: #{residual_block.4} parent=11 // pred_fallthru
        _
      // Predicated region
      $region21: #{residual_block.4} parent=11 // pred_check
        %p174 = pneg %p101
      $region22: #{residual_block.4} parent=11 // pred_check_branch
        %176 = sbr.rel (%p174) target = $region24
      $region23: #{residual_block.4} parent=11 // pred_region
        _
      $region24: #{residual_block.4} parent=11 // pred_fallthru
        _
    $region12: #{residual_block.4} parent=5 // pred_fallthru
      _
    %p177 = scmp.lt.s32.totalorder %s12, 2
    // Predicated region
    $region25: #{residual_block.4} parent=5 // pred_check
      %p178 = pneg %p177
    $region26: #{residual_block.4} parent=5 // pred_check_branch
      %180 = sbr.rel (%p178) target = $region28
    $region27: #{residual_block.4} parent=5 // pred_region
      // Predicated region
      $region29: #{residual_block.4} parent=27 // pred_check
        %p181 = pneg %p32
      $region30: #{residual_block.4} parent=27 // pred_check_branch
        %183 = sbr.rel (%p181) target = $region32
      $region31: #{residual_block.4} parent=27 // pred_region
        %p184 = scmp.lt.s32.totalorder %s12, 1
        %s185 = scalar_select %p184, %s12, 1
        %s186 = smul.addr %s185, 32
        %s187 = smul.addr %s186, 4
        %s188 = scalar_lea.vmem %s0, %s187
      $region32: #{residual_block.4} parent=27 // pred_fallthru
        _
    $region28: #{residual_block.4} parent=5 // pred_fallthru
      _
    %p189 = scmp.le.s32.totalorder 1, %s12
    %p190 = scmp.lt.s32.totalorder %s12, 3
    %p191 = pnand %p189, %p190
    %p192 = pneg %p191
    // Predicated region
    $region33: #{residual_block.4} parent=5 // pred_check
      _
    $region34: #{residual_block.4} parent=5 // pred_check_branch
      %194 = sbr.rel (%p191) target = $region36
    $region35: #{residual_block.4} parent=5 // pred_region
      %s195 = ssub.s32 %s12, 1
      %p196 = scmp.lt.s32.totalorder %s17, 1
      %s197 = scalar_select %p196, %s17, 1
      %s198 = smul.addr %s197, 32
      %s199 = smul.addr %s198, 4
      %s200 = scalar_lea.vmem %s0, %s199
      %p201 = pneg %p38
      %p202 = pneg %p35
      %p203 = pneg %p59
      %p204 = pneg %p56
      %p205 = pneg %p80
      %p206 = pneg %p77
      %p207 = pneg %p101
      %p208 = pneg %p98
      %p209 = pneg %p127
      %p210 = pneg %p124
      %p211 = scmp.lt.s32.totalorder %s17, 1
      %s212 = scalar_select %p211, %s17, 1
      %s213 = smul.addr %s212, 32
      %s214 = smul.addr %s213, 4
      %s215 = scalar_lea.vmem %s4, %s214
      %p216 = pneg %p153
      %p217 = pneg %p150
      %p218 = scmp.lt.s32.totalorder %s17, 1
      %s219 = scalar_select %p218, %s17, 1
      %s220 = smul.addr %s219, 2
      %s221 = scalar_lea.vmem %s5, %s220
      %p222 = scmp.lt.s32.totalorder %s17, 1
      %s223 = scalar_select %p222, %s17, 1
      %s224 = smul.addr %s223, 32
      %s225 = smul.addr %s224, 4
      %s226 = scalar_lea.vmem %s0, %s225
      %p227 = scmp.lt.s32.totalorder %s17, 1
      %s228 = scalar_select %p227, %s17, 1
      %s229 = smul.addr %s228, 32
      %s230 = smul.addr %s229, 4
      %s231 = scalar_lea.vmem %s4, %s230
      %p232 = scmp.lt.s32.totalorder %s17, 1
      %s233 = scalar_select %p232, %s17, 1
      %s234 = smul.addr %s233, 2
      %s235 = scalar_lea.vmem %s5, %s234
      %v237 = vld [vmem:[%s226] sm:$0xf]
      %v238 = vld [vmem:[%s226 + $0x4] sm:$0xf]
      %v239 = vld [vmem:[%s226 + $0x8] sm:$0xf]
      %v240 = vld [vmem:[%s226 + $0xc] sm:$0xf]
      %v241 = vld [vmem:[%s226 + $0x10] sm:$0xf]
      %v242 = vld [vmem:[%s226 + $0x14] sm:$0xf]
      %v243 = vld [vmem:[%s226 + $0x18] sm:$0xf]
      %v244 = vld [vmem:[%s226 + $0x1c] sm:$0xf]
      %v245 = vld [vmem:[%s226 + $0x20] sm:$0xf]
      %v246 = vld [vmem:[%s226 + $0x24] sm:$0xf]
      %v247 = vld [vmem:[%s226 + $0x28] sm:$0xf]
      %v248 = vld [vmem:[%s226 + $0x2c] sm:$0xf]
      %v249 = vld [vmem:[%s226 + $0x30] sm:$0xf]
      %v250 = vld [vmem:[%s226 + $0x34] sm:$0xf]
      %v251 = vld [vmem:[%s226 + $0x38] sm:$0xf]
      %v252 = vld [vmem:[%s226 + $0x3c] sm:$0xf]
      %v253 = vld [vmem:[%s226 + $0x40] sm:$0xf]
      %v254 = vld [vmem:[%s226 + $0x44] sm:$0xf]
      %v255 = vld [vmem:[%s226 + $0x48] sm:$0xf]
      %v256 = vld [vmem:[%s226 + $0x4c] sm:$0xf]
      %v257 = vld [vmem:[%s226 + $0x50] sm:$0xf]
      %v258 = vld [vmem:[%s226 + $0x54] sm:$0xf]
      %v259 = vld [vmem:[%s226 + $0x58] sm:$0xf]
      %v260 = vld [vmem:[%s226 + $0x5c] sm:$0xf]
      %v261 = vld [vmem:[%s226 + $0x60] sm:$0xf]
      %v262 = vld [vmem:[%s226 + $0x64] sm:$0xf]
      %v263 = vld [vmem:[%s226 + $0x68] sm:$0xf]
      %v264 = vld [vmem:[%s226 + $0x6c] sm:$0xf]
      %v265 = vld [vmem:[%s226 + $0x70] sm:$0xf]
      %v266 = vld [vmem:[%s226 + $0x74] sm:$0xf]
      %v267 = vld [vmem:[%s226 + $0x78] sm:$0xf]
      %v268 = vld [vmem:[%s226 + $0x7c] sm:$0xf]
      %v269 = vunpack.c.l.bf16 %v237
      %v270 = vunpack.c.l.bf16 %v238
      %v271 = vunpack.c.l.bf16 %v239
      %v272 = vunpack.c.l.bf16 %v240
      %v273 = vunpack.c.l.bf16 %v241
      %v274 = vunpack.c.l.bf16 %v242
      %v275 = vunpack.c.l.bf16 %v243
      %v276 = vunpack.c.l.bf16 %v244
      %v277 = vunpack.c.l.bf16 %v245
      %v278 = vunpack.c.l.bf16 %v246
      %v279 = vunpack.c.l.bf16 %v247
      %v280 = vunpack.c.l.bf16 %v248
      %v281 = vunpack.c.l.bf16 %v249
      %v282 = vunpack.c.l.bf16 %v250
      %v283 = vunpack.c.l.bf16 %v251
      %v284 = vunpack.c.l.bf16 %v252
      %v285 = vunpack.c.l.bf16 %v253
      %v286 = vunpack.c.l.bf16 %v254
      %v287 = vunpack.c.l.bf16 %v255
      %v288 = vunpack.c.l.bf16 %v256
      %v289 = vunpack.c.l.bf16 %v257
      %v290 = vunpack.c.l.bf16 %v258
      %v291 = vunpack.c.l.bf16 %v259
      %v292 = vunpack.c.l.bf16 %v260
      %v293 = vunpack.c.l.bf16 %v261
      %v294 = vunpack.c.l.bf16 %v262
      %v295 = vunpack.c.l.bf16 %v263
      %v296 = vunpack.c.l.bf16 %v264
      %v297 = vunpack.c.l.bf16 %v265
      %v298 = vunpack.c.l.bf16 %v266
      %v299 = vunpack.c.l.bf16 %v267
      %v300 = vunpack.c.l.bf16 %v268
      %v301 = vld [vmem:[%s2] sm:$0x1]
      %v303 = vlaneseq
      %v304 = vshrl.u32 %v303, 7
      %v305 = vsub.s32 0, %v304
      %v306 = vrot.slane %v301, %v305
      %v308 = vmul.f32 %v269, %v306
      %v309 = vmul.f32 %v270, %v306
      %v310 = vmul.f32 %v271, %v306
      %v311 = vmul.f32 %v272, %v306
      %v312 = vmul.f32 %v273, %v306
      %v313 = vmul.f32 %v274, %v306
      %v314 = vmul.f32 %v275, %v306
      %v315 = vmul.f32 %v276, %v306
      %v316 = vmul.f32 %v277, %v306
      %v317 = vmul.f32 %v278, %v306
      %v318 = vmul.f32 %v279, %v306
      %v319 = vmul.f32 %v280, %v306
      %v320 = vmul.f32 %v281, %v306
      %v321 = vmul.f32 %v282, %v306
      %v322 = vmul.f32 %v283, %v306
      %v323 = vmul.f32 %v284, %v306
      %v324 = vmul.f32 %v285, %v306
      %v325 = vmul.f32 %v286, %v306
      %v326 = vmul.f32 %v287, %v306
      %v327 = vmul.f32 %v288, %v306
      %v328 = vmul.f32 %v289, %v306
      %v329 = vmul.f32 %v290, %v306
      %v330 = vmul.f32 %v291, %v306
      %v331 = vmul.f32 %v292, %v306
      %v332 = vmul.f32 %v293, %v306
      %v333 = vmul.f32 %v294, %v306
      %v334 = vmul.f32 %v295, %v306
      %v335 = vmul.f32 %v296, %v306
      %v336 = vmul.f32 %v297, %v306
      %v337 = vmul.f32 %v298, %v306
      %v338 = vmul.f32 %v299, %v306
      %v339 = vmul.f32 %v300, %v306
      %v340 = vld [vmem:[%s3] sm:$0x1]
      %v342 = vlaneseq
      %v343 = vshrl.u32 %v342, 7
      %v344 = vsub.s32 0, %v343
      %v345 = vrot.slane %v340, %v344
      %v347 = vadd.f32 %v308, %v345
      %v348 = vadd.f32 %v309, %v345
      %v349 = vadd.f32 %v310, %v345
      %v350 = vadd.f32 %v311, %v345
      %v351 = vadd.f32 %v312, %v345
      %v352 = vadd.f32 %v313, %v345
      %v353 = vadd.f32 %v314, %v345
      %v354 = vadd.f32 %v315, %v345
      %v355 = vadd.f32 %v316, %v345
      %v356 = vadd.f32 %v317, %v345
      %v357 = vadd.f32 %v318, %v345
      %v358 = vadd.f32 %v319, %v345
      %v359 = vadd.f32 %v320, %v345
      %v360 = vadd.f32 %v321, %v345
      %v361 = vadd.f32 %v322, %v345
      %v362 = vadd.f32 %v323, %v345
      %v363 = vadd.f32 %v324, %v345
      %v364 = vadd.f32 %v325, %v345
      %v365 = vadd.f32 %v326, %v345
      %v366 = vadd.f32 %v327, %v345
      %v367 = vadd.f32 %v328, %v345
      %v368 = vadd.f32 %v329, %v345
      %v369 = vadd.f32 %v330, %v345
      %v370 = vadd.f32 %v331, %v345
      %v371 = vadd.f32 %v332, %v345
      %v372 = vadd.f32 %v333, %v345
      %v373 = vadd.f32 %v334, %v345
      %v374 = vadd.f32 %v335, %v345
      %v375 = vadd.f32 %v336, %v345
      %v376 = vadd.f32 %v337, %v345
      %v377 = vadd.f32 %v338, %v345
      %v378 = vadd.f32 %v339, %v345
      %v379 = vmax.f32 %v347, 0.0
      %v380 = vmax.f32 %v348, 0.0
      %v381 = vmax.f32 %v349, 0.0
      %v382 = vmax.f32 %v350, 0.0
      %v383 = vmax.f32 %v351, 0.0
      %v384 = vmax.f32 %v352, 0.0
      %v385 = vmax.f32 %v353, 0.0
      %v386 = vmax.f32 %v354, 0.0
      %v387 = vmax.f32 %v355, 0.0
      %v388 = vmax.f32 %v356, 0.0
      %v389 = vmax.f32 %v357, 0.0
      %v390 = vmax.f32 %v358, 0.0
      %v391 = vmax.f32 %v359, 0.0
      %v392 = vmax.f32 %v360, 0.0
      %v393 = vmax.f32 %v361, 0.0
      %v394 = vmax.f32 %v362, 0.0
      %v395 = vmax.f32 %v363, 0.0
      %v396 = vmax.f32 %v364, 0.0
      %v397 = vmax.f32 %v365, 0.0
      %v398 = vmax.f32 %v366, 0.0
      %v399 = vmax.f32 %v367, 0.0
      %v400 = vmax.f32 %v368, 0.0
      %v401 = vmax.f32 %v369, 0.0
      %v402 = vmax.f32 %v370, 0.0
      %v403 = vmax.f32 %v371, 0.0
      %v404 = vmax.f32 %v372, 0.0
      %v405 = vmax.f32 %v373, 0.0
      %v406 = vmax.f32 %v374, 0.0
      %v407 = vmax.f32 %v375, 0.0
      %v408 = vmax.f32 %v376, 0.0
      %v409 = vmax.f32 %v377, 0.0
      %v410 = vmax.f32 %v378, 0.0
      %vm411 = vcmask 27648
      %412 = vst.msk [vmem:[#allocation2] sm:$0xf] %vm411, 0
      %413 = vst.msk [vmem:[#allocation2 + $0x4] sm:$0xf] %vm411, 0
      %vm414 = vcmask 24576
      %415 = vst.msk [vmem:[#allocation2 + $0x8] sm:$0x1] %vm414, 0
      %s416 = scalar_lea.vmem [#allocation2], 204
      %417 = vst.msk [vmem:[%s416] sm:$0xf] %vm411, 0
      %418 = vst.msk [vmem:[%s416 + $0x4] sm:$0xf] %vm411, 0
      %419 = vst.msk [vmem:[%s416 + $0x8] sm:$0x1] %vm414, 0
      %vm420 = vcmask 24576
      %vm421 = vsmask.f32 256
      %vm422 = vmand %vm420, %vm421
      %v423 = vld [vmem:[#allocation2] sm:$0x1]
      %v424 = vsel %vm422, 0, %v423
      %425 = vst [vmem:[#allocation2] sm:$0x1] %v424
      %v426 = vld [vmem:[#allocation2 + $0xc] sm:$0x1]
      %v427 = vsel %vm422, 0, %v426
      %428 = vst [vmem:[#allocation2 + $0xc] sm:$0x1] %v427
      %v429 = vld [vmem:[#allocation2 + $0x18] sm:$0x1]
      %v430 = vsel %vm422, 0, %v429
      %431 = vst [vmem:[#allocation2 + $0x18] sm:$0x1] %v430
      %v432 = vld [vmem:[#allocation2 + $0x24] sm:$0x1]
      %v433 = vsel %vm422, 0, %v432
      %434 = vst [vmem:[#allocation2 + $0x24] sm:$0x1] %v433
      %v435 = vld [vmem:[#allocation2 + $0x30] sm:$0x1]
      %v436 = vsel %vm422, 0, %v435
      %437 = vst [vmem:[#allocation2 + $0x30] sm:$0x1] %v436
      %v438 = vld [vmem:[#allocation2 + $0x3c] sm:$0x1]
      %v439 = vsel %vm422, 0, %v438
      %440 = vst [vmem:[#allocation2 + $0x3c] sm:$0x1] %v439
      %v441 = vld [vmem:[#allocation2 + $0x48] sm:$0x1]
      %v442 = vsel %vm422, 0, %v441
      %443 = vst [vmem:[#allocation2 + $0x48] sm:$0x1] %v442
      %v444 = vld [vmem:[#allocation2 + $0x54] sm:$0x1]
      %v445 = vsel %vm422, 0, %v444
      %446 = vst [vmem:[#allocation2 + $0x54] sm:$0x1] %v445
      %v447 = vld [vmem:[#allocation2 + $0x60] sm:$0x1]
      %v448 = vsel %vm422, 0, %v447
      %449 = vst [vmem:[#allocation2 + $0x60] sm:$0x1] %v448
      %v450 = vld [vmem:[#allocation2 + $0x6c] sm:$0x1]
      %v451 = vsel %vm422, 0, %v450
      %452 = vst [vmem:[#allocation2 + $0x6c] sm:$0x1] %v451
      %v453 = vld [vmem:[#allocation2 + $0x78] sm:$0x1]
      %v454 = vsel %vm422, 0, %v453
      %455 = vst [vmem:[#allocation2 + $0x78] sm:$0x1] %v454
      %v456 = vld [vmem:[#allocation2 + $0x84] sm:$0x1]
      %v457 = vsel %vm422, 0, %v456
      %458 = vst [vmem:[#allocation2 + $0x84] sm:$0x1] %v457
      %v459 = vld [vmem:[#allocation2 + $0x90] sm:$0x1]
      %v460 = vsel %vm422, 0, %v459
      %461 = vst [vmem:[#allocation2 + $0x90] sm:$0x1] %v460
      %v462 = vld [vmem:[#allocation2 + $0x9c] sm:$0x1]
      %v463 = vsel %vm422, 0, %v462
      %464 = vst [vmem:[#allocation2 + $0x9c] sm:$0x1] %v463
      %v465 = vld [vmem:[#allocation2 + $0xa8] sm:$0x1]
      %v466 = vsel %vm422, 0, %v465
      %467 = vst [vmem:[#allocation2 + $0xa8] sm:$0x1] %v466
      %v468 = vld [vmem:[#allocation2 + $0xb4] sm:$0x1]
      %v469 = vsel %vm422, 0, %v468
      %470 = vst [vmem:[#allocation2 + $0xb4] sm:$0x1] %v469
      %v471 = vld [vmem:[#allocation2 + $0xc0] sm:$0x1]
      %v472 = vsel %vm422, 0, %v471
      %473 = vst [vmem:[#allocation2 + $0xc0] sm:$0x1] %v472
      %v474 = vld [vmem:[#allocation2 + $0xcc] sm:$0x1]
      %v475 = vsel %vm422, 0, %v474
      %476 = vst [vmem:[#allocation2 + $0xcc] sm:$0x1] %v475
      %vm477 = vsmask.f32 7938
      %vm478 = vmand %vm420, %vm477
      %v479 = vld [vmem:[#allocation2 + $0x8] sm:$0x1]
      %v480 = vsel %vm478, 0, %v479
      %481 = vst [vmem:[#allocation2 + $0x8] sm:$0x1] %v480
      %v482 = vld [vmem:[#allocation2 + $0x14] sm:$0x1]
      %v483 = vsel %vm478, 0, %v482
      %484 = vst [vmem:[#allocation2 + $0x14] sm:$0x1] %v483
      %v485 = vld [vmem:[#allocation2 + $0x20] sm:$0x1]
      %v486 = vsel %vm478, 0, %v485
      %487 = vst [vmem:[#allocation2 + $0x20] sm:$0x1] %v486
      %v488 = vld [vmem:[#allocation2 + $0x2c] sm:$0x1]
      %v489 = vsel %vm478, 0, %v488
      %490 = vst [vmem:[#allocation2 + $0x2c] sm:$0x1] %v489
      %v491 = vld [vmem:[#allocation2 + $0x38] sm:$0x1]
      %v492 = vsel %vm478, 0, %v491
      %493 = vst [vmem:[#allocation2 + $0x38] sm:$0x1] %v492
      %v494 = vld [vmem:[#allocation2 + $0x44] sm:$0x1]
      %v495 = vsel %vm478, 0, %v494
      %496 = vst [vmem:[#allocation2 + $0x44] sm:$0x1] %v495
      %v497 = vld [vmem:[#allocation2 + $0x50] sm:$0x1]
      %v498 = vsel %vm478, 0, %v497
      %499 = vst [vmem:[#allocation2 + $0x50] sm:$0x1] %v498
      %v500 = vld [vmem:[#allocation2 + $0x5c] sm:$0x1]
      %v501 = vsel %vm478, 0, %v500
      %502 = vst [vmem:[#allocation2 + $0x5c] sm:$0x1] %v501
      %v503 = vld [vmem:[#allocation2 + $0x68] sm:$0x1]
      %v504 = vsel %vm478, 0, %v503
      %505 = vst [vmem:[#allocation2 + $0x68] sm:$0x1] %v504
      %v506 = vld [vmem:[#allocation2 + $0x74] sm:$0x1]
      %v507 = vsel %vm478, 0, %v506
      %508 = vst [vmem:[#allocation2 + $0x74] sm:$0x1] %v507
      %v509 = vld [vmem:[#allocation2 + $0x80] sm:$0x1]
      %v510 = vsel %vm478, 0, %v509
      %511 = vst [vmem:[#allocation2 + $0x80] sm:$0x1] %v510
      %v512 = vld [vmem:[#allocation2 + $0x8c] sm:$0x1]
      %v513 = vsel %vm478, 0, %v512
      %514 = vst [vmem:[#allocation2 + $0x8c] sm:$0x1] %v513
      %v515 = vld [vmem:[#allocation2 + $0x98] sm:$0x1]
      %v516 = vsel %vm478, 0, %v515
      %517 = vst [vmem:[#allocation2 + $0x98] sm:$0x1] %v516
      %v518 = vld [vmem:[#allocation2 + $0xa4] sm:$0x1]
      %v519 = vsel %vm478, 0, %v518
      %520 = vst [vmem:[#allocation2 + $0xa4] sm:$0x1] %v519
      %v521 = vld [vmem:[#allocation2 + $0xb0] sm:$0x1]
      %v522 = vsel %vm478, 0, %v521
      %523 = vst [vmem:[#allocation2 + $0xb0] sm:$0x1] %v522
      %v524 = vld [vmem:[#allocation2 + $0xbc] sm:$0x1]
      %v525 = vsel %vm478, 0, %v524
      %526 = vst [vmem:[#allocation2 + $0xbc] sm:$0x1] %v525
      %v527 = vld [vmem:[#allocation2 + $0xc8] sm:$0x1]
      %v528 = vsel %vm478, 0, %v527
      %529 = vst [vmem:[#allocation2 + $0xc8] sm:$0x1] %v528
      %v530 = vld [vmem:[#allocation2 + $0xd4] sm:$0x1]
      %v531 = vsel %vm478, 0, %v530
      %532 = vst [vmem:[#allocation2 + $0xd4] sm:$0x1] %v531
      %v533 = vpack.c.bf16 %v380, %v379
      %v534 = vpack.c.bf16 %v382, %v381
      %v535 = vpack.c.bf16 %v384, %v383
      %v536 = vpack.c.bf16 %v386, %v385
      %v537 = vpack.c.bf16 %v388, %v387
      %v538 = vpack.c.bf16 %v390, %v389
      %v539 = vpack.c.bf16 %v392, %v391
      %v540 = vpack.c.bf16 %v394, %v393
      %v541 = vpack.c.bf16 %v396, %v395
      %v542 = vpack.c.bf16 %v398, %v397
      %v543 = vpack.c.bf16 %v400, %v399
      %v544 = vpack.c.bf16 %v402, %v401
      %v545 = vpack.c.bf16 %v404, %v403
      %v546 = vpack.c.bf16 %v406, %v405
      %v547 = vpack.c.bf16 %v408, %v407
      %v548 = vpack.c.bf16 %v410, %v409
      %v565 = vunpack.c.l.b16 %v533
      %v566 = vunpack.c.h.b16 %v533
      %v567 = vunpack.c.l.b16 %v534
      %v568 = vunpack.c.h.b16 %v534
      %v569 = vunpack.c.l.b16 %v535
      %v570 = vunpack.c.h.b16 %v535
      %v571 = vunpack.c.l.b16 %v536
      %v572 = vunpack.c.h.b16 %v536
      %v573 = vunpack.c.l.b16 %v537
      %v574 = vunpack.c.h.b16 %v537
      %v575 = vunpack.c.l.b16 %v538
      %v576 = vunpack.c.h.b16 %v538
      %v577 = vunpack.c.l.b16 %v539
      %v578 = vunpack.c.h.b16 %v539
      %v579 = vunpack.c.l.b16 %v540
      %v580 = vunpack.c.h.b16 %v540
      %v581 = vunpack.c.l.b16 %v541
      %v582 = vunpack.c.h.b16 %v541
      %v583 = vunpack.c.l.b16 %v542
      %v584 = vunpack.c.h.b16 %v542
      %v585 = vunpack.c.l.b16 %v543
      %v586 = vunpack.c.h.b16 %v543
      %v587 = vunpack.c.l.b16 %v544
      %v588 = vunpack.c.h.b16 %v544
      %v589 = vunpack.c.l.b16 %v545
      %v590 = vunpack.c.h.b16 %v545
      %v591 = vunpack.c.l.b16 %v546
      %v592 = vunpack.c.h.b16 %v546
      %v593 = vunpack.c.l.b16 %v547
      %v594 = vunpack.c.h.b16 %v547
      %v595 = vunpack.c.l.b16 %v548
      %v596 = vunpack.c.h.b16 %v548
      %v597 = vpack.c.b16 %v565, %v565
      %v598 = vpack.c.b16 %v566, %v566
      %v599 = vpack.c.b16 %v567, %v567
      %v600 = vpack.c.b16 %v568, %v568
      %v601 = vpack.c.b16 %v569, %v569
      %v602 = vpack.c.b16 %v570, %v570
      %v603 = vpack.c.b16 %v571, %v571
      %v604 = vpack.c.b16 %v572, %v572
      %v605 = vpack.c.b16 %v573, %v573
      %v606 = vpack.c.b16 %v574, %v574
      %v607 = vpack.c.b16 %v575, %v575
      %v608 = vpack.c.b16 %v576, %v576
      %v609 = vpack.c.b16 %v577, %v577
      %v610 = vpack.c.b16 %v578, %v578
      %v611 = vpack.c.b16 %v579, %v579
      %v612 = vpack.c.b16 %v580, %v580
      %v613 = vpack.c.b16 %v581, %v581
      %v614 = vpack.c.b16 %v582, %v582
      %v615 = vpack.c.b16 %v583, %v583
      %v616 = vpack.c.b16 %v584, %v584
      %v617 = vpack.c.b16 %v585, %v585
      %v618 = vpack.c.b16 %v586, %v586
      %v619 = vpack.c.b16 %v587, %v587
      %v620 = vpack.c.b16 %v588, %v588
      %v621 = vpack.c.b16 %v589, %v589
      %v622 = vpack.c.b16 %v590, %v590
      %v623 = vpack.c.b16 %v591, %v591
      %v624 = vpack.c.b16 %v592, %v592
      %v625 = vpack.c.b16 %v593, %v593
      %v626 = vpack.c.b16 %v594, %v594
      %v627 = vpack.c.b16 %v595, %v595
      %v628 = vpack.c.b16 %v596, %v596
      %vm629 = vsmask.f32 4368
      %vm630 = vmor %vm421, %vm629
      %v632 = vshrl.u32 %v597, 16
      %v634 = vrot.slane %v632, 7
      %v635 = vshll.u32 %v597, 16
      %v637 = vor.u32 %v634, %v635
      %v638 = vrot.slane %v634, 4
      %v640 = vshrl.u32 %v598, 16
      %v642 = vrot.slane %v640, 7
      %v643 = vshll.u32 %v598, 16
      %v645 = vor.u32 %v642, %v643
      %v646 = vsel %vm630, %v638, %v645
      %v647 = vrot.slane %v642, 4
      %v649 = vshrl.u32 %v599, 16
      %v651 = vrot.slane %v649, 7
      %v652 = vshll.u32 %v599, 16
      %v654 = vor.u32 %v651, %v652
      %v655 = vrot.slane %v651, 4
      %v657 = vshrl.u32 %v600, 16
      %v659 = vrot.slane %v657, 7
      %v660 = vshll.u32 %v600, 16
      %v662 = vor.u32 %v659, %v660
      %v663 = vsel %vm630, %v655, %v662
      %v664 = vrot.slane %v659, 4
      %v666 = vshrl.u32 %v601, 16
      %v668 = vrot.slane %v666, 7
      %v669 = vshll.u32 %v601, 16
      %v671 = vor.u32 %v668, %v669
      %v672 = vrot.slane %v668, 4
      %v674 = vshrl.u32 %v602, 16
      %v676 = vrot.slane %v674, 7
      %v677 = vshll.u32 %v602, 16
      %v679 = vor.u32 %v676, %v677
      %v680 = vsel %vm630, %v672, %v679
      %v681 = vrot.slane %v676, 4
      %v683 = vshrl.u32 %v603, 16
      %v685 = vrot.slane %v683, 7
      %v686 = vshll.u32 %v603, 16
      %v688 = vor.u32 %v685, %v686
      %v689 = vrot.slane %v685, 4
      %v691 = vshrl.u32 %v604, 16
      %v693 = vrot.slane %v691, 7
      %v694 = vshll.u32 %v604, 16
      %v696 = vor.u32 %v693, %v694
      %v697 = vsel %vm630, %v689, %v696
      %v698 = vrot.slane %v693, 4
      %v700 = vshrl.u32 %v605, 16
      %v702 = vrot.slane %v700, 7
      %v703 = vshll.u32 %v605, 16
      %v705 = vor.u32 %v702, %v703
      %v706 = vrot.slane %v702, 4
      %v708 = vshrl.u32 %v606, 16
      %v710 = vrot.slane %v708, 7
      %v711 = vshll.u32 %v606, 16
      %v713 = vor.u32 %v710, %v711
      %v714 = vsel %vm630, %v706, %v713
      %v715 = vrot.slane %v710, 4
      %v717 = vshrl.u32 %v607, 16
      %v719 = vrot.slane %v717, 7
      %v720 = vshll.u32 %v607, 16
      %v722 = vor.u32 %v719, %v720
      %v723 = vrot.slane %v719, 4
      %v725 = vshrl.u32 %v608, 16
      %v727 = vrot.slane %v725, 7
      %v728 = vshll.u32 %v608, 16
      %v730 = vor.u32 %v727, %v728
      %v731 = vsel %vm630, %v723, %v730
      %v732 = vrot.slane %v727, 4
      %v734 = vshrl.u32 %v609, 16
      %v736 = vrot.slane %v734, 7
      %v737 = vshll.u32 %v609, 16
      %v739 = vor.u32 %v736, %v737
      %v740 = vrot.slane %v736, 4
      %v742 = vshrl.u32 %v610, 16
      %v744 = vrot.slane %v742, 7
      %v745 = vshll.u32 %v610, 16
      %v747 = vor.u32 %v744, %v745
      %v748 = vsel %vm630, %v740, %v747
      %v749 = vrot.slane %v744, 4
      %v751 = vshrl.u32 %v611, 16
      %v753 = vrot.slane %v751, 7
      %v754 = vshll.u32 %v611, 16
      %v756 = vor.u32 %v753, %v754
      %v757 = vrot.slane %v753, 4
      %v759 = vshrl.u32 %v612, 16
      %v761 = vrot.slane %v759, 7
      %v762 = vshll.u32 %v612, 16
      %v764 = vor.u32 %v761, %v762
      %v765 = vsel %vm630, %v757, %v764
      %v766 = vrot.slane %v761, 4
      %v768 = vshrl.u32 %v613, 16
      %v770 = vrot.slane %v768, 7
      %v771 = vshll.u32 %v613, 16
      %v773 = vor.u32 %v770, %v771
      %v774 = vrot.slane %v770, 4
      %v776 = vshrl.u32 %v614, 16
      %v778 = vrot.slane %v776, 7
      %v779 = vshll.u32 %v614, 16
      %v781 = vor.u32 %v778, %v779
      %v782 = vsel %vm630, %v774, %v781
      %v783 = vrot.slane %v778, 4
      %v785 = vshrl.u32 %v615, 16
      %v787 = vrot.slane %v785, 7
      %v788 = vshll.u32 %v615, 16
      %v790 = vor.u32 %v787, %v788
      %v791 = vrot.slane %v787, 4
      %v793 = vshrl.u32 %v616, 16
      %v795 = vrot.slane %v793, 7
      %v796 = vshll.u32 %v616, 16
      %v798 = vor.u32 %v795, %v796
      %v799 = vsel %vm630, %v791, %v798
      %v800 = vrot.slane %v795, 4
      %v802 = vshrl.u32 %v617, 16
      %v804 = vrot.slane %v802, 7
      %v805 = vshll.u32 %v617, 16
      %v807 = vor.u32 %v804, %v805
      %v808 = vrot.slane %v804, 4
      %v810 = vshrl.u32 %v618, 16
      %v812 = vrot.slane %v810, 7
      %v813 = vshll.u32 %v618, 16
      %v815 = vor.u32 %v812, %v813
      %v816 = vsel %vm630, %v808, %v815
      %v817 = vrot.slane %v812, 4
      %v819 = vshrl.u32 %v619, 16
      %v821 = vrot.slane %v819, 7
      %v822 = vshll.u32 %v619, 16
      %v824 = vor.u32 %v821, %v822
      %v825 = vrot.slane %v821, 4
      %v827 = vshrl.u32 %v620, 16
      %v829 = vrot.slane %v827, 7
      %v830 = vshll.u32 %v620, 16
      %v832 = vor.u32 %v829, %v830
      %v833 = vsel %vm630, %v825, %v832
      %v834 = vrot.slane %v829, 4
      %v836 = vshrl.u32 %v621, 16
      %v838 = vrot.slane %v836, 7
      %v839 = vshll.u32 %v621, 16
      %v841 = vor.u32 %v838, %v839
      %v842 = vrot.slane %v838, 4
      %v844 = vshrl.u32 %v622, 16
      %v846 = vrot.slane %v844, 7
      %v847 = vshll.u32 %v622, 16
      %v849 = vor.u32 %v846, %v847
      %v850 = vsel %vm630, %v842, %v849
      %v851 = vrot.slane %v846, 4
      %v853 = vshrl.u32 %v623, 16
      %v855 = vrot.slane %v853, 7
      %v856 = vshll.u32 %v623, 16
      %v858 = vor.u32 %v855, %v856
      %v859 = vrot.slane %v855, 4
      %v861 = vshrl.u32 %v624, 16
      %v863 = vrot.slane %v861, 7
      %v864 = vshll.u32 %v624, 16
      %v866 = vor.u32 %v863, %v864
      %v867 = vsel %vm630, %v859, %v866
      %v868 = vrot.slane %v863, 4
      %v870 = vshrl.u32 %v625, 16
      %v872 = vrot.slane %v870, 7
      %v873 = vshll.u32 %v625, 16
      %v875 = vor.u32 %v872, %v873
      %v876 = vrot.slane %v872, 4
      %v878 = vshrl.u32 %v626, 16
      %v880 = vrot.slane %v878, 7
      %v881 = vshll.u32 %v626, 16
      %v883 = vor.u32 %v880, %v881
      %v884 = vsel %vm630, %v876, %v883
      %v885 = vrot.slane %v880, 4
      %v887 = vshrl.u32 %v627, 16
      %v889 = vrot.slane %v887, 7
      %v890 = vshll.u32 %v627, 16
      %v892 = vor.u32 %v889, %v890
      %v893 = vrot.slane %v889, 4
      %v895 = vshrl.u32 %v628, 16
      %v897 = vrot.slane %v895, 7
      %v898 = vshll.u32 %v628, 16
      %v900 = vor.u32 %v897, %v898
      %v901 = vsel %vm630, %v893, %v900
      %v902 = vrot.slane %v897, 4
      %s951 = scalar_lea.vmem [#allocation2], 12
      %vm952 = vcmask 27648
      %vm953 = vmand %vm952, %vm477
      %v954 = vld [vmem:[%s951] sm:$0xf]
      %v955 = vsel %vm953, %v637, %v954
      %956 = vst [vmem:[%s951] sm:$0xf] %v955
      %957 = vst.msk [vmem:[%s951 + $0x4] sm:$0xf] %vm411, %v646
      %v958 = vld [vmem:[%s951 + $0x8] sm:$0x1]
      %v959 = vsel %vm422, %v647, %v958
      %960 = vst [vmem:[%s951 + $0x8] sm:$0x1] %v959
      %v961 = vld [vmem:[%s951 + $0xc] sm:$0xf]
      %v962 = vsel %vm953, %v654, %v961
      %963 = vst [vmem:[%s951 + $0xc] sm:$0xf] %v962
      %964 = vst.msk [vmem:[%s951 + $0x10] sm:$0xf] %vm411, %v663
      %v965 = vld [vmem:[%s951 + $0x14] sm:$0x1]
      %v966 = vsel %vm422, %v664, %v965
      %967 = vst [vmem:[%s951 + $0x14] sm:$0x1] %v966
      %v968 = vld [vmem:[%s951 + $0x18] sm:$0xf]
      %v969 = vsel %vm953, %v671, %v968
      %970 = vst [vmem:[%s951 + $0x18] sm:$0xf] %v969
      %971 = vst.msk [vmem:[%s951 + $0x1c] sm:$0xf] %vm411, %v680
      %v972 = vld [vmem:[%s951 + $0x20] sm:$0x1]
      %v973 = vsel %vm422, %v681, %v972
      %974 = vst [vmem:[%s951 + $0x20] sm:$0x1] %v973
      %v975 = vld [vmem:[%s951 + $0x24] sm:$0xf]
      %v976 = vsel %vm953, %v688, %v975
      %977 = vst [vmem:[%s951 + $0x24] sm:$0xf] %v976
      %978 = vst.msk [vmem:[%s951 + $0x28] sm:$0xf] %vm411, %v697
      %v979 = vld [vmem:[%s951 + $0x2c] sm:$0x1]
      %v980 = vsel %vm422, %v698, %v979
      %981 = vst [vmem:[%s951 + $0x2c] sm:$0x1] %v980
      %v982 = vld [vmem:[%s951 + $0x30] sm:$0xf]
      %v983 = vsel %vm953, %v705, %v982
      %984 = vst [vmem:[%s951 + $0x30] sm:$0xf] %v983
      %985 = vst.msk [vmem:[%s951 + $0x34] sm:$0xf] %vm411, %v714
      %v986 = vld [vmem:[%s951 + $0x38] sm:$0x1]
      %v987 = vsel %vm422, %v715, %v986
      %988 = vst [vmem:[%s951 + $0x38] sm:$0x1] %v987
      %v989 = vld [vmem:[%s951 + $0x3c] sm:$0xf]
      %v990 = vsel %vm953, %v722, %v989
      %991 = vst [vmem:[%s951 + $0x3c] sm:$0xf] %v990
      %992 = vst.msk [vmem:[%s951 + $0x40] sm:$0xf] %vm411, %v731
      %v993 = vld [vmem:[%s951 + $0x44] sm:$0x1]
      %v994 = vsel %vm422, %v732, %v993
      %995 = vst [vmem:[%s951 + $0x44] sm:$0x1] %v994
      %v996 = vld [vmem:[%s951 + $0x48] sm:$0xf]
      %v997 = vsel %vm953, %v739, %v996
      %998 = vst [vmem:[%s951 + $0x48] sm:$0xf] %v997
      %999 = vst.msk [vmem:[%s951 + $0x4c] sm:$0xf] %vm411, %v748
      %v1000 = vld [vmem:[%s951 + $0x50] sm:$0x1]
      %v1001 = vsel %vm422, %v749, %v1000
      %1002 = vst [vmem:[%s951 + $0x50] sm:$0x1] %v1001
      %v1003 = vld [vmem:[%s951 + $0x54] sm:$0xf]
      %v1004 = vsel %vm953, %v756, %v1003
      %1005 = vst [vmem:[%s951 + $0x54] sm:$0xf] %v1004
      %1006 = vst.msk [vmem:[%s951 + $0x58] sm:$0xf] %vm411, %v765
      %v1007 = vld [vmem:[%s951 + $0x5c] sm:$0x1]
      %v1008 = vsel %vm422, %v766, %v1007
      %1009 = vst [vmem:[%s951 + $0x5c] sm:$0x1] %v1008
      %v1010 = vld [vmem:[%s951 + $0x60] sm:$0xf]
      %v1011 = vsel %vm953, %v773, %v1010
      %1012 = vst [vmem:[%s951 + $0x60] sm:$0xf] %v1011
      %1013 = vst.msk [vmem:[%s951 + $0x64] sm:$0xf] %vm411, %v782
      %v1014 = vld [vmem:[%s951 + $0x68] sm:$0x1]
      %v1015 = vsel %vm422, %v783, %v1014
      %1016 = vst [vmem:[%s951 + $0x68] sm:$0x1] %v1015
      %v1017 = vld [vmem:[%s951 + $0x6c] sm:$0xf]
      %v1018 = vsel %vm953, %v790, %v1017
      %1019 = vst [vmem:[%s951 + $0x6c] sm:$0xf] %v1018
      %1020 = vst.msk [vmem:[%s951 + $0x70] sm:$0xf] %vm411, %v799
      %v1021 = vld [vmem:[%s951 + $0x74] sm:$0x1]
      %v1022 = vsel %vm422, %v800, %v1021
      %1023 = vst [vmem:[%s951 + $0x74] sm:$0x1] %v1022
      %v1024 = vld [vmem:[%s951 + $0x78] sm:$0xf]
      %v1025 = vsel %vm953, %v807, %v1024
      %1026 = vst [vmem:[%s951 + $0x78] sm:$0xf] %v1025
      %1027 = vst.msk [vmem:[%s951 + $0x7c] sm:$0xf] %vm411, %v816
      %v1028 = vld [vmem:[%s951 + $0x80] sm:$0x1]
      %v1029 = vsel %vm422, %v817, %v1028
      %1030 = vst [vmem:[%s951 + $0x80] sm:$0x1] %v1029
      %v1031 = vld [vmem:[%s951 + $0x84] sm:$0xf]
      %v1032 = vsel %vm953, %v824, %v1031
      %1033 = vst [vmem:[%s951 + $0x84] sm:$0xf] %v1032
      %1034 = vst.msk [vmem:[%s951 + $0x88] sm:$0xf] %vm411, %v833
      %v1035 = vld [vmem:[%s951 + $0x8c] sm:$0x1]
      %v1036 = vsel %vm422, %v834, %v1035
      %1037 = vst [vmem:[%s951 + $0x8c] sm:$0x1] %v1036
      %v1038 = vld [vmem:[%s951 + $0x90] sm:$0xf]
      %v1039 = vsel %vm953, %v841, %v1038
      %1040 = vst [vmem:[%s951 + $0x90] sm:$0xf] %v1039
      %1041 = vst.msk [vmem:[%s951 + $0x94] sm:$0xf] %vm411, %v850
      %v1042 = vld [vmem:[%s951 + $0x98] sm:$0x1]
      %v1043 = vsel %vm422, %v851, %v1042
      %1044 = vst [vmem:[%s951 + $0x98] sm:$0x1] %v1043
      %v1045 = vld [vmem:[%s951 + $0x9c] sm:$0xf]
      %v1046 = vsel %vm953, %v858, %v1045
      %1047 = vst [vmem:[%s951 + $0x9c] sm:$0xf] %v1046
      %1048 = vst.msk [vmem:[%s951 + $0xa0] sm:$0xf] %vm411, %v867
      %v1049 = vld [vmem:[%s951 + $0xa4] sm:$0x1]
      %v1050 = vsel %vm422, %v868, %v1049
      %1051 = vst [vmem:[%s951 + $0xa4] sm:$0x1] %v1050
      %v1052 = vld [vmem:[%s951 + $0xa8] sm:$0xf]
      %v1053 = vsel %vm953, %v875, %v1052
      %1054 = vst [vmem:[%s951 + $0xa8] sm:$0xf] %v1053
      %1055 = vst.msk [vmem:[%s951 + $0xac] sm:$0xf] %vm411, %v884
      %v1056 = vld [vmem:[%s951 + $0xb0] sm:$0x1]
      %v1057 = vsel %vm422, %v885, %v1056
      %1058 = vst [vmem:[%s951 + $0xb0] sm:$0x1] %v1057
      %v1059 = vld [vmem:[%s951 + $0xb4] sm:$0xf]
      %v1060 = vsel %vm953, %v892, %v1059
      %1061 = vst [vmem:[%s951 + $0xb4] sm:$0xf] %v1060
      %1062 = vst.msk [vmem:[%s951 + $0xb8] sm:$0xf] %vm411, %v901
      %v1063 = vld [vmem:[%s951 + $0xbc] sm:$0x1]
      %v1064 = vsel %vm422, %v902, %v1063
      %1065 = vst [vmem:[%s951 + $0xbc] sm:$0x1] %v1064
      %v1066 = vld [vmem:[#allocation2] sm:$0xf]
      %v1067 = vld [vmem:[#allocation2 + $0x4] sm:$0xf]
      %v1068 = vld [vmem:[#allocation2 + $0xc] sm:$0xf]
      %v1069 = vld [vmem:[#allocation2 + $0x10] sm:$0xf]
      %v1070 = vld [vmem:[#allocation2 + $0x18] sm:$0xf]
      %v1071 = vld [vmem:[#allocation2 + $0x1c] sm:$0xf]
      %v1072 = vld [vmem:[#allocation2 + $0x24] sm:$0xf]
      %v1073 = vld [vmem:[#allocation2 + $0x28] sm:$0xf]
      %v1074 = vld [vmem:[#allocation2 + $0x30] sm:$0xf]
      %v1075 = vld [vmem:[#allocation2 + $0x34] sm:$0xf]
      %v1076 = vld [vmem:[#allocation2 + $0x3c] sm:$0xf]
      %v1077 = vld [vmem:[#allocation2 + $0x40] sm:$0xf]
      %v1078 = vld [vmem:[#allocation2 + $0x48] sm:$0xf]
      %v1079 = vld [vmem:[#allocation2 + $0x4c] sm:$0xf]
      %v1080 = vld [vmem:[#allocation2 + $0x54] sm:$0xf]
      %v1081 = vld [vmem:[#allocation2 + $0x58] sm:$0xf]
      %v1082 = vld [vmem:[#allocation2 + $0x60] sm:$0xf]
      %v1083 = vld [vmem:[#allocation2 + $0x64] sm:$0xf]
      %v1084 = vld [vmem:[#allocation2 + $0x6c] sm:$0xf]
      %v1085 = vld [vmem:[#allocation2 + $0x70] sm:$0xf]
      %v1086 = vld [vmem:[#allocation2 + $0x78] sm:$0xf]
      %v1087 = vld [vmem:[#allocation2 + $0x7c] sm:$0xf]
      %v1088 = vld [vmem:[#allocation2 + $0x84] sm:$0xf]
      %v1089 = vld [vmem:[#allocation2 + $0x88] sm:$0xf]
      %v1090 = vld [vmem:[#allocation2 + $0x90] sm:$0xf]
      %v1091 = vld [vmem:[#allocation2 + $0x94] sm:$0xf]
      %v1092 = vld [vmem:[#allocation2 + $0x9c] sm:$0xf]
      %v1093 = vld [vmem:[#allocation2 + $0xa0] sm:$0xf]
      %v1094 = vld [vmem:[#allocation2 + $0xa8] sm:$0xf]
      %v1095 = vld [vmem:[#allocation2 + $0xac] sm:$0xf]
      %v1096 = vld [vmem:[#allocation2 + $0xb4] sm:$0xf]
      %v1097 = vld [vmem:[#allocation2 + $0xb8] sm:$0xf]
      %v1098 = vld [vmem:[#allocation2 + $0x8] sm:$0x1]
      %v1099 = vld [vmem:[#allocation2 + $0x14] sm:$0x1]
      %v1100 = vld [vmem:[#allocation2 + $0x20] sm:$0x1]
      %v1101 = vld [vmem:[#allocation2 + $0x2c] sm:$0x1]
      %v1102 = vld [vmem:[#allocation2 + $0x38] sm:$0x1]
      %v1103 = vld [vmem:[#allocation2 + $0x44] sm:$0x1]
      %v1104 = vld [vmem:[#allocation2 + $0x50] sm:$0x1]
      %v1105 = vld [vmem:[#allocation2 + $0x5c] sm:$0x1]
      %v1106 = vld [vmem:[#allocation2 + $0x68] sm:$0x1]
      %v1107 = vld [vmem:[#allocation2 + $0x74] sm:$0x1]
      %v1108 = vld [vmem:[#allocation2 + $0x80] sm:$0x1]
      %v1109 = vld [vmem:[#allocation2 + $0x8c] sm:$0x1]
      %v1110 = vld [vmem:[#allocation2 + $0x98] sm:$0x1]
      %v1111 = vld [vmem:[#allocation2 + $0xa4] sm:$0x1]
      %v1112 = vld [vmem:[#allocation2 + $0xb0] sm:$0x1]
      %v1113 = vld [vmem:[#allocation2 + $0xbc] sm:$0x1]
      %v1114 = vld [vmem:[#allocation2] sm:$0xe]
      %v1115 = vld [vmem:[#allocation2 + $0xc] sm:$0xe]
      %v1116 = vld [vmem:[#allocation2 + $0x18] sm:$0xe]
      %v1117 = vld [vmem:[#allocation2 + $0x24] sm:$0xe]
      %v1118 = vld [vmem:[#allocation2 + $0x30] sm:$0xe]
      %v1119 = vld [vmem:[#allocation2 + $0x3c] sm:$0xe]
      %v1120 = vld [vmem:[#allocation2 + $0x48] sm:$0xe]
      %v1121 = vld [vmem:[#allocation2 + $0x54] sm:$0xe]
      %v1122 = vld [vmem:[#allocation2 + $0x60] sm:$0xe]
      %v1123 = vld [vmem:[#allocation2 + $0x6c] sm:$0xe]
      %v1124 = vld [vmem:[#allocation2 + $0x78] sm:$0xe]
      %v1125 = vld [vmem:[#allocation2 + $0x84] sm:$0xe]
      %v1126 = vld [vmem:[#allocation2 + $0x90] sm:$0xe]
      %v1127 = vld [vmem:[#allocation2 + $0x9c] sm:$0xe]
      %v1128 = vld [vmem:[#allocation2 + $0xa8] sm:$0xe]
      %v1129 = vld [vmem:[#allocation2 + $0xb4] sm:$0xe]
      %v1130 = vld [vmem:[%s951] sm:$0xf]
      %v1131 = vld [vmem:[%s951 + $0x4] sm:$0xf]
      %v1132 = vld [vmem:[%s951 + $0xc] sm:$0xf]
      %v1133 = vld [vmem:[%s951 + $0x10] sm:$0xf]
      %v1134 = vld [vmem:[%s951 + $0x18] sm:$0xf]
      %v1135 = vld [vmem:[%s951 + $0x1c] sm:$0xf]
      %v1136 = vld [vmem:[%s951 + $0x24] sm:$0xf]
      %v1137 = vld [vmem:[%s951 + $0x28] sm:$0xf]
      %v1138 = vld [vmem:[%s951 + $0x30] sm:$0xf]
      %v1139 = vld [vmem:[%s951 + $0x34] sm:$0xf]
      %v1140 = vld [vmem:[%s951 + $0x3c] sm:$0xf]
      %v1141 = vld [vmem:[%s951 + $0x40] sm:$0xf]
      %v1142 = vld [vmem:[%s951 + $0x48] sm:$0xf]
      %v1143 = vld [vmem:[%s951 + $0x4c] sm:$0xf]
      %v1144 = vld [vmem:[%s951 + $0x54] sm:$0xf]
      %v1145 = vld [vmem:[%s951 + $0x58] sm:$0xf]
      %v1146 = vld [vmem:[%s951 + $0x60] sm:$0xf]
      %v1147 = vld [vmem:[%s951 + $0x64] sm:$0xf]
      %v1148 = vld [vmem:[%s951 + $0x6c] sm:$0xf]
      %v1149 = vld [vmem:[%s951 + $0x70] sm:$0xf]
      %v1150 = vld [vmem:[%s951 + $0x78] sm:$0xf]
      %v1151 = vld [vmem:[%s951 + $0x7c] sm:$0xf]
      %v1152 = vld [vmem:[%s951 + $0x84] sm:$0xf]
      %v1153 = vld [vmem:[%s951 + $0x88] sm:$0xf]
      %v1154 = vld [vmem:[%s951 + $0x90] sm:$0xf]
      %v1155 = vld [vmem:[%s951 + $0x94] sm:$0xf]
      %v1156 = vld [vmem:[%s951 + $0x9c] sm:$0xf]
      %v1157 = vld [vmem:[%s951 + $0xa0] sm:$0xf]
      %v1158 = vld [vmem:[%s951 + $0xa8] sm:$0xf]
      %v1159 = vld [vmem:[%s951 + $0xac] sm:$0xf]
      %v1160 = vld [vmem:[%s951 + $0xb4] sm:$0xf]
      %v1161 = vld [vmem:[%s951 + $0xb8] sm:$0xf]
      %v1162 = vld [vmem:[%s951 + $0x8] sm:$0x1]
      %v1163 = vld [vmem:[%s951 + $0x14] sm:$0x1]
      %v1164 = vld [vmem:[%s951 + $0x20] sm:$0x1]
      %v1165 = vld [vmem:[%s951 + $0x2c] sm:$0x1]
      %v1166 = vld [vmem:[%s951 + $0x38] sm:$0x1]
      %v1167 = vld [vmem:[%s951 + $0x44] sm:$0x1]
      %v1168 = vld [vmem:[%s951 + $0x50] sm:$0x1]
      %v1169 = vld [vmem:[%s951 + $0x5c] sm:$0x1]
      %v1170 = vld [vmem:[%s951 + $0x68] sm:$0x1]
      %v1171 = vld [vmem:[%s951 + $0x74] sm:$0x1]
      %v1172 = vld [vmem:[%s951 + $0x80] sm:$0x1]
      %v1173 = vld [vmem:[%s951 + $0x8c] sm:$0x1]
      %v1174 = vld [vmem:[%s951 + $0x98] sm:$0x1]
      %v1175 = vld [vmem:[%s951 + $0xa4] sm:$0x1]
      %v1176 = vld [vmem:[%s951 + $0xb0] sm:$0x1]
      %v1177 = vld [vmem:[%s951 + $0xbc] sm:$0x1]
      %v1178 = vld [vmem:[%s951] sm:$0xe]
      %v1179 = vld [vmem:[%s951 + $0xc] sm:$0xe]
      %v1180 = vld [vmem:[%s951 + $0x18] sm:$0xe]
      %v1181 = vld [vmem:[%s951 + $0x24] sm:$0xe]
      %v1182 = vld [vmem:[%s951 + $0x30] sm:$0xe]
      %v1183 = vld [vmem:[%s951 + $0x3c] sm:$0xe]
      %v1184 = vld [vmem:[%s951 + $0x48] sm:$0xe]
      %v1185 = vld [vmem:[%s951 + $0x54] sm:$0xe]
      %v1186 = vld [vmem:[%s951 + $0x60] sm:$0xe]
      %v1187 = vld [vmem:[%s951 + $0x6c] sm:$0xe]
      %v1188 = vld [vmem:[%s951 + $0x78] sm:$0xe]
      %v1189 = vld [vmem:[%s951 + $0x84] sm:$0xe]
      %v1190 = vld [vmem:[%s951 + $0x90] sm:$0xe]
      %v1191 = vld [vmem:[%s951 + $0x9c] sm:$0xe]
      %v1192 = vld [vmem:[%s951 + $0xa8] sm:$0xe]
      %v1193 = vld [vmem:[%s951 + $0xb4] sm:$0xe]
      %s1194 = scalar_lea.vmem [#allocation2], 24
      %v1195 = vld [vmem:[%s1194] sm:$0xf]
      %v1196 = vld [vmem:[%s1194 + $0x4] sm:$0xf]
      %v1197 = vld [vmem:[%s1194 + $0xc] sm:$0xf]
      %v1198 = vld [vmem:[%s1194 + $0x10] sm:$0xf]
      %v1199 = vld [vmem:[%s1194 + $0x18] sm:$0xf]
      %v1200 = vld [vmem:[%s1194 + $0x1c] sm:$0xf]
      %v1201 = vld [vmem:[%s1194 + $0x24] sm:$0xf]
      %v1202 = vld [vmem:[%s1194 + $0x28] sm:$0xf]
      %v1203 = vld [vmem:[%s1194 + $0x30] sm:$0xf]
      %v1204 = vld [vmem:[%s1194 + $0x34] sm:$0xf]
      %v1205 = vld [vmem:[%s1194 + $0x3c] sm:$0xf]
      %v1206 = vld [vmem:[%s1194 + $0x40] sm:$0xf]
      %v1207 = vld [vmem:[%s1194 + $0x48] sm:$0xf]
      %v1208 = vld [vmem:[%s1194 + $0x4c] sm:$0xf]
      %v1209 = vld [vmem:[%s1194 + $0x54] sm:$0xf]
      %v1210 = vld [vmem:[%s1194 + $0x58] sm:$0xf]
      %v1211 = vld [vmem:[%s1194 + $0x60] sm:$0xf]
      %v1212 = vld [vmem:[%s1194 + $0x64] sm:$0xf]
      %v1213 = vld [vmem:[%s1194 + $0x6c] sm:$0xf]
      %v1214 = vld [vmem:[%s1194 + $0x70] sm:$0xf]
      %v1215 = vld [vmem:[%s1194 + $0x78] sm:$0xf]
      %v1216 = vld [vmem:[%s1194 + $0x7c] sm:$0xf]
      %v1217 = vld [vmem:[%s1194 + $0x84] sm:$0xf]
      %v1218 = vld [vmem:[%s1194 + $0x88] sm:$0xf]
      %v1219 = vld [vmem:[%s1194 + $0x90] sm:$0xf]
      %v1220 = vld [vmem:[%s1194 + $0x94] sm:$0xf]
      %v1221 = vld [vmem:[%s1194 + $0x9c] sm:$0xf]
      %v1222 = vld [vmem:[%s1194 + $0xa0] sm:$0xf]
      %v1223 = vld [vmem:[%s1194 + $0xa8] sm:$0xf]
      %v1224 = vld [vmem:[%s1194 + $0xac] sm:$0xf]
      %v1225 = vld [vmem:[%s1194 + $0xb4] sm:$0xf]
      %v1226 = vld [vmem:[%s1194 + $0xb8] sm:$0xf]
      %v1227 = vld [vmem:[%s1194 + $0x8] sm:$0x1]
      %v1228 = vld [vmem:[%s1194 + $0x14] sm:$0x1]
      %v1229 = vld [vmem:[%s1194 + $0x20] sm:$0x1]
      %v1230 = vld [vmem:[%s1194 + $0x2c] sm:$0x1]
      %v1231 = vld [vmem:[%s1194 + $0x38] sm:$0x1]
      %v1232 = vld [vmem:[%s1194 + $0x44] sm:$0x1]
      %v1233 = vld [vmem:[%s1194 + $0x50] sm:$0x1]
      %v1234 = vld [vmem:[%s1194 + $0x5c] sm:$0x1]
      %v1235 = vld [vmem:[%s1194 + $0x68] sm:$0x1]
      %v1236 = vld [vmem:[%s1194 + $0x74] sm:$0x1]
      %v1237 = vld [vmem:[%s1194 + $0x80] sm:$0x1]
      %v1238 = vld [vmem:[%s1194 + $0x8c] sm:$0x1]
      %v1239 = vld [vmem:[%s1194 + $0x98] sm:$0x1]
      %v1240 = vld [vmem:[%s1194 + $0xa4] sm:$0x1]
      %v1241 = vld [vmem:[%s1194 + $0xb0] sm:$0x1]
      %v1242 = vld [vmem:[%s1194 + $0xbc] sm:$0x1]
      %v1243 = vld [vmem:[%s1194] sm:$0xe]
      %v1244 = vld [vmem:[%s1194 + $0xc] sm:$0xe]
      %v1245 = vld [vmem:[%s1194 + $0x18] sm:$0xe]
      %v1246 = vld [vmem:[%s1194 + $0x24] sm:$0xe]
      %v1247 = vld [vmem:[%s1194 + $0x30] sm:$0xe]
      %v1248 = vld [vmem:[%s1194 + $0x3c] sm:$0xe]
      %v1249 = vld [vmem:[%s1194 + $0x48] sm:$0xe]
      %v1250 = vld [vmem:[%s1194 + $0x54] sm:$0xe]
      %v1251 = vld [vmem:[%s1194 + $0x60] sm:$0xe]
      %v1252 = vld [vmem:[%s1194 + $0x6c] sm:$0xe]
      %v1253 = vld [vmem:[%s1194 + $0x78] sm:$0xe]
      %v1254 = vld [vmem:[%s1194 + $0x84] sm:$0xe]
      %v1255 = vld [vmem:[%s1194 + $0x90] sm:$0xe]
      %v1256 = vld [vmem:[%s1194 + $0x9c] sm:$0xe]
      %v1257 = vld [vmem:[%s1194 + $0xa8] sm:$0xe]
      %v1258 = vld [vmem:[%s1194 + $0xb4] sm:$0xe]
      %v1291 = vunpack.c.l.b16 %v1066
      %v1292 = vunpack.c.l.b16 %v1067
      %v1293 = vunpack.c.l.b16 %v1068
      %v1294 = vunpack.c.l.b16 %v1069
      %v1295 = vunpack.c.l.b16 %v1070
      %v1296 = vunpack.c.l.b16 %v1071
      %v1297 = vunpack.c.l.b16 %v1072
      %v1298 = vunpack.c.l.b16 %v1073
      %v1299 = vunpack.c.l.b16 %v1074
      %v1300 = vunpack.c.l.b16 %v1075
      %v1301 = vunpack.c.l.b16 %v1076
      %v1302 = vunpack.c.l.b16 %v1077
      %v1303 = vunpack.c.l.b16 %v1078
      %v1304 = vunpack.c.l.b16 %v1079
      %v1305 = vunpack.c.l.b16 %v1080
      %v1306 = vunpack.c.l.b16 %v1081
      %v1307 = vunpack.c.l.b16 %v1082
      %v1308 = vunpack.c.l.b16 %v1083
      %v1309 = vunpack.c.l.b16 %v1084
      %v1310 = vunpack.c.l.b16 %v1085
      %v1311 = vunpack.c.l.b16 %v1086
      %v1312 = vunpack.c.l.b16 %v1087
      %v1313 = vunpack.c.l.b16 %v1088
      %v1314 = vunpack.c.l.b16 %v1089
      %v1315 = vunpack.c.l.b16 %v1090
      %v1316 = vunpack.c.l.b16 %v1091
      %v1317 = vunpack.c.l.b16 %v1092
      %v1318 = vunpack.c.l.b16 %v1093
      %v1319 = vunpack.c.l.b16 %v1094
      %v1320 = vunpack.c.l.b16 %v1095
      %v1321 = vunpack.c.l.b16 %v1096
      %v1322 = vunpack.c.l.b16 %v1097
      %v1323 = vpack.c.b16 %v1292, %v1291
      %v1324 = vpack.c.b16 %v1294, %v1293
      %v1325 = vpack.c.b16 %v1296, %v1295
      %v1326 = vpack.c.b16 %v1298, %v1297
      %v1327 = vpack.c.b16 %v1300, %v1299
      %v1328 = vpack.c.b16 %v1302, %v1301
      %v1329 = vpack.c.b16 %v1304, %v1303
      %v1330 = vpack.c.b16 %v1306, %v1305
      %v1331 = vpack.c.b16 %v1308, %v1307
      %v1332 = vpack.c.b16 %v1310, %v1309
      %v1333 = vpack.c.b16 %v1312, %v1311
      %v1334 = vpack.c.b16 %v1314, %v1313
      %v1335 = vpack.c.b16 %v1316, %v1315
      %v1336 = vpack.c.b16 %v1318, %v1317
      %v1337 = vpack.c.b16 %v1320, %v1319
      %v1338 = vpack.c.b16 %v1322, %v1321
      %v1355 = vunpack.c.l.b16 %v1098
      %v1356 = vunpack.c.l.b16 %v1099
      %v1357 = vunpack.c.l.b16 %v1100
      %v1358 = vunpack.c.l.b16 %v1101
      %v1359 = vunpack.c.l.b16 %v1102
      %v1360 = vunpack.c.l.b16 %v1103
      %v1361 = vunpack.c.l.b16 %v1104
      %v1362 = vunpack.c.l.b16 %v1105
      %v1363 = vunpack.c.l.b16 %v1106
      %v1364 = vunpack.c.l.b16 %v1107
      %v1365 = vunpack.c.l.b16 %v1108
      %v1366 = vunpack.c.l.b16 %v1109
      %v1367 = vunpack.c.l.b16 %v1110
      %v1368 = vunpack.c.l.b16 %v1111
      %v1369 = vunpack.c.l.b16 %v1112
      %v1370 = vunpack.c.l.b16 %v1113
      %v1371 = vpack.c.b16 %v1355, %v1355
      %v1372 = vpack.c.b16 %v1356, %v1356
      %v1373 = vpack.c.b16 %v1357, %v1357
      %v1374 = vpack.c.b16 %v1358, %v1358
      %v1375 = vpack.c.b16 %v1359, %v1359
      %v1376 = vpack.c.b16 %v1360, %v1360
      %v1377 = vpack.c.b16 %v1361, %v1361
      %v1378 = vpack.c.b16 %v1362, %v1362
      %v1379 = vpack.c.b16 %v1363, %v1363
      %v1380 = vpack.c.b16 %v1364, %v1364
      %v1381 = vpack.c.b16 %v1365, %v1365
      %v1382 = vpack.c.b16 %v1366, %v1366
      %v1383 = vpack.c.b16 %v1367, %v1367
      %v1384 = vpack.c.b16 %v1368, %v1368
      %v1385 = vpack.c.b16 %v1369, %v1369
      %v1386 = vpack.c.b16 %v1370, %v1370
      %vm1387 = vsmask.f32 7424
      %v1389 = vshrl.u32 %v1323, 16
      %v1391 = vshll.u32 %v1323, 16
      %v1393 = vrot.slane %v1391, 1
      %v1394 = vor.u32 %v1389, %v1393
      %v1396 = vshll.u32 %v1371, 16
      %v1398 = vrot.slane %v1396, 1
      %v1399 = vsel %vm1387, %v1394, %v1398
      %v1401 = vshrl.u32 %v1324, 16
      %v1403 = vshll.u32 %v1324, 16
      %v1405 = vrot.slane %v1403, 1
      %v1406 = vor.u32 %v1401, %v1405
      %v1408 = vshll.u32 %v1372, 16
      %v1410 = vrot.slane %v1408, 1
      %v1411 = vsel %vm1387, %v1406, %v1410
      %v1413 = vshrl.u32 %v1325, 16
      %v1415 = vshll.u32 %v1325, 16
      %v1417 = vrot.slane %v1415, 1
      %v1418 = vor.u32 %v1413, %v1417
      %v1420 = vshll.u32 %v1373, 16
      %v1422 = vrot.slane %v1420, 1
      %v1423 = vsel %vm1387, %v1418, %v1422
      %v1425 = vshrl.u32 %v1326, 16
      %v1427 = vshll.u32 %v1326, 16
      %v1429 = vrot.slane %v1427, 1
      %v1430 = vor.u32 %v1425, %v1429
      %v1432 = vshll.u32 %v1374, 16
      %v1434 = vrot.slane %v1432, 1
      %v1435 = vsel %vm1387, %v1430, %v1434
      %v1437 = vshrl.u32 %v1327, 16
      %v1439 = vshll.u32 %v1327, 16
      %v1441 = vrot.slane %v1439, 1
      %v1442 = vor.u32 %v1437, %v1441
      %v1444 = vshll.u32 %v1375, 16
      %v1446 = vrot.slane %v1444, 1
      %v1447 = vsel %vm1387, %v1442, %v1446
      %v1449 = vshrl.u32 %v1328, 16
      %v1451 = vshll.u32 %v1328, 16
      %v1453 = vrot.slane %v1451, 1
      %v1454 = vor.u32 %v1449, %v1453
      %v1456 = vshll.u32 %v1376, 16
      %v1458 = vrot.slane %v1456, 1
      %v1459 = vsel %vm1387, %v1454, %v1458
      %v1461 = vshrl.u32 %v1329, 16
      %v1463 = vshll.u32 %v1329, 16
      %v1465 = vrot.slane %v1463, 1
      %v1466 = vor.u32 %v1461, %v1465
      %v1468 = vshll.u32 %v1377, 16
      %v1470 = vrot.slane %v1468, 1
      %v1471 = vsel %vm1387, %v1466, %v1470
      %v1473 = vshrl.u32 %v1330, 16
      %v1475 = vshll.u32 %v1330, 16
      %v1477 = vrot.slane %v1475, 1
      %v1478 = vor.u32 %v1473, %v1477
      %v1480 = vshll.u32 %v1378, 16
      %v1482 = vrot.slane %v1480, 1
      %v1483 = vsel %vm1387, %v1478, %v1482
      %v1485 = vshrl.u32 %v1331, 16
      %v1487 = vshll.u32 %v1331, 16
      %v1489 = vrot.slane %v1487, 1
      %v1490 = vor.u32 %v1485, %v1489
      %v1492 = vshll.u32 %v1379, 16
      %v1494 = vrot.slane %v1492, 1
      %v1495 = vsel %vm1387, %v1490, %v1494
      %v1497 = vshrl.u32 %v1332, 16
      %v1499 = vshll.u32 %v1332, 16
      %v1501 = vrot.slane %v1499, 1
      %v1502 = vor.u32 %v1497, %v1501
      %v1504 = vshll.u32 %v1380, 16
      %v1506 = vrot.slane %v1504, 1
      %v1507 = vsel %vm1387, %v1502, %v1506
      %v1509 = vshrl.u32 %v1333, 16
      %v1511 = vshll.u32 %v1333, 16
      %v1513 = vrot.slane %v1511, 1
      %v1514 = vor.u32 %v1509, %v1513
      %v1516 = vshll.u32 %v1381, 16
      %v1518 = vrot.slane %v1516, 1
      %v1519 = vsel %vm1387, %v1514, %v1518
      %v1521 = vshrl.u32 %v1334, 16
      %v1523 = vshll.u32 %v1334, 16
      %v1525 = vrot.slane %v1523, 1
      %v1526 = vor.u32 %v1521, %v1525
      %v1528 = vshll.u32 %v1382, 16
      %v1530 = vrot.slane %v1528, 1
      %v1531 = vsel %vm1387, %v1526, %v1530
      %v1533 = vshrl.u32 %v1335, 16
      %v1535 = vshll.u32 %v1335, 16
      %v1537 = vrot.slane %v1535, 1
      %v1538 = vor.u32 %v1533, %v1537
      %v1540 = vshll.u32 %v1383, 16
      %v1542 = vrot.slane %v1540, 1
      %v1543 = vsel %vm1387, %v1538, %v1542
      %v1545 = vshrl.u32 %v1336, 16
      %v1547 = vshll.u32 %v1336, 16
      %v1549 = vrot.slane %v1547, 1
      %v1550 = vor.u32 %v1545, %v1549
      %v1552 = vshll.u32 %v1384, 16
      %v1554 = vrot.slane %v1552, 1
      %v1555 = vsel %vm1387, %v1550, %v1554
      %v1557 = vshrl.u32 %v1337, 16
      %v1559 = vshll.u32 %v1337, 16
      %v1561 = vrot.slane %v1559, 1
      %v1562 = vor.u32 %v1557, %v1561
      %v1564 = vshll.u32 %v1385, 16
      %v1566 = vrot.slane %v1564, 1
      %v1567 = vsel %vm1387, %v1562, %v1566
      %v1569 = vshrl.u32 %v1338, 16
      %v1571 = vshll.u32 %v1338, 16
      %v1573 = vrot.slane %v1571, 1
      %v1574 = vor.u32 %v1569, %v1573
      %v1576 = vshll.u32 %v1386, 16
      %v1578 = vrot.slane %v1576, 1
      %v1579 = vsel %vm1387, %v1574, %v1578
      %1580 = vrot.lane.b32.xlu0 %v1399, 4
      %v1581 = vpop.permute.xlu0 %1580
      %1582 = vrot.lane.b32.xlu0 %v1411, 4
      %v1583 = vpop.permute.xlu0 %1582
      %1584 = vrot.lane.b32.xlu0 %v1423, 4
      %v1585 = vpop.permute.xlu0 %1584
      %1586 = vrot.lane.b32.xlu0 %v1435, 4
      %v1587 = vpop.permute.xlu0 %1586
      %1588 = vrot.lane.b32.xlu0 %v1447, 4
      %v1589 = vpop.permute.xlu0 %1588
      %1590 = vrot.lane.b32.xlu0 %v1459, 4
      %v1591 = vpop.permute.xlu0 %1590
      %1592 = vrot.lane.b32.xlu0 %v1471, 4
      %v1593 = vpop.permute.xlu0 %1592
      %1594 = vrot.lane.b32.xlu0 %v1483, 4
      %v1595 = vpop.permute.xlu0 %1594
      %1596 = vrot.lane.b32.xlu0 %v1495, 4
      %v1597 = vpop.permute.xlu0 %1596
      %1598 = vrot.lane.b32.xlu0 %v1507, 4
      %v1599 = vpop.permute.xlu0 %1598
      %1600 = vrot.lane.b32.xlu0 %v1519, 4
      %v1601 = vpop.permute.xlu0 %1600
      %1602 = vrot.lane.b32.xlu0 %v1531, 4
      %v1603 = vpop.permute.xlu0 %1602
      %1604 = vrot.lane.b32.xlu0 %v1543, 4
      %v1605 = vpop.permute.xlu0 %1604
      %1606 = vrot.lane.b32.xlu0 %v1555, 4
      %v1607 = vpop.permute.xlu0 %1606
      %1608 = vrot.lane.b32.xlu0 %v1567, 4
      %v1609 = vpop.permute.xlu0 %1608
      %1610 = vrot.lane.b32.xlu0 %v1579, 4
      %v1611 = vpop.permute.xlu0 %1610
      %v1628 = vunpack.c.l.b16 %v1114
      %v1629 = vunpack.c.l.b16 %v1115
      %v1630 = vunpack.c.l.b16 %v1116
      %v1631 = vunpack.c.l.b16 %v1117
      %v1632 = vunpack.c.l.b16 %v1118
      %v1633 = vunpack.c.l.b16 %v1119
      %v1634 = vunpack.c.l.b16 %v1120
      %v1635 = vunpack.c.l.b16 %v1121
      %v1636 = vunpack.c.l.b16 %v1122
      %v1637 = vunpack.c.l.b16 %v1123
      %v1638 = vunpack.c.l.b16 %v1124
      %v1639 = vunpack.c.l.b16 %v1125
      %v1640 = vunpack.c.l.b16 %v1126
      %v1641 = vunpack.c.l.b16 %v1127
      %v1642 = vunpack.c.l.b16 %v1128
      %v1643 = vunpack.c.l.b16 %v1129
      %v1644 = vpack.c.b16 %v1292, %v1628
      %v1645 = vpack.c.b16 %v1294, %v1629
      %v1646 = vpack.c.b16 %v1296, %v1630
      %v1647 = vpack.c.b16 %v1298, %v1631
      %v1648 = vpack.c.b16 %v1300, %v1632
      %v1649 = vpack.c.b16 %v1302, %v1633
      %v1650 = vpack.c.b16 %v1304, %v1634
      %v1651 = vpack.c.b16 %v1306, %v1635
      %v1652 = vpack.c.b16 %v1308, %v1636
      %v1653 = vpack.c.b16 %v1310, %v1637
      %v1654 = vpack.c.b16 %v1312, %v1638
      %v1655 = vpack.c.b16 %v1314, %v1639
      %v1656 = vpack.c.b16 %v1316, %v1640
      %v1657 = vpack.c.b16 %v1318, %v1641
      %v1658 = vpack.c.b16 %v1320, %v1642
      %v1659 = vpack.c.b16 %v1322, %v1643
      %vm1660 = vcmask 1046528
      %v1661 = vrot.slane %v1644, 1
      %v1662 = vrot.slane %v1371, 1
      %v1663 = vsel %vm1660, %v1661, %v1662
      %v1664 = vrot.slane %v1645, 1
      %v1665 = vrot.slane %v1372, 1
      %v1666 = vsel %vm1660, %v1664, %v1665
      %v1667 = vrot.slane %v1646, 1
      %v1668 = vrot.slane %v1373, 1
      %v1669 = vsel %vm1660, %v1667, %v1668
      %v1670 = vrot.slane %v1647, 1
      %v1671 = vrot.slane %v1374, 1
      %v1672 = vsel %vm1660, %v1670, %v1671
      %v1673 = vrot.slane %v1648, 1
      %v1674 = vrot.slane %v1375, 1
      %v1675 = vsel %vm1660, %v1673, %v1674
      %v1676 = vrot.slane %v1649, 1
      %v1677 = vrot.slane %v1376, 1
      %v1678 = vsel %vm1660, %v1676, %v1677
      %v1679 = vrot.slane %v1650, 1
      %v1680 = vrot.slane %v1377, 1
      %v1681 = vsel %vm1660, %v1679, %v1680
      %v1682 = vrot.slane %v1651, 1
      %v1683 = vrot.slane %v1378, 1
      %v1684 = vsel %vm1660, %v1682, %v1683
      %v1685 = vrot.slane %v1652, 1
      %v1686 = vrot.slane %v1379, 1
      %v1687 = vsel %vm1660, %v1685, %v1686
      %v1688 = vrot.slane %v1653, 1
      %v1689 = vrot.slane %v1380, 1
      %v1690 = vsel %vm1660, %v1688, %v1689
      %v1691 = vrot.slane %v1654, 1
      %v1692 = vrot.slane %v1381, 1
      %v1693 = vsel %vm1660, %v1691, %v1692
      %v1694 = vrot.slane %v1655, 1
      %v1695 = vrot.slane %v1382, 1
      %v1696 = vsel %vm1660, %v1694, %v1695
      %v1697 = vrot.slane %v1656, 1
      %v1698 = vrot.slane %v1383, 1
      %v1699 = vsel %vm1660, %v1697, %v1698
      %v1700 = vrot.slane %v1657, 1
      %v1701 = vrot.slane %v1384, 1
      %v1702 = vsel %vm1660, %v1700, %v1701
      %v1703 = vrot.slane %v1658, 1
      %v1704 = vrot.slane %v1385, 1
      %v1705 = vsel %vm1660, %v1703, %v1704
      %v1706 = vrot.slane %v1659, 1
      %v1707 = vrot.slane %v1386, 1
      %v1708 = vsel %vm1660, %v1706, %v1707
      %1709 = vrot.lane.b32.xlu0 %v1663, 8
      %v1710 = vpop.permute.xlu0 %1709
      %1711 = vrot.lane.b32.xlu0 %v1666, 8
      %v1712 = vpop.permute.xlu0 %1711
      %1713 = vrot.lane.b32.xlu0 %v1669, 8
      %v1714 = vpop.permute.xlu0 %1713
      %1715 = vrot.lane.b32.xlu0 %v1672, 8
      %v1716 = vpop.permute.xlu0 %1715
      %1717 = vrot.lane.b32.xlu0 %v1675, 8
      %v1718 = vpop.permute.xlu0 %1717
      %1719 = vrot.lane.b32.xlu0 %v1678, 8
      %v1720 = vpop.permute.xlu0 %1719
      %1721 = vrot.lane.b32.xlu0 %v1681, 8
      %v1722 = vpop.permute.xlu0 %1721
      %1723 = vrot.lane.b32.xlu0 %v1684, 8
      %v1724 = vpop.permute.xlu0 %1723
      %1725 = vrot.lane.b32.xlu0 %v1687, 8
      %v1726 = vpop.permute.xlu0 %1725
      %1727 = vrot.lane.b32.xlu0 %v1690, 8
      %v1728 = vpop.permute.xlu0 %1727
      %1729 = vrot.lane.b32.xlu0 %v1693, 8
      %v1730 = vpop.permute.xlu0 %1729
      %1731 = vrot.lane.b32.xlu0 %v1696, 8
      %v1732 = vpop.permute.xlu0 %1731
      %1733 = vrot.lane.b32.xlu0 %v1699, 8
      %v1734 = vpop.permute.xlu0 %1733
      %1735 = vrot.lane.b32.xlu0 %v1702, 8
      %v1736 = vpop.permute.xlu0 %1735
      %1737 = vrot.lane.b32.xlu0 %v1705, 8
      %v1738 = vpop.permute.xlu0 %1737
      %1739 = vrot.lane.b32.xlu0 %v1708, 8
      %v1740 = vpop.permute.xlu0 %1739
      %v1773 = vunpack.c.l.b16 %v1130
      %v1774 = vunpack.c.l.b16 %v1131
      %v1775 = vunpack.c.l.b16 %v1132
      %v1776 = vunpack.c.l.b16 %v1133
      %v1777 = vunpack.c.l.b16 %v1134
      %v1778 = vunpack.c.l.b16 %v1135
      %v1779 = vunpack.c.l.b16 %v1136
      %v1780 = vunpack.c.l.b16 %v1137
      %v1781 = vunpack.c.l.b16 %v1138
      %v1782 = vunpack.c.l.b16 %v1139
      %v1783 = vunpack.c.l.b16 %v1140
      %v1784 = vunpack.c.l.b16 %v1141
      %v1785 = vunpack.c.l.b16 %v1142
      %v1786 = vunpack.c.l.b16 %v1143
      %v1787 = vunpack.c.l.b16 %v1144
      %v1788 = vunpack.c.l.b16 %v1145
      %v1789 = vunpack.c.l.b16 %v1146
      %v1790 = vunpack.c.l.b16 %v1147
      %v1791 = vunpack.c.l.b16 %v1148
      %v1792 = vunpack.c.l.b16 %v1149
      %v1793 = vunpack.c.l.b16 %v1150
      %v1794 = vunpack.c.l.b16 %v1151
      %v1795 = vunpack.c.l.b16 %v1152
      %v1796 = vunpack.c.l.b16 %v1153
      %v1797 = vunpack.c.l.b16 %v1154
      %v1798 = vunpack.c.l.b16 %v1155
      %v1799 = vunpack.c.l.b16 %v1156
      %v1800 = vunpack.c.l.b16 %v1157
      %v1801 = vunpack.c.l.b16 %v1158
      %v1802 = vunpack.c.l.b16 %v1159
      %v1803 = vunpack.c.l.b16 %v1160
      %v1804 = vunpack.c.l.b16 %v1161
      %v1805 = vpack.c.b16 %v1774, %v1773
      %v1806 = vpack.c.b16 %v1776, %v1775
      %v1807 = vpack.c.b16 %v1778, %v1777
      %v1808 = vpack.c.b16 %v1780, %v1779
      %v1809 = vpack.c.b16 %v1782, %v1781
      %v1810 = vpack.c.b16 %v1784, %v1783
      %v1811 = vpack.c.b16 %v1786, %v1785
      %v1812 = vpack.c.b16 %v1788, %v1787
      %v1813 = vpack.c.b16 %v1790, %v1789
      %v1814 = vpack.c.b16 %v1792, %v1791
      %v1815 = vpack.c.b16 %v1794, %v1793
      %v1816 = vpack.c.b16 %v1796, %v1795
      %v1817 = vpack.c.b16 %v1798, %v1797
      %v1818 = vpack.c.b16 %v1800, %v1799
      %v1819 = vpack.c.b16 %v1802, %v1801
      %v1820 = vpack.c.b16 %v1804, %v1803
      %1821 = vrot.lane.b32.xlu0 %v1805, 12
      %v1822 = vpop.permute.xlu0 %1821
      %1823 = vrot.lane.b32.xlu0 %v1806, 12
      %v1824 = vpop.permute.xlu0 %1823
      %1825 = vrot.lane.b32.xlu0 %v1807, 12
      %v1826 = vpop.permute.xlu0 %1825
      %1827 = vrot.lane.b32.xlu0 %v1808, 12
      %v1828 = vpop.permute.xlu0 %1827
      %1829 = vrot.lane.b32.xlu0 %v1809, 12
      %v1830 = vpop.permute.xlu0 %1829
      %1831 = vrot.lane.b32.xlu0 %v1810, 12
      %v1832 = vpop.permute.xlu0 %1831
      %1833 = vrot.lane.b32.xlu0 %v1811, 12
      %v1834 = vpop.permute.xlu0 %1833
      %1835 = vrot.lane.b32.xlu0 %v1812, 12
      %v1836 = vpop.permute.xlu0 %1835
      %1837 = vrot.lane.b32.xlu0 %v1813, 12
      %v1838 = vpop.permute.xlu0 %1837
      %1839 = vrot.lane.b32.xlu0 %v1814, 12
      %v1840 = vpop.permute.xlu0 %1839
      %1841 = vrot.lane.b32.xlu0 %v1815, 12
      %v1842 = vpop.permute.xlu0 %1841
      %1843 = vrot.lane.b32.xlu0 %v1816, 12
      %v1844 = vpop.permute.xlu0 %1843
      %1845 = vrot.lane.b32.xlu0 %v1817, 12
      %v1846 = vpop.permute.xlu0 %1845
      %1847 = vrot.lane.b32.xlu0 %v1818, 12
      %v1848 = vpop.permute.xlu0 %1847
      %1849 = vrot.lane.b32.xlu0 %v1819, 12
      %v1850 = vpop.permute.xlu0 %1849
      %1851 = vrot.lane.b32.xlu0 %v1820, 12
      %v1852 = vpop.permute.xlu0 %1851
      %v1869 = vunpack.c.l.b16 %v1162
      %v1870 = vunpack.c.l.b16 %v1163
      %v1871 = vunpack.c.l.b16 %v1164
      %v1872 = vunpack.c.l.b16 %v1165
      %v1873 = vunpack.c.l.b16 %v1166
      %v1874 = vunpack.c.l.b16 %v1167
      %v1875 = vunpack.c.l.b16 %v1168
      %v1876 = vunpack.c.l.b16 %v1169
      %v1877 = vunpack.c.l.b16 %v1170
      %v1878 = vunpack.c.l.b16 %v1171
      %v1879 = vunpack.c.l.b16 %v1172
      %v1880 = vunpack.c.l.b16 %v1173
      %v1881 = vunpack.c.l.b16 %v1174
      %v1882 = vunpack.c.l.b16 %v1175
      %v1883 = vunpack.c.l.b16 %v1176
      %v1884 = vunpack.c.l.b16 %v1177
      %v1885 = vpack.c.b16 %v1869, %v1869
      %v1886 = vpack.c.b16 %v1870, %v1870
      %v1887 = vpack.c.b16 %v1871, %v1871
      %v1888 = vpack.c.b16 %v1872, %v1872
      %v1889 = vpack.c.b16 %v1873, %v1873
      %v1890 = vpack.c.b16 %v1874, %v1874
      %v1891 = vpack.c.b16 %v1875, %v1875
      %v1892 = vpack.c.b16 %v1876, %v1876
      %v1893 = vpack.c.b16 %v1877, %v1877
      %v1894 = vpack.c.b16 %v1878, %v1878
      %v1895 = vpack.c.b16 %v1879, %v1879
      %v1896 = vpack.c.b16 %v1880, %v1880
      %v1897 = vpack.c.b16 %v1881, %v1881
      %v1898 = vpack.c.b16 %v1882, %v1882
      %v1899 = vpack.c.b16 %v1883, %v1883
      %v1900 = vpack.c.b16 %v1884, %v1884
      %v1902 = vshrl.u32 %v1805, 16
      %v1904 = vshll.u32 %v1805, 16
      %v1906 = vrot.slane %v1904, 1
      %v1907 = vor.u32 %v1902, %v1906
      %v1909 = vshll.u32 %v1885, 16
      %v1911 = vrot.slane %v1909, 1
      %v1912 = vsel %vm1387, %v1907, %v1911
      %v1914 = vshrl.u32 %v1806, 16
      %v1916 = vshll.u32 %v1806, 16
      %v1918 = vrot.slane %v1916, 1
      %v1919 = vor.u32 %v1914, %v1918
      %v1921 = vshll.u32 %v1886, 16
      %v1923 = vrot.slane %v1921, 1
      %v1924 = vsel %vm1387, %v1919, %v1923
      %v1926 = vshrl.u32 %v1807, 16
      %v1928 = vshll.u32 %v1807, 16
      %v1930 = vrot.slane %v1928, 1
      %v1931 = vor.u32 %v1926, %v1930
      %v1933 = vshll.u32 %v1887, 16
      %v1935 = vrot.slane %v1933, 1
      %v1936 = vsel %vm1387, %v1931, %v1935
      %v1938 = vshrl.u32 %v1808, 16
      %v1940 = vshll.u32 %v1808, 16
      %v1942 = vrot.slane %v1940, 1
      %v1943 = vor.u32 %v1938, %v1942
      %v1945 = vshll.u32 %v1888, 16
      %v1947 = vrot.slane %v1945, 1
      %v1948 = vsel %vm1387, %v1943, %v1947
      %v1950 = vshrl.u32 %v1809, 16
      %v1952 = vshll.u32 %v1809, 16
      %v1954 = vrot.slane %v1952, 1
      %v1955 = vor.u32 %v1950, %v1954
      %v1957 = vshll.u32 %v1889, 16
      %v1959 = vrot.slane %v1957, 1
      %v1960 = vsel %vm1387, %v1955, %v1959
      %v1962 = vshrl.u32 %v1810, 16
      %v1964 = vshll.u32 %v1810, 16
      %v1966 = vrot.slane %v1964, 1
      %v1967 = vor.u32 %v1962, %v1966
      %v1969 = vshll.u32 %v1890, 16
      %v1971 = vrot.slane %v1969, 1
      %v1972 = vsel %vm1387, %v1967, %v1971
      %v1974 = vshrl.u32 %v1811, 16
      %v1976 = vshll.u32 %v1811, 16
      %v1978 = vrot.slane %v1976, 1
      %v1979 = vor.u32 %v1974, %v1978
      %v1981 = vshll.u32 %v1891, 16
      %v1983 = vrot.slane %v1981, 1
      %v1984 = vsel %vm1387, %v1979, %v1983
      %v1986 = vshrl.u32 %v1812, 16
      %v1988 = vshll.u32 %v1812, 16
      %v1990 = vrot.slane %v1988, 1
      %v1991 = vor.u32 %v1986, %v1990
      %v1993 = vshll.u32 %v1892, 16
      %v1995 = vrot.slane %v1993, 1
      %v1996 = vsel %vm1387, %v1991, %v1995
      %v1998 = vshrl.u32 %v1813, 16
      %v2000 = vshll.u32 %v1813, 16
      %v2002 = vrot.slane %v2000, 1
      %v2003 = vor.u32 %v1998, %v2002
      %v2005 = vshll.u32 %v1893, 16
      %v2007 = vrot.slane %v2005, 1
      %v2008 = vsel %vm1387, %v2003, %v2007
      %v2010 = vshrl.u32 %v1814, 16
      %v2012 = vshll.u32 %v1814, 16
      %v2014 = vrot.slane %v2012, 1
      %v2015 = vor.u32 %v2010, %v2014
      %v2017 = vshll.u32 %v1894, 16
      %v2019 = vrot.slane %v2017, 1
      %v2020 = vsel %vm1387, %v2015, %v2019
      %v2022 = vshrl.u32 %v1815, 16
      %v2024 = vshll.u32 %v1815, 16
      %v2026 = vrot.slane %v2024, 1
      %v2027 = vor.u32 %v2022, %v2026
      %v2029 = vshll.u32 %v1895, 16
      %v2031 = vrot.slane %v2029, 1
      %v2032 = vsel %vm1387, %v2027, %v2031
      %v2034 = vshrl.u32 %v1816, 16
      %v2036 = vshll.u32 %v1816, 16
      %v2038 = vrot.slane %v2036, 1
      %v2039 = vor.u32 %v2034, %v2038
      %v2041 = vshll.u32 %v1896, 16
      %v2043 = vrot.slane %v2041, 1
      %v2044 = vsel %vm1387, %v2039, %v2043
      %v2046 = vshrl.u32 %v1817, 16
      %v2048 = vshll.u32 %v1817, 16
      %v2050 = vrot.slane %v2048, 1
      %v2051 = vor.u32 %v2046, %v2050
      %v2053 = vshll.u32 %v1897, 16
      %v2055 = vrot.slane %v2053, 1
      %v2056 = vsel %vm1387, %v2051, %v2055
      %v2058 = vshrl.u32 %v1818, 16
      %v2060 = vshll.u32 %v1818, 16
      %v2062 = vrot.slane %v2060, 1
      %v2063 = vor.u32 %v2058, %v2062
      %v2065 = vshll.u32 %v1898, 16
      %v2067 = vrot.slane %v2065, 1
      %v2068 = vsel %vm1387, %v2063, %v2067
      %v2070 = vshrl.u32 %v1819, 16
      %v2072 = vshll.u32 %v1819, 16
      %v2074 = vrot.slane %v2072, 1
      %v2075 = vor.u32 %v2070, %v2074
      %v2077 = vshll.u32 %v1899, 16
      %v2079 = vrot.slane %v2077, 1
      %v2080 = vsel %vm1387, %v2075, %v2079
      %v2082 = vshrl.u32 %v1820, 16
      %v2084 = vshll.u32 %v1820, 16
      %v2086 = vrot.slane %v2084, 1
      %v2087 = vor.u32 %v2082, %v2086
      %v2089 = vshll.u32 %v1900, 16
      %v2091 = vrot.slane %v2089, 1
      %v2092 = vsel %vm1387, %v2087, %v2091
      %2093 = vrot.lane.b32.xlu0 %v1912, 16
      %v2094 = vpop.permute.xlu0 %2093
      %2095 = vrot.lane.b32.xlu0 %v1924, 16
      %v2096 = vpop.permute.xlu0 %2095
      %2097 = vrot.lane.b32.xlu0 %v1936, 16
      %v2098 = vpop.permute.xlu0 %2097
      %2099 = vrot.lane.b32.xlu0 %v1948, 16
      %v2100 = vpop.permute.xlu0 %2099
      %2101 = vrot.lane.b32.xlu0 %v1960, 16
      %v2102 = vpop.permute.xlu0 %2101
      %2103 = vrot.lane.b32.xlu0 %v1972, 16
      %v2104 = vpop.permute.xlu0 %2103
      %2105 = vrot.lane.b32.xlu0 %v1984, 16
      %v2106 = vpop.permute.xlu0 %2105
      %2107 = vrot.lane.b32.xlu0 %v1996, 16
      %v2108 = vpop.permute.xlu0 %2107
      %2109 = vrot.lane.b32.xlu0 %v2008, 16
      %v2110 = vpop.permute.xlu0 %2109
      %2111 = vrot.lane.b32.xlu0 %v2020, 16
      %v2112 = vpop.permute.xlu0 %2111
      %2113 = vrot.lane.b32.xlu0 %v2032, 16
      %v2114 = vpop.permute.xlu0 %2113
      %2115 = vrot.lane.b32.xlu0 %v2044, 16
      %v2116 = vpop.permute.xlu0 %2115
      %2117 = vrot.lane.b32.xlu0 %v2056, 16
      %v2118 = vpop.permute.xlu0 %2117
      %2119 = vrot.lane.b32.xlu0 %v2068, 16
      %v2120 = vpop.permute.xlu0 %2119
      %2121 = vrot.lane.b32.xlu0 %v2080, 16
      %v2122 = vpop.permute.xlu0 %2121
      %2123 = vrot.lane.b32.xlu0 %v2092, 16
      %v2124 = vpop.permute.xlu0 %2123
      %v2141 = vunpack.c.l.b16 %v1178
      %v2142 = vunpack.c.l.b16 %v1179
      %v2143 = vunpack.c.l.b16 %v1180
      %v2144 = vunpack.c.l.b16 %v1181
      %v2145 = vunpack.c.l.b16 %v1182
      %v2146 = vunpack.c.l.b16 %v1183
      %v2147 = vunpack.c.l.b16 %v1184
      %v2148 = vunpack.c.l.b16 %v1185
      %v2149 = vunpack.c.l.b16 %v1186
      %v2150 = vunpack.c.l.b16 %v1187
      %v2151 = vunpack.c.l.b16 %v1188
      %v2152 = vunpack.c.l.b16 %v1189
      %v2153 = vunpack.c.l.b16 %v1190
      %v2154 = vunpack.c.l.b16 %v1191
      %v2155 = vunpack.c.l.b16 %v1192
      %v2156 = vunpack.c.l.b16 %v1193
      %v2157 = vpack.c.b16 %v1774, %v2141
      %v2158 = vpack.c.b16 %v1776, %v2142
      %v2159 = vpack.c.b16 %v1778, %v2143
      %v2160 = vpack.c.b16 %v1780, %v2144
      %v2161 = vpack.c.b16 %v1782, %v2145
      %v2162 = vpack.c.b16 %v1784, %v2146
      %v2163 = vpack.c.b16 %v1786, %v2147
      %v2164 = vpack.c.b16 %v1788, %v2148
      %v2165 = vpack.c.b16 %v1790, %v2149
      %v2166 = vpack.c.b16 %v1792, %v2150
      %v2167 = vpack.c.b16 %v1794, %v2151
      %v2168 = vpack.c.b16 %v1796, %v2152
      %v2169 = vpack.c.b16 %v1798, %v2153
      %v2170 = vpack.c.b16 %v1800, %v2154
      %v2171 = vpack.c.b16 %v1802, %v2155
      %v2172 = vpack.c.b16 %v1804, %v2156
      %v2173 = vrot.slane %v2157, 1
      %v2174 = vrot.slane %v1885, 1
      %v2175 = vsel %vm1660, %v2173, %v2174
      %v2176 = vrot.slane %v2158, 1
      %v2177 = vrot.slane %v1886, 1
      %v2178 = vsel %vm1660, %v2176, %v2177
      %v2179 = vrot.slane %v2159, 1
      %v2180 = vrot.slane %v1887, 1
      %v2181 = vsel %vm1660, %v2179, %v2180
      %v2182 = vrot.slane %v2160, 1
      %v2183 = vrot.slane %v1888, 1
      %v2184 = vsel %vm1660, %v2182, %v2183
      %v2185 = vrot.slane %v2161, 1
      %v2186 = vrot.slane %v1889, 1
      %v2187 = vsel %vm1660, %v2185, %v2186
      %v2188 = vrot.slane %v2162, 1
      %v2189 = vrot.slane %v1890, 1
      %v2190 = vsel %vm1660, %v2188, %v2189
      %v2191 = vrot.slane %v2163, 1
      %v2192 = vrot.slane %v1891, 1
      %v2193 = vsel %vm1660, %v2191, %v2192
      %v2194 = vrot.slane %v2164, 1
      %v2195 = vrot.slane %v1892, 1
      %v2196 = vsel %vm1660, %v2194, %v2195
      %v2197 = vrot.slane %v2165, 1
      %v2198 = vrot.slane %v1893, 1
      %v2199 = vsel %vm1660, %v2197, %v2198
      %v2200 = vrot.slane %v2166, 1
      %v2201 = vrot.slane %v1894, 1
      %v2202 = vsel %vm1660, %v2200, %v2201
      %v2203 = vrot.slane %v2167, 1
      %v2204 = vrot.slane %v1895, 1
      %v2205 = vsel %vm1660, %v2203, %v2204
      %v2206 = vrot.slane %v2168, 1
      %v2207 = vrot.slane %v1896, 1
      %v2208 = vsel %vm1660, %v2206, %v2207
      %v2209 = vrot.slane %v2169, 1
      %v2210 = vrot.slane %v1897, 1
      %v2211 = vsel %vm1660, %v2209, %v2210
      %v2212 = vrot.slane %v2170, 1
      %v2213 = vrot.slane %v1898, 1
      %v2214 = vsel %vm1660, %v2212, %v2213
      %v2215 = vrot.slane %v2171, 1
      %v2216 = vrot.slane %v1899, 1
      %v2217 = vsel %vm1660, %v2215, %v2216
      %v2218 = vrot.slane %v2172, 1
      %v2219 = vrot.slane %v1900, 1
      %v2220 = vsel %vm1660, %v2218, %v2219
      %2221 = vrot.lane.b32.xlu0 %v2175, 20
      %v2222 = vpop.permute.xlu0 %2221
      %2223 = vrot.lane.b32.xlu0 %v2178, 20
      %v2224 = vpop.permute.xlu0 %2223
      %2225 = vrot.lane.b32.xlu0 %v2181, 20
      %v2226 = vpop.permute.xlu0 %2225
      %2227 = vrot.lane.b32.xlu0 %v2184, 20
      %v2228 = vpop.permute.xlu0 %2227
      %2229 = vrot.lane.b32.xlu0 %v2187, 20
      %v2230 = vpop.permute.xlu0 %2229
      %2231 = vrot.lane.b32.xlu0 %v2190, 20
      %v2232 = vpop.permute.xlu0 %2231
      %2233 = vrot.lane.b32.xlu0 %v2193, 20
      %v2234 = vpop.permute.xlu0 %2233
      %2235 = vrot.lane.b32.xlu0 %v2196, 20
      %v2236 = vpop.permute.xlu0 %2235
      %2237 = vrot.lane.b32.xlu0 %v2199, 20
      %v2238 = vpop.permute.xlu0 %2237
      %2239 = vrot.lane.b32.xlu0 %v2202, 20
      %v2240 = vpop.permute.xlu0 %2239
      %2241 = vrot.lane.b32.xlu0 %v2205, 20
      %v2242 = vpop.permute.xlu0 %2241
      %2243 = vrot.lane.b32.xlu0 %v2208, 20
      %v2244 = vpop.permute.xlu0 %2243
      %2245 = vrot.lane.b32.xlu0 %v2211, 20
      %v2246 = vpop.permute.xlu0 %2245
      %2247 = vrot.lane.b32.xlu0 %v2214, 20
      %v2248 = vpop.permute.xlu0 %2247
      %2249 = vrot.lane.b32.xlu0 %v2217, 20
      %v2250 = vpop.permute.xlu0 %2249
      %2251 = vrot.lane.b32.xlu0 %v2220, 20
      %v2252 = vpop.permute.xlu0 %2251
      %v2285 = vunpack.c.l.b16 %v1195
      %v2286 = vunpack.c.l.b16 %v1196
      %v2287 = vunpack.c.l.b16 %v1197
      %v2288 = vunpack.c.l.b16 %v1198
      %v2289 = vunpack.c.l.b16 %v1199
      %v2290 = vunpack.c.l.b16 %v1200
      %v2291 = vunpack.c.l.b16 %v1201
      %v2292 = vunpack.c.l.b16 %v1202
      %v2293 = vunpack.c.l.b16 %v1203
      %v2294 = vunpack.c.l.b16 %v1204
      %v2295 = vunpack.c.l.b16 %v1205
      %v2296 = vunpack.c.l.b16 %v1206
      %v2297 = vunpack.c.l.b16 %v1207
      %v2298 = vunpack.c.l.b16 %v1208
      %v2299 = vunpack.c.l.b16 %v1209
      %v2300 = vunpack.c.l.b16 %v1210
      %v2301 = vunpack.c.l.b16 %v1211
      %v2302 = vunpack.c.l.b16 %v1212
      %v2303 = vunpack.c.l.b16 %v1213
      %v2304 = vunpack.c.l.b16 %v1214
      %v2305 = vunpack.c.l.b16 %v1215
      %v2306 = vunpack.c.l.b16 %v1216
      %v2307 = vunpack.c.l.b16 %v1217
      %v2308 = vunpack.c.l.b16 %v1218
      %v2309 = vunpack.c.l.b16 %v1219
      %v2310 = vunpack.c.l.b16 %v1220
      %v2311 = vunpack.c.l.b16 %v1221
      %v2312 = vunpack.c.l.b16 %v1222
      %v2313 = vunpack.c.l.b16 %v1223
      %v2314 = vunpack.c.l.b16 %v1224
      %v2315 = vunpack.c.l.b16 %v1225
      %v2316 = vunpack.c.l.b16 %v1226
      %v2317 = vpack.c.b16 %v2286, %v2285
      %v2318 = vpack.c.b16 %v2288, %v2287
      %v2319 = vpack.c.b16 %v2290, %v2289
      %v2320 = vpack.c.b16 %v2292, %v2291
      %v2321 = vpack.c.b16 %v2294, %v2293
      %v2322 = vpack.c.b16 %v2296, %v2295
      %v2323 = vpack.c.b16 %v2298, %v2297
      %v2324 = vpack.c.b16 %v2300, %v2299
      %v2325 = vpack.c.b16 %v2302, %v2301
      %v2326 = vpack.c.b16 %v2304, %v2303
      %v2327 = vpack.c.b16 %v2306, %v2305
      %v2328 = vpack.c.b16 %v2308, %v2307
      %v2329 = vpack.c.b16 %v2310, %v2309
      %v2330 = vpack.c.b16 %v2312, %v2311
      %v2331 = vpack.c.b16 %v2314, %v2313
      %v2332 = vpack.c.b16 %v2316, %v2315
      %2333 = vrot.lane.b32.xlu0 %v2317, 24
      %v2334 = vpop.permute.xlu0 %2333
      %2335 = vrot.lane.b32.xlu0 %v2318, 24
      %v2336 = vpop.permute.xlu0 %2335
      %2337 = vrot.lane.b32.xlu0 %v2319, 24
      %v2338 = vpop.permute.xlu0 %2337
      %2339 = vrot.lane.b32.xlu0 %v2320, 24
      %v2340 = vpop.permute.xlu0 %2339
      %2341 = vrot.lane.b32.xlu0 %v2321, 24
      %v2342 = vpop.permute.xlu0 %2341
      %2343 = vrot.lane.b32.xlu0 %v2322, 24
      %v2344 = vpop.permute.xlu0 %2343
      %2345 = vrot.lane.b32.xlu0 %v2323, 24
      %v2346 = vpop.permute.xlu0 %2345
      %2347 = vrot.lane.b32.xlu0 %v2324, 24
      %v2348 = vpop.permute.xlu0 %2347
      %2349 = vrot.lane.b32.xlu0 %v2325, 24
      %v2350 = vpop.permute.xlu0 %2349
      %2351 = vrot.lane.b32.xlu0 %v2326, 24
      %v2352 = vpop.permute.xlu0 %2351
      %2353 = vrot.lane.b32.xlu0 %v2327, 24
      %v2354 = vpop.permute.xlu0 %2353
      %2355 = vrot.lane.b32.xlu0 %v2328, 24
      %v2356 = vpop.permute.xlu0 %2355
      %2357 = vrot.lane.b32.xlu0 %v2329, 24
      %v2358 = vpop.permute.xlu0 %2357
      %2359 = vrot.lane.b32.xlu0 %v2330, 24
      %v2360 = vpop.permute.xlu0 %2359
      %2361 = vrot.lane.b32.xlu0 %v2331, 24
      %v2362 = vpop.permute.xlu0 %2361
      %2363 = vrot.lane.b32.xlu0 %v2332, 24
      %v2364 = vpop.permute.xlu0 %2363
      %v2381 = vunpack.c.l.b16 %v1227
      %v2382 = vunpack.c.l.b16 %v1228
      %v2383 = vunpack.c.l.b16 %v1229
      %v2384 = vunpack.c.l.b16 %v1230
      %v2385 = vunpack.c.l.b16 %v1231
      %v2386 = vunpack.c.l.b16 %v1232
      %v2387 = vunpack.c.l.b16 %v1233
      %v2388 = vunpack.c.l.b16 %v1234
      %v2389 = vunpack.c.l.b16 %v1235
      %v2390 = vunpack.c.l.b16 %v1236
      %v2391 = vunpack.c.l.b16 %v1237
      %v2392 = vunpack.c.l.b16 %v1238
      %v2393 = vunpack.c.l.b16 %v1239
      %v2394 = vunpack.c.l.b16 %v1240
      %v2395 = vunpack.c.l.b16 %v1241
      %v2396 = vunpack.c.l.b16 %v1242
      %v2397 = vpack.c.b16 %v2381, %v2381
      %v2398 = vpack.c.b16 %v2382, %v2382
      %v2399 = vpack.c.b16 %v2383, %v2383
      %v2400 = vpack.c.b16 %v2384, %v2384
      %v2401 = vpack.c.b16 %v2385, %v2385
      %v2402 = vpack.c.b16 %v2386, %v2386
      %v2403 = vpack.c.b16 %v2387, %v2387
      %v2404 = vpack.c.b16 %v2388, %v2388
      %v2405 = vpack.c.b16 %v2389, %v2389
      %v2406 = vpack.c.b16 %v2390, %v2390
      %v2407 = vpack.c.b16 %v2391, %v2391
      %v2408 = vpack.c.b16 %v2392, %v2392
      %v2409 = vpack.c.b16 %v2393, %v2393
      %v2410 = vpack.c.b16 %v2394, %v2394
      %v2411 = vpack.c.b16 %v2395, %v2395
      %v2412 = vpack.c.b16 %v2396, %v2396
      %v2414 = vshrl.u32 %v2317, 16
      %v2416 = vshll.u32 %v2317, 16
      %v2418 = vrot.slane %v2416, 1
      %v2419 = vor.u32 %v2414, %v2418
      %v2421 = vshll.u32 %v2397, 16
      %v2423 = vrot.slane %v2421, 1
      %v2424 = vsel %vm1387, %v2419, %v2423
      %v2426 = vshrl.u32 %v2318, 16
      %v2428 = vshll.u32 %v2318, 16
      %v2430 = vrot.slane %v2428, 1
      %v2431 = vor.u32 %v2426, %v2430
      %v2433 = vshll.u32 %v2398, 16
      %v2435 = vrot.slane %v2433, 1
      %v2436 = vsel %vm1387, %v2431, %v2435
      %v2438 = vshrl.u32 %v2319, 16
      %v2440 = vshll.u32 %v2319, 16
      %v2442 = vrot.slane %v2440, 1
      %v2443 = vor.u32 %v2438, %v2442
      %v2445 = vshll.u32 %v2399, 16
      %v2447 = vrot.slane %v2445, 1
      %v2448 = vsel %vm1387, %v2443, %v2447
      %v2450 = vshrl.u32 %v2320, 16
      %v2452 = vshll.u32 %v2320, 16
      %v2454 = vrot.slane %v2452, 1
      %v2455 = vor.u32 %v2450, %v2454
      %v2457 = vshll.u32 %v2400, 16
      %v2459 = vrot.slane %v2457, 1
      %v2460 = vsel %vm1387, %v2455, %v2459
      %v2462 = vshrl.u32 %v2321, 16
      %v2464 = vshll.u32 %v2321, 16
      %v2466 = vrot.slane %v2464, 1
      %v2467 = vor.u32 %v2462, %v2466
      %v2469 = vshll.u32 %v2401, 16
      %v2471 = vrot.slane %v2469, 1
      %v2472 = vsel %vm1387, %v2467, %v2471
      %v2474 = vshrl.u32 %v2322, 16
      %v2476 = vshll.u32 %v2322, 16
      %v2478 = vrot.slane %v2476, 1
      %v2479 = vor.u32 %v2474, %v2478
      %v2481 = vshll.u32 %v2402, 16
      %v2483 = vrot.slane %v2481, 1
      %v2484 = vsel %vm1387, %v2479, %v2483
      %v2486 = vshrl.u32 %v2323, 16
      %v2488 = vshll.u32 %v2323, 16
      %v2490 = vrot.slane %v2488, 1
      %v2491 = vor.u32 %v2486, %v2490
      %v2493 = vshll.u32 %v2403, 16
      %v2495 = vrot.slane %v2493, 1
      %v2496 = vsel %vm1387, %v2491, %v2495
      %v2498 = vshrl.u32 %v2324, 16
      %v2500 = vshll.u32 %v2324, 16
      %v2502 = vrot.slane %v2500, 1
      %v2503 = vor.u32 %v2498, %v2502
      %v2505 = vshll.u32 %v2404, 16
      %v2507 = vrot.slane %v2505, 1
      %v2508 = vsel %vm1387, %v2503, %v2507
      %v2510 = vshrl.u32 %v2325, 16
      %v2512 = vshll.u32 %v2325, 16
      %v2514 = vrot.slane %v2512, 1
      %v2515 = vor.u32 %v2510, %v2514
      %v2517 = vshll.u32 %v2405, 16
      %v2519 = vrot.slane %v2517, 1
      %v2520 = vsel %vm1387, %v2515, %v2519
      %v2522 = vshrl.u32 %v2326, 16
      %v2524 = vshll.u32 %v2326, 16
      %v2526 = vrot.slane %v2524, 1
      %v2527 = vor.u32 %v2522, %v2526
      %v2529 = vshll.u32 %v2406, 16
      %v2531 = vrot.slane %v2529, 1
      %v2532 = vsel %vm1387, %v2527, %v2531
      %v2534 = vshrl.u32 %v2327, 16
      %v2536 = vshll.u32 %v2327, 16
      %v2538 = vrot.slane %v2536, 1
      %v2539 = vor.u32 %v2534, %v2538
      %v2541 = vshll.u32 %v2407, 16
      %v2543 = vrot.slane %v2541, 1
      %v2544 = vsel %vm1387, %v2539, %v2543
      %v2546 = vshrl.u32 %v2328, 16
      %v2548 = vshll.u32 %v2328, 16
      %v2550 = vrot.slane %v2548, 1
      %v2551 = vor.u32 %v2546, %v2550
      %v2553 = vshll.u32 %v2408, 16
      %v2555 = vrot.slane %v2553, 1
      %v2556 = vsel %vm1387, %v2551, %v2555
      %v2558 = vshrl.u32 %v2329, 16
      %v2560 = vshll.u32 %v2329, 16
      %v2562 = vrot.slane %v2560, 1
      %v2563 = vor.u32 %v2558, %v2562
      %v2565 = vshll.u32 %v2409, 16
      %v2567 = vrot.slane %v2565, 1
      %v2568 = vsel %vm1387, %v2563, %v2567
      %v2570 = vshrl.u32 %v2330, 16
      %v2572 = vshll.u32 %v2330, 16
      %v2574 = vrot.slane %v2572, 1
      %v2575 = vor.u32 %v2570, %v2574
      %v2577 = vshll.u32 %v2410, 16
      %v2579 = vrot.slane %v2577, 1
      %v2580 = vsel %vm1387, %v2575, %v2579
      %v2582 = vshrl.u32 %v2331, 16
      %v2584 = vshll.u32 %v2331, 16
      %v2586 = vrot.slane %v2584, 1
      %v2587 = vor.u32 %v2582, %v2586
      %v2589 = vshll.u32 %v2411, 16
      %v2591 = vrot.slane %v2589, 1
      %v2592 = vsel %vm1387, %v2587, %v2591
      %v2594 = vshrl.u32 %v2332, 16
      %v2596 = vshll.u32 %v2332, 16
      %v2598 = vrot.slane %v2596, 1
      %v2599 = vor.u32 %v2594, %v2598
      %v2601 = vshll.u32 %v2412, 16
      %v2603 = vrot.slane %v2601, 1
      %v2604 = vsel %vm1387, %v2599, %v2603
      %2605 = vrot.lane.b32.xlu0 %v2424, 28
      %v2606 = vpop.permute.xlu0 %2605
      %2607 = vrot.lane.b32.xlu0 %v2436, 28
      %v2608 = vpop.permute.xlu0 %2607
      %2609 = vrot.lane.b32.xlu0 %v2448, 28
      %v2610 = vpop.permute.xlu0 %2609
      %2611 = vrot.lane.b32.xlu0 %v2460, 28
      %v2612 = vpop.permute.xlu0 %2611
      %2613 = vrot.lane.b32.xlu0 %v2472, 28
      %v2614 = vpop.permute.xlu0 %2613
      %2615 = vrot.lane.b32.xlu0 %v2484, 28
      %v2616 = vpop.permute.xlu0 %2615
      %2617 = vrot.lane.b32.xlu0 %v2496, 28
      %v2618 = vpop.permute.xlu0 %2617
      %2619 = vrot.lane.b32.xlu0 %v2508, 28
      %v2620 = vpop.permute.xlu0 %2619
      %2621 = vrot.lane.b32.xlu0 %v2520, 28
      %v2622 = vpop.permute.xlu0 %2621
      %2623 = vrot.lane.b32.xlu0 %v2532, 28
      %v2624 = vpop.permute.xlu0 %2623
      %2625 = vrot.lane.b32.xlu0 %v2544, 28
      %v2626 = vpop.permute.xlu0 %2625
      %2627 = vrot.lane.b32.xlu0 %v2556, 28
      %v2628 = vpop.permute.xlu0 %2627
      %2629 = vrot.lane.b32.xlu0 %v2568, 28
      %v2630 = vpop.permute.xlu0 %2629
      %2631 = vrot.lane.b32.xlu0 %v2580, 28
      %v2632 = vpop.permute.xlu0 %2631
      %2633 = vrot.lane.b32.xlu0 %v2592, 28
      %v2634 = vpop.permute.xlu0 %2633
      %2635 = vrot.lane.b32.xlu0 %v2604, 28
      %v2636 = vpop.permute.xlu0 %2635
      %v2653 = vunpack.c.l.b16 %v1243
      %v2654 = vunpack.c.l.b16 %v1244
      %v2655 = vunpack.c.l.b16 %v1245
      %v2656 = vunpack.c.l.b16 %v1246
      %v2657 = vunpack.c.l.b16 %v1247
      %v2658 = vunpack.c.l.b16 %v1248
      %v2659 = vunpack.c.l.b16 %v1249
      %v2660 = vunpack.c.l.b16 %v1250
      %v2661 = vunpack.c.l.b16 %v1251
      %v2662 = vunpack.c.l.b16 %v1252
      %v2663 = vunpack.c.l.b16 %v1253
      %v2664 = vunpack.c.l.b16 %v1254
      %v2665 = vunpack.c.l.b16 %v1255
      %v2666 = vunpack.c.l.b16 %v1256
      %v2667 = vunpack.c.l.b16 %v1257
      %v2668 = vunpack.c.l.b16 %v1258
      %v2669 = vpack.c.b16 %v2286, %v2653
      %v2670 = vpack.c.b16 %v2288, %v2654
      %v2671 = vpack.c.b16 %v2290, %v2655
      %v2672 = vpack.c.b16 %v2292, %v2656
      %v2673 = vpack.c.b16 %v2294, %v2657
      %v2674 = vpack.c.b16 %v2296, %v2658
      %v2675 = vpack.c.b16 %v2298, %v2659
      %v2676 = vpack.c.b16 %v2300, %v2660
      %v2677 = vpack.c.b16 %v2302, %v2661
      %v2678 = vpack.c.b16 %v2304, %v2662
      %v2679 = vpack.c.b16 %v2306, %v2663
      %v2680 = vpack.c.b16 %v2308, %v2664
      %v2681 = vpack.c.b16 %v2310, %v2665
      %v2682 = vpack.c.b16 %v2312, %v2666
      %v2683 = vpack.c.b16 %v2314, %v2667
      %v2684 = vpack.c.b16 %v2316, %v2668
      %v2685 = vrot.slane %v2669, 1
      %v2686 = vrot.slane %v2397, 1
      %v2687 = vsel %vm1660, %v2685, %v2686
      %v2688 = vrot.slane %v2670, 1
      %v2689 = vrot.slane %v2398, 1
      %v2690 = vsel %vm1660, %v2688, %v2689
      %v2691 = vrot.slane %v2671, 1
      %v2692 = vrot.slane %v2399, 1
      %v2693 = vsel %vm1660, %v2691, %v2692
      %v2694 = vrot.slane %v2672, 1
      %v2695 = vrot.slane %v2400, 1
      %v2696 = vsel %vm1660, %v2694, %v2695
      %v2697 = vrot.slane %v2673, 1
      %v2698 = vrot.slane %v2401, 1
      %v2699 = vsel %vm1660, %v2697, %v2698
      %v2700 = vrot.slane %v2674, 1
      %v2701 = vrot.slane %v2402, 1
      %v2702 = vsel %vm1660, %v2700, %v2701
      %v2703 = vrot.slane %v2675, 1
      %v2704 = vrot.slane %v2403, 1
      %v2705 = vsel %vm1660, %v2703, %v2704
      %v2706 = vrot.slane %v2676, 1
      %v2707 = vrot.slane %v2404, 1
      %v2708 = vsel %vm1660, %v2706, %v2707
      %v2709 = vrot.slane %v2677, 1
      %v2710 = vrot.slane %v2405, 1
      %v2711 = vsel %vm1660, %v2709, %v2710
      %v2712 = vrot.slane %v2678, 1
      %v2713 = vrot.slane %v2406, 1
      %v2714 = vsel %vm1660, %v2712, %v2713
      %v2715 = vrot.slane %v2679, 1
      %v2716 = vrot.slane %v2407, 1
      %v2717 = vsel %vm1660, %v2715, %v2716
      %v2718 = vrot.slane %v2680, 1
      %v2719 = vrot.slane %v2408, 1
      %v2720 = vsel %vm1660, %v2718, %v2719
      %v2721 = vrot.slane %v2681, 1
      %v2722 = vrot.slane %v2409, 1
      %v2723 = vsel %vm1660, %v2721, %v2722
      %v2724 = vrot.slane %v2682, 1
      %v2725 = vrot.slane %v2410, 1
      %v2726 = vsel %vm1660, %v2724, %v2725
      %v2727 = vrot.slane %v2683, 1
      %v2728 = vrot.slane %v2411, 1
      %v2729 = vsel %vm1660, %v2727, %v2728
      %v2730 = vrot.slane %v2684, 1
      %v2731 = vrot.slane %v2412, 1
      %v2732 = vsel %vm1660, %v2730, %v2731
      %2733 = vrot.lane.b32.xlu0 %v2687, 32
      %v2734 = vpop.permute.xlu0 %2733
      %2735 = vrot.lane.b32.xlu0 %v2690, 32
      %v2736 = vpop.permute.xlu0 %2735
      %2737 = vrot.lane.b32.xlu0 %v2693, 32
      %v2738 = vpop.permute.xlu0 %2737
      %2739 = vrot.lane.b32.xlu0 %v2696, 32
      %v2740 = vpop.permute.xlu0 %2739
      %2741 = vrot.lane.b32.xlu0 %v2699, 32
      %v2742 = vpop.permute.xlu0 %2741
      %2743 = vrot.lane.b32.xlu0 %v2702, 32
      %v2744 = vpop.permute.xlu0 %2743
      %2745 = vrot.lane.b32.xlu0 %v2705, 32
      %v2746 = vpop.permute.xlu0 %2745
      %2747 = vrot.lane.b32.xlu0 %v2708, 32
      %v2748 = vpop.permute.xlu0 %2747
      %2749 = vrot.lane.b32.xlu0 %v2711, 32
      %v2750 = vpop.permute.xlu0 %2749
      %2751 = vrot.lane.b32.xlu0 %v2714, 32
      %v2752 = vpop.permute.xlu0 %2751
      %2753 = vrot.lane.b32.xlu0 %v2717, 32
      %v2754 = vpop.permute.xlu0 %2753
      %2755 = vrot.lane.b32.xlu0 %v2720, 32
      %v2756 = vpop.permute.xlu0 %2755
      %2757 = vrot.lane.b32.xlu0 %v2723, 32
      %v2758 = vpop.permute.xlu0 %2757
      %2759 = vrot.lane.b32.xlu0 %v2726, 32
      %v2760 = vpop.permute.xlu0 %2759
      %2761 = vrot.lane.b32.xlu0 %v2729, 32
      %v2762 = vpop.permute.xlu0 %2761
      %2763 = vrot.lane.b32.xlu0 %v2732, 32
      %v2764 = vpop.permute.xlu0 %2763
      %vm2765 = vcmask 31744
      %v2767 = vsel %vm2765, %v1323, %v1581
      %v2769 = vsel %vm2765, %v1324, %v1583
      %v2771 = vsel %vm2765, %v1325, %v1585
      %v2773 = vsel %vm2765, %v1326, %v1587
      %v2775 = vsel %vm2765, %v1327, %v1589
      %v2777 = vsel %vm2765, %v1328, %v1591
      %v2779 = vsel %vm2765, %v1329, %v1593
      %v2781 = vsel %vm2765, %v1330, %v1595
      %v2783 = vsel %vm2765, %v1331, %v1597
      %v2785 = vsel %vm2765, %v1332, %v1599
      %v2787 = vsel %vm2765, %v1333, %v1601
      %v2789 = vsel %vm2765, %v1334, %v1603
      %v2791 = vsel %vm2765, %v1335, %v1605
      %v2793 = vsel %vm2765, %v1336, %v1607
      %v2795 = vsel %vm2765, %v1337, %v1609
      %v2797 = vsel %vm2765, %v1338, %v1611
      %vm2798 = vcmask 64512
      %v2800 = vsel %vm2798, %v2767, %v1710
      %v2802 = vsel %vm2798, %v2769, %v1712
      %v2804 = vsel %vm2798, %v2771, %v1714
      %v2806 = vsel %vm2798, %v2773, %v1716
      %v2808 = vsel %vm2798, %v2775, %v1718
      %v2810 = vsel %vm2798, %v2777, %v1720
      %v2812 = vsel %vm2798, %v2779, %v1722
      %v2814 = vsel %vm2798, %v2781, %v1724
      %v2816 = vsel %vm2798, %v2783, %v1726
      %v2818 = vsel %vm2798, %v2785, %v1728
      %v2820 = vsel %vm2798, %v2787, %v1730
      %v2822 = vsel %vm2798, %v2789, %v1732
      %v2824 = vsel %vm2798, %v2791, %v1734
      %v2826 = vsel %vm2798, %v2793, %v1736
      %v2828 = vsel %vm2798, %v2795, %v1738
      %v2830 = vsel %vm2798, %v2797, %v1740
      %vm2831 = vcmask 97280
      %v2833 = vsel %vm2831, %v2800, %v1822
      %v2835 = vsel %vm2831, %v2802, %v1824
      %v2837 = vsel %vm2831, %v2804, %v1826
      %v2839 = vsel %vm2831, %v2806, %v1828
      %v2841 = vsel %vm2831, %v2808, %v1830
      %v2843 = vsel %vm2831, %v2810, %v1832
      %v2845 = vsel %vm2831, %v2812, %v1834
      %v2847 = vsel %vm2831, %v2814, %v1836
      %v2849 = vsel %vm2831, %v2816, %v1838
      %v2851 = vsel %vm2831, %v2818, %v1840
      %v2853 = vsel %vm2831, %v2820, %v1842
      %v2855 = vsel %vm2831, %v2822, %v1844
      %v2857 = vsel %vm2831, %v2824, %v1846
      %v2859 = vsel %vm2831, %v2826, %v1848
      %v2861 = vsel %vm2831, %v2828, %v1850
      %v2863 = vsel %vm2831, %v2830, %v1852
      %vm2864 = vcmask 130048
      %v2866 = vsel %vm2864, %v2833, %v2094
      %v2868 = vsel %vm2864, %v2835, %v2096
      %v2870 = vsel %vm2864, %v2837, %v2098
      %v2872 = vsel %vm2864, %v2839, %v2100
      %v2874 = vsel %vm2864, %v2841, %v2102
      %v2876 = vsel %vm2864, %v2843, %v2104
      %v2878 = vsel %vm2864, %v2845, %v2106
      %v2880 = vsel %vm2864, %v2847, %v2108
      %v2882 = vsel %vm2864, %v2849, %v2110
      %v2884 = vsel %vm2864, %v2851, %v2112
      %v2886 = vsel %vm2864, %v2853, %v2114
      %v2888 = vsel %vm2864, %v2855, %v2116
      %v2890 = vsel %vm2864, %v2857, %v2118
      %v2892 = vsel %vm2864, %v2859, %v2120
      %v2894 = vsel %vm2864, %v2861, %v2122
      %v2896 = vsel %vm2864, %v2863, %v2124
      %vm2897 = vcmask 162816
      %v2899 = vsel %vm2897, %v2866, %v2222
      %v2901 = vsel %vm2897, %v2868, %v2224
      %v2903 = vsel %vm2897, %v2870, %v2226
      %v2905 = vsel %vm2897, %v2872, %v2228
      %v2907 = vsel %vm2897, %v2874, %v2230
      %v2909 = vsel %vm2897, %v2876, %v2232
      %v2911 = vsel %vm2897, %v2878, %v2234
      %v2913 = vsel %vm2897, %v2880, %v2236
      %v2915 = vsel %vm2897, %v2882, %v2238
      %v2917 = vsel %vm2897, %v2884, %v2240
      %v2919 = vsel %vm2897, %v2886, %v2242
      %v2921 = vsel %vm2897, %v2888, %v2244
      %v2923 = vsel %vm2897, %v2890, %v2246
      %v2925 = vsel %vm2897, %v2892, %v2248
      %v2927 = vsel %vm2897, %v2894, %v2250
      %v2929 = vsel %vm2897, %v2896, %v2252
      %vm2930 = vcmask 195584
      %v2932 = vsel %vm2930, %v2899, %v2334
      %v2934 = vsel %vm2930, %v2901, %v2336
      %v2936 = vsel %vm2930, %v2903, %v2338
      %v2938 = vsel %vm2930, %v2905, %v2340
      %v2940 = vsel %vm2930, %v2907, %v2342
      %v2942 = vsel %vm2930, %v2909, %v2344
      %v2944 = vsel %vm2930, %v2911, %v2346
      %v2946 = vsel %vm2930, %v2913, %v2348
      %v2948 = vsel %vm2930, %v2915, %v2350
      %v2950 = vsel %vm2930, %v2917, %v2352
      %v2952 = vsel %vm2930, %v2919, %v2354
      %v2954 = vsel %vm2930, %v2921, %v2356
      %v2956 = vsel %vm2930, %v2923, %v2358
      %v2958 = vsel %vm2930, %v2925, %v2360
      %v2960 = vsel %vm2930, %v2927, %v2362
      %v2962 = vsel %vm2930, %v2929, %v2364
      %vm2963 = vcmask 228352
      %v2965 = vsel %vm2963, %v2932, %v2606
      %v2967 = vsel %vm2963, %v2934, %v2608
      %v2969 = vsel %vm2963, %v2936, %v2610
      %v2971 = vsel %vm2963, %v2938, %v2612
      %v2973 = vsel %vm2963, %v2940, %v2614
      %v2975 = vsel %vm2963, %v2942, %v2616
      %v2977 = vsel %vm2963, %v2944, %v2618
      %v2979 = vsel %vm2963, %v2946, %v2620
      %v2981 = vsel %vm2963, %v2948, %v2622
      %v2983 = vsel %vm2963, %v2950, %v2624
      %v2985 = vsel %vm2963, %v2952, %v2626
      %v2987 = vsel %vm2963, %v2954, %v2628
      %v2989 = vsel %vm2963, %v2956, %v2630
      %v2991 = vsel %vm2963, %v2958, %v2632
      %v2993 = vsel %vm2963, %v2960, %v2634
      %v2995 = vsel %vm2963, %v2962, %v2636
      %vm2996 = vcmask 261120
      %v2998 = vsel %vm2996, %v2965, %v2734
      %v3000 = vsel %vm2996, %v2967, %v2736
      %v3002 = vsel %vm2996, %v2969, %v2738
      %v3004 = vsel %vm2996, %v2971, %v2740
      %v3006 = vsel %vm2996, %v2973, %v2742
      %v3008 = vsel %vm2996, %v2975, %v2744
      %v3010 = vsel %vm2996, %v2977, %v2746
      %v3012 = vsel %vm2996, %v2979, %v2748
      %v3014 = vsel %vm2996, %v2981, %v2750
      %v3016 = vsel %vm2996, %v2983, %v2752
      %v3018 = vsel %vm2996, %v2985, %v2754
      %v3020 = vsel %vm2996, %v2987, %v2756
      %v3022 = vsel %vm2996, %v2989, %v2758
      %v3024 = vsel %vm2996, %v2991, %v2760
      %v3026 = vsel %vm2996, %v2993, %v2762
      %v3028 = vsel %vm2996, %v2995, %v2764
      %v3029 = vld [vmem:[%s1] sm:$0xf]
      %v3030 = vld [vmem:[%s1 + $0x4] sm:$0xf]
      %v3031 = vld [vmem:[%s1 + $0x8] sm:$0xf]
      %v3032 = vld [vmem:[%s1 + $0xc] sm:$0xf]
      %v3033 = vld [vmem:[%s1 + $0x10] sm:$0x3]
      %v3039 = vunpack.c.l.b16 %v3029
      %v3040 = vunpack.c.l.b16 %v3030
      %v3041 = vunpack.c.l.b16 %v3031
      %v3042 = vunpack.c.l.b16 %v3032
      %v3043 = vunpack.c.l.b16 %v3033
      %v3044 = vpack.c.b16 %v3040, %v3039
      %v3045 = vpack.c.b16 %v3042, %v3041
      %v3046 = vpack.c.b16 %v3043, %v3043
      %vm3049 = vcmask 293888
      %v3050 = vsel %vm3049, %v2998, 0
      %v3052 = vsel %vm3049, %v3000, 0
      %v3054 = vsel %vm3049, %v3002, 0
      %v3056 = vsel %vm3049, %v3004, 0
      %v3058 = vsel %vm3049, %v3006, 0
      %v3060 = vsel %vm3049, %v3008, 0
      %v3062 = vsel %vm3049, %v3010, 0
      %v3064 = vsel %vm3049, %v3012, 0
      %v3066 = vsel %vm3049, %v3014, 0
      %v3068 = vsel %vm3049, %v3016, 0
      %v3070 = vsel %vm3049, %v3018, 0
      %v3072 = vsel %vm3049, %v3020, 0
      %v3074 = vsel %vm3049, %v3022, 0
      %v3076 = vsel %vm3049, %v3024, 0
      %v3078 = vsel %vm3049, %v3026, 0
      %v3080 = vsel %vm3049, %v3028, 0
      %vm3082 = vcmask 1041408
      %v3084 = vsel %vm3082, %v3046, 0
      %3086 = vmatprep.subr.bf16.mxu0 0
      %3087 = vmatpush1.bf16.msra.mxu0 %v3044
      %3088 = vmatprep.subr.bf16.mxu0 0
      %3089 = vmatpush1.bf16.msra.mxu0 %v3045
      %3090 = vmatprep.subr.bf16.mxu0 0
      %3091 = vmatpush1.bf16.msra.mxu0 %v3084
      %3092 = vmatprep.subr.bf16.mxu0 0
      %3093 = vmatpush1.bf16.msra.mxu0 0
      %3094 = vmatprep.subr.bf16.mxu0 0
      %3095 = vmatpush1.bf16.msra.mxu0 0
      %3096 = vmatprep.subr.bf16.mxu0 0
      %3097 = vmatpush1.bf16.msra.mxu0 0
      %3098 = vmatprep.subr.bf16.mxu0 0
      %3099 = vmatpush1.bf16.msra.mxu0 0
      %3100 = vmatprep.subr.bf16.mxu0 0
      %3101 = vmatpush1.bf16.msra.mxu0 0
      %3102 = vmatprep.subr.bf16.mxu0 0
      %3103 = vmatpush1.bf16.msra.mxu0 0
      %3104 = vmatprep.subr.bf16.mxu0 0
      %3105 = vmatpush1.bf16.msra.mxu0 0
      %3106 = vmatprep.subr.bf16.mxu0 0
      %3107 = vmatpush1.bf16.msra.mxu0 0
      %3108 = vmatprep.subr.bf16.mxu0 0
      %3109 = vmatpush1.bf16.msra.mxu0 0
      %3110 = vmatprep.subr.bf16.mxu0 0
      %3111 = vmatpush1.bf16.msra.mxu0 0
      %3112 = vmatprep.subr.bf16.mxu0 0
      %3113 = vmatpush1.bf16.msra.mxu0 0
      %3114 = vmatprep.subr.bf16.mxu0 0
      %3115 = vmatpush1.bf16.msra.mxu0 0
      %3116 = vmatprep.subr.bf16.mxu0 0
      %3117 = vmatpush1.bf16.msra.mxu0 0
      %3118 = vmatprep.mubr.bf16.mxu0 0
      %3119 = vmatmul.mubr.bf16.gmra.mrb[0].mxu0 %v3050
      %v3120 = vpop.f32.mrb[0].mxu0
      %v3121 = vadd.f32 0.0, %v3120
      %v3122 = vpop.f32.mrb[0].mxu0
      %v3123 = vpop.f32.mrb[0].mxu0
      %v3124 = vadd.f32 0.0, %v3123
      %v3125 = vpop.f32.mrb[0].mxu0
      %3126 = vmatprep.mubr.bf16.mxu0 0
      %3127 = vmatmul.mubr.bf16.gmra.mrb[0].mxu0 %v3052
      %v3128 = vpop.f32.mrb[0].mxu0
      %v3129 = vadd.f32 0.0, %v3128
      %v3130 = vpop.f32.mrb[0].mxu0
      %v3131 = vpop.f32.mrb[0].mxu0
      %v3132 = vadd.f32 0.0, %v3131
      %v3133 = vpop.f32.mrb[0].mxu0
      %3134 = vmatprep.mubr.bf16.mxu0 0
      %3135 = vmatmul.mubr.bf16.gmra.mrb[0].mxu0 %v3054
      %v3136 = vpop.f32.mrb[0].mxu0
      %v3137 = vadd.f32 0.0, %v3136
      %v3138 = vpop.f32.mrb[0].mxu0
      %v3139 = vpop.f32.mrb[0].mxu0
      %v3140 = vadd.f32 0.0, %v3139
      %v3141 = vpop.f32.mrb[0].mxu0
      %3142 = vmatprep.mubr.bf16.mxu0 0
      %3143 = vmatmul.mubr.bf16.gmra.mrb[0].mxu0 %v3056
      %v3144 = vpop.f32.mrb[0].mxu0
      %v3145 = vadd.f32 0.0, %v3144
      %v3146 = vpop.f32.mrb[0].mxu0
      %v3147 = vpop.f32.mrb[0].mxu0
      %v3148 = vadd.f32 0.0, %v3147
      %v3149 = vpop.f32.mrb[0].mxu0
      %3150 = vmatprep.mubr.bf16.mxu0 0
      %3151 = vmatmul.mubr.bf16.gmra.mrb[0].mxu0 %v3058
      %v3152 = vpop.f32.mrb[0].mxu0
      %v3153 = vadd.f32 0.0, %v3152
      %v3154 = vpop.f32.mrb[0].mxu0
      %v3155 = vpop.f32.mrb[0].mxu0
      %v3156 = vadd.f32 0.0, %v3155
      %v3157 = vpop.f32.mrb[0].mxu0
      %3158 = vmatprep.mubr.bf16.mxu0 0
      %3159 = vmatmul.mubr.bf16.gmra.mrb[0].mxu0 %v3060
      %v3160 = vpop.f32.mrb[0].mxu0
      %v3161 = vadd.f32 0.0, %v3160
      %v3162 = vpop.f32.mrb[0].mxu0
      %v3163 = vpop.f32.mrb[0].mxu0
      %v3164 = vadd.f32 0.0, %v3163
      %v3165 = vpop.f32.mrb[0].mxu0
      %3166 = vmatprep.mubr.bf16.mxu0 0
      %3167 = vmatmul.mubr.bf16.gmra.mrb[0].mxu0 %v3062
      %v3168 = vpop.f32.mrb[0].mxu0
      %v3169 = vadd.f32 0.0, %v3168
      %v3170 = vpop.f32.mrb[0].mxu0
      %v3171 = vpop.f32.mrb[0].mxu0
      %v3172 = vadd.f32 0.0, %v3171
      %v3173 = vpop.f32.mrb[0].mxu0
      %3174 = vmatprep.mubr.bf16.mxu0 0
      %3175 = vmatmul.mubr.bf16.gmra.mrb[0].mxu0 %v3064
      %v3176 = vpop.f32.mrb[0].mxu0
      %v3177 = vadd.f32 0.0, %v3176
      %v3178 = vpop.f32.mrb[0].mxu0
      %v3179 = vpop.f32.mrb[0].mxu0
      %v3180 = vadd.f32 0.0, %v3179
      %v3181 = vpop.f32.mrb[0].mxu0
      %3182 = vmatprep.mubr.bf16.mxu0 0
      %3183 = vmatmul.mubr.bf16.gmra.mrb[0].mxu0 %v3066
      %v3184 = vpop.f32.mrb[0].mxu0
      %v3185 = vadd.f32 0.0, %v3184
      %v3186 = vpop.f32.mrb[0].mxu0
      %v3187 = vpop.f32.mrb[0].mxu0
      %v3188 = vadd.f32 0.0, %v3187
      %v3189 = vpop.f32.mrb[0].mxu0
      %3190 = vmatprep.mubr.bf16.mxu0 0
      %3191 = vmatmul.mubr.bf16.gmra.mrb[0].mxu0 %v3068
      %v3192 = vpop.f32.mrb[0].mxu0
      %v3193 = vadd.f32 0.0, %v3192
      %v3194 = vpop.f32.mrb[0].mxu0
      %v3195 = vpop.f32.mrb[0].mxu0
      %v3196 = vadd.f32 0.0, %v3195
      %v3197 = vpop.f32.mrb[0].mxu0
      %3198 = vmatprep.mubr.bf16.mxu0 0
      %3199 = vmatmul.mubr.bf16.gmra.mrb[0].mxu0 %v3070
      %v3200 = vpop.f32.mrb[0].mxu0
      %v3201 = vadd.f32 0.0, %v3200
      %v3202 = vpop.f32.mrb[0].mxu0
      %v3203 = vpop.f32.mrb[0].mxu0
      %v3204 = vadd.f32 0.0, %v3203
      %v3205 = vpop.f32.mrb[0].mxu0
      %3206 = vmatprep.mubr.bf16.mxu0 0
      %3207 = vmatmul.mubr.bf16.gmra.mrb[0].mxu0 %v3072
      %v3208 = vpop.f32.mrb[0].mxu0
      %v3209 = vadd.f32 0.0, %v3208
      %v3210 = vpop.f32.mrb[0].mxu0
      %v3211 = vpop.f32.mrb[0].mxu0
      %v3212 = vadd.f32 0.0, %v3211
      %v3213 = vpop.f32.mrb[0].mxu0
      %3214 = vmatprep.mubr.bf16.mxu0 0
      %3215 = vmatmul.mubr.bf16.gmra.mrb[0].mxu0 %v3074
      %v3216 = vpop.f32.mrb[0].mxu0
      %v3217 = vadd.f32 0.0, %v3216
      %v3218 = vpop.f32.mrb[0].mxu0
      %v3219 = vpop.f32.mrb[0].mxu0
      %v3220 = vadd.f32 0.0, %v3219
      %v3221 = vpop.f32.mrb[0].mxu0
      %3222 = vmatprep.mubr.bf16.mxu0 0
      %3223 = vmatmul.mubr.bf16.gmra.mrb[0].mxu0 %v3076
      %v3224 = vpop.f32.mrb[0].mxu0
      %v3225 = vadd.f32 0.0, %v3224
      %v3226 = vpop.f32.mrb[0].mxu0
      %v3227 = vpop.f32.mrb[0].mxu0
      %v3228 = vadd.f32 0.0, %v3227
      %v3229 = vpop.f32.mrb[0].mxu0
      %3230 = vmatprep.mubr.bf16.mxu0 0
      %3231 = vmatmul.mubr.bf16.gmra.mrb[0].mxu0 %v3078
      %v3232 = vpop.f32.mrb[0].mxu0
      %v3233 = vadd.f32 0.0, %v3232
      %v3234 = vpop.f32.mrb[0].mxu0
      %v3235 = vpop.f32.mrb[0].mxu0
      %v3236 = vadd.f32 0.0, %v3235
      %v3237 = vpop.f32.mrb[0].mxu0
      %3238 = vmatprep.mubr.bf16.mxu0 0
      %3239 = vmatmul.mubr.bf16.gmra.mrb[0].mxu0 %v3080
      %v3240 = vpop.f32.mrb[0].mxu0
      %v3241 = vadd.f32 0.0, %v3240
      %v3242 = vpop.f32.mrb[0].mxu0
      %v3243 = vpop.f32.mrb[0].mxu0
      %v3244 = vadd.f32 0.0, %v3243
      %v3245 = vpop.f32.mrb[0].mxu0
      %3246 = vdwg.mxu0
      %v3247 = vpack.c.bf16 %v3124, %v3121
      %v3248 = vpack.c.bf16 %v3132, %v3129
      %v3249 = vpack.c.bf16 %v3140, %v3137
      %v3250 = vpack.c.bf16 %v3148, %v3145
      %v3251 = vpack.c.bf16 %v3156, %v3153
      %v3252 = vpack.c.bf16 %v3164, %v3161
      %v3253 = vpack.c.bf16 %v3172, %v3169
      %v3254 = vpack.c.bf16 %v3180, %v3177
      %v3255 = vpack.c.bf16 %v3188, %v3185
      %v3256 = vpack.c.bf16 %v3196, %v3193
      %v3257 = vpack.c.bf16 %v3204, %v3201
      %v3258 = vpack.c.bf16 %v3212, %v3209
      %v3259 = vpack.c.bf16 %v3220, %v3217
      %v3260 = vpack.c.bf16 %v3228, %v3225
      %v3261 = vpack.c.bf16 %v3236, %v3233
      %v3262 = vpack.c.bf16 %v3244, %v3241
      %v3279 = vunpack.c.l.b16 %v3247
      %v3280 = vunpack.c.h.b16 %v3247
      %v3281 = vunpack.c.l.b16 %v3248
      %v3282 = vunpack.c.h.b16 %v3248
      %v3283 = vunpack.c.l.b16 %v3249
      %v3284 = vunpack.c.h.b16 %v3249
      %v3285 = vunpack.c.l.b16 %v3250
      %v3286 = vunpack.c.h.b16 %v3250
      %v3287 = vunpack.c.l.b16 %v3251
      %v3288 = vunpack.c.h.b16 %v3251
      %v3289 = vunpack.c.l.b16 %v3252
      %v3290 = vunpack.c.h.b16 %v3252
      %v3291 = vunpack.c.l.b16 %v3253
      %v3292 = vunpack.c.h.b16 %v3253
      %v3293 = vunpack.c.l.b16 %v3254
      %v3294 = vunpack.c.h.b16 %v3254
      %v3295 = vunpack.c.l.b16 %v3255
      %v3296 = vunpack.c.h.b16 %v3255
      %v3297 = vunpack.c.l.b16 %v3256
      %v3298 = vunpack.c.h.b16 %v3256
      %v3299 = vunpack.c.l.b16 %v3257
      %v3300 = vunpack.c.h.b16 %v3257
      %v3301 = vunpack.c.l.b16 %v3258
      %v3302 = vunpack.c.h.b16 %v3258
      %v3303 = vunpack.c.l.b16 %v3259
      %v3304 = vunpack.c.h.b16 %v3259
      %v3305 = vunpack.c.l.b16 %v3260
      %v3306 = vunpack.c.h.b16 %v3260
      %v3307 = vunpack.c.l.b16 %v3261
      %v3308 = vunpack.c.h.b16 %v3261
      %v3309 = vunpack.c.l.b16 %v3262
      %v3310 = vunpack.c.h.b16 %v3262
      %v3311 = vpack.c.b16 %v3279, %v3279
      %v3312 = vpack.c.b16 %v3280, %v3280
      %v3313 = vpack.c.b16 %v3281, %v3281
      %v3314 = vpack.c.b16 %v3282, %v3282
      %v3315 = vpack.c.b16 %v3283, %v3283
      %v3316 = vpack.c.b16 %v3284, %v3284
      %v3317 = vpack.c.b16 %v3285, %v3285
      %v3318 = vpack.c.b16 %v3286, %v3286
      %v3319 = vpack.c.b16 %v3287, %v3287
      %v3320 = vpack.c.b16 %v3288, %v3288
      %v3321 = vpack.c.b16 %v3289, %v3289
      %v3322 = vpack.c.b16 %v3290, %v3290
      %v3323 = vpack.c.b16 %v3291, %v3291
      %v3324 = vpack.c.b16 %v3292, %v3292
      %v3325 = vpack.c.b16 %v3293, %v3293
      %v3326 = vpack.c.b16 %v3294, %v3294
      %v3327 = vpack.c.b16 %v3295, %v3295
      %v3328 = vpack.c.b16 %v3296, %v3296
      %v3329 = vpack.c.b16 %v3297, %v3297
      %v3330 = vpack.c.b16 %v3298, %v3298
      %v3331 = vpack.c.b16 %v3299, %v3299
      %v3332 = vpack.c.b16 %v3300, %v3300
      %v3333 = vpack.c.b16 %v3301, %v3301
      %v3334 = vpack.c.b16 %v3302, %v3302
      %v3335 = vpack.c.b16 %v3303, %v3303
      %v3336 = vpack.c.b16 %v3304, %v3304
      %v3337 = vpack.c.b16 %v3305, %v3305
      %v3338 = vpack.c.b16 %v3306, %v3306
      %v3339 = vpack.c.b16 %v3307, %v3307
      %v3340 = vpack.c.b16 %v3308, %v3308
      %v3341 = vpack.c.b16 %v3309, %v3309
      %v3342 = vpack.c.b16 %v3310, %v3310
      %3375 = vst.msk [vmem:[%s231] sm:$0xf] %vm411, %v3311
      %3376 = vst.msk [vmem:[%s231 + $0x4] sm:$0xf] %vm411, %v3312
      %3377 = vst.msk [vmem:[%s231 + $0x8] sm:$0xf] %vm411, %v3313
      %3378 = vst.msk [vmem:[%s231 + $0xc] sm:$0xf] %vm411, %v3314
      %3379 = vst.msk [vmem:[%s231 + $0x10] sm:$0xf] %vm411, %v3315
      %3380 = vst.msk [vmem:[%s231 + $0x14] sm:$0xf] %vm411, %v3316
      %3381 = vst.msk [vmem:[%s231 + $0x18] sm:$0xf] %vm411, %v3317
      %3382 = vst.msk [vmem:[%s231 + $0x1c] sm:$0xf] %vm411, %v3318
      %3383 = vst.msk [vmem:[%s231 + $0x20] sm:$0xf] %vm411, %v3319
      %3384 = vst.msk [vmem:[%s231 + $0x24] sm:$0xf] %vm411, %v3320
      %3385 = vst.msk [vmem:[%s231 + $0x28] sm:$0xf] %vm411, %v3321
      %3386 = vst.msk [vmem:[%s231 + $0x2c] sm:$0xf] %vm411, %v3322
      %3387 = vst.msk [vmem:[%s231 + $0x30] sm:$0xf] %vm411, %v3323
      %3388 = vst.msk [vmem:[%s231 + $0x34] sm:$0xf] %vm411, %v3324
      %3389 = vst.msk [vmem:[%s231 + $0x38] sm:$0xf] %vm411, %v3325
      %3390 = vst.msk [vmem:[%s231 + $0x3c] sm:$0xf] %vm411, %v3326
      %3391 = vst.msk [vmem:[%s231 + $0x40] sm:$0xf] %vm411, %v3327
      %3392 = vst.msk [vmem:[%s231 + $0x44] sm:$0xf] %vm411, %v3328
      %3393 = vst.msk [vmem:[%s231 + $0x48] sm:$0xf] %vm411, %v3329
      %3394 = vst.msk [vmem:[%s231 + $0x4c] sm:$0xf] %vm411, %v3330
      %3395 = vst.msk [vmem:[%s231 + $0x50] sm:$0xf] %vm411, %v3331
      %3396 = vst.msk [vmem:[%s231 + $0x54] sm:$0xf] %vm411, %v3332
      %3397 = vst.msk [vmem:[%s231 + $0x58] sm:$0xf] %vm411, %v3333
      %3398 = vst.msk [vmem:[%s231 + $0x5c] sm:$0xf] %vm411, %v3334
      %3399 = vst.msk [vmem:[%s231 + $0x60] sm:$0xf] %vm411, %v3335
      %3400 = vst.msk [vmem:[%s231 + $0x64] sm:$0xf] %vm411, %v3336
      %3401 = vst.msk [vmem:[%s231 + $0x68] sm:$0xf] %vm411, %v3337
      %3402 = vst.msk [vmem:[%s231 + $0x6c] sm:$0xf] %vm411, %v3338
      %3403 = vst.msk [vmem:[%s231 + $0x70] sm:$0xf] %vm411, %v3339
      %3404 = vst.msk [vmem:[%s231 + $0x74] sm:$0xf] %vm411, %v3340
      %3405 = vst.msk [vmem:[%s231 + $0x78] sm:$0xf] %vm411, %v3341
      %3406 = vst.msk [vmem:[%s231 + $0x7c] sm:$0xf] %vm411, %v3342
      %v3407 = vsel %vm2765, %v3121, 0.0
      %v3408 = vsel %vm2765, %v3124, 0.0
      %v3409 = vadd.f32 %v3407, %v3408
      %v3410 = vsel %vm2765, %v3129, 0.0
      %v3411 = vadd.f32 %v3409, %v3410
      %v3412 = vsel %vm2765, %v3132, 0.0
      %v3413 = vadd.f32 %v3411, %v3412
      %v3414 = vsel %vm2765, %v3137, 0.0
      %v3415 = vadd.f32 %v3413, %v3414
      %v3416 = vsel %vm2765, %v3140, 0.0
      %v3417 = vadd.f32 %v3415, %v3416
      %v3418 = vsel %vm2765, %v3145, 0.0
      %v3419 = vadd.f32 %v3417, %v3418
      %v3420 = vsel %vm2765, %v3148, 0.0
      %v3421 = vadd.f32 %v3419, %v3420
      %v3422 = vsel %vm2765, %v3153, 0.0
      %v3423 = vadd.f32 %v3421, %v3422
      %v3424 = vsel %vm2765, %v3156, 0.0
      %v3425 = vadd.f32 %v3423, %v3424
      %v3426 = vsel %vm2765, %v3161, 0.0
      %v3427 = vadd.f32 %v3425, %v3426
      %v3428 = vsel %vm2765, %v3164, 0.0
      %v3429 = vadd.f32 %v3427, %v3428
      %v3430 = vsel %vm2765, %v3169, 0.0
      %v3431 = vadd.f32 %v3429, %v3430
      %v3432 = vsel %vm2765, %v3172, 0.0
      %v3433 = vadd.f32 %v3431, %v3432
      %v3434 = vsel %vm2765, %v3177, 0.0
      %v3435 = vadd.f32 %v3433, %v3434
      %v3436 = vsel %vm2765, %v3180, 0.0
      %v3437 = vadd.f32 %v3435, %v3436
      %v3438 = vsel %vm2765, %v3185, 0.0
      %v3439 = vadd.f32 %v3437, %v3438
      %v3440 = vsel %vm2765, %v3188, 0.0
      %v3441 = vadd.f32 %v3439, %v3440
      %v3442 = vsel %vm2765, %v3193, 0.0
      %v3443 = vadd.f32 %v3441, %v3442
      %v3444 = vsel %vm2765, %v3196, 0.0
      %v3445 = vadd.f32 %v3443, %v3444
      %v3446 = vsel %vm2765, %v3201, 0.0
      %v3447 = vadd.f32 %v3445, %v3446
      %v3448 = vsel %vm2765, %v3204, 0.0
      %v3449 = vadd.f32 %v3447, %v3448
      %v3450 = vsel %vm2765, %v3209, 0.0
      %v3451 = vadd.f32 %v3449, %v3450
      %v3452 = vsel %vm2765, %v3212, 0.0
      %v3453 = vadd.f32 %v3451, %v3452
      %v3454 = vsel %vm2765, %v3217, 0.0
      %v3455 = vadd.f32 %v3453, %v3454
      %v3456 = vsel %vm2765, %v3220, 0.0
      %v3457 = vadd.f32 %v3455, %v3456
      %v3458 = vsel %vm2765, %v3225, 0.0
      %v3459 = vadd.f32 %v3457, %v3458
      %v3460 = vsel %vm2765, %v3228, 0.0
      %v3461 = vadd.f32 %v3459, %v3460
      %v3462 = vsel %vm2765, %v3233, 0.0
      %v3463 = vadd.f32 %v3461, %v3462
      %v3464 = vsel %vm2765, %v3236, 0.0
      %v3465 = vadd.f32 %v3463, %v3464
      %v3466 = vsel %vm2765, %v3241, 0.0
      %v3467 = vadd.f32 %v3465, %v3466
      %v3468 = vsel %vm2765, %v3244, 0.0
      %v3469 = vadd.f32 %v3467, %v3468
      %v3470 = vrot.slane %v3469, 4
      %v3471 = vadd.f32 %v3469, %v3470
      %v3472 = vrot.slane %v3471, 2
      %v3473 = vadd.f32 %v3471, %v3472
      %v3474 = vrot.slane %v3473, 1
      %v3475 = vadd.f32 %v3473, %v3474
      %v3476 = vadd.f32 %v3475, 0.0
      %v3477 = vmul.f32 %v3121, %v3121
      %v3478 = vmul.f32 %v3124, %v3124
      %v3479 = vmul.f32 %v3129, %v3129
      %v3480 = vmul.f32 %v3132, %v3132
      %v3481 = vmul.f32 %v3137, %v3137
      %v3482 = vmul.f32 %v3140, %v3140
      %v3483 = vmul.f32 %v3145, %v3145
      %v3484 = vmul.f32 %v3148, %v3148
      %v3485 = vmul.f32 %v3153, %v3153
      %v3486 = vmul.f32 %v3156, %v3156
      %v3487 = vmul.f32 %v3161, %v3161
      %v3488 = vmul.f32 %v3164, %v3164
      %v3489 = vmul.f32 %v3169, %v3169
      %v3490 = vmul.f32 %v3172, %v3172
      %v3491 = vmul.f32 %v3177, %v3177
      %v3492 = vmul.f32 %v3180, %v3180
      %v3493 = vmul.f32 %v3185, %v3185
      %v3494 = vmul.f32 %v3188, %v3188
      %v3495 = vmul.f32 %v3193, %v3193
      %v3496 = vmul.f32 %v3196, %v3196
      %v3497 = vmul.f32 %v3201, %v3201
      %v3498 = vmul.f32 %v3204, %v3204
      %v3499 = vmul.f32 %v3209, %v3209
      %v3500 = vmul.f32 %v3212, %v3212
      %v3501 = vmul.f32 %v3217, %v3217
      %v3502 = vmul.f32 %v3220, %v3220
      %v3503 = vmul.f32 %v3225, %v3225
      %v3504 = vmul.f32 %v3228, %v3228
      %v3505 = vmul.f32 %v3233, %v3233
      %v3506 = vmul.f32 %v3236, %v3236
      %v3507 = vmul.f32 %v3241, %v3241
      %v3508 = vmul.f32 %v3244, %v3244
      %v3509 = vsel %vm2765, %v3477, 0.0
      %v3510 = vsel %vm2765, %v3478, 0.0
      %v3511 = vadd.f32 %v3509, %v3510
      %v3512 = vsel %vm2765, %v3479, 0.0
      %v3513 = vadd.f32 %v3511, %v3512
      %v3514 = vsel %vm2765, %v3480, 0.0
      %v3515 = vadd.f32 %v3513, %v3514
      %v3516 = vsel %vm2765, %v3481, 0.0
      %v3517 = vadd.f32 %v3515, %v3516
      %v3518 = vsel %vm2765, %v3482, 0.0
      %v3519 = vadd.f32 %v3517, %v3518
      %v3520 = vsel %vm2765, %v3483, 0.0
      %v3521 = vadd.f32 %v3519, %v3520
      %v3522 = vsel %vm2765, %v3484, 0.0
      %v3523 = vadd.f32 %v3521, %v3522
      %v3524 = vsel %vm2765, %v3485, 0.0
      %v3525 = vadd.f32 %v3523, %v3524
      %v3526 = vsel %vm2765, %v3486, 0.0
      %v3527 = vadd.f32 %v3525, %v3526
      %v3528 = vsel %vm2765, %v3487, 0.0
      %v3529 = vadd.f32 %v3527, %v3528
      %v3530 = vsel %vm2765, %v3488, 0.0
      %v3531 = vadd.f32 %v3529, %v3530
      %v3532 = vsel %vm2765, %v3489, 0.0
      %v3533 = vadd.f32 %v3531, %v3532
      %v3534 = vsel %vm2765, %v3490, 0.0
      %v3535 = vadd.f32 %v3533, %v3534
      %v3536 = vsel %vm2765, %v3491, 0.0
      %v3537 = vadd.f32 %v3535, %v3536
      %v3538 = vsel %vm2765, %v3492, 0.0
      %v3539 = vadd.f32 %v3537, %v3538
      %v3540 = vsel %vm2765, %v3493, 0.0
      %v3541 = vadd.f32 %v3539, %v3540
      %v3542 = vsel %vm2765, %v3494, 0.0
      %v3543 = vadd.f32 %v3541, %v3542
      %v3544 = vsel %vm2765, %v3495, 0.0
      %v3545 = vadd.f32 %v3543, %v3544
      %v3546 = vsel %vm2765, %v3496, 0.0
      %v3547 = vadd.f32 %v3545, %v3546
      %v3548 = vsel %vm2765, %v3497, 0.0
      %v3549 = vadd.f32 %v3547, %v3548
      %v3550 = vsel %vm2765, %v3498, 0.0
      %v3551 = vadd.f32 %v3549, %v3550
      %v3552 = vsel %vm2765, %v3499, 0.0
      %v3553 = vadd.f32 %v3551, %v3552
      %v3554 = vsel %vm2765, %v3500, 0.0
      %v3555 = vadd.f32 %v3553, %v3554
      %v3556 = vsel %vm2765, %v3501, 0.0
      %v3557 = vadd.f32 %v3555, %v3556
      %v3558 = vsel %vm2765, %v3502, 0.0
      %v3559 = vadd.f32 %v3557, %v3558
      %v3560 = vsel %vm2765, %v3503, 0.0
      %v3561 = vadd.f32 %v3559, %v3560
      %v3562 = vsel %vm2765, %v3504, 0.0
      %v3563 = vadd.f32 %v3561, %v3562
      %v3564 = vsel %vm2765, %v3505, 0.0
      %v3565 = vadd.f32 %v3563, %v3564
      %v3566 = vsel %vm2765, %v3506, 0.0
      %v3567 = vadd.f32 %v3565, %v3566
      %v3568 = vsel %vm2765, %v3507, 0.0
      %v3569 = vadd.f32 %v3567, %v3568
      %v3570 = vsel %vm2765, %v3508, 0.0
      %v3571 = vadd.f32 %v3569, %v3570
      %v3572 = vrot.slane %v3571, 4
      %v3573 = vadd.f32 %v3571, %v3572
      %v3574 = vrot.slane %v3573, 2
      %v3575 = vadd.f32 %v3573, %v3574
      %v3576 = vrot.slane %v3575, 1
      %v3577 = vadd.f32 %v3575, %v3576
      %v3578 = vadd.f32 %v3577, 0.0
      %vm3579 = vcmask 1040384
      %v3580 = vsel %vm3579, %v3476, %v3578
      %vm3581 = vcmask 25600
      %3582 = vst.msk [vmem:[%s235] sm:$0x3] %vm3581, %v3580
      %p3583 = scmp.lt.s32.totalorder %s17, 1
      %s3584 = scalar_select %p3583, %s17, 1
      %s3585 = smul.addr %s3584, 32
      %s3586 = smul.addr %s3585, 4
      %s3587 = scalar_lea.vmem %s4, %s3586
      %p3588 = scmp.lt.s32.totalorder %s17, 1
      %s3589 = scalar_select %p3588, %s17, 1
      %s3590 = smul.addr %s3589, 2
      %s3591 = scalar_lea.vmem %s5, %s3590
      // Predicated region
      $region37: #{residual_block.4} parent=35 // pred_check
        %p3592 = pneg %p124
      $region38: #{residual_block.4} parent=35 // pred_check_branch
        %3594 = sbr.rel (%p3592) target = $region40
      $region39: #{residual_block.4} parent=35 // pred_region
        _
      $region40: #{residual_block.4} parent=35 // pred_fallthru
        _
      // Predicated region
      $region41: #{residual_block.4} parent=35 // pred_check
        %p3595 = pneg %p150
      $region42: #{residual_block.4} parent=35 // pred_check_branch
        %3597 = sbr.rel (%p3595) target = $region44
      $region43: #{residual_block.4} parent=35 // pred_region
        _
      $region44: #{residual_block.4} parent=35 // pred_fallthru
        _
    $region36: #{residual_block.4} parent=5 // pred_fallthru
      _
    %p3598 = scmp.le.s32.totalorder 2, %s12
    // Predicated region
    $region45: #{residual_block.4} parent=5 // pred_check
      %p3599 = pneg %p3598
    $region46: #{residual_block.4} parent=5 // pred_check_branch
      %3601 = sbr.rel (%p3599) target = $region48
    $region47: #{residual_block.4} parent=5 // pred_region
      %s3602 = ssub.s32 %s12, 2
      // Predicated region
      $region49: #{residual_block.4} parent=47 // pred_check
        %p3603 = pneg %p130
      $region50: #{residual_block.4} parent=47 // pred_check_branch
        %3605 = sbr.rel (%p3603) target = $region52
      $region51: #{residual_block.4} parent=47 // pred_region
        %p3606 = scmp.lt.s32.totalorder %s18, 1
        %s3607 = scalar_select %p3606, %s18, 1
        %s3608 = smul.addr %s3607, 32
        %s3609 = smul.addr %s3608, 4
        %s3610 = scalar_lea.vmem %s4, %s3609
      $region52: #{residual_block.4} parent=47 // pred_fallthru
        _
      // Predicated region
      $region53: #{residual_block.4} parent=47 // pred_check
        %p3611 = pneg %p156
      $region54: #{residual_block.4} parent=47 // pred_check_branch
        %3613 = sbr.rel (%p3611) target = $region56
      $region55: #{residual_block.4} parent=47 // pred_region
        %p3614 = scmp.lt.s32.totalorder %s18, 1
        %s3615 = scalar_select %p3614, %s18, 1
        %s3616 = smul.addr %s3615, 2
        %s3617 = scalar_lea.vmem %s5, %s3616
      $region56: #{residual_block.4} parent=47 // pred_fallthru
        _
    $region48: #{residual_block.4} parent=5 // pred_fallthru
      _
  $region6: #{residual_block.4} parent=0 // loop_footer
    %s16 = sadd.s32 1, %s12
  $region7: #{residual_block.4} parent=0 // loop_footer_branch
    %11 = sbr.rel target = $region3
  $region8: #{residual_block.4} parent=0 // loop_exit
    _

</llo_original>
